<compile_context>
chip_gen: v7x
topology: tpu7x:2x2x1
jax: 0.10.0
libtpu: 0.0.40
codegen_flags: <defaults>
</compile_context>

<pallas_src>
import jax
import jax.numpy as jnp
from jax.experimental import pallas as pl
from jax.experimental.pallas import tpu as pltpu


# Static LeNet / CIFAR geometry (the PyTorch module hard-codes 16*5*5 -> 120).
IMG = 32                     # input H = W
KS = 5                       # conv kernel size
C_IN, C1, C2 = 3, 6, 16      # channels
OH1 = IMG - KS + 1           # 28  conv1 output H/W
PH1 = OH1 // 2               # 14  pool1 output H/W
OH2 = PH1 - KS + 1           # 10  conv2 output H/W
PH2 = OH2 // 2               # 5   pool2 output H/W
F_IN, F1, F2, F3 = C2 * PH2 * PH2, 120, 84, 10   # 400, 120, 84, 10
PADW = 128                   # lane padding for activations / K bands / output


# ----------------------------------------------------------------------------
# Fused Pallas kernel: whole forward pass for TB images per grid step.
# ----------------------------------------------------------------------------
def _lenet_kernel(x_ref, m1c_ref, b1_ref, sw1_ref, m2c_ref, b2_ref, sw2_ref,
                  wf1_ref, bf1_ref, wf2_ref, bf2_ref, wf3_ref, bf3_ref,
                  out_ref, pool_scr):
    """Activation layout: rows = (image, height), lanes = width*channels,
    lane-padded to 128 (pad lanes are exactly zero end-to-end)."""
    f32, bf16 = jnp.float32, jnp.bfloat16
    dot = lambda a, b: jnp.dot(a, b, preferred_element_type=f32)
    TB = x_ref.shape[0]

    def row_pool(wm, n_out):
        # 2x2 row pool: even/odd row max via stride-2 scratch reads.  Valid
        # across the whole (TB*H) row stack because H is even, so image
        # boundaries always align with the even/odd parity.
        pool_scr[0:2 * n_out, :] = wm
        ev = pool_scr[pl.ds(0, n_out, stride=2), :]
        od = pool_scr[pl.ds(1, n_out, stride=2), :]
        return jnp.maximum(ev, od)

    # ---- conv1 + bias + relu: one K-fused banded matmul, M = TB*28 ----------
    x = x_ref[...]                                                   # (TB,32,128) bf16
    xb = jnp.concatenate([x[:, i:i + OH1, :] for i in range(KS)], axis=-1)
    xb = xb.reshape(TB * OH1, KS * PADW)                             # (TB*28, 640)
    a1 = jnp.maximum(dot(xb, m1c_ref[...]) + b1_ref[...], 0.0)       # (TB*28, 168) f32

    # ---- pool1: lane pick via exact 0/1 matmuls, row pick via even/odd max --
    a1b = a1.astype(bf16)
    wm1 = jnp.maximum(dot(a1b, sw1_ref[0]), dot(a1b, sw1_ref[1]))    # (TB*28, 128) f32
    p1 = row_pool(wm1, TB * PH1).astype(bf16).reshape(TB, PH1, PADW)

    # ---- conv2 + bias + relu ------------------------------------------------
    xb2 = jnp.concatenate([p1[:, i:i + OH2, :] for i in range(KS)], axis=-1)
    xb2 = xb2.reshape(TB * OH2, KS * PADW)                           # (TB*10, 640)
    a2 = jnp.maximum(dot(xb2, m2c_ref[...]) + b2_ref[...], 0.0)      # (TB*10, 160) f32

    # ---- pool2 --------------------------------------------------------------
    a2b = a2.astype(bf16)
    wm2 = jnp.maximum(dot(a2b, sw2_ref[0]), dot(a2b, sw2_ref[1]))    # (TB*10, 128) f32
    p2 = row_pool(wm2, TB * PH2).astype(bf16).reshape(TB, PH2, PADW)

    # ---- fc1: torch's NCHW flatten is folded into the per-row weight blocks -
    y = dot(p2[:, 0, :], wf1_ref[0])
    for h in range(1, PH2):
        y = y + dot(p2[:, h, :], wf1_ref[h])
    y = jnp.maximum(y + bf1_ref[...], 0.0)                           # (TB, 120)
    y = jnp.maximum(dot(y.astype(bf16), wf2_ref[...]) + bf2_ref[...], 0.0)   # (TB, 84)
    y = dot(y.astype(bf16), wf3_ref[...]) + bf3_ref[...]             # (TB, 128) padded
    out_ref[...] = y


# ----------------------------------------------------------------------------
# One-time weight repacking (plain JAX, done at init, NOT per forward call).
# ----------------------------------------------------------------------------
def _band_matrices(w, in_w, out_w):
    """w: (OC, C, KH, KW) torch Conv2d weight -> (KH, in_w*C, out_w*OC) f32.

    M[i][(ow+j)*C + c, ow*OC + oc] = w[oc, c, i, j]  (block-Toeplitz per row),
    so  conv_out[oh, ow*OC+oc] = sum_i (X_row[oh+i, :] @ M[i])[ow*OC+oc].
    """
    w = w.astype(jnp.float32)
    oc, c, kh, kw = w.shape
    mats = []
    for i in range(kh):
        m = jnp.zeros((in_w * c, out_w * oc), jnp.float32)
        for j in range(kw):
            shift = jnp.eye(in_w, out_w, k=-j, dtype=jnp.float32)  # 1 at [ow+j, ow]
            m = m + jnp.kron(shift, w[:, :, i, j].T)               # (in_w*C, out_w*OC)
        mats.append(m)
    return jnp.stack(mats)


def pack_params(p):
    """Repack torch-layout parameters into fused-kernel operands (bf16 matmul
    weights, f32 biases); all padding / transposes happen exactly once here."""
    f32, bf16 = jnp.float32, jnp.bfloat16

    def band_concat(w, in_w, out_w):
        m = _band_matrices(w, in_w, out_w)                      # (5, in_w*C, out_w*OC)
        m = jnp.pad(m, ((0, 0), (0, PADW - m.shape[1]), (0, 0)))  # K-pad each band to 128
        return m.reshape(KS * PADW, -1).astype(bf16)            # (640, out_w*OC)

    def pool_cols(hw, ch):
        # Exact 0/1 lane-selection matrices (even / odd output columns),
        # output lane-padded to 128 with zero columns.
        eye = jnp.eye(hw, dtype=f32)
        eyec = jnp.eye(ch, dtype=f32)
        sw = jnp.stack([jnp.kron(eye[:, 0::2], eyec),
                        jnp.kron(eye[:, 1::2], eyec)])          # (2, hw*ch, hw//2*ch)
        sw = jnp.pad(sw, ((0, 0), (0, 0), (0, PADW - sw.shape[2])))
        return sw.astype(bf16)                                  # (2, hw*ch, 128)

    # fc1 rows reordered so the kernel's (h, w*16+c) layout matches
    # torch.flatten's (c, h, w) ordering exactly; lane-padded rows are zero.
    wf1 = (p["fc1_w"].astype(f32)
           .reshape(F1, C2, PH2, PH2)           # (o, c, h, w)
           .transpose(2, 3, 1, 0)               # (h, w, c, o)
           .reshape(PH2, PH2 * C2, F1))         # (5, 80, 120)
    wf1 = jnp.pad(wf1, ((0, 0), (0, PADW - PH2 * C2), (0, 0))).astype(bf16)  # (5,128,120)

    return dict(
        m1c=band_concat(p["conv1_w"], IMG, OH1),                        # (640, 168)
        b1=jnp.tile(p["conv1_b"].astype(f32), OH1).reshape(1, OH1 * C1),
        sw1=pool_cols(OH1, C1),                                         # (2, 168, 128)
        m2c=band_concat(p["conv2_w"], PH1, OH2),                        # (640, 160)
        b2=jnp.tile(p["conv2_b"].astype(f32), OH2).reshape(1, OH2 * C2),
        sw2=pool_cols(OH2, C2),                                         # (2, 160, 128)
        wf1=wf1,
        bf1=p["fc1_b"].astype(f32).reshape(1, F1),
        wf2=p["fc2_w"].astype(f32).T.astype(bf16),                      # (120, 84)
        bf2=p["fc2_b"].astype(f32).reshape(1, F2),
        wf3=jnp.pad(p["fc3_w"].astype(f32).T, ((0, 0), (0, PADW - F3))).astype(bf16),
        bf3=jnp.pad(p["fc3_b"].astype(f32), (0, PADW - F3)).reshape(1, PADW),
    )


# ----------------------------------------------------------------------------
# Forward: one fused pallas_call, TB images per grid step.
# ----------------------------------------------------------------------------
def forward(packed, x_nchw, tb=8):
    B = x_nchw.shape[0]
    Bp = ((B + tb - 1) // tb) * tb          # pad batch to a multiple of tb

    # Per-call NCHW -> (H, W*C) relayout + lane pad + bf16 cast.  NOTE: this is
    # one extra HBM read+write of the input; for throughput pipelines keep the
    # inputs in this layout upstream and feed them directly.
    x = (x_nchw.astype(jnp.float32)
         .transpose(0, 2, 3, 1)
         .reshape(B, IMG, IMG * C_IN))
    x = jnp.pad(x, ((0, Bp - B), (0, 0), (0, PADW - IMG * C_IN)))
    x = x.astype(jnp.bfloat16)                                   # (Bp, 32, 128)

    names = ("m1c", "b1", "sw1", "m2c", "b2", "sw2",
             "wf1", "bf1", "wf2", "bf2", "wf3", "bf3")
    ops = [packed[n] for n in names]

    def whole(a):                     # VMEM-resident whole-array block
        return pl.BlockSpec(a.shape, lambda g, z=(0,) * a.ndim: z)

    flops = 2 * Bp * (
        OH1 * (KS * PADW) * (OH1 * C1)              # conv1 K-fused matmul
        + 2 * OH1 * (OH1 * C1) * PADW               # pool1 lane picks
        + OH2 * (KS * PADW) * (OH2 * C2)            # conv2
        + 2 * OH2 * (OH2 * C2) * PADW               # pool2
        + PH2 * PADW * F1 + F1 * F2 + F2 * PADW)    # fc1..fc3
    w_bytes = sum(int(a.size) * a.dtype.itemsize for a in ops)
    bytes_accessed = int(int(x.size) * x.dtype.itemsize + w_bytes + Bp * PADW * 4)

    out = pl.pallas_call(
        _lenet_kernel,
        out_shape=jax.ShapeDtypeStruct((Bp, PADW), jnp.float32),
        grid=(Bp // tb,),
        in_specs=[pl.BlockSpec((tb, IMG, PADW), lambda g: (g, 0, 0))]
                 + [whole(a) for a in ops],
        out_specs=pl.BlockSpec((tb, PADW), lambda g: (g, 0)),
        scratch_shapes=[pltpu.VMEM((tb * OH1, PADW), jnp.float32)],  # row-pool scratch
        compiler_params=pltpu.CompilerParams(
            dimension_semantics=("parallel",)),
        cost_estimate=pl.CostEstimate(flops=int(flops), transcendentals=0,
                                      bytes_accessed=bytes_accessed),
    )(x, *ops)
    return out[:B, :F3]


# ----------------------------------------------------------------------------
# Parameters (torch-layout) + plain-JAX reference for the self-check.
# ----------------------------------------------------------------------------
def init_params(key):
    ks = jax.random.split(key, 10)

    def w(k, shape, fan_in):
        return jax.random.normal(k, shape, jnp.float32) * (1.0 / fan_in) ** 0.5

    return {
        "conv1_w": w(ks[0], (C1, C_IN, KS, KS), C_IN * KS * KS),
        "conv1_b": w(ks[1], (C1,), C_IN * KS * KS),
        "conv2_w": w(ks[2], (C2, C1, KS, KS), C1 * KS * KS),
        "conv2_b": w(ks[3], (C2,), C1 * KS * KS),
        "fc1_w": w(ks[4], (F1, F_IN), F_IN),
        "fc1_b": w(ks[5], (F1,), F_IN),
        "fc2_w": w(ks[6], (F2, F1), F1),
        "fc2_b": w(ks[7], (F2,), F1),
        "fc3_w": w(ks[8], (F3, F2), F2),
        "fc3_b": w(ks[9], (F3,), F2),
    }


def reference_forward(params, x):
    """Plain-JAX replica of the PyTorch module (numerical check only)."""
    hi = jax.lax.Precision.HIGHEST

    def conv(h, w, b):
        out = jax.lax.conv_general_dilated(
            h, w, window_strides=(1, 1), padding="VALID",
            dimension_numbers=("NCHW", "OIHW", "NCHW"), precision=hi)
        return out + b.reshape(1, -1, 1, 1)

    def pool(h):
        return jax.lax.reduce_window(h, -jnp.inf, jax.lax.max,
                                     (1, 1, 2, 2), (1, 1, 2, 2), "VALID")

    h = pool(jnp.maximum(conv(x, params["conv1_w"], params["conv1_b"]), 0.0))
    h = pool(jnp.maximum(conv(h, params["conv2_w"], params["conv2_b"]), 0.0))
    h = h.reshape(h.shape[0], -1)
    h = jnp.maximum(jnp.dot(h, params["fc1_w"].T, precision=hi) + params["fc1_b"], 0.0)
    h = jnp.maximum(jnp.dot(h, params["fc2_w"].T, precision=hi) + params["fc2_b"], 0.0)
    return jnp.dot(h, params["fc3_w"].T, precision=hi) + params["fc3_b"]


if __name__ == "__main__":
    key = jax.random.PRNGKey(0)
    k_x, k_p = jax.random.split(key)

    B, TB = 10, 8     # batch padded to 16 inside forward -> 2 parallel grid steps
    x = jax.random.normal(k_x, (B, C_IN, IMG, IMG), jnp.float32)  # NCHW like torch

    params = init_params(k_p)
    packed = pack_params(params)          # one-time weight repack (bf16)

    fwd = jax.jit(forward, static_argnames=("tb",))
    out = jax.block_until_ready(fwd(packed, x, tb=TB))
    assert out.shape == (B, F3) and out.dtype == jnp.float32

    ref = reference_forward(params, x)
    err = float(jnp.max(jnp.abs(out - ref)))
    # bf16 matmul operands vs. the f32 HIGHEST-precision reference -> ~1e-2 noise.
    assert err < 5e-2, f"kernel deviates from reference: max|diff|={err}"
    print("KERNEL_OK")
</pallas_src>

<mosaic_0001>
module attributes {stable_mosaic.version = 11 : i64} {
  func.func @_lenet_kernel(%arg0: i32, %arg1: memref<8x32x128xbf16, #tpu.memory_space<vmem>>, %arg2: memref<640x168xbf16, #tpu.memory_space<vmem>>, %arg3: memref<1x168xf32, #tpu.memory_space<vmem>>, %arg4: memref<2x168x128xbf16, #tpu.memory_space<vmem>>, %arg5: memref<640x160xbf16, #tpu.memory_space<vmem>>, %arg6: memref<1x160xf32, #tpu.memory_space<vmem>>, %arg7: memref<2x160x128xbf16, #tpu.memory_space<vmem>>, %arg8: memref<5x128x120xbf16, #tpu.memory_space<vmem>>, %arg9: memref<1x120xf32, #tpu.memory_space<vmem>>, %arg10: memref<120x84xbf16, #tpu.memory_space<vmem>>, %arg11: memref<1x84xf32, #tpu.memory_space<vmem>>, %arg12: memref<84x128xbf16, #tpu.memory_space<vmem>>, %arg13: memref<1x128xf32, #tpu.memory_space<vmem>>, %arg14: memref<8x128xf32, #tpu.memory_space<vmem>>, %arg15: memref<224x128xf32, #tpu.memory_space<vmem>>) attributes {dimension_semantics = [#tpu.dimension_semantics<parallel>], iteration_bounds = array<i64: 2>, scalar_prefetch = 0 : i64, scratch_operands = 1 : i64, tpu.core_type = #tpu.core_type<tc>, window_params = [{transform_indices = @transform_0, window_bounds = array<i64: 8, 32, 128>}, {pipeline_mode = #tpu.pipeline_mode<synchronous>, transform_indices = @transform_1, window_bounds = array<i64: 640, 168>}, {pipeline_mode = #tpu.pipeline_mode<synchronous>, transform_indices = @transform_2, window_bounds = array<i64: 1, 168>}, {pipeline_mode = #tpu.pipeline_mode<synchronous>, transform_indices = @transform_3, window_bounds = array<i64: 2, 168, 128>}, {pipeline_mode = #tpu.pipeline_mode<synchronous>, transform_indices = @transform_4, window_bounds = array<i64: 640, 160>}, {pipeline_mode = #tpu.pipeline_mode<synchronous>, transform_indices = @transform_5, window_bounds = array<i64: 1, 160>}, {pipeline_mode = #tpu.pipeline_mode<synchronous>, transform_indices = @transform_6, window_bounds = array<i64: 2, 160, 128>}, {pipeline_mode = #tpu.pipeline_mode<synchronous>, transform_indices = @transform_7, window_bounds = array<i64: 5, 128, 120>}, {pipeline_mode = #tpu.pipeline_mode<synchronous>, transform_indices = @transform_8, window_bounds = array<i64: 1, 120>}, {pipeline_mode = #tpu.pipeline_mode<synchronous>, transform_indices = @transform_9, window_bounds = array<i64: 120, 84>}, {pipeline_mode = #tpu.pipeline_mode<synchronous>, transform_indices = @transform_10, window_bounds = array<i64: 1, 84>}, {pipeline_mode = #tpu.pipeline_mode<synchronous>, transform_indices = @transform_11, window_bounds = array<i64: 84, 128>}, {pipeline_mode = #tpu.pipeline_mode<synchronous>, transform_indices = @transform_12, window_bounds = array<i64: 1, 128>}, {transform_indices = @transform_13, window_bounds = array<i64: 8, 128>}]} {
    %c0 = arith.constant 0 : index
    %c0_0 = arith.constant 0 : index
    %c0_1 = arith.constant 0 : index
    %0 = vector.load %arg1[%c0, %c0_0, %c0_1] : memref<8x32x128xbf16, #tpu.memory_space<vmem>>, vector<8x32x128xbf16>
    %1 = vector.extract_strided_slice %0 {offsets = [0, 0, 0], sizes = [8, 28, 128], strides = [1, 1, 1]} : vector<8x32x128xbf16> to vector<8x28x128xbf16>
    %2 = vector.extract_strided_slice %0 {offsets = [0, 1, 0], sizes = [8, 28, 128], strides = [1, 1, 1]} : vector<8x32x128xbf16> to vector<8x28x128xbf16>
    %3 = vector.extract_strided_slice %0 {offsets = [0, 2, 0], sizes = [8, 28, 128], strides = [1, 1, 1]} : vector<8x32x128xbf16> to vector<8x28x128xbf16>
    %4 = vector.extract_strided_slice %0 {offsets = [0, 3, 0], sizes = [8, 28, 128], strides = [1, 1, 1]} : vector<8x32x128xbf16> to vector<8x28x128xbf16>
    %5 = vector.extract_strided_slice %0 {offsets = [0, 4, 0], sizes = [8, 28, 128], strides = [1, 1, 1]} : vector<8x32x128xbf16> to vector<8x28x128xbf16>
    %6 = tpu.concatenate %1, %2, %3, %4, %5 in 2 : vector<8x28x128xbf16>, vector<8x28x128xbf16>, vector<8x28x128xbf16>, vector<8x28x128xbf16>, vector<8x28x128xbf16> -> vector<8x28x640xbf16>
    %7 = vector.shape_cast %6 : vector<8x28x640xbf16> to vector<224x640xbf16>
    %c0_2 = arith.constant 0 : index
    %c0_3 = arith.constant 0 : index
    %8 = vector.load %arg2[%c0_2, %c0_3] : memref<640x168xbf16, #tpu.memory_space<vmem>>, vector<640x168xbf16>
    %cst = arith.constant dense<0.000000e+00> : vector<224x168xf32>
    %9 = tpu.matmul %7, %8, %cst {dimension_numbers = #tpu.dot_dimension_numbers<[1], [0], [0], [1], [0, 0, 1, 1], [], []>} : vector<224x640xbf16>, vector<640x168xbf16>, vector<224x168xf32> -> vector<224x168xf32>
    %c0_4 = arith.constant 0 : index
    %c0_5 = arith.constant 0 : index
    %10 = vector.load %arg3[%c0_4, %c0_5] : memref<1x168xf32, #tpu.memory_space<vmem>>, vector<1x168xf32>
    %11 = vector.broadcast %10 : vector<1x168xf32> to vector<224x168xf32>
    %12 = arith.addf %9, %11 : vector<224x168xf32>
    %cst_6 = arith.constant 0.000000e+00 : f32
    %13 = vector.broadcast %cst_6 : f32 to vector<224x168xf32>
    %14 = arith.maximumf %12, %13 : vector<224x168xf32>
    %15 = arith.truncf %14 : vector<224x168xf32> to vector<224x168xbf16>
    %c0_7 = arith.constant 0 : index
    %c0_8 = arith.constant 0 : index
    %c0_9 = arith.constant 0 : index
    %16 = vector.load %arg4[%c0_7, %c0_8, %c0_9] : memref<2x168x128xbf16, #tpu.memory_space<vmem>>, vector<1x168x128xbf16>
    %17 = vector.shape_cast %16 : vector<1x168x128xbf16> to vector<168x128xbf16>
    %cst_10 = arith.constant dense<0.000000e+00> : vector<224x128xf32>
    %18 = tpu.matmul %15, %17, %cst_10 {dimension_numbers = #tpu.dot_dimension_numbers<[1], [0], [0], [1], [0, 0, 1, 1], [], []>} : vector<224x168xbf16>, vector<168x128xbf16>, vector<224x128xf32> -> vector<224x128xf32>
    %c1 = arith.constant 1 : index
    %c0_11 = arith.constant 0 : index
    %c0_12 = arith.constant 0 : index
    %19 = vector.load %arg4[%c1, %c0_11, %c0_12] : memref<2x168x128xbf16, #tpu.memory_space<vmem>>, vector<1x168x128xbf16>
    %20 = vector.shape_cast %19 : vector<1x168x128xbf16> to vector<168x128xbf16>
    %cst_13 = arith.constant dense<0.000000e+00> : vector<224x128xf32>
    %21 = tpu.matmul %15, %20, %cst_13 {dimension_numbers = #tpu.dot_dimension_numbers<[1], [0], [0], [1], [0, 0, 1, 1], [], []>} : vector<224x168xbf16>, vector<168x128xbf16>, vector<224x128xf32> -> vector<224x128xf32>
    %22 = arith.maximumf %18, %21 : vector<224x128xf32>
    %c0_14 = arith.constant 0 : index
    %c0_15 = arith.constant 0 : index
    %23 = vector.load %arg15[%c0_14, %c0_15] : memref<224x128xf32, #tpu.memory_space<vmem>>, vector<224x128xf32>
    tpu.vector_store %arg15[%c0_14, %c0_15], %22 {strides = array<i32>} : memref<224x128xf32, #tpu.memory_space<vmem>>, vector<224x128xf32>,
    %c0_16 = arith.constant 0 : index
    %c0_17 = arith.constant 0 : index
    %24 = tpu.strided_load %arg15[%c0_16, %c0_17] {strides = array<i32: 2, 1>} : memref<224x128xf32, #tpu.memory_space<vmem>>, vector<112x128xf32>
    %c1_18 = arith.constant 1 : index
    %c0_19 = arith.constant 0 : index
    %25 = tpu.strided_load %arg15[%c1_18, %c0_19] {strides = array<i32: 2, 1>} : memref<224x128xf32, #tpu.memory_space<vmem>>, vector<112x128xf32>
    %26 = arith.maximumf %24, %25 : vector<112x128xf32>
    %27 = arith.truncf %26 : vector<112x128xf32> to vector<112x128xbf16>
    %28 = vector.shape_cast %27 : vector<112x128xbf16> to vector<8x14x128xbf16>
    %29 = vector.extract_strided_slice %28 {offsets = [0, 0, 0], sizes = [8, 10, 128], strides = [1, 1, 1]} : vector<8x14x128xbf16> to vector<8x10x128xbf16>
    %30 = vector.extract_strided_slice %28 {offsets = [0, 1, 0], sizes = [8, 10, 128], strides = [1, 1, 1]} : vector<8x14x128xbf16> to vector<8x10x128xbf16>
    %31 = vector.extract_strided_slice %28 {offsets = [0, 2, 0], sizes = [8, 10, 128], strides = [1, 1, 1]} : vector<8x14x128xbf16> to vector<8x10x128xbf16>
    %32 = vector.extract_strided_slice %28 {offsets = [0, 3, 0], sizes = [8, 10, 128], strides = [1, 1, 1]} : vector<8x14x128xbf16> to vector<8x10x128xbf16>
    %33 = vector.extract_strided_slice %28 {offsets = [0, 4, 0], sizes = [8, 10, 128], strides = [1, 1, 1]} : vector<8x14x128xbf16> to vector<8x10x128xbf16>
    %34 = tpu.concatenate %29, %30, %31, %32, %33 in 2 : vector<8x10x128xbf16>, vector<8x10x128xbf16>, vector<8x10x128xbf16>, vector<8x10x128xbf16>, vector<8x10x128xbf16> -> vector<8x10x640xbf16>
    %35 = vector.shape_cast %34 : vector<8x10x640xbf16> to vector<80x640xbf16>
    %c0_20 = arith.constant 0 : index
    %c0_21 = arith.constant 0 : index
    %36 = vector.load %arg5[%c0_20, %c0_21] : memref<640x160xbf16, #tpu.memory_space<vmem>>, vector<640x160xbf16>
    %cst_22 = arith.constant dense<0.000000e+00> : vector<80x160xf32>
    %37 = tpu.matmul %35, %36, %cst_22 {dimension_numbers = #tpu.dot_dimension_numbers<[1], [0], [0], [1], [0, 0, 1, 1], [], []>} : vector<80x640xbf16>, vector<640x160xbf16>, vector<80x160xf32> -> vector<80x160xf32>
    %c0_23 = arith.constant 0 : index
    %c0_24 = arith.constant 0 : index
    %38 = vector.load %arg6[%c0_23, %c0_24] : memref<1x160xf32, #tpu.memory_space<vmem>>, vector<1x160xf32>
    %39 = vector.broadcast %38 : vector<1x160xf32> to vector<80x160xf32>
    %40 = arith.addf %37, %39 : vector<80x160xf32>
    %cst_25 = arith.constant 0.000000e+00 : f32
    %41 = vector.broadcast %cst_25 : f32 to vector<80x160xf32>
    %42 = arith.maximumf %40, %41 : vector<80x160xf32>
    %43 = arith.truncf %42 : vector<80x160xf32> to vector<80x160xbf16>
    %c0_26 = arith.constant 0 : index
    %c0_27 = arith.constant 0 : index
    %c0_28 = arith.constant 0 : index
    %44 = vector.load %arg7[%c0_26, %c0_27, %c0_28] : memref<2x160x128xbf16, #tpu.memory_space<vmem>>, vector<1x160x128xbf16>
    %45 = vector.shape_cast %44 : vector<1x160x128xbf16> to vector<160x128xbf16>
    %cst_29 = arith.constant dense<0.000000e+00> : vector<80x128xf32>
    %46 = tpu.matmul %43, %45, %cst_29 {dimension_numbers = #tpu.dot_dimension_numbers<[1], [0], [0], [1], [0, 0, 1, 1], [], []>} : vector<80x160xbf16>, vector<160x128xbf16>, vector<80x128xf32> -> vector<80x128xf32>
    %c1_30 = arith.constant 1 : index
    %c0_31 = arith.constant 0 : index
    %c0_32 = arith.constant 0 : index
    %47 = vector.load %arg7[%c1_30, %c0_31, %c0_32] : memref<2x160x128xbf16, #tpu.memory_space<vmem>>, vector<1x160x128xbf16>
    %48 = vector.shape_cast %47 : vector<1x160x128xbf16> to vector<160x128xbf16>
    %cst_33 = arith.constant dense<0.000000e+00> : vector<80x128xf32>
    %49 = tpu.matmul %43, %48, %cst_33 {dimension_numbers = #tpu.dot_dimension_numbers<[1], [0], [0], [1], [0, 0, 1, 1], [], []>} : vector<80x160xbf16>, vector<160x128xbf16>, vector<80x128xf32> -> vector<80x128xf32>
    %50 = arith.maximumf %46, %49 : vector<80x128xf32>
    %c0_34 = arith.constant 0 : index
    %c0_35 = arith.constant 0 : index
    %51 = vector.load %arg15[%c0_34, %c0_35] : memref<224x128xf32, #tpu.memory_space<vmem>>, vector<80x128xf32>
    tpu.vector_store %arg15[%c0_34, %c0_35], %50 {strides = array<i32>} : memref<224x128xf32, #tpu.memory_space<vmem>>, vector<80x128xf32>,
    %c0_36 = arith.constant 0 : index
    %c0_37 = arith.constant 0 : index
    %52 = tpu.strided_load %arg15[%c0_36, %c0_37] {strides = array<i32: 2, 1>} : memref<224x128xf32, #tpu.memory_space<vmem>>, vector<40x128xf32>
    %c1_38 = arith.constant 1 : index
    %c0_39 = arith.constant 0 : index
    %53 = tpu.strided_load %arg15[%c1_38, %c0_39] {strides = array<i32: 2, 1>} : memref<224x128xf32, #tpu.memory_space<vmem>>, vector<40x128xf32>
    %54 = arith.maximumf %52, %53 : vector<40x128xf32>
    %55 = arith.truncf %54 : vector<40x128xf32> to vector<40x128xbf16>
    %56 = vector.shape_cast %55 : vector<40x128xbf16> to vector<8x5x128xbf16>
    %57 = vector.extract_strided_slice %56 {offsets = [0, 0, 0], sizes = [8, 1, 128], strides = [1, 1, 1]} : vector<8x5x128xbf16> to vector<8x1x128xbf16>
    %58 = vector.shape_cast %57 : vector<8x1x128xbf16> to vector<8x128xbf16>
    %c0_40 = arith.constant 0 : index
    %c0_41 = arith.constant 0 : index
    %c0_42 = arith.constant 0 : index
    %59 = vector.load %arg8[%c0_40, %c0_41, %c0_42] : memref<5x128x120xbf16, #tpu.memory_space<vmem>>, vector<1x128x120xbf16>
    %60 = vector.shape_cast %59 : vector<1x128x120xbf16> to vector<128x120xbf16>
    %cst_43 = arith.constant dense<0.000000e+00> : vector<8x120xf32>
    %61 = tpu.matmul %58, %60, %cst_43 {dimension_numbers = #tpu.dot_dimension_numbers<[1], [0], [0], [1], [0, 0, 1, 1], [], []>} : vector<8x128xbf16>, vector<128x120xbf16>, vector<8x120xf32> -> vector<8x120xf32>
    %62 = vector.extract_strided_slice %56 {offsets = [0, 1, 0], sizes = [8, 1, 128], strides = [1, 1, 1]} : vector<8x5x128xbf16> to vector<8x1x128xbf16>
    %63 = vector.shape_cast %62 : vector<8x1x128xbf16> to vector<8x128xbf16>
    %c1_44 = arith.constant 1 : index
    %c0_45 = arith.constant 0 : index
    %c0_46 = arith.constant 0 : index
    %64 = vector.load %arg8[%c1_44, %c0_45, %c0_46] : memref<5x128x120xbf16, #tpu.memory_space<vmem>>, vector<1x128x120xbf16>
    %65 = vector.shape_cast %64 : vector<1x128x120xbf16> to vector<128x120xbf16>
    %cst_47 = arith.constant dense<0.000000e+00> : vector<8x120xf32>
    %66 = tpu.matmul %63, %65, %cst_47 {dimension_numbers = #tpu.dot_dimension_numbers<[1], [0], [0], [1], [0, 0, 1, 1], [], []>} : vector<8x128xbf16>, vector<128x120xbf16>, vector<8x120xf32> -> vector<8x120xf32>
    %67 = arith.addf %61, %66 : vector<8x120xf32>
    %68 = vector.extract_strided_slice %56 {offsets = [0, 2, 0], sizes = [8, 1, 128], strides = [1, 1, 1]} : vector<8x5x128xbf16> to vector<8x1x128xbf16>
    %69 = vector.shape_cast %68 : vector<8x1x128xbf16> to vector<8x128xbf16>
    %c2 = arith.constant 2 : index
    %c0_48 = arith.constant 0 : index
    %c0_49 = arith.constant 0 : index
    %70 = vector.load %arg8[%c2, %c0_48, %c0_49] : memref<5x128x120xbf16, #tpu.memory_space<vmem>>, vector<1x128x120xbf16>
    %71 = vector.shape_cast %70 : vector<1x128x120xbf16> to vector<128x120xbf16>
    %cst_50 = arith.constant dense<0.000000e+00> : vector<8x120xf32>
    %72 = tpu.matmul %69, %71, %cst_50 {dimension_numbers = #tpu.dot_dimension_numbers<[1], [0], [0], [1], [0, 0, 1, 1], [], []>} : vector<8x128xbf16>, vector<128x120xbf16>, vector<8x120xf32> -> vector<8x120xf32>
    %73 = arith.addf %67, %72 : vector<8x120xf32>
    %74 = vector.extract_strided_slice %56 {offsets = [0, 3, 0], sizes = [8, 1, 128], strides = [1, 1, 1]} : vector<8x5x128xbf16> to vector<8x1x128xbf16>
    %75 = vector.shape_cast %74 : vector<8x1x128xbf16> to vector<8x128xbf16>
    %c3 = arith.constant 3 : index
    %c0_51 = arith.constant 0 : index
    %c0_52 = arith.constant 0 : index
    %76 = vector.load %arg8[%c3, %c0_51, %c0_52] : memref<5x128x120xbf16, #tpu.memory_space<vmem>>, vector<1x128x120xbf16>
    %77 = vector.shape_cast %76 : vector<1x128x120xbf16> to vector<128x120xbf16>
    %cst_53 = arith.constant dense<0.000000e+00> : vector<8x120xf32>
    %78 = tpu.matmul %75, %77, %cst_53 {dimension_numbers = #tpu.dot_dimension_numbers<[1], [0], [0], [1], [0, 0, 1, 1], [], []>} : vector<8x128xbf16>, vector<128x120xbf16>, vector<8x120xf32> -> vector<8x120xf32>
    %79 = arith.addf %73, %78 : vector<8x120xf32>
    %80 = vector.extract_strided_slice %56 {offsets = [0, 4, 0], sizes = [8, 1, 128], strides = [1, 1, 1]} : vector<8x5x128xbf16> to vector<8x1x128xbf16>
    %81 = vector.shape_cast %80 : vector<8x1x128xbf16> to vector<8x128xbf16>
    %c4 = arith.constant 4 : index
    %c0_54 = arith.constant 0 : index
    %c0_55 = arith.constant 0 : index
    %82 = vector.load %arg8[%c4, %c0_54, %c0_55] : memref<5x128x120xbf16, #tpu.memory_space<vmem>>, vector<1x128x120xbf16>
    %83 = vector.shape_cast %82 : vector<1x128x120xbf16> to vector<128x120xbf16>
    %cst_56 = arith.constant dense<0.000000e+00> : vector<8x120xf32>
    %84 = tpu.matmul %81, %83, %cst_56 {dimension_numbers = #tpu.dot_dimension_numbers<[1], [0], [0], [1], [0, 0, 1, 1], [], []>} : vector<8x128xbf16>, vector<128x120xbf16>, vector<8x120xf32> -> vector<8x120xf32>
    %85 = arith.addf %79, %84 : vector<8x120xf32>
    %c0_57 = arith.constant 0 : index
    %c0_58 = arith.constant 0 : index
    %86 = vector.load %arg9[%c0_57, %c0_58] : memref<1x120xf32, #tpu.memory_space<vmem>>, vector<1x120xf32>
    %87 = vector.broadcast %86 : vector<1x120xf32> to vector<8x120xf32>
    %88 = arith.addf %85, %87 : vector<8x120xf32>
    %cst_59 = arith.constant 0.000000e+00 : f32
    %89 = vector.broadcast %cst_59 : f32 to vector<8x120xf32>
    %90 = arith.maximumf %88, %89 : vector<8x120xf32>
    %91 = arith.truncf %90 : vector<8x120xf32> to vector<8x120xbf16>
    %c0_60 = arith.constant 0 : index
    %c0_61 = arith.constant 0 : index
    %92 = vector.load %arg10[%c0_60, %c0_61] : memref<120x84xbf16, #tpu.memory_space<vmem>>, vector<120x84xbf16>
    %cst_62 = arith.constant dense<0.000000e+00> : vector<8x84xf32>
    %93 = tpu.matmul %91, %92, %cst_62 {dimension_numbers = #tpu.dot_dimension_numbers<[1], [0], [0], [1], [0, 0, 1, 1], [], []>} : vector<8x120xbf16>, vector<120x84xbf16>, vector<8x84xf32> -> vector<8x84xf32>
    %c0_63 = arith.constant 0 : index
    %c0_64 = arith.constant 0 : index
    %94 = vector.load %arg11[%c0_63, %c0_64] : memref<1x84xf32, #tpu.memory_space<vmem>>, vector<1x84xf32>
    %95 = vector.broadcast %94 : vector<1x84xf32> to vector<8x84xf32>
    %96 = arith.addf %93, %95 : vector<8x84xf32>
    %cst_65 = arith.constant 0.000000e+00 : f32
    %97 = vector.broadcast %cst_65 : f32 to vector<8x84xf32>
    %98 = arith.maximumf %96, %97 : vector<8x84xf32>
    %99 = arith.truncf %98 : vector<8x84xf32> to vector<8x84xbf16>
    %c0_66 = arith.constant 0 : index
    %c0_67 = arith.constant 0 : index
    %100 = vector.load %arg12[%c0_66, %c0_67] : memref<84x128xbf16, #tpu.memory_space<vmem>>, vector<84x128xbf16>
    %cst_68 = arith.constant dense<0.000000e+00> : vector<8x128xf32>
    %101 = tpu.matmul %99, %100, %cst_68 {dimension_numbers = #tpu.dot_dimension_numbers<[1], [0], [0], [1], [0, 0, 1, 1], [], []>} : vector<8x84xbf16>, vector<84x128xbf16>, vector<8x128xf32> -> vector<8x128xf32>
    %c0_69 = arith.constant 0 : index
    %c0_70 = arith.constant 0 : index
    %102 = vector.load %arg13[%c0_69, %c0_70] : memref<1x128xf32, #tpu.memory_space<vmem>>, vector<1x128xf32>
    %103 = vector.broadcast %102 : vector<1x128xf32> to vector<8x128xf32>
    %104 = arith.addf %101, %103 : vector<8x128xf32>
    %c0_71 = arith.constant 0 : index
    %c0_72 = arith.constant 0 : index
    %105 = vector.load %arg14[%c0_71, %c0_72] : memref<8x128xf32, #tpu.memory_space<vmem>>, vector<8x128xf32>
    tpu.vector_store %arg14[%c0_71, %c0_72], %104 {strides = array<i32>} : memref<8x128xf32, #tpu.memory_space<vmem>>, vector<8x128xf32>,
    return
  }
  func.func @transform_0(%arg0: i32) -> (i32, i32, i32) {
    %c0_i32 = arith.constant 0 : i32
    %c0_i32_0 = arith.constant 0 : i32
    %c0_i32_1 = arith.constant 0 : i32
    return %arg0, %c0_i32, %c0_i32_0 : i32, i32, i32
  }
  func.func @transform_1(%arg0: i32) -> (i32, i32) {
    %c0_i32 = arith.constant 0 : i32
    %c0_i32_0 = arith.constant 0 : i32
    %c0_i32_1 = arith.constant 0 : i32
    return %c0_i32, %c0_i32_0 : i32, i32
  }
  func.func @transform_2(%arg0: i32) -> (i32, i32) {
    %c0_i32 = arith.constant 0 : i32
    %c0_i32_0 = arith.constant 0 : i32
    %c0_i32_1 = arith.constant 0 : i32
    return %c0_i32, %c0_i32_0 : i32, i32
  }
  func.func @transform_3(%arg0: i32) -> (i32, i32, i32) {
    %c0_i32 = arith.constant 0 : i32
    %c0_i32_0 = arith.constant 0 : i32
    %c0_i32_1 = arith.constant 0 : i32
    %c0_i32_2 = arith.constant 0 : i32
    return %c0_i32, %c0_i32_0, %c0_i32_1 : i32, i32, i32
  }
  func.func @transform_4(%arg0: i32) -> (i32, i32) {
    %c0_i32 = arith.constant 0 : i32
    %c0_i32_0 = arith.constant 0 : i32
    %c0_i32_1 = arith.constant 0 : i32
    return %c0_i32, %c0_i32_0 : i32, i32
  }
  func.func @transform_5(%arg0: i32) -> (i32, i32) {
    %c0_i32 = arith.constant 0 : i32
    %c0_i32_0 = arith.constant 0 : i32
    %c0_i32_1 = arith.constant 0 : i32
    return %c0_i32, %c0_i32_0 : i32, i32
  }
  func.func @transform_6(%arg0: i32) -> (i32, i32, i32) {
    %c0_i32 = arith.constant 0 : i32
    %c0_i32_0 = arith.constant 0 : i32
    %c0_i32_1 = arith.constant 0 : i32
    %c0_i32_2 = arith.constant 0 : i32
    return %c0_i32, %c0_i32_0, %c0_i32_1 : i32, i32, i32
  }
  func.func @transform_7(%arg0: i32) -> (i32, i32, i32) {
    %c0_i32 = arith.constant 0 : i32
    %c0_i32_0 = arith.constant 0 : i32
    %c0_i32_1 = arith.constant 0 : i32
    %c0_i32_2 = arith.constant 0 : i32
    return %c0_i32, %c0_i32_0, %c0_i32_1 : i32, i32, i32
  }
  func.func @transform_8(%arg0: i32) -> (i32, i32) {
    %c0_i32 = arith.constant 0 : i32
    %c0_i32_0 = arith.constant 0 : i32
    %c0_i32_1 = arith.constant 0 : i32
    return %c0_i32, %c0_i32_0 : i32, i32
  }
  func.func @transform_9(%arg0: i32) -> (i32, i32) {
    %c0_i32 = arith.constant 0 : i32
    %c0_i32_0 = arith.constant 0 : i32
    %c0_i32_1 = arith.constant 0 : i32
    return %c0_i32, %c0_i32_0 : i32, i32
  }
  func.func @transform_10(%arg0: i32) -> (i32, i32) {
    %c0_i32 = arith.constant 0 : i32
    %c0_i32_0 = arith.constant 0 : i32
    %c0_i32_1 = arith.constant 0 : i32
    return %c0_i32, %c0_i32_0 : i32, i32
  }
  func.func @transform_11(%arg0: i32) -> (i32, i32) {
    %c0_i32 = arith.constant 0 : i32
    %c0_i32_0 = arith.constant 0 : i32
    %c0_i32_1 = arith.constant 0 : i32
    return %c0_i32, %c0_i32_0 : i32, i32
  }
  func.func @transform_12(%arg0: i32) -> (i32, i32) {
    %c0_i32 = arith.constant 0 : i32
    %c0_i32_0 = arith.constant 0 : i32
    %c0_i32_1 = arith.constant 0 : i32
    return %c0_i32, %c0_i32_0 : i32, i32
  }
  func.func @transform_13(%arg0: i32) -> (i32, i32) {
    %c0_i32 = arith.constant 0 : i32
    %c0_i32_0 = arith.constant 0 : i32
    return %arg0, %c0_i32 : i32, i32
  }
}

</mosaic_0001>

<llo_original>
// kernel: forward.1
$region0: #{forward.1}
  #allocation0 [shape = 'u32[]', space=smem, size = 0x4, offset = 0x4, fixed_abs, tag = 'smem constant byte address 0x4 - core index']
  #allocation1 [shape = 'u32[144,128]{1,0:T(1,128)}', space=vmem, size = 0x12000, scoped, tag = 'internal scratch']
  #allocation2 [shape = 'f32[224,128]{1,0:T(8,128)}', space=vmem, size = 0x1c000, scoped, tag = 'scratch operand']
  %s0 = inlined_call_operand.vmem [shape: bf16[16,32,128], index: 0, kind: input, shape index: {}]
  %s1 = inlined_call_operand.vmem [shape: bf16[640,168], index: 1, kind: input, shape index: {}]
  %s2 = inlined_call_operand.vmem [shape: f32[1,168], index: 2, kind: input, shape index: {}]
  %s3 = inlined_call_operand.vmem [shape: bf16[2,168,128], index: 3, kind: input, shape index: {}]
  %s4 = inlined_call_operand.vmem [shape: bf16[640,160], index: 4, kind: input, shape index: {}]
  %s5 = inlined_call_operand.vmem [shape: f32[1,160], index: 5, kind: input, shape index: {}]
  %s6 = inlined_call_operand.vmem [shape: bf16[2,160,128], index: 6, kind: input, shape index: {}]
  %s7 = inlined_call_operand.vmem [shape: bf16[5,128,120], index: 7, kind: input, shape index: {}]
  %s8 = inlined_call_operand.vmem [shape: f32[1,120], index: 8, kind: input, shape index: {}]
  %s9 = inlined_call_operand.vmem [shape: bf16[120,84], index: 9, kind: input, shape index: {}]
  %s10 = inlined_call_operand.vmem [shape: f32[1,84], index: 10, kind: input, shape index: {}]
  %s11 = inlined_call_operand.vmem [shape: bf16[84,128], index: 11, kind: input, shape index: {}]
  %s12 = inlined_call_operand.vmem [shape: f32[1,128], index: 12, kind: input, shape index: {}]
  %s13 = inlined_call_operand.hbm [shape: f32[16,128], index: 13, kind: output, shape index: {}]
  %s14 = sld [smem:[#allocation0]]
  $region85: #{forward.1} parent=0
    _
  %s16 = ssub.s32 1, %s14
  %s17 = scalar_select 0, %s16, %s14
  $region1: #{forward.1} parent=0
    #allocation3 [shape = 'u8[8192]{0}', space=vmem, size = 0x2000, scoped, tag = 'output window, operand 0']
    #allocation4 [shape = 's32[2]{0}', space=sflag, size = 0x8, scoped, tag = 'scoped memory for forward.1']
    %18 = vsyncpa [#allocation4], 0
    %s19 = scalar_lea.sflag [#allocation4], 1
    %20 = vsyncpa %s19, 0
    loop: start=0, step=1, limit=4
    $region2: #{forward.1} parent=1 // loop_pre_header
      _
    $region3: #{forward.1} parent=1 // loop_header
      %s22 = sphi 0, %s26
      %p23 = scmp.ge.s32.totalorder %s22, 4
      %s32 = sphi 0, %s34
      %s35 = sphi 0, %s32
      %s36 = sphi 0, %s35
      %s52 = sphi 0, %s36
      %s56 = sphi 0, %s56
      %s58 = sphi 0, %s56
      %s59 = sphi 0, %s58
      %s73 = sphi 0, %s59
      %s77 = sphi 0, %s77
      %s79 = sphi 0, %s77
      %s80 = sphi 0, %s79
      %s94 = sphi 0, %s80
      %s98 = sphi 0, %s98
      %s100 = sphi 0, %s98
      %s101 = sphi 0, %s100
      %s115 = sphi 0, %s101
      %s119 = sphi 0, %s119
      %s121 = sphi 0, %s119
      %s122 = sphi 0, %s121
      %s136 = sphi 0, %s122
      %s140 = sphi 0, %s140
      %s142 = sphi 0, %s140
      %s143 = sphi 0, %s142
      %s157 = sphi 0, %s143
      %s161 = sphi 0, %s161
      %s163 = sphi 0, %s161
      %s164 = sphi 0, %s163
      %s178 = sphi 0, %s164
      %s182 = sphi 0, %s182
      %s184 = sphi 0, %s182
      %s185 = sphi 0, %s184
      %s199 = sphi 0, %s185
      %s203 = sphi 0, %s203
      %s205 = sphi 0, %s203
      %s206 = sphi 0, %s205
      %s220 = sphi 0, %s206
      %s224 = sphi 0, %s224
      %s226 = sphi 0, %s224
      %s227 = sphi 0, %s226
      %s241 = sphi 0, %s227
      %s245 = sphi 0, %s245
      %s247 = sphi 0, %s245
      %s248 = sphi 0, %s247
      %s262 = sphi 0, %s248
      %s266 = sphi 0, %s266
      %s268 = sphi 0, %s266
      %s269 = sphi 0, %s268
      %s283 = sphi 0, %s269
      %s287 = sphi 0, %s287
      %s289 = sphi 0, %s287
      %s290 = sphi 0, %s289
      %s304 = sphi 0, %s290
      %s310 = sphi 0, %s312
      %s313 = sphi 0, %s310
      %s314 = sphi 0, %s313
      %s330 = sphi 0, %s314
    $region4: #{forward.1} parent=1 // loop_header_branch
      %25 = sbr.rel (%p23) target = $region8
    $region5: #{forward.1} parent=1 // loop_body
      %s27 = ssub.s32 %s22, 1
      %s28 = ssub.s32 %s22, 2
      %s29 = sadd.s32 %s22, 1
      %s30 = ssub.s32 %s22, %s29
      %p31 = scmp.eq.s32.totalorder %s30, 0
      %s33 = sadd.s32 %s32, 1
      %s34 = scalar_select %p31, %s32, %s33
      %p37 = pneg %p31
      %p38 = scmp.eq.s32.totalorder %s22, 1
      %p39 = por %p37, %p38
      %p40 = scmp.ne.s32.totalorder %s32, %s35
      %p41 = scmp.eq.s32.totalorder %s22, 0
      %p42 = por %p40, %p41
      %p43 = scmp.ne.s32.totalorder %s32, %s35
      %p44 = scmp.eq.s32.totalorder %s27, 1
      %p45 = por %p43, %p44
      %p46 = scmp.ne.s32.totalorder %s35, %s36
      %p47 = scmp.eq.s32.totalorder %s27, 0
      %p48 = por %p46, %p47
      %p49 = scmp.ne.s32.totalorder %s35, %s36
      %p50 = scmp.eq.s32.totalorder %s28, 1
      %p51 = por %p49, %p50
      %p53 = scmp.ne.s32.totalorder %s36, %s52
      %p54 = scmp.eq.s32.totalorder %s28, 0
      %p55 = por %p53, %p54
      %s57 = sadd.s32 %s56, 1
      %p60 = scmp.eq.s32.totalorder %s22, 1
      %p61 = scmp.ne.s32.totalorder %s56, %s58
      %p62 = scmp.eq.s32.totalorder %s22, 0
      %p63 = por %p61, %p62
      %p64 = scmp.ne.s32.totalorder %s56, %s58
      %p65 = scmp.eq.s32.totalorder %s27, 1
      %p66 = por %p64, %p65
      %p67 = scmp.ne.s32.totalorder %s58, %s59
      %p68 = scmp.eq.s32.totalorder %s27, 0
      %p69 = por %p67, %p68
      %p70 = scmp.ne.s32.totalorder %s58, %s59
      %p71 = scmp.eq.s32.totalorder %s28, 1
      %p72 = por %p70, %p71
      %p74 = scmp.ne.s32.totalorder %s59, %s73
      %p75 = scmp.eq.s32.totalorder %s28, 0
      %p76 = por %p74, %p75
      %s78 = sadd.s32 %s77, 1
      %p81 = scmp.eq.s32.totalorder %s22, 1
      %p82 = scmp.ne.s32.totalorder %s77, %s79
      %p83 = scmp.eq.s32.totalorder %s22, 0
      %p84 = por %p82, %p83
      %p85 = scmp.ne.s32.totalorder %s77, %s79
      %p86 = scmp.eq.s32.totalorder %s27, 1
      %p87 = por %p85, %p86
      %p88 = scmp.ne.s32.totalorder %s79, %s80
      %p89 = scmp.eq.s32.totalorder %s27, 0
      %p90 = por %p88, %p89
      %p91 = scmp.ne.s32.totalorder %s79, %s80
      %p92 = scmp.eq.s32.totalorder %s28, 1
      %p93 = por %p91, %p92
      %p95 = scmp.ne.s32.totalorder %s80, %s94
      %p96 = scmp.eq.s32.totalorder %s28, 0
      %p97 = por %p95, %p96
      %s99 = sadd.s32 %s98, 1
      %p102 = scmp.eq.s32.totalorder %s22, 1
      %p103 = scmp.ne.s32.totalorder %s98, %s100
      %p104 = scmp.eq.s32.totalorder %s22, 0
      %p105 = por %p103, %p104
      %p106 = scmp.ne.s32.totalorder %s98, %s100
      %p107 = scmp.eq.s32.totalorder %s27, 1
      %p108 = por %p106, %p107
      %p109 = scmp.ne.s32.totalorder %s100, %s101
      %p110 = scmp.eq.s32.totalorder %s27, 0
      %p111 = por %p109, %p110
      %p112 = scmp.ne.s32.totalorder %s100, %s101
      %p113 = scmp.eq.s32.totalorder %s28, 1
      %p114 = por %p112, %p113
      %p116 = scmp.ne.s32.totalorder %s101, %s115
      %p117 = scmp.eq.s32.totalorder %s28, 0
      %p118 = por %p116, %p117
      %s120 = sadd.s32 %s119, 1
      %p123 = scmp.eq.s32.totalorder %s22, 1
      %p124 = scmp.ne.s32.totalorder %s119, %s121
      %p125 = scmp.eq.s32.totalorder %s22, 0
      %p126 = por %p124, %p125
      %p127 = scmp.ne.s32.totalorder %s119, %s121
      %p128 = scmp.eq.s32.totalorder %s27, 1
      %p129 = por %p127, %p128
      %p130 = scmp.ne.s32.totalorder %s121, %s122
      %p131 = scmp.eq.s32.totalorder %s27, 0
      %p132 = por %p130, %p131
      %p133 = scmp.ne.s32.totalorder %s121, %s122
      %p134 = scmp.eq.s32.totalorder %s28, 1
      %p135 = por %p133, %p134
      %p137 = scmp.ne.s32.totalorder %s122, %s136
      %p138 = scmp.eq.s32.totalorder %s28, 0
      %p139 = por %p137, %p138
      %s141 = sadd.s32 %s140, 1
      %p144 = scmp.eq.s32.totalorder %s22, 1
      %p145 = scmp.ne.s32.totalorder %s140, %s142
      %p146 = scmp.eq.s32.totalorder %s22, 0
      %p147 = por %p145, %p146
      %p148 = scmp.ne.s32.totalorder %s140, %s142
      %p149 = scmp.eq.s32.totalorder %s27, 1
      %p150 = por %p148, %p149
      %p151 = scmp.ne.s32.totalorder %s142, %s143
      %p152 = scmp.eq.s32.totalorder %s27, 0
      %p153 = por %p151, %p152
      %p154 = scmp.ne.s32.totalorder %s142, %s143
      %p155 = scmp.eq.s32.totalorder %s28, 1
      %p156 = por %p154, %p155
      %p158 = scmp.ne.s32.totalorder %s143, %s157
      %p159 = scmp.eq.s32.totalorder %s28, 0
      %p160 = por %p158, %p159
      %s162 = sadd.s32 %s161, 1
      %p165 = scmp.eq.s32.totalorder %s22, 1
      %p166 = scmp.ne.s32.totalorder %s161, %s163
      %p167 = scmp.eq.s32.totalorder %s22, 0
      %p168 = por %p166, %p167
      %p169 = scmp.ne.s32.totalorder %s161, %s163
      %p170 = scmp.eq.s32.totalorder %s27, 1
      %p171 = por %p169, %p170
      %p172 = scmp.ne.s32.totalorder %s163, %s164
      %p173 = scmp.eq.s32.totalorder %s27, 0
      %p174 = por %p172, %p173
      %p175 = scmp.ne.s32.totalorder %s163, %s164
      %p176 = scmp.eq.s32.totalorder %s28, 1
      %p177 = por %p175, %p176
      %p179 = scmp.ne.s32.totalorder %s164, %s178
      %p180 = scmp.eq.s32.totalorder %s28, 0
      %p181 = por %p179, %p180
      %s183 = sadd.s32 %s182, 1
      %p186 = scmp.eq.s32.totalorder %s22, 1
      %p187 = scmp.ne.s32.totalorder %s182, %s184
      %p188 = scmp.eq.s32.totalorder %s22, 0
      %p189 = por %p187, %p188
      %p190 = scmp.ne.s32.totalorder %s182, %s184
      %p191 = scmp.eq.s32.totalorder %s27, 1
      %p192 = por %p190, %p191
      %p193 = scmp.ne.s32.totalorder %s184, %s185
      %p194 = scmp.eq.s32.totalorder %s27, 0
      %p195 = por %p193, %p194
      %p196 = scmp.ne.s32.totalorder %s184, %s185
      %p197 = scmp.eq.s32.totalorder %s28, 1
      %p198 = por %p196, %p197
      %p200 = scmp.ne.s32.totalorder %s185, %s199
      %p201 = scmp.eq.s32.totalorder %s28, 0
      %p202 = por %p200, %p201
      %s204 = sadd.s32 %s203, 1
      %p207 = scmp.eq.s32.totalorder %s22, 1
      %p208 = scmp.ne.s32.totalorder %s203, %s205
      %p209 = scmp.eq.s32.totalorder %s22, 0
      %p210 = por %p208, %p209
      %p211 = scmp.ne.s32.totalorder %s203, %s205
      %p212 = scmp.eq.s32.totalorder %s27, 1
      %p213 = por %p211, %p212
      %p214 = scmp.ne.s32.totalorder %s205, %s206
      %p215 = scmp.eq.s32.totalorder %s27, 0
      %p216 = por %p214, %p215
      %p217 = scmp.ne.s32.totalorder %s205, %s206
      %p218 = scmp.eq.s32.totalorder %s28, 1
      %p219 = por %p217, %p218
      %p221 = scmp.ne.s32.totalorder %s206, %s220
      %p222 = scmp.eq.s32.totalorder %s28, 0
      %p223 = por %p221, %p222
      %s225 = sadd.s32 %s224, 1
      %p228 = scmp.eq.s32.totalorder %s22, 1
      %p229 = scmp.ne.s32.totalorder %s224, %s226
      %p230 = scmp.eq.s32.totalorder %s22, 0
      %p231 = por %p229, %p230
      %p232 = scmp.ne.s32.totalorder %s224, %s226
      %p233 = scmp.eq.s32.totalorder %s27, 1
      %p234 = por %p232, %p233
      %p235 = scmp.ne.s32.totalorder %s226, %s227
      %p236 = scmp.eq.s32.totalorder %s27, 0
      %p237 = por %p235, %p236
      %p238 = scmp.ne.s32.totalorder %s226, %s227
      %p239 = scmp.eq.s32.totalorder %s28, 1
      %p240 = por %p238, %p239
      %p242 = scmp.ne.s32.totalorder %s227, %s241
      %p243 = scmp.eq.s32.totalorder %s28, 0
      %p244 = por %p242, %p243
      %s246 = sadd.s32 %s245, 1
      %p249 = scmp.eq.s32.totalorder %s22, 1
      %p250 = scmp.ne.s32.totalorder %s245, %s247
      %p251 = scmp.eq.s32.totalorder %s22, 0
      %p252 = por %p250, %p251
      %p253 = scmp.ne.s32.totalorder %s245, %s247
      %p254 = scmp.eq.s32.totalorder %s27, 1
      %p255 = por %p253, %p254
      %p256 = scmp.ne.s32.totalorder %s247, %s248
      %p257 = scmp.eq.s32.totalorder %s27, 0
      %p258 = por %p256, %p257
      %p259 = scmp.ne.s32.totalorder %s247, %s248
      %p260 = scmp.eq.s32.totalorder %s28, 1
      %p261 = por %p259, %p260
      %p263 = scmp.ne.s32.totalorder %s248, %s262
      %p264 = scmp.eq.s32.totalorder %s28, 0
      %p265 = por %p263, %p264
      %s267 = sadd.s32 %s266, 1
      %p270 = scmp.eq.s32.totalorder %s22, 1
      %p271 = scmp.ne.s32.totalorder %s266, %s268
      %p272 = scmp.eq.s32.totalorder %s22, 0
      %p273 = por %p271, %p272
      %p274 = scmp.ne.s32.totalorder %s266, %s268
      %p275 = scmp.eq.s32.totalorder %s27, 1
      %p276 = por %p274, %p275
      %p277 = scmp.ne.s32.totalorder %s268, %s269
      %p278 = scmp.eq.s32.totalorder %s27, 0
      %p279 = por %p277, %p278
      %p280 = scmp.ne.s32.totalorder %s268, %s269
      %p281 = scmp.eq.s32.totalorder %s28, 1
      %p282 = por %p280, %p281
      %p284 = scmp.ne.s32.totalorder %s269, %s283
      %p285 = scmp.eq.s32.totalorder %s28, 0
      %p286 = por %p284, %p285
      %s288 = sadd.s32 %s287, 1
      %p291 = scmp.eq.s32.totalorder %s22, 1
      %p292 = scmp.ne.s32.totalorder %s287, %s289
      %p293 = scmp.eq.s32.totalorder %s22, 0
      %p294 = por %p292, %p293
      %p295 = scmp.ne.s32.totalorder %s287, %s289
      %p296 = scmp.eq.s32.totalorder %s27, 1
      %p297 = por %p295, %p296
      %p298 = scmp.ne.s32.totalorder %s289, %s290
      %p299 = scmp.eq.s32.totalorder %s27, 0
      %p300 = por %p298, %p299
      %p301 = scmp.ne.s32.totalorder %s289, %s290
      %p302 = scmp.eq.s32.totalorder %s28, 1
      %p303 = por %p301, %p302
      %p305 = scmp.ne.s32.totalorder %s290, %s304
      %p306 = scmp.eq.s32.totalorder %s28, 0
      %p307 = por %p305, %p306
      %s308 = ssub.s32 %s22, %s29
      %p309 = scmp.eq.s32.totalorder %s308, 0
      %s311 = sadd.s32 %s310, 1
      %s312 = scalar_select %p309, %s310, %s311
      %p315 = pneg %p309
      %p316 = scmp.eq.s32.totalorder %s22, 1
      %p317 = por %p315, %p316
      %p318 = scmp.ne.s32.totalorder %s310, %s313
      %p319 = scmp.eq.s32.totalorder %s22, 0
      %p320 = por %p318, %p319
      %p321 = scmp.ne.s32.totalorder %s310, %s313
      %p322 = scmp.eq.s32.totalorder %s27, 1
      %p323 = por %p321, %p322
      %p324 = scmp.ne.s32.totalorder %s313, %s314
      %p325 = scmp.eq.s32.totalorder %s27, 0
      %p326 = por %p324, %p325
      %p327 = scmp.ne.s32.totalorder %s313, %s314
      %p328 = scmp.eq.s32.totalorder %s28, 1
      %p329 = por %p327, %p328
      %p331 = scmp.ne.s32.totalorder %s314, %s330
      %p332 = scmp.eq.s32.totalorder %s28, 0
      %p333 = por %p331, %p332
      %p334 = scmp.le.s32.totalorder 1, %s22
      %p335 = scmp.lt.s32.totalorder %s22, 3
      %p336 = pnand %p334, %p335
      %p337 = pneg %p336
      // Predicated region
      $region9: #{forward.1} parent=5 // pred_check
        _
      $region10: #{forward.1} parent=5 // pred_check_branch
        %339 = sbr.rel (%p336) target = $region12
      $region11: #{forward.1} parent=5 // pred_region
        %s340 = ssub.s32 %s22, 1
        // Predicated region
        $region13: #{forward.1} parent=11 // pred_check
          %p341 = pneg %p69
        $region14: #{forward.1} parent=11 // pred_check_branch
          %343 = sbr.rel (%p341) target = $region16
        $region15: #{forward.1} parent=11 // pred_region
          _
        $region16: #{forward.1} parent=11 // pred_fallthru
          _
        // Predicated region
        $region17: #{forward.1} parent=11 // pred_check
          %p344 = pneg %p90
        $region18: #{forward.1} parent=11 // pred_check_branch
          %346 = sbr.rel (%p344) target = $region20
        $region19: #{forward.1} parent=11 // pred_region
          _
        $region20: #{forward.1} parent=11 // pred_fallthru
          _
        // Predicated region
        $region21: #{forward.1} parent=11 // pred_check
          %p347 = pneg %p111
        $region22: #{forward.1} parent=11 // pred_check_branch
          %349 = sbr.rel (%p347) target = $region24
        $region23: #{forward.1} parent=11 // pred_region
          _
        $region24: #{forward.1} parent=11 // pred_fallthru
          _
        // Predicated region
        $region25: #{forward.1} parent=11 // pred_check
          %p350 = pneg %p132
        $region26: #{forward.1} parent=11 // pred_check_branch
          %352 = sbr.rel (%p350) target = $region28
        $region27: #{forward.1} parent=11 // pred_region
          _
        $region28: #{forward.1} parent=11 // pred_fallthru
          _
        // Predicated region
        $region29: #{forward.1} parent=11 // pred_check
          %p353 = pneg %p153
        $region30: #{forward.1} parent=11 // pred_check_branch
          %355 = sbr.rel (%p353) target = $region32
        $region31: #{forward.1} parent=11 // pred_region
          _
        $region32: #{forward.1} parent=11 // pred_fallthru
          _
        // Predicated region
        $region33: #{forward.1} parent=11 // pred_check
          %p356 = pneg %p174
        $region34: #{forward.1} parent=11 // pred_check_branch
          %358 = sbr.rel (%p356) target = $region36
        $region35: #{forward.1} parent=11 // pred_region
          _
        $region36: #{forward.1} parent=11 // pred_fallthru
          _
        // Predicated region
        $region37: #{forward.1} parent=11 // pred_check
          %p359 = pneg %p195
        $region38: #{forward.1} parent=11 // pred_check_branch
          %361 = sbr.rel (%p359) target = $region40
        $region39: #{forward.1} parent=11 // pred_region
          _
        $region40: #{forward.1} parent=11 // pred_fallthru
          _
        // Predicated region
        $region41: #{forward.1} parent=11 // pred_check
          %p362 = pneg %p216
        $region42: #{forward.1} parent=11 // pred_check_branch
          %364 = sbr.rel (%p362) target = $region44
        $region43: #{forward.1} parent=11 // pred_region
          _
        $region44: #{forward.1} parent=11 // pred_fallthru
          _
        // Predicated region
        $region45: #{forward.1} parent=11 // pred_check
          %p365 = pneg %p237
        $region46: #{forward.1} parent=11 // pred_check_branch
          %367 = sbr.rel (%p365) target = $region48
        $region47: #{forward.1} parent=11 // pred_region
          _
        $region48: #{forward.1} parent=11 // pred_fallthru
          _
        // Predicated region
        $region49: #{forward.1} parent=11 // pred_check
          %p368 = pneg %p258
        $region50: #{forward.1} parent=11 // pred_check_branch
          %370 = sbr.rel (%p368) target = $region52
        $region51: #{forward.1} parent=11 // pred_region
          _
        $region52: #{forward.1} parent=11 // pred_fallthru
          _
        // Predicated region
        $region53: #{forward.1} parent=11 // pred_check
          %p371 = pneg %p279
        $region54: #{forward.1} parent=11 // pred_check_branch
          %373 = sbr.rel (%p371) target = $region56
        $region55: #{forward.1} parent=11 // pred_region
          _
        $region56: #{forward.1} parent=11 // pred_fallthru
          _
        // Predicated region
        $region57: #{forward.1} parent=11 // pred_check
          %p374 = pneg %p300
        $region58: #{forward.1} parent=11 // pred_check_branch
          %376 = sbr.rel (%p374) target = $region60
        $region59: #{forward.1} parent=11 // pred_region
          _
        $region60: #{forward.1} parent=11 // pred_fallthru
          _
      $region12: #{forward.1} parent=5 // pred_fallthru
        _
      %p377 = scmp.lt.s32.totalorder %s22, 2
      // Predicated region
      $region61: #{forward.1} parent=5 // pred_check
        %p378 = pneg %p377
      $region62: #{forward.1} parent=5 // pred_check_branch
        %380 = sbr.rel (%p378) target = $region64
      $region63: #{forward.1} parent=5 // pred_region
        // Predicated region
        $region65: #{forward.1} parent=63 // pred_check
          %p381 = pneg %p42
        $region66: #{forward.1} parent=63 // pred_check_branch
          %383 = sbr.rel (%p381) target = $region68
        $region67: #{forward.1} parent=63 // pred_region
          %s384 = smul.u32 8, %s22
          %p385 = scmp.lt.s32.totalorder %s384, 15
          %s386 = scalar_select %p385, %s384, 15
          %s387 = smul.addr %s386, 4
          %s388 = smul.addr %s387, 4
          %s389 = scalar_lea.vmem %s0, %s388
          %s390 = smul.u32 8, %s22
        $region68: #{forward.1} parent=63 // pred_fallthru
          _
      $region64: #{forward.1} parent=5 // pred_fallthru
        _
      %p391 = scmp.le.s32.totalorder 1, %s22
      %p392 = scmp.lt.s32.totalorder %s22, 3
      %p393 = pnand %p391, %p392
      %p394 = pneg %p393
      // Predicated region
      $region69: #{forward.1} parent=5 // pred_check
        _
      $region70: #{forward.1} parent=5 // pred_check_branch
        %396 = sbr.rel (%p393) target = $region72
      $region71: #{forward.1} parent=5 // pred_region
        %s397 = ssub.s32 %s22, 1
        %s398 = smul.u32 8, %s27
        %p399 = scmp.lt.s32.totalorder %s398, 15
        %s400 = scalar_select %p399, %s398, 15
        %s401 = smul.addr %s400, 4
        %s402 = smul.addr %s401, 4
        %s403 = scalar_lea.vmem %s0, %s402
        %p404 = pneg %p48
        %p405 = pneg %p45
        %p406 = pneg %p69
        %p407 = pneg %p66
        %p408 = pneg %p90
        %p409 = pneg %p87
        %p410 = pneg %p111
        %p411 = pneg %p108
        %p412 = pneg %p132
        %p413 = pneg %p129
        %p414 = pneg %p153
        %p415 = pneg %p150
        %p416 = pneg %p174
        %p417 = pneg %p171
        %p418 = pneg %p195
        %p419 = pneg %p192
        %p420 = pneg %p216
        %p421 = pneg %p213
        %p422 = pneg %p237
        %p423 = pneg %p234
        %p424 = pneg %p258
        %p425 = pneg %p255
        %p426 = pneg %p279
        %p427 = pneg %p276
        %p428 = pneg %p300
        %p429 = pneg %p297
        %p430 = pneg %p326
        %p431 = pneg %p323
        %s432 = sand.u32 %s313, 1
        %s433 = scalar_lea.sflag [#allocation4], %s432
        %s434 = sand.u32 %s313, 1
        %s435 = smul.addr %s434, 8
        %s436 = scalar_lea.vmem [#allocation3], %s435
        %s437 = smul.u32 8, %s27
        %p438 = scmp.lt.s32.totalorder %s437, 15
        %s439 = scalar_select %p438, %s437, 15
        %s440 = smul.addr %s439, 4
        %s441 = smul.addr %s440, 4
        %s442 = scalar_lea.vmem %s0, %s441
        %s443 = smul.u32 8, %s27
        %v445 = vld [vmem:[%s442] sm:$0xf]
        %v446 = vld [vmem:[%s442 + $0x4] sm:$0xf]
        %v447 = vld [vmem:[%s442 + $0x8] sm:$0xf]
        %v448 = vld [vmem:[%s442 + $0xc] sm:$0xf]
        %v449 = vld [vmem:[%s442 + $0x10] sm:$0xf]
        %v450 = vld [vmem:[%s442 + $0x14] sm:$0xf]
        %v451 = vld [vmem:[%s442 + $0x18] sm:$0xf]
        %v452 = vld [vmem:[%s442 + $0x1c] sm:$0xf]
        %v453 = vld [vmem:[%s442 + $0x20] sm:$0xf]
        %v454 = vld [vmem:[%s442 + $0x24] sm:$0xf]
        %v455 = vld [vmem:[%s442 + $0x28] sm:$0xf]
        %v456 = vld [vmem:[%s442 + $0x2c] sm:$0xf]
        %v457 = vld [vmem:[%s442 + $0x30] sm:$0xf]
        %v458 = vld [vmem:[%s442 + $0x34] sm:$0xf]
        %v459 = vld [vmem:[%s442 + $0x38] sm:$0xf]
        %v460 = vld [vmem:[%s442 + $0x3c] sm:$0xf]
        %v461 = vld [vmem:[%s442 + $0x40] sm:$0xf]
        %v462 = vld [vmem:[%s442 + $0x44] sm:$0xf]
        %v463 = vld [vmem:[%s442 + $0x48] sm:$0xf]
        %v464 = vld [vmem:[%s442 + $0x4c] sm:$0xf]
        %v465 = vld [vmem:[%s442 + $0x50] sm:$0xf]
        %v466 = vld [vmem:[%s442 + $0x54] sm:$0xf]
        %v467 = vld [vmem:[%s442 + $0x58] sm:$0xf]
        %v468 = vld [vmem:[%s442 + $0x5c] sm:$0xf]
        %v469 = vld [vmem:[%s442 + $0x60] sm:$0xf]
        %v470 = vld [vmem:[%s442 + $0x64] sm:$0xf]
        %v471 = vld [vmem:[%s442 + $0x68] sm:$0xf]
        %v472 = vld [vmem:[%s442 + $0x6c] sm:$0xf]
        %v473 = vld [vmem:[%s442 + $0x70] sm:$0xf]
        %v474 = vld [vmem:[%s442 + $0x74] sm:$0xf]
        %v475 = vld [vmem:[%s442 + $0x78] sm:$0xf]
        %v476 = vld [vmem:[%s442 + $0x7c] sm:$0xf]
        %v509 = vunpack.c.l.b16 %v445
        %v510 = vunpack.c.l.b16 %v446
        %v511 = vunpack.c.l.b16 %v447
        %v512 = vunpack.c.l.b16 %v448
        %v513 = vunpack.c.l.b16 %v449
        %v514 = vunpack.c.l.b16 %v450
        %v515 = vunpack.c.l.b16 %v451
        %v516 = vunpack.c.l.b16 %v452
        %v517 = vunpack.c.l.b16 %v453
        %v518 = vunpack.c.l.b16 %v454
        %v519 = vunpack.c.l.b16 %v455
        %v520 = vunpack.c.l.b16 %v456
        %v521 = vunpack.c.l.b16 %v457
        %v522 = vunpack.c.l.b16 %v458
        %v523 = vunpack.c.l.b16 %v459
        %v524 = vunpack.c.l.b16 %v460
        %v525 = vunpack.c.l.b16 %v461
        %v526 = vunpack.c.l.b16 %v462
        %v527 = vunpack.c.l.b16 %v463
        %v528 = vunpack.c.l.b16 %v464
        %v529 = vunpack.c.l.b16 %v465
        %v530 = vunpack.c.l.b16 %v466
        %v531 = vunpack.c.l.b16 %v467
        %v532 = vunpack.c.l.b16 %v468
        %v533 = vunpack.c.l.b16 %v469
        %v534 = vunpack.c.l.b16 %v470
        %v535 = vunpack.c.l.b16 %v471
        %v536 = vunpack.c.l.b16 %v472
        %v537 = vunpack.c.l.b16 %v473
        %v538 = vunpack.c.l.b16 %v474
        %v539 = vunpack.c.l.b16 %v475
        %v540 = vunpack.c.l.b16 %v476
        %v541 = vpack.c.b16 %v510, %v509
        %v542 = vpack.c.b16 %v512, %v511
        %v543 = vpack.c.b16 %v514, %v513
        %v544 = vpack.c.b16 %v516, %v515
        %v545 = vpack.c.b16 %v518, %v517
        %v546 = vpack.c.b16 %v520, %v519
        %v547 = vpack.c.b16 %v522, %v521
        %v548 = vpack.c.b16 %v524, %v523
        %v549 = vpack.c.b16 %v526, %v525
        %v550 = vpack.c.b16 %v528, %v527
        %v551 = vpack.c.b16 %v530, %v529
        %v552 = vpack.c.b16 %v532, %v531
        %v553 = vpack.c.b16 %v534, %v533
        %v554 = vpack.c.b16 %v536, %v535
        %v555 = vpack.c.b16 %v538, %v537
        %v556 = vpack.c.b16 %v540, %v539
        %vm557 = vsmask.f32 7424
        %v559 = vshrl.u32 %v541, 16
        %v561 = vshll.u32 %v541, 16
        %v563 = vrot.slane %v561, 1
        %v564 = vor.u32 %v559, %v563
        %v566 = vshll.u32 %v542, 16
        %v568 = vrot.slane %v566, 1
        %v569 = vsel %vm557, %v564, %v568
        %v570 = vshrl.u32 %v542, 16
        %v572 = vor.u32 %v570, %v568
        %v574 = vshrl.u32 %v543, 16
        %v576 = vshll.u32 %v543, 16
        %v578 = vrot.slane %v576, 1
        %v579 = vor.u32 %v574, %v578
        %v581 = vshll.u32 %v544, 16
        %v583 = vrot.slane %v581, 1
        %v584 = vsel %vm557, %v579, %v583
        %v585 = vshrl.u32 %v544, 16
        %v587 = vor.u32 %v585, %v583
        %v589 = vshrl.u32 %v545, 16
        %v591 = vshll.u32 %v545, 16
        %v593 = vrot.slane %v591, 1
        %v594 = vor.u32 %v589, %v593
        %v596 = vshll.u32 %v546, 16
        %v598 = vrot.slane %v596, 1
        %v599 = vsel %vm557, %v594, %v598
        %v600 = vshrl.u32 %v546, 16
        %v602 = vor.u32 %v600, %v598
        %v604 = vshrl.u32 %v547, 16
        %v606 = vshll.u32 %v547, 16
        %v608 = vrot.slane %v606, 1
        %v609 = vor.u32 %v604, %v608
        %v611 = vshll.u32 %v548, 16
        %v613 = vrot.slane %v611, 1
        %v614 = vsel %vm557, %v609, %v613
        %v615 = vshrl.u32 %v548, 16
        %v617 = vor.u32 %v615, %v613
        %v619 = vshrl.u32 %v549, 16
        %v621 = vshll.u32 %v549, 16
        %v623 = vrot.slane %v621, 1
        %v624 = vor.u32 %v619, %v623
        %v626 = vshll.u32 %v550, 16
        %v628 = vrot.slane %v626, 1
        %v629 = vsel %vm557, %v624, %v628
        %v630 = vshrl.u32 %v550, 16
        %v632 = vor.u32 %v630, %v628
        %v634 = vshrl.u32 %v551, 16
        %v636 = vshll.u32 %v551, 16
        %v638 = vrot.slane %v636, 1
        %v639 = vor.u32 %v634, %v638
        %v641 = vshll.u32 %v552, 16
        %v643 = vrot.slane %v641, 1
        %v644 = vsel %vm557, %v639, %v643
        %v645 = vshrl.u32 %v552, 16
        %v647 = vor.u32 %v645, %v643
        %v649 = vshrl.u32 %v553, 16
        %v651 = vshll.u32 %v553, 16
        %v653 = vrot.slane %v651, 1
        %v654 = vor.u32 %v649, %v653
        %v656 = vshll.u32 %v554, 16
        %v658 = vrot.slane %v656, 1
        %v659 = vsel %vm557, %v654, %v658
        %v660 = vshrl.u32 %v554, 16
        %v662 = vor.u32 %v660, %v658
        %v664 = vshrl.u32 %v555, 16
        %v666 = vshll.u32 %v555, 16
        %v668 = vrot.slane %v666, 1
        %v669 = vor.u32 %v664, %v668
        %v671 = vshll.u32 %v556, 16
        %v673 = vrot.slane %v671, 1
        %v674 = vsel %vm557, %v669, %v673
        %v675 = vshrl.u32 %v556, 16
        %v677 = vor.u32 %v675, %v673
        %vm678 = vcmask 1046528
        %v679 = vrot.slane %v541, 1
        %v680 = vrot.slane %v542, 1
        %v681 = vsel %vm678, %v679, %v680
        %v682 = vrot.slane %v543, 1
        %v683 = vrot.slane %v544, 1
        %v684 = vsel %vm678, %v682, %v683
        %v685 = vrot.slane %v545, 1
        %v686 = vrot.slane %v546, 1
        %v687 = vsel %vm678, %v685, %v686
        %v688 = vrot.slane %v547, 1
        %v689 = vrot.slane %v548, 1
        %v690 = vsel %vm678, %v688, %v689
        %v691 = vrot.slane %v549, 1
        %v692 = vrot.slane %v550, 1
        %v693 = vsel %vm678, %v691, %v692
        %v694 = vrot.slane %v551, 1
        %v695 = vrot.slane %v552, 1
        %v696 = vsel %vm678, %v694, %v695
        %v697 = vrot.slane %v553, 1
        %v698 = vrot.slane %v554, 1
        %v699 = vsel %vm678, %v697, %v698
        %v700 = vrot.slane %v555, 1
        %v701 = vrot.slane %v556, 1
        %v702 = vsel %vm678, %v700, %v701
        %vm703 = vsmask.f32 6400
        %v704 = vrot.slane %v559, 1
        %v705 = vrot.slane %v561, 2
        %v706 = vor.u32 %v704, %v705
        %v707 = vrot.slane %v570, 1
        %v708 = vrot.slane %v566, 2
        %v709 = vor.u32 %v707, %v708
        %v710 = vsel %vm703, %v706, %v709
        %v711 = vrot.slane %v574, 1
        %v712 = vrot.slane %v576, 2
        %v713 = vor.u32 %v711, %v712
        %v714 = vrot.slane %v585, 1
        %v715 = vrot.slane %v581, 2
        %v716 = vor.u32 %v714, %v715
        %v717 = vsel %vm703, %v713, %v716
        %v718 = vrot.slane %v589, 1
        %v719 = vrot.slane %v591, 2
        %v720 = vor.u32 %v718, %v719
        %v721 = vrot.slane %v600, 1
        %v722 = vrot.slane %v596, 2
        %v723 = vor.u32 %v721, %v722
        %v724 = vsel %vm703, %v720, %v723
        %v725 = vrot.slane %v604, 1
        %v726 = vrot.slane %v606, 2
        %v727 = vor.u32 %v725, %v726
        %v728 = vrot.slane %v615, 1
        %v729 = vrot.slane %v611, 2
        %v730 = vor.u32 %v728, %v729
        %v731 = vsel %vm703, %v727, %v730
        %v732 = vrot.slane %v619, 1
        %v733 = vrot.slane %v621, 2
        %v734 = vor.u32 %v732, %v733
        %v735 = vrot.slane %v630, 1
        %v736 = vrot.slane %v626, 2
        %v737 = vor.u32 %v735, %v736
        %v738 = vsel %vm703, %v734, %v737
        %v739 = vrot.slane %v634, 1
        %v740 = vrot.slane %v636, 2
        %v741 = vor.u32 %v739, %v740
        %v742 = vrot.slane %v645, 1
        %v743 = vrot.slane %v641, 2
        %v744 = vor.u32 %v742, %v743
        %v745 = vsel %vm703, %v741, %v744
        %v746 = vrot.slane %v649, 1
        %v747 = vrot.slane %v651, 2
        %v748 = vor.u32 %v746, %v747
        %v749 = vrot.slane %v660, 1
        %v750 = vrot.slane %v656, 2
        %v751 = vor.u32 %v749, %v750
        %v752 = vsel %vm703, %v748, %v751
        %v753 = vrot.slane %v664, 1
        %v754 = vrot.slane %v666, 2
        %v755 = vor.u32 %v753, %v754
        %v756 = vrot.slane %v675, 1
        %v757 = vrot.slane %v671, 2
        %v758 = vor.u32 %v756, %v757
        %v759 = vsel %vm703, %v755, %v758
        %vm760 = vcmask 1045504
        %v761 = vrot.slane %v541, 2
        %v762 = vrot.slane %v542, 2
        %v763 = vsel %vm760, %v761, %v762
        %v764 = vrot.slane %v543, 2
        %v765 = vrot.slane %v544, 2
        %v766 = vsel %vm760, %v764, %v765
        %v767 = vrot.slane %v545, 2
        %v768 = vrot.slane %v546, 2
        %v769 = vsel %vm760, %v767, %v768
        %v770 = vrot.slane %v547, 2
        %v771 = vrot.slane %v548, 2
        %v772 = vsel %vm760, %v770, %v771
        %v773 = vrot.slane %v549, 2
        %v774 = vrot.slane %v550, 2
        %v775 = vsel %vm760, %v773, %v774
        %v776 = vrot.slane %v551, 2
        %v777 = vrot.slane %v552, 2
        %v778 = vsel %vm760, %v776, %v777
        %v779 = vrot.slane %v553, 2
        %v780 = vrot.slane %v554, 2
        %v781 = vsel %vm760, %v779, %v780
        %v782 = vrot.slane %v555, 2
        %v783 = vrot.slane %v556, 2
        %v784 = vsel %vm760, %v782, %v783
        %v785 = vcombine.low %v541, %v569
        %v786 = vcombine.high %v541, %v569
        %v787 = vcombine.low %v681, %v710
        %v788 = vcombine.high %v681, %v710
        %v790 = vunpack.c.l.s4 1983009808
        %v791 = vunpack.c.0.s8 %v790
        %v792 = vlaneseq
        %v793 = vshrl.u32 %v792, 7
        %v794 = vsub.s32 %v791, %v793
        %v795 = vrot.slane %v785, %v794
        %v797 = vunpack.c.l.s4 1983009808
        %v798 = vunpack.c.0.s8 %v797
        %v799 = vlaneseq
        %v800 = vshrl.u32 %v799, 7
        %v801 = vsub.s32 %v798, %v800
        %v802 = vrot.slane %v786, %v801
        %v804 = vunpack.c.l.s4 1983009808
        %v805 = vunpack.c.0.s8 %v804
        %v806 = vlaneseq
        %v807 = vshrl.u32 %v806, 7
        %v808 = vsub.s32 %v805, %v807
        %v809 = vrot.slane %v787, %v808
        %v811 = vunpack.c.l.s4 1983009808
        %v812 = vunpack.c.0.s8 %v811
        %v813 = vlaneseq
        %v814 = vshrl.u32 %v813, 7
        %v815 = vsub.s32 %v812, %v814
        %v816 = vrot.slane %v788, %v815
        %v817 = vcombine.low %v795, %v809
        %v818 = vcombine.high %v795, %v809
        %v819 = vcombine.low %v802, %v816
        %v820 = vcombine.high %v802, %v816
        %v821 = vcombine.high %v763, %v763
        %v823 = vunpack.c.l.s4 1983009808
        %v824 = vunpack.c.0.s8 %v823
        %v825 = vlaneseq
        %v826 = vshrl.u32 %v825, 7
        %v827 = vsub.s32 %v824, %v826
        %v828 = vrot.slane %v763, %v827
        %v830 = vunpack.c.l.s4 1983009808
        %v831 = vunpack.c.0.s8 %v830
        %v832 = vlaneseq
        %v833 = vshrl.u32 %v832, 7
        %v834 = vsub.s32 %v831, %v833
        %v835 = vrot.slane %v821, %v834
        %v836 = vcombine.high %v828, %v828
        %v837 = vcombine.high %v835, %v835
        %v838 = vcombine.low %v542, %v572
        %v839 = vcombine.high %v542, %v572
        %v840 = vcombine.low %v680, %v709
        %v841 = vcombine.high %v680, %v709
        %v843 = vunpack.c.l.s4 1983009808
        %v844 = vunpack.c.0.s8 %v843
        %v845 = vlaneseq
        %v846 = vshrl.u32 %v845, 7
        %v847 = vsub.s32 %v844, %v846
        %v848 = vrot.slane %v838, %v847
        %v850 = vunpack.c.l.s4 1983009808
        %v851 = vunpack.c.0.s8 %v850
        %v852 = vlaneseq
        %v853 = vshrl.u32 %v852, 7
        %v854 = vsub.s32 %v851, %v853
        %v855 = vrot.slane %v839, %v854
        %v857 = vunpack.c.l.s4 1983009808
        %v858 = vunpack.c.0.s8 %v857
        %v859 = vlaneseq
        %v860 = vshrl.u32 %v859, 7
        %v861 = vsub.s32 %v858, %v860
        %v862 = vrot.slane %v840, %v861
        %v864 = vunpack.c.l.s4 1983009808
        %v865 = vunpack.c.0.s8 %v864
        %v866 = vlaneseq
        %v867 = vshrl.u32 %v866, 7
        %v868 = vsub.s32 %v865, %v867
        %v869 = vrot.slane %v841, %v868
        %v870 = vcombine.low %v848, %v862
        %v871 = vcombine.high %v848, %v862
        %v872 = vcombine.low %v855, %v869
        %v873 = vcombine.high %v762, %v762
        %v875 = vunpack.c.l.s4 1983009808
        %v876 = vunpack.c.0.s8 %v875
        %v877 = vlaneseq
        %v878 = vshrl.u32 %v877, 7
        %v879 = vsub.s32 %v876, %v878
        %v880 = vrot.slane %v762, %v879
        %v882 = vunpack.c.l.s4 1983009808
        %v883 = vunpack.c.0.s8 %v882
        %v884 = vlaneseq
        %v885 = vshrl.u32 %v884, 7
        %v886 = vsub.s32 %v883, %v885
        %v887 = vrot.slane %v873, %v886
        %v888 = vcombine.high %v880, %v880
        %v889 = vcombine.low %v543, %v584
        %v890 = vcombine.high %v543, %v584
        %v891 = vcombine.low %v684, %v717
        %v892 = vcombine.high %v684, %v717
        %v894 = vunpack.c.l.s4 1983009808
        %v895 = vunpack.c.0.s8 %v894
        %v896 = vlaneseq
        %v897 = vshrl.u32 %v896, 7
        %v898 = vsub.s32 %v895, %v897
        %v899 = vrot.slane %v889, %v898
        %v901 = vunpack.c.l.s4 1983009808
        %v902 = vunpack.c.0.s8 %v901
        %v903 = vlaneseq
        %v904 = vshrl.u32 %v903, 7
        %v905 = vsub.s32 %v902, %v904
        %v906 = vrot.slane %v890, %v905
        %v908 = vunpack.c.l.s4 1983009808
        %v909 = vunpack.c.0.s8 %v908
        %v910 = vlaneseq
        %v911 = vshrl.u32 %v910, 7
        %v912 = vsub.s32 %v909, %v911
        %v913 = vrot.slane %v891, %v912
        %v915 = vunpack.c.l.s4 1983009808
        %v916 = vunpack.c.0.s8 %v915
        %v917 = vlaneseq
        %v918 = vshrl.u32 %v917, 7
        %v919 = vsub.s32 %v916, %v918
        %v920 = vrot.slane %v892, %v919
        %v921 = vcombine.low %v899, %v913
        %v922 = vcombine.high %v899, %v913
        %v923 = vcombine.low %v906, %v920
        %v924 = vcombine.high %v906, %v920
        %v925 = vcombine.high %v766, %v766
        %v927 = vunpack.c.l.s4 1983009808
        %v928 = vunpack.c.0.s8 %v927
        %v929 = vlaneseq
        %v930 = vshrl.u32 %v929, 7
        %v931 = vsub.s32 %v928, %v930
        %v932 = vrot.slane %v766, %v931
        %v934 = vunpack.c.l.s4 1983009808
        %v935 = vunpack.c.0.s8 %v934
        %v936 = vlaneseq
        %v937 = vshrl.u32 %v936, 7
        %v938 = vsub.s32 %v935, %v937
        %v939 = vrot.slane %v925, %v938
        %v940 = vcombine.high %v932, %v932
        %v941 = vcombine.high %v939, %v939
        %v942 = vcombine.low %v544, %v587
        %v943 = vcombine.high %v544, %v587
        %v944 = vcombine.low %v683, %v716
        %v945 = vcombine.high %v683, %v716
        %v947 = vunpack.c.l.s4 1983009808
        %v948 = vunpack.c.0.s8 %v947
        %v949 = vlaneseq
        %v950 = vshrl.u32 %v949, 7
        %v951 = vsub.s32 %v948, %v950
        %v952 = vrot.slane %v942, %v951
        %v954 = vunpack.c.l.s4 1983009808
        %v955 = vunpack.c.0.s8 %v954
        %v956 = vlaneseq
        %v957 = vshrl.u32 %v956, 7
        %v958 = vsub.s32 %v955, %v957
        %v959 = vrot.slane %v943, %v958
        %v961 = vunpack.c.l.s4 1983009808
        %v962 = vunpack.c.0.s8 %v961
        %v963 = vlaneseq
        %v964 = vshrl.u32 %v963, 7
        %v965 = vsub.s32 %v962, %v964
        %v966 = vrot.slane %v944, %v965
        %v968 = vunpack.c.l.s4 1983009808
        %v969 = vunpack.c.0.s8 %v968
        %v970 = vlaneseq
        %v971 = vshrl.u32 %v970, 7
        %v972 = vsub.s32 %v969, %v971
        %v973 = vrot.slane %v945, %v972
        %v974 = vcombine.low %v952, %v966
        %v975 = vcombine.high %v952, %v966
        %v976 = vcombine.low %v959, %v973
        %v977 = vcombine.high %v765, %v765
        %v979 = vunpack.c.l.s4 1983009808
        %v980 = vunpack.c.0.s8 %v979
        %v981 = vlaneseq
        %v982 = vshrl.u32 %v981, 7
        %v983 = vsub.s32 %v980, %v982
        %v984 = vrot.slane %v765, %v983
        %v986 = vunpack.c.l.s4 1983009808
        %v987 = vunpack.c.0.s8 %v986
        %v988 = vlaneseq
        %v989 = vshrl.u32 %v988, 7
        %v990 = vsub.s32 %v987, %v989
        %v991 = vrot.slane %v977, %v990
        %v992 = vcombine.high %v984, %v984
        %v993 = vcombine.low %v545, %v599
        %v994 = vcombine.high %v545, %v599
        %v995 = vcombine.low %v687, %v724
        %v996 = vcombine.high %v687, %v724
        %v998 = vunpack.c.l.s4 1983009808
        %v999 = vunpack.c.0.s8 %v998
        %v1000 = vlaneseq
        %v1001 = vshrl.u32 %v1000, 7
        %v1002 = vsub.s32 %v999, %v1001
        %v1003 = vrot.slane %v993, %v1002
        %v1005 = vunpack.c.l.s4 1983009808
        %v1006 = vunpack.c.0.s8 %v1005
        %v1007 = vlaneseq
        %v1008 = vshrl.u32 %v1007, 7
        %v1009 = vsub.s32 %v1006, %v1008
        %v1010 = vrot.slane %v994, %v1009
        %v1012 = vunpack.c.l.s4 1983009808
        %v1013 = vunpack.c.0.s8 %v1012
        %v1014 = vlaneseq
        %v1015 = vshrl.u32 %v1014, 7
        %v1016 = vsub.s32 %v1013, %v1015
        %v1017 = vrot.slane %v995, %v1016
        %v1019 = vunpack.c.l.s4 1983009808
        %v1020 = vunpack.c.0.s8 %v1019
        %v1021 = vlaneseq
        %v1022 = vshrl.u32 %v1021, 7
        %v1023 = vsub.s32 %v1020, %v1022
        %v1024 = vrot.slane %v996, %v1023
        %v1025 = vcombine.low %v1003, %v1017
        %v1026 = vcombine.high %v1003, %v1017
        %v1027 = vcombine.low %v1010, %v1024
        %v1028 = vcombine.high %v1010, %v1024
        %v1029 = vcombine.high %v769, %v769
        %v1031 = vunpack.c.l.s4 1983009808
        %v1032 = vunpack.c.0.s8 %v1031
        %v1033 = vlaneseq
        %v1034 = vshrl.u32 %v1033, 7
        %v1035 = vsub.s32 %v1032, %v1034
        %v1036 = vrot.slane %v769, %v1035
        %v1038 = vunpack.c.l.s4 1983009808
        %v1039 = vunpack.c.0.s8 %v1038
        %v1040 = vlaneseq
        %v1041 = vshrl.u32 %v1040, 7
        %v1042 = vsub.s32 %v1039, %v1041
        %v1043 = vrot.slane %v1029, %v1042
        %v1044 = vcombine.high %v1036, %v1036
        %v1045 = vcombine.high %v1043, %v1043
        %v1046 = vcombine.low %v546, %v602
        %v1047 = vcombine.high %v546, %v602
        %v1048 = vcombine.low %v686, %v723
        %v1049 = vcombine.high %v686, %v723
        %v1051 = vunpack.c.l.s4 1983009808
        %v1052 = vunpack.c.0.s8 %v1051
        %v1053 = vlaneseq
        %v1054 = vshrl.u32 %v1053, 7
        %v1055 = vsub.s32 %v1052, %v1054
        %v1056 = vrot.slane %v1046, %v1055
        %v1058 = vunpack.c.l.s4 1983009808
        %v1059 = vunpack.c.0.s8 %v1058
        %v1060 = vlaneseq
        %v1061 = vshrl.u32 %v1060, 7
        %v1062 = vsub.s32 %v1059, %v1061
        %v1063 = vrot.slane %v1047, %v1062
        %v1065 = vunpack.c.l.s4 1983009808
        %v1066 = vunpack.c.0.s8 %v1065
        %v1067 = vlaneseq
        %v1068 = vshrl.u32 %v1067, 7
        %v1069 = vsub.s32 %v1066, %v1068
        %v1070 = vrot.slane %v1048, %v1069
        %v1072 = vunpack.c.l.s4 1983009808
        %v1073 = vunpack.c.0.s8 %v1072
        %v1074 = vlaneseq
        %v1075 = vshrl.u32 %v1074, 7
        %v1076 = vsub.s32 %v1073, %v1075
        %v1077 = vrot.slane %v1049, %v1076
        %v1078 = vcombine.low %v1056, %v1070
        %v1079 = vcombine.high %v1056, %v1070
        %v1080 = vcombine.low %v1063, %v1077
        %v1081 = vcombine.high %v768, %v768
        %v1083 = vunpack.c.l.s4 1983009808
        %v1084 = vunpack.c.0.s8 %v1083
        %v1085 = vlaneseq
        %v1086 = vshrl.u32 %v1085, 7
        %v1087 = vsub.s32 %v1084, %v1086
        %v1088 = vrot.slane %v768, %v1087
        %v1090 = vunpack.c.l.s4 1983009808
        %v1091 = vunpack.c.0.s8 %v1090
        %v1092 = vlaneseq
        %v1093 = vshrl.u32 %v1092, 7
        %v1094 = vsub.s32 %v1091, %v1093
        %v1095 = vrot.slane %v1081, %v1094
        %v1096 = vcombine.high %v1088, %v1088
        %v1097 = vcombine.low %v547, %v614
        %v1098 = vcombine.high %v547, %v614
        %v1099 = vcombine.low %v690, %v731
        %v1100 = vcombine.high %v690, %v731
        %v1102 = vunpack.c.l.s4 1983009808
        %v1103 = vunpack.c.0.s8 %v1102
        %v1104 = vlaneseq
        %v1105 = vshrl.u32 %v1104, 7
        %v1106 = vsub.s32 %v1103, %v1105
        %v1107 = vrot.slane %v1097, %v1106
        %v1109 = vunpack.c.l.s4 1983009808
        %v1110 = vunpack.c.0.s8 %v1109
        %v1111 = vlaneseq
        %v1112 = vshrl.u32 %v1111, 7
        %v1113 = vsub.s32 %v1110, %v1112
        %v1114 = vrot.slane %v1098, %v1113
        %v1116 = vunpack.c.l.s4 1983009808
        %v1117 = vunpack.c.0.s8 %v1116
        %v1118 = vlaneseq
        %v1119 = vshrl.u32 %v1118, 7
        %v1120 = vsub.s32 %v1117, %v1119
        %v1121 = vrot.slane %v1099, %v1120
        %v1123 = vunpack.c.l.s4 1983009808
        %v1124 = vunpack.c.0.s8 %v1123
        %v1125 = vlaneseq
        %v1126 = vshrl.u32 %v1125, 7
        %v1127 = vsub.s32 %v1124, %v1126
        %v1128 = vrot.slane %v1100, %v1127
        %v1129 = vcombine.low %v1107, %v1121
        %v1130 = vcombine.high %v1107, %v1121
        %v1131 = vcombine.low %v1114, %v1128
        %v1132 = vcombine.high %v1114, %v1128
        %v1133 = vcombine.high %v772, %v772
        %v1135 = vunpack.c.l.s4 1983009808
        %v1136 = vunpack.c.0.s8 %v1135
        %v1137 = vlaneseq
        %v1138 = vshrl.u32 %v1137, 7
        %v1139 = vsub.s32 %v1136, %v1138
        %v1140 = vrot.slane %v772, %v1139
        %v1142 = vunpack.c.l.s4 1983009808
        %v1143 = vunpack.c.0.s8 %v1142
        %v1144 = vlaneseq
        %v1145 = vshrl.u32 %v1144, 7
        %v1146 = vsub.s32 %v1143, %v1145
        %v1147 = vrot.slane %v1133, %v1146
        %v1148 = vcombine.high %v1140, %v1140
        %v1149 = vcombine.high %v1147, %v1147
        %v1150 = vcombine.low %v548, %v617
        %v1151 = vcombine.high %v548, %v617
        %v1152 = vcombine.low %v689, %v730
        %v1153 = vcombine.high %v689, %v730
        %v1155 = vunpack.c.l.s4 1983009808
        %v1156 = vunpack.c.0.s8 %v1155
        %v1157 = vlaneseq
        %v1158 = vshrl.u32 %v1157, 7
        %v1159 = vsub.s32 %v1156, %v1158
        %v1160 = vrot.slane %v1150, %v1159
        %v1162 = vunpack.c.l.s4 1983009808
        %v1163 = vunpack.c.0.s8 %v1162
        %v1164 = vlaneseq
        %v1165 = vshrl.u32 %v1164, 7
        %v1166 = vsub.s32 %v1163, %v1165
        %v1167 = vrot.slane %v1151, %v1166
        %v1169 = vunpack.c.l.s4 1983009808
        %v1170 = vunpack.c.0.s8 %v1169
        %v1171 = vlaneseq
        %v1172 = vshrl.u32 %v1171, 7
        %v1173 = vsub.s32 %v1170, %v1172
        %v1174 = vrot.slane %v1152, %v1173
        %v1176 = vunpack.c.l.s4 1983009808
        %v1177 = vunpack.c.0.s8 %v1176
        %v1178 = vlaneseq
        %v1179 = vshrl.u32 %v1178, 7
        %v1180 = vsub.s32 %v1177, %v1179
        %v1181 = vrot.slane %v1153, %v1180
        %v1182 = vcombine.low %v1160, %v1174
        %v1183 = vcombine.high %v1160, %v1174
        %v1184 = vcombine.low %v1167, %v1181
        %v1185 = vcombine.high %v771, %v771
        %v1187 = vunpack.c.l.s4 1983009808
        %v1188 = vunpack.c.0.s8 %v1187
        %v1189 = vlaneseq
        %v1190 = vshrl.u32 %v1189, 7
        %v1191 = vsub.s32 %v1188, %v1190
        %v1192 = vrot.slane %v771, %v1191
        %v1194 = vunpack.c.l.s4 1983009808
        %v1195 = vunpack.c.0.s8 %v1194
        %v1196 = vlaneseq
        %v1197 = vshrl.u32 %v1196, 7
        %v1198 = vsub.s32 %v1195, %v1197
        %v1199 = vrot.slane %v1185, %v1198
        %v1200 = vcombine.high %v1192, %v1192
        %v1201 = vcombine.low %v549, %v629
        %v1202 = vcombine.high %v549, %v629
        %v1203 = vcombine.low %v693, %v738
        %v1204 = vcombine.high %v693, %v738
        %v1206 = vunpack.c.l.s4 1983009808
        %v1207 = vunpack.c.0.s8 %v1206
        %v1208 = vlaneseq
        %v1209 = vshrl.u32 %v1208, 7
        %v1210 = vsub.s32 %v1207, %v1209
        %v1211 = vrot.slane %v1201, %v1210
        %v1213 = vunpack.c.l.s4 1983009808
        %v1214 = vunpack.c.0.s8 %v1213
        %v1215 = vlaneseq
        %v1216 = vshrl.u32 %v1215, 7
        %v1217 = vsub.s32 %v1214, %v1216
        %v1218 = vrot.slane %v1202, %v1217
        %v1220 = vunpack.c.l.s4 1983009808
        %v1221 = vunpack.c.0.s8 %v1220
        %v1222 = vlaneseq
        %v1223 = vshrl.u32 %v1222, 7
        %v1224 = vsub.s32 %v1221, %v1223
        %v1225 = vrot.slane %v1203, %v1224
        %v1227 = vunpack.c.l.s4 1983009808
        %v1228 = vunpack.c.0.s8 %v1227
        %v1229 = vlaneseq
        %v1230 = vshrl.u32 %v1229, 7
        %v1231 = vsub.s32 %v1228, %v1230
        %v1232 = vrot.slane %v1204, %v1231
        %v1233 = vcombine.low %v1211, %v1225
        %v1234 = vcombine.high %v1211, %v1225
        %v1235 = vcombine.low %v1218, %v1232
        %v1236 = vcombine.high %v1218, %v1232
        %v1237 = vcombine.high %v775, %v775
        %v1239 = vunpack.c.l.s4 1983009808
        %v1240 = vunpack.c.0.s8 %v1239
        %v1241 = vlaneseq
        %v1242 = vshrl.u32 %v1241, 7
        %v1243 = vsub.s32 %v1240, %v1242
        %v1244 = vrot.slane %v775, %v1243
        %v1246 = vunpack.c.l.s4 1983009808
        %v1247 = vunpack.c.0.s8 %v1246
        %v1248 = vlaneseq
        %v1249 = vshrl.u32 %v1248, 7
        %v1250 = vsub.s32 %v1247, %v1249
        %v1251 = vrot.slane %v1237, %v1250
        %v1252 = vcombine.high %v1244, %v1244
        %v1253 = vcombine.high %v1251, %v1251
        %v1254 = vcombine.low %v550, %v632
        %v1255 = vcombine.high %v550, %v632
        %v1256 = vcombine.low %v692, %v737
        %v1257 = vcombine.high %v692, %v737
        %v1259 = vunpack.c.l.s4 1983009808
        %v1260 = vunpack.c.0.s8 %v1259
        %v1261 = vlaneseq
        %v1262 = vshrl.u32 %v1261, 7
        %v1263 = vsub.s32 %v1260, %v1262
        %v1264 = vrot.slane %v1254, %v1263
        %v1266 = vunpack.c.l.s4 1983009808
        %v1267 = vunpack.c.0.s8 %v1266
        %v1268 = vlaneseq
        %v1269 = vshrl.u32 %v1268, 7
        %v1270 = vsub.s32 %v1267, %v1269
        %v1271 = vrot.slane %v1255, %v1270
        %v1273 = vunpack.c.l.s4 1983009808
        %v1274 = vunpack.c.0.s8 %v1273
        %v1275 = vlaneseq
        %v1276 = vshrl.u32 %v1275, 7
        %v1277 = vsub.s32 %v1274, %v1276
        %v1278 = vrot.slane %v1256, %v1277
        %v1280 = vunpack.c.l.s4 1983009808
        %v1281 = vunpack.c.0.s8 %v1280
        %v1282 = vlaneseq
        %v1283 = vshrl.u32 %v1282, 7
        %v1284 = vsub.s32 %v1281, %v1283
        %v1285 = vrot.slane %v1257, %v1284
        %v1286 = vcombine.low %v1264, %v1278
        %v1287 = vcombine.high %v1264, %v1278
        %v1288 = vcombine.low %v1271, %v1285
        %v1289 = vcombine.high %v774, %v774
        %v1291 = vunpack.c.l.s4 1983009808
        %v1292 = vunpack.c.0.s8 %v1291
        %v1293 = vlaneseq
        %v1294 = vshrl.u32 %v1293, 7
        %v1295 = vsub.s32 %v1292, %v1294
        %v1296 = vrot.slane %v774, %v1295
        %v1298 = vunpack.c.l.s4 1983009808
        %v1299 = vunpack.c.0.s8 %v1298
        %v1300 = vlaneseq
        %v1301 = vshrl.u32 %v1300, 7
        %v1302 = vsub.s32 %v1299, %v1301
        %v1303 = vrot.slane %v1289, %v1302
        %v1304 = vcombine.high %v1296, %v1296
        %v1305 = vcombine.low %v551, %v644
        %v1306 = vcombine.high %v551, %v644
        %v1307 = vcombine.low %v696, %v745
        %v1308 = vcombine.high %v696, %v745
        %v1310 = vunpack.c.l.s4 1983009808
        %v1311 = vunpack.c.0.s8 %v1310
        %v1312 = vlaneseq
        %v1313 = vshrl.u32 %v1312, 7
        %v1314 = vsub.s32 %v1311, %v1313
        %v1315 = vrot.slane %v1305, %v1314
        %v1317 = vunpack.c.l.s4 1983009808
        %v1318 = vunpack.c.0.s8 %v1317
        %v1319 = vlaneseq
        %v1320 = vshrl.u32 %v1319, 7
        %v1321 = vsub.s32 %v1318, %v1320
        %v1322 = vrot.slane %v1306, %v1321
        %v1324 = vunpack.c.l.s4 1983009808
        %v1325 = vunpack.c.0.s8 %v1324
        %v1326 = vlaneseq
        %v1327 = vshrl.u32 %v1326, 7
        %v1328 = vsub.s32 %v1325, %v1327
        %v1329 = vrot.slane %v1307, %v1328
        %v1331 = vunpack.c.l.s4 1983009808
        %v1332 = vunpack.c.0.s8 %v1331
        %v1333 = vlaneseq
        %v1334 = vshrl.u32 %v1333, 7
        %v1335 = vsub.s32 %v1332, %v1334
        %v1336 = vrot.slane %v1308, %v1335
        %v1337 = vcombine.low %v1315, %v1329
        %v1338 = vcombine.high %v1315, %v1329
        %v1339 = vcombine.low %v1322, %v1336
        %v1340 = vcombine.high %v1322, %v1336
        %v1341 = vcombine.high %v778, %v778
        %v1343 = vunpack.c.l.s4 1983009808
        %v1344 = vunpack.c.0.s8 %v1343
        %v1345 = vlaneseq
        %v1346 = vshrl.u32 %v1345, 7
        %v1347 = vsub.s32 %v1344, %v1346
        %v1348 = vrot.slane %v778, %v1347
        %v1350 = vunpack.c.l.s4 1983009808
        %v1351 = vunpack.c.0.s8 %v1350
        %v1352 = vlaneseq
        %v1353 = vshrl.u32 %v1352, 7
        %v1354 = vsub.s32 %v1351, %v1353
        %v1355 = vrot.slane %v1341, %v1354
        %v1356 = vcombine.high %v1348, %v1348
        %v1357 = vcombine.high %v1355, %v1355
        %v1358 = vcombine.low %v552, %v647
        %v1359 = vcombine.high %v552, %v647
        %v1360 = vcombine.low %v695, %v744
        %v1361 = vcombine.high %v695, %v744
        %v1363 = vunpack.c.l.s4 1983009808
        %v1364 = vunpack.c.0.s8 %v1363
        %v1365 = vlaneseq
        %v1366 = vshrl.u32 %v1365, 7
        %v1367 = vsub.s32 %v1364, %v1366
        %v1368 = vrot.slane %v1358, %v1367
        %v1370 = vunpack.c.l.s4 1983009808
        %v1371 = vunpack.c.0.s8 %v1370
        %v1372 = vlaneseq
        %v1373 = vshrl.u32 %v1372, 7
        %v1374 = vsub.s32 %v1371, %v1373
        %v1375 = vrot.slane %v1359, %v1374
        %v1377 = vunpack.c.l.s4 1983009808
        %v1378 = vunpack.c.0.s8 %v1377
        %v1379 = vlaneseq
        %v1380 = vshrl.u32 %v1379, 7
        %v1381 = vsub.s32 %v1378, %v1380
        %v1382 = vrot.slane %v1360, %v1381
        %v1384 = vunpack.c.l.s4 1983009808
        %v1385 = vunpack.c.0.s8 %v1384
        %v1386 = vlaneseq
        %v1387 = vshrl.u32 %v1386, 7
        %v1388 = vsub.s32 %v1385, %v1387
        %v1389 = vrot.slane %v1361, %v1388
        %v1390 = vcombine.low %v1368, %v1382
        %v1391 = vcombine.high %v1368, %v1382
        %v1392 = vcombine.low %v1375, %v1389
        %v1393 = vcombine.high %v777, %v777
        %v1395 = vunpack.c.l.s4 1983009808
        %v1396 = vunpack.c.0.s8 %v1395
        %v1397 = vlaneseq
        %v1398 = vshrl.u32 %v1397, 7
        %v1399 = vsub.s32 %v1396, %v1398
        %v1400 = vrot.slane %v777, %v1399
        %v1402 = vunpack.c.l.s4 1983009808
        %v1403 = vunpack.c.0.s8 %v1402
        %v1404 = vlaneseq
        %v1405 = vshrl.u32 %v1404, 7
        %v1406 = vsub.s32 %v1403, %v1405
        %v1407 = vrot.slane %v1393, %v1406
        %v1408 = vcombine.high %v1400, %v1400
        %v1409 = vcombine.low %v553, %v659
        %v1410 = vcombine.high %v553, %v659
        %v1411 = vcombine.low %v699, %v752
        %v1412 = vcombine.high %v699, %v752
        %v1414 = vunpack.c.l.s4 1983009808
        %v1415 = vunpack.c.0.s8 %v1414
        %v1416 = vlaneseq
        %v1417 = vshrl.u32 %v1416, 7
        %v1418 = vsub.s32 %v1415, %v1417
        %v1419 = vrot.slane %v1409, %v1418
        %v1421 = vunpack.c.l.s4 1983009808
        %v1422 = vunpack.c.0.s8 %v1421
        %v1423 = vlaneseq
        %v1424 = vshrl.u32 %v1423, 7
        %v1425 = vsub.s32 %v1422, %v1424
        %v1426 = vrot.slane %v1410, %v1425
        %v1428 = vunpack.c.l.s4 1983009808
        %v1429 = vunpack.c.0.s8 %v1428
        %v1430 = vlaneseq
        %v1431 = vshrl.u32 %v1430, 7
        %v1432 = vsub.s32 %v1429, %v1431
        %v1433 = vrot.slane %v1411, %v1432
        %v1435 = vunpack.c.l.s4 1983009808
        %v1436 = vunpack.c.0.s8 %v1435
        %v1437 = vlaneseq
        %v1438 = vshrl.u32 %v1437, 7
        %v1439 = vsub.s32 %v1436, %v1438
        %v1440 = vrot.slane %v1412, %v1439
        %v1441 = vcombine.low %v1419, %v1433
        %v1442 = vcombine.high %v1419, %v1433
        %v1443 = vcombine.low %v1426, %v1440
        %v1444 = vcombine.high %v1426, %v1440
        %v1445 = vcombine.high %v781, %v781
        %v1447 = vunpack.c.l.s4 1983009808
        %v1448 = vunpack.c.0.s8 %v1447
        %v1449 = vlaneseq
        %v1450 = vshrl.u32 %v1449, 7
        %v1451 = vsub.s32 %v1448, %v1450
        %v1452 = vrot.slane %v781, %v1451
        %v1454 = vunpack.c.l.s4 1983009808
        %v1455 = vunpack.c.0.s8 %v1454
        %v1456 = vlaneseq
        %v1457 = vshrl.u32 %v1456, 7
        %v1458 = vsub.s32 %v1455, %v1457
        %v1459 = vrot.slane %v1445, %v1458
        %v1460 = vcombine.high %v1452, %v1452
        %v1461 = vcombine.high %v1459, %v1459
        %v1462 = vcombine.low %v554, %v662
        %v1463 = vcombine.high %v554, %v662
        %v1464 = vcombine.low %v698, %v751
        %v1465 = vcombine.high %v698, %v751
        %v1467 = vunpack.c.l.s4 1983009808
        %v1468 = vunpack.c.0.s8 %v1467
        %v1469 = vlaneseq
        %v1470 = vshrl.u32 %v1469, 7
        %v1471 = vsub.s32 %v1468, %v1470
        %v1472 = vrot.slane %v1462, %v1471
        %v1474 = vunpack.c.l.s4 1983009808
        %v1475 = vunpack.c.0.s8 %v1474
        %v1476 = vlaneseq
        %v1477 = vshrl.u32 %v1476, 7
        %v1478 = vsub.s32 %v1475, %v1477
        %v1479 = vrot.slane %v1463, %v1478
        %v1481 = vunpack.c.l.s4 1983009808
        %v1482 = vunpack.c.0.s8 %v1481
        %v1483 = vlaneseq
        %v1484 = vshrl.u32 %v1483, 7
        %v1485 = vsub.s32 %v1482, %v1484
        %v1486 = vrot.slane %v1464, %v1485
        %v1488 = vunpack.c.l.s4 1983009808
        %v1489 = vunpack.c.0.s8 %v1488
        %v1490 = vlaneseq
        %v1491 = vshrl.u32 %v1490, 7
        %v1492 = vsub.s32 %v1489, %v1491
        %v1493 = vrot.slane %v1465, %v1492
        %v1494 = vcombine.low %v1472, %v1486
        %v1495 = vcombine.high %v1472, %v1486
        %v1496 = vcombine.low %v1479, %v1493
        %v1497 = vcombine.high %v780, %v780
        %v1499 = vunpack.c.l.s4 1983009808
        %v1500 = vunpack.c.0.s8 %v1499
        %v1501 = vlaneseq
        %v1502 = vshrl.u32 %v1501, 7
        %v1503 = vsub.s32 %v1500, %v1502
        %v1504 = vrot.slane %v780, %v1503
        %v1506 = vunpack.c.l.s4 1983009808
        %v1507 = vunpack.c.0.s8 %v1506
        %v1508 = vlaneseq
        %v1509 = vshrl.u32 %v1508, 7
        %v1510 = vsub.s32 %v1507, %v1509
        %v1511 = vrot.slane %v1497, %v1510
        %v1512 = vcombine.high %v1504, %v1504
        %v1513 = vcombine.low %v555, %v674
        %v1514 = vcombine.high %v555, %v674
        %v1515 = vcombine.low %v702, %v759
        %v1516 = vcombine.high %v702, %v759
        %v1518 = vunpack.c.l.s4 1983009808
        %v1519 = vunpack.c.0.s8 %v1518
        %v1520 = vlaneseq
        %v1521 = vshrl.u32 %v1520, 7
        %v1522 = vsub.s32 %v1519, %v1521
        %v1523 = vrot.slane %v1513, %v1522
        %v1525 = vunpack.c.l.s4 1983009808
        %v1526 = vunpack.c.0.s8 %v1525
        %v1527 = vlaneseq
        %v1528 = vshrl.u32 %v1527, 7
        %v1529 = vsub.s32 %v1526, %v1528
        %v1530 = vrot.slane %v1514, %v1529
        %v1532 = vunpack.c.l.s4 1983009808
        %v1533 = vunpack.c.0.s8 %v1532
        %v1534 = vlaneseq
        %v1535 = vshrl.u32 %v1534, 7
        %v1536 = vsub.s32 %v1533, %v1535
        %v1537 = vrot.slane %v1515, %v1536
        %v1539 = vunpack.c.l.s4 1983009808
        %v1540 = vunpack.c.0.s8 %v1539
        %v1541 = vlaneseq
        %v1542 = vshrl.u32 %v1541, 7
        %v1543 = vsub.s32 %v1540, %v1542
        %v1544 = vrot.slane %v1516, %v1543
        %v1545 = vcombine.low %v1523, %v1537
        %v1546 = vcombine.high %v1523, %v1537
        %v1547 = vcombine.low %v1530, %v1544
        %v1548 = vcombine.high %v1530, %v1544
        %v1549 = vcombine.high %v784, %v784
        %v1551 = vunpack.c.l.s4 1983009808
        %v1552 = vunpack.c.0.s8 %v1551
        %v1553 = vlaneseq
        %v1554 = vshrl.u32 %v1553, 7
        %v1555 = vsub.s32 %v1552, %v1554
        %v1556 = vrot.slane %v784, %v1555
        %v1558 = vunpack.c.l.s4 1983009808
        %v1559 = vunpack.c.0.s8 %v1558
        %v1560 = vlaneseq
        %v1561 = vshrl.u32 %v1560, 7
        %v1562 = vsub.s32 %v1559, %v1561
        %v1563 = vrot.slane %v1549, %v1562
        %v1564 = vcombine.high %v1556, %v1556
        %v1565 = vcombine.high %v1563, %v1563
        %v1566 = vcombine.low %v556, %v677
        %v1567 = vcombine.high %v556, %v677
        %v1568 = vcombine.low %v701, %v758
        %v1569 = vcombine.high %v701, %v758
        %v1571 = vunpack.c.l.s4 1983009808
        %v1572 = vunpack.c.0.s8 %v1571
        %v1573 = vlaneseq
        %v1574 = vshrl.u32 %v1573, 7
        %v1575 = vsub.s32 %v1572, %v1574
        %v1576 = vrot.slane %v1566, %v1575
        %v1578 = vunpack.c.l.s4 1983009808
        %v1579 = vunpack.c.0.s8 %v1578
        %v1580 = vlaneseq
        %v1581 = vshrl.u32 %v1580, 7
        %v1582 = vsub.s32 %v1579, %v1581
        %v1583 = vrot.slane %v1567, %v1582
        %v1585 = vunpack.c.l.s4 1983009808
        %v1586 = vunpack.c.0.s8 %v1585
        %v1587 = vlaneseq
        %v1588 = vshrl.u32 %v1587, 7
        %v1589 = vsub.s32 %v1586, %v1588
        %v1590 = vrot.slane %v1568, %v1589
        %v1592 = vunpack.c.l.s4 1983009808
        %v1593 = vunpack.c.0.s8 %v1592
        %v1594 = vlaneseq
        %v1595 = vshrl.u32 %v1594, 7
        %v1596 = vsub.s32 %v1593, %v1595
        %v1597 = vrot.slane %v1569, %v1596
        %v1598 = vcombine.low %v1576, %v1590
        %v1599 = vcombine.high %v1576, %v1590
        %v1600 = vcombine.low %v1583, %v1597
        %v1601 = vcombine.high %v783, %v783
        %v1603 = vunpack.c.l.s4 1983009808
        %v1604 = vunpack.c.0.s8 %v1603
        %v1605 = vlaneseq
        %v1606 = vshrl.u32 %v1605, 7
        %v1607 = vsub.s32 %v1604, %v1606
        %v1608 = vrot.slane %v783, %v1607
        %v1610 = vunpack.c.l.s4 1983009808
        %v1611 = vunpack.c.0.s8 %v1610
        %v1612 = vlaneseq
        %v1613 = vshrl.u32 %v1612, 7
        %v1614 = vsub.s32 %v1611, %v1613
        %v1615 = vrot.slane %v1601, %v1614
        %v1616 = vcombine.high %v1608, %v1608
        %v1617 = vld [vmem:[%s1] sm:$0xff]
        %v1618 = vld [vmem:[%s1 + $0x8] sm:$0xff]
        %v1619 = vld [vmem:[%s1 + $0x10] sm:$0xff]
        %v1620 = vld [vmem:[%s1 + $0x18] sm:$0xff]
        %v1621 = vld [vmem:[%s1 + $0x20] sm:$0xff]
        %v1622 = vld [vmem:[%s1 + $0x28] sm:$0xff]
        %v1623 = vld [vmem:[%s1 + $0x30] sm:$0xff]
        %v1624 = vld [vmem:[%s1 + $0x38] sm:$0xff]
        %v1625 = vld [vmem:[%s1 + $0x40] sm:$0xff]
        %v1626 = vld [vmem:[%s1 + $0x48] sm:$0xff]
        %v1627 = vld [vmem:[%s1 + $0x50] sm:$0xff]
        %v1628 = vld [vmem:[%s1 + $0x58] sm:$0xff]
        %v1629 = vld [vmem:[%s1 + $0x60] sm:$0xff]
        %v1630 = vld [vmem:[%s1 + $0x68] sm:$0xff]
        %v1631 = vld [vmem:[%s1 + $0x70] sm:$0xff]
        %v1632 = vld [vmem:[%s1 + $0x78] sm:$0xff]
        %v1633 = vld [vmem:[%s1 + $0x80] sm:$0xff]
        %v1634 = vld [vmem:[%s1 + $0x88] sm:$0xff]
        %v1635 = vld [vmem:[%s1 + $0x90] sm:$0xff]
        %v1636 = vld [vmem:[%s1 + $0x98] sm:$0xff]
        %v1637 = vld [vmem:[%s1 + $0xa0] sm:$0xff]
        %v1638 = vld [vmem:[%s1 + $0xa8] sm:$0xff]
        %v1639 = vld [vmem:[%s1 + $0xb0] sm:$0xff]
        %v1640 = vld [vmem:[%s1 + $0xb8] sm:$0xff]
        %v1641 = vld [vmem:[%s1 + $0xc0] sm:$0xff]
        %v1642 = vld [vmem:[%s1 + $0xc8] sm:$0xff]
        %v1643 = vld [vmem:[%s1 + $0xd0] sm:$0xff]
        %v1644 = vld [vmem:[%s1 + $0xd8] sm:$0xff]
        %v1645 = vld [vmem:[%s1 + $0xe0] sm:$0xff]
        %v1646 = vld [vmem:[%s1 + $0xe8] sm:$0xff]
        %v1647 = vld [vmem:[%s1 + $0xf0] sm:$0xff]
        %v1648 = vld [vmem:[%s1 + $0xf8] sm:$0xff]
        %v1649 = vld [vmem:[%s1 + $0x100] sm:$0xff]
        %v1650 = vld [vmem:[%s1 + $0x108] sm:$0xff]
        %v1651 = vld [vmem:[%s1 + $0x110] sm:$0xff]
        %v1652 = vld [vmem:[%s1 + $0x118] sm:$0xff]
        %v1653 = vld [vmem:[%s1 + $0x120] sm:$0xff]
        %v1654 = vld [vmem:[%s1 + $0x128] sm:$0xff]
        %v1655 = vld [vmem:[%s1 + $0x130] sm:$0xff]
        %v1656 = vld [vmem:[%s1 + $0x138] sm:$0xff]
        %v1657 = vld [vmem:[%s1 + $0x140] sm:$0xff]
        %v1658 = vld [vmem:[%s1 + $0x148] sm:$0xff]
        %v1659 = vld [vmem:[%s1 + $0x150] sm:$0xff]
        %v1660 = vld [vmem:[%s1 + $0x158] sm:$0xff]
        %v1661 = vld [vmem:[%s1 + $0x160] sm:$0xff]
        %v1662 = vld [vmem:[%s1 + $0x168] sm:$0xff]
        %v1663 = vld [vmem:[%s1 + $0x170] sm:$0xff]
        %v1664 = vld [vmem:[%s1 + $0x178] sm:$0xff]
        %v1665 = vld [vmem:[%s1 + $0x180] sm:$0xff]
        %v1666 = vld [vmem:[%s1 + $0x188] sm:$0xff]
        %v1667 = vld [vmem:[%s1 + $0x190] sm:$0xff]
        %v1668 = vld [vmem:[%s1 + $0x198] sm:$0xff]
        %v1669 = vld [vmem:[%s1 + $0x1a0] sm:$0xff]
        %v1670 = vld [vmem:[%s1 + $0x1a8] sm:$0xff]
        %v1671 = vld [vmem:[%s1 + $0x1b0] sm:$0xff]
        %v1672 = vld [vmem:[%s1 + $0x1b8] sm:$0xff]
        %v1673 = vld [vmem:[%s1 + $0x1c0] sm:$0xff]
        %v1674 = vld [vmem:[%s1 + $0x1c8] sm:$0xff]
        %v1675 = vld [vmem:[%s1 + $0x1d0] sm:$0xff]
        %v1676 = vld [vmem:[%s1 + $0x1d8] sm:$0xff]
        %v1677 = vld [vmem:[%s1 + $0x1e0] sm:$0xff]
        %v1678 = vld [vmem:[%s1 + $0x1e8] sm:$0xff]
        %v1679 = vld [vmem:[%s1 + $0x1f0] sm:$0xff]
        %v1680 = vld [vmem:[%s1 + $0x1f8] sm:$0xff]
        %v1681 = vld [vmem:[%s1 + $0x200] sm:$0xff]
        %v1682 = vld [vmem:[%s1 + $0x208] sm:$0xff]
        %v1683 = vld [vmem:[%s1 + $0x210] sm:$0xff]
        %v1684 = vld [vmem:[%s1 + $0x218] sm:$0xff]
        %v1685 = vld [vmem:[%s1 + $0x220] sm:$0xff]
        %v1686 = vld [vmem:[%s1 + $0x228] sm:$0xff]
        %v1687 = vld [vmem:[%s1 + $0x230] sm:$0xff]
        %v1688 = vld [vmem:[%s1 + $0x238] sm:$0xff]
        %v1689 = vld [vmem:[%s1 + $0x240] sm:$0xff]
        %v1690 = vld [vmem:[%s1 + $0x248] sm:$0xff]
        %v1691 = vld [vmem:[%s1 + $0x250] sm:$0xff]
        %v1692 = vld [vmem:[%s1 + $0x258] sm:$0xff]
        %v1693 = vld [vmem:[%s1 + $0x260] sm:$0xff]
        %v1694 = vld [vmem:[%s1 + $0x268] sm:$0xff]
        %v1695 = vld [vmem:[%s1 + $0x270] sm:$0xff]
        %v1696 = vld [vmem:[%s1 + $0x278] sm:$0xff]
        %v1697 = vld [vmem:[%s2] sm:$0x3]
        %v1699 = vlaneseq
        %v1700 = vshrl.u32 %v1699, 7
        %v1701 = vsub.s32 0, %v1700
        %v1702 = vrot.slane %v1697, %v1701
        %v1703 = vlaneseq
        %v1704 = vshrl.u32 %v1703, 7
        %v1705 = vsub.s32 1, %v1704
        %v1706 = vrot.slane %v1697, %v1705
        %v1709 = vcombine.low %v817, %v818
        %v1710 = vcombine.high %v817, %v818
        %v1711 = vcombine.low %v819, %v820
        %v1712 = vcombine.high %v819, %v820
        %v1714 = vunpack.c.l.s4 1983009808
        %v1715 = vunpack.c.0.s8 %v1714
        %v1716 = vlaneseq
        %v1717 = vshrl.u32 %v1716, 7
        %v1718 = vsub.s32 %v1715, %v1717
        %v1719 = vrot.slane %v1709, %v1718
        %v1721 = vunpack.c.l.s4 1983009808
        %v1722 = vunpack.c.0.s8 %v1721
        %v1723 = vlaneseq
        %v1724 = vshrl.u32 %v1723, 7
        %v1725 = vsub.s32 %v1722, %v1724
        %v1726 = vrot.slane %v1710, %v1725
        %v1728 = vunpack.c.l.s4 1983009808
        %v1729 = vunpack.c.0.s8 %v1728
        %v1730 = vlaneseq
        %v1731 = vshrl.u32 %v1730, 7
        %v1732 = vsub.s32 %v1729, %v1731
        %v1733 = vrot.slane %v1711, %v1732
        %v1735 = vunpack.c.l.s4 1983009808
        %v1736 = vunpack.c.0.s8 %v1735
        %v1737 = vlaneseq
        %v1738 = vshrl.u32 %v1737, 7
        %v1739 = vsub.s32 %v1736, %v1738
        %v1740 = vrot.slane %v1712, %v1739
        %v1741 = vcombine.low %v1719, %v1733
        %v1742 = vcombine.high %v1719, %v1733
        %v1743 = vcombine.low %v1726, %v1740
        %v1744 = vcombine.high %v1726, %v1740
        %v1745 = vcombine.low %v828, %v836
        %v1746 = vcombine.low %v835, %v837
        %v1748 = vunpack.c.l.s4 1983009808
        %v1749 = vunpack.c.0.s8 %v1748
        %v1750 = vlaneseq
        %v1751 = vshrl.u32 %v1750, 7
        %v1752 = vsub.s32 %v1749, %v1751
        %v1753 = vrot.slane %v1745, %v1752
        %v1755 = vunpack.c.l.s4 1983009808
        %v1756 = vunpack.c.0.s8 %v1755
        %v1757 = vlaneseq
        %v1758 = vshrl.u32 %v1757, 7
        %v1759 = vsub.s32 %v1756, %v1758
        %v1760 = vrot.slane %v1746, %v1759
        %v1761 = vcombine.low %v1753, %v1760
        %v1762 = vcombine.low %v870, %v871
        %v1763 = vcombine.high %v870, %v871
        %v1764 = vcombine.low %v872, %v921
        %v1765 = vcombine.high %v872, %v921
        %v1767 = vunpack.c.l.s4 1983009808
        %v1768 = vunpack.c.0.s8 %v1767
        %v1769 = vlaneseq
        %v1770 = vshrl.u32 %v1769, 7
        %v1771 = vsub.s32 %v1768, %v1770
        %v1772 = vrot.slane %v1762, %v1771
        %v1774 = vunpack.c.l.s4 1983009808
        %v1775 = vunpack.c.0.s8 %v1774
        %v1776 = vlaneseq
        %v1777 = vshrl.u32 %v1776, 7
        %v1778 = vsub.s32 %v1775, %v1777
        %v1779 = vrot.slane %v1763, %v1778
        %v1781 = vunpack.c.l.s4 1983009808
        %v1782 = vunpack.c.0.s8 %v1781
        %v1783 = vlaneseq
        %v1784 = vshrl.u32 %v1783, 7
        %v1785 = vsub.s32 %v1782, %v1784
        %v1786 = vrot.slane %v1764, %v1785
        %v1788 = vunpack.c.l.s4 1983009808
        %v1789 = vunpack.c.0.s8 %v1788
        %v1790 = vlaneseq
        %v1791 = vshrl.u32 %v1790, 7
        %v1792 = vsub.s32 %v1789, %v1791
        %v1793 = vrot.slane %v1765, %v1792
        %v1794 = vcombine.low %v1772, %v1786
        %v1795 = vcombine.high %v1772, %v1786
        %v1796 = vcombine.low %v1779, %v1793
        %v1797 = vcombine.high %v1779, %v1793
        %v1798 = vcombine.low %v880, %v888
        %v1799 = vcombine.low %v887, %v932
        %v1801 = vunpack.c.l.s4 1983009808
        %v1802 = vunpack.c.0.s8 %v1801
        %v1803 = vlaneseq
        %v1804 = vshrl.u32 %v1803, 7
        %v1805 = vsub.s32 %v1802, %v1804
        %v1806 = vrot.slane %v1798, %v1805
        %v1808 = vunpack.c.l.s4 1983009808
        %v1809 = vunpack.c.0.s8 %v1808
        %v1810 = vlaneseq
        %v1811 = vshrl.u32 %v1810, 7
        %v1812 = vsub.s32 %v1809, %v1811
        %v1813 = vrot.slane %v1799, %v1812
        %v1814 = vcombine.low %v1806, %v1813
        %v1815 = vcombine.low %v922, %v923
        %v1816 = vcombine.high %v922, %v923
        %v1817 = vcombine.low %v924, %v974
        %v1818 = vcombine.high %v924, %v974
        %v1820 = vunpack.c.l.s4 1983009808
        %v1821 = vunpack.c.0.s8 %v1820
        %v1822 = vlaneseq
        %v1823 = vshrl.u32 %v1822, 7
        %v1824 = vsub.s32 %v1821, %v1823
        %v1825 = vrot.slane %v1815, %v1824
        %v1827 = vunpack.c.l.s4 1983009808
        %v1828 = vunpack.c.0.s8 %v1827
        %v1829 = vlaneseq
        %v1830 = vshrl.u32 %v1829, 7
        %v1831 = vsub.s32 %v1828, %v1830
        %v1832 = vrot.slane %v1816, %v1831
        %v1834 = vunpack.c.l.s4 1983009808
        %v1835 = vunpack.c.0.s8 %v1834
        %v1836 = vlaneseq
        %v1837 = vshrl.u32 %v1836, 7
        %v1838 = vsub.s32 %v1835, %v1837
        %v1839 = vrot.slane %v1817, %v1838
        %v1841 = vunpack.c.l.s4 1983009808
        %v1842 = vunpack.c.0.s8 %v1841
        %v1843 = vlaneseq
        %v1844 = vshrl.u32 %v1843, 7
        %v1845 = vsub.s32 %v1842, %v1844
        %v1846 = vrot.slane %v1818, %v1845
        %v1847 = vcombine.low %v1825, %v1839
        %v1848 = vcombine.high %v1825, %v1839
        %v1849 = vcombine.low %v1832, %v1846
        %v1850 = vcombine.high %v1832, %v1846
        %v1851 = vcombine.low %v940, %v939
        %v1852 = vcombine.low %v941, %v984
        %v1854 = vunpack.c.l.s4 1983009808
        %v1855 = vunpack.c.0.s8 %v1854
        %v1856 = vlaneseq
        %v1857 = vshrl.u32 %v1856, 7
        %v1858 = vsub.s32 %v1855, %v1857
        %v1859 = vrot.slane %v1851, %v1858
        %v1861 = vunpack.c.l.s4 1983009808
        %v1862 = vunpack.c.0.s8 %v1861
        %v1863 = vlaneseq
        %v1864 = vshrl.u32 %v1863, 7
        %v1865 = vsub.s32 %v1862, %v1864
        %v1866 = vrot.slane %v1852, %v1865
        %v1867 = vcombine.low %v1859, %v1866
        %v1868 = vcombine.low %v975, %v976
        %v1869 = vcombine.high %v975, %v976
        %v1870 = vcombine.low %v1025, %v1026
        %v1871 = vcombine.high %v1025, %v1026
        %v1873 = vunpack.c.l.s4 1983009808
        %v1874 = vunpack.c.0.s8 %v1873
        %v1875 = vlaneseq
        %v1876 = vshrl.u32 %v1875, 7
        %v1877 = vsub.s32 %v1874, %v1876
        %v1878 = vrot.slane %v1868, %v1877
        %v1880 = vunpack.c.l.s4 1983009808
        %v1881 = vunpack.c.0.s8 %v1880
        %v1882 = vlaneseq
        %v1883 = vshrl.u32 %v1882, 7
        %v1884 = vsub.s32 %v1881, %v1883
        %v1885 = vrot.slane %v1869, %v1884
        %v1887 = vunpack.c.l.s4 1983009808
        %v1888 = vunpack.c.0.s8 %v1887
        %v1889 = vlaneseq
        %v1890 = vshrl.u32 %v1889, 7
        %v1891 = vsub.s32 %v1888, %v1890
        %v1892 = vrot.slane %v1870, %v1891
        %v1894 = vunpack.c.l.s4 1983009808
        %v1895 = vunpack.c.0.s8 %v1894
        %v1896 = vlaneseq
        %v1897 = vshrl.u32 %v1896, 7
        %v1898 = vsub.s32 %v1895, %v1897
        %v1899 = vrot.slane %v1871, %v1898
        %v1900 = vcombine.low %v1878, %v1892
        %v1901 = vcombine.high %v1878, %v1892
        %v1902 = vcombine.low %v1885, %v1899
        %v1903 = vcombine.high %v1885, %v1899
        %v1904 = vcombine.low %v992, %v991
        %v1905 = vcombine.low %v1036, %v1044
        %v1907 = vunpack.c.l.s4 1983009808
        %v1908 = vunpack.c.0.s8 %v1907
        %v1909 = vlaneseq
        %v1910 = vshrl.u32 %v1909, 7
        %v1911 = vsub.s32 %v1908, %v1910
        %v1912 = vrot.slane %v1904, %v1911
        %v1914 = vunpack.c.l.s4 1983009808
        %v1915 = vunpack.c.0.s8 %v1914
        %v1916 = vlaneseq
        %v1917 = vshrl.u32 %v1916, 7
        %v1918 = vsub.s32 %v1915, %v1917
        %v1919 = vrot.slane %v1905, %v1918
        %v1920 = vcombine.low %v1912, %v1919
        %v1921 = vcombine.low %v1027, %v1028
        %v1922 = vcombine.high %v1027, %v1028
        %v1923 = vcombine.low %v1078, %v1079
        %v1924 = vcombine.high %v1078, %v1079
        %v1926 = vunpack.c.l.s4 1983009808
        %v1927 = vunpack.c.0.s8 %v1926
        %v1928 = vlaneseq
        %v1929 = vshrl.u32 %v1928, 7
        %v1930 = vsub.s32 %v1927, %v1929
        %v1931 = vrot.slane %v1921, %v1930
        %v1933 = vunpack.c.l.s4 1983009808
        %v1934 = vunpack.c.0.s8 %v1933
        %v1935 = vlaneseq
        %v1936 = vshrl.u32 %v1935, 7
        %v1937 = vsub.s32 %v1934, %v1936
        %v1938 = vrot.slane %v1922, %v1937
        %v1940 = vunpack.c.l.s4 1983009808
        %v1941 = vunpack.c.0.s8 %v1940
        %v1942 = vlaneseq
        %v1943 = vshrl.u32 %v1942, 7
        %v1944 = vsub.s32 %v1941, %v1943
        %v1945 = vrot.slane %v1923, %v1944
        %v1947 = vunpack.c.l.s4 1983009808
        %v1948 = vunpack.c.0.s8 %v1947
        %v1949 = vlaneseq
        %v1950 = vshrl.u32 %v1949, 7
        %v1951 = vsub.s32 %v1948, %v1950
        %v1952 = vrot.slane %v1924, %v1951
        %v1953 = vcombine.low %v1931, %v1945
        %v1954 = vcombine.high %v1931, %v1945
        %v1955 = vcombine.low %v1938, %v1952
        %v1956 = vcombine.high %v1938, %v1952
        %v1957 = vcombine.low %v1043, %v1045
        %v1958 = vcombine.low %v1088, %v1096
        %v1960 = vunpack.c.l.s4 1983009808
        %v1961 = vunpack.c.0.s8 %v1960
        %v1962 = vlaneseq
        %v1963 = vshrl.u32 %v1962, 7
        %v1964 = vsub.s32 %v1961, %v1963
        %v1965 = vrot.slane %v1957, %v1964
        %v1967 = vunpack.c.l.s4 1983009808
        %v1968 = vunpack.c.0.s8 %v1967
        %v1969 = vlaneseq
        %v1970 = vshrl.u32 %v1969, 7
        %v1971 = vsub.s32 %v1968, %v1970
        %v1972 = vrot.slane %v1958, %v1971
        %v1973 = vcombine.low %v1965, %v1972
        %v1974 = vcombine.low %v1080, %v1129
        %v1975 = vcombine.high %v1080, %v1129
        %v1976 = vcombine.low %v1130, %v1131
        %v1977 = vcombine.high %v1130, %v1131
        %v1979 = vunpack.c.l.s4 1983009808
        %v1980 = vunpack.c.0.s8 %v1979
        %v1981 = vlaneseq
        %v1982 = vshrl.u32 %v1981, 7
        %v1983 = vsub.s32 %v1980, %v1982
        %v1984 = vrot.slane %v1974, %v1983
        %v1986 = vunpack.c.l.s4 1983009808
        %v1987 = vunpack.c.0.s8 %v1986
        %v1988 = vlaneseq
        %v1989 = vshrl.u32 %v1988, 7
        %v1990 = vsub.s32 %v1987, %v1989
        %v1991 = vrot.slane %v1975, %v1990
        %v1993 = vunpack.c.l.s4 1983009808
        %v1994 = vunpack.c.0.s8 %v1993
        %v1995 = vlaneseq
        %v1996 = vshrl.u32 %v1995, 7
        %v1997 = vsub.s32 %v1994, %v1996
        %v1998 = vrot.slane %v1976, %v1997
        %v2000 = vunpack.c.l.s4 1983009808
        %v2001 = vunpack.c.0.s8 %v2000
        %v2002 = vlaneseq
        %v2003 = vshrl.u32 %v2002, 7
        %v2004 = vsub.s32 %v2001, %v2003
        %v2005 = vrot.slane %v1977, %v2004
        %v2006 = vcombine.low %v1984, %v1998
        %v2007 = vcombine.high %v1984, %v1998
        %v2008 = vcombine.low %v1991, %v2005
        %v2009 = vcombine.high %v1991, %v2005
        %v2010 = vcombine.low %v1095, %v1140
        %v2011 = vcombine.low %v1148, %v1147
        %v2013 = vunpack.c.l.s4 1983009808
        %v2014 = vunpack.c.0.s8 %v2013
        %v2015 = vlaneseq
        %v2016 = vshrl.u32 %v2015, 7
        %v2017 = vsub.s32 %v2014, %v2016
        %v2018 = vrot.slane %v2010, %v2017
        %v2020 = vunpack.c.l.s4 1983009808
        %v2021 = vunpack.c.0.s8 %v2020
        %v2022 = vlaneseq
        %v2023 = vshrl.u32 %v2022, 7
        %v2024 = vsub.s32 %v2021, %v2023
        %v2025 = vrot.slane %v2011, %v2024
        %v2026 = vcombine.low %v2018, %v2025
        %v2027 = vcombine.low %v1132, %v1182
        %v2028 = vcombine.high %v1132, %v1182
        %v2029 = vcombine.low %v1183, %v1184
        %v2030 = vcombine.high %v1183, %v1184
        %v2032 = vunpack.c.l.s4 1983009808
        %v2033 = vunpack.c.0.s8 %v2032
        %v2034 = vlaneseq
        %v2035 = vshrl.u32 %v2034, 7
        %v2036 = vsub.s32 %v2033, %v2035
        %v2037 = vrot.slane %v2027, %v2036
        %v2039 = vunpack.c.l.s4 1983009808
        %v2040 = vunpack.c.0.s8 %v2039
        %v2041 = vlaneseq
        %v2042 = vshrl.u32 %v2041, 7
        %v2043 = vsub.s32 %v2040, %v2042
        %v2044 = vrot.slane %v2028, %v2043
        %v2046 = vunpack.c.l.s4 1983009808
        %v2047 = vunpack.c.0.s8 %v2046
        %v2048 = vlaneseq
        %v2049 = vshrl.u32 %v2048, 7
        %v2050 = vsub.s32 %v2047, %v2049
        %v2051 = vrot.slane %v2029, %v2050
        %v2053 = vunpack.c.l.s4 1983009808
        %v2054 = vunpack.c.0.s8 %v2053
        %v2055 = vlaneseq
        %v2056 = vshrl.u32 %v2055, 7
        %v2057 = vsub.s32 %v2054, %v2056
        %v2058 = vrot.slane %v2030, %v2057
        %v2059 = vcombine.low %v2037, %v2051
        %v2060 = vcombine.high %v2037, %v2051
        %v2061 = vcombine.low %v2044, %v2058
        %v2062 = vcombine.high %v2044, %v2058
        %v2063 = vcombine.low %v1149, %v1192
        %v2064 = vcombine.low %v1200, %v1199
        %v2066 = vunpack.c.l.s4 1983009808
        %v2067 = vunpack.c.0.s8 %v2066
        %v2068 = vlaneseq
        %v2069 = vshrl.u32 %v2068, 7
        %v2070 = vsub.s32 %v2067, %v2069
        %v2071 = vrot.slane %v2063, %v2070
        %v2073 = vunpack.c.l.s4 1983009808
        %v2074 = vunpack.c.0.s8 %v2073
        %v2075 = vlaneseq
        %v2076 = vshrl.u32 %v2075, 7
        %v2077 = vsub.s32 %v2074, %v2076
        %v2078 = vrot.slane %v2064, %v2077
        %v2079 = vcombine.low %v2071, %v2078
        %v2080 = vcombine.low %v1233, %v1234
        %v2081 = vcombine.high %v1233, %v1234
        %v2082 = vcombine.low %v1235, %v1236
        %v2083 = vcombine.high %v1235, %v1236
        %v2085 = vunpack.c.l.s4 1983009808
        %v2086 = vunpack.c.0.s8 %v2085
        %v2087 = vlaneseq
        %v2088 = vshrl.u32 %v2087, 7
        %v2089 = vsub.s32 %v2086, %v2088
        %v2090 = vrot.slane %v2080, %v2089
        %v2092 = vunpack.c.l.s4 1983009808
        %v2093 = vunpack.c.0.s8 %v2092
        %v2094 = vlaneseq
        %v2095 = vshrl.u32 %v2094, 7
        %v2096 = vsub.s32 %v2093, %v2095
        %v2097 = vrot.slane %v2081, %v2096
        %v2099 = vunpack.c.l.s4 1983009808
        %v2100 = vunpack.c.0.s8 %v2099
        %v2101 = vlaneseq
        %v2102 = vshrl.u32 %v2101, 7
        %v2103 = vsub.s32 %v2100, %v2102
        %v2104 = vrot.slane %v2082, %v2103
        %v2106 = vunpack.c.l.s4 1983009808
        %v2107 = vunpack.c.0.s8 %v2106
        %v2108 = vlaneseq
        %v2109 = vshrl.u32 %v2108, 7
        %v2110 = vsub.s32 %v2107, %v2109
        %v2111 = vrot.slane %v2083, %v2110
        %v2112 = vcombine.low %v2090, %v2104
        %v2113 = vcombine.high %v2090, %v2104
        %v2114 = vcombine.low %v2097, %v2111
        %v2115 = vcombine.high %v2097, %v2111
        %v2116 = vcombine.low %v1244, %v1252
        %v2117 = vcombine.low %v1251, %v1253
        %v2119 = vunpack.c.l.s4 1983009808
        %v2120 = vunpack.c.0.s8 %v2119
        %v2121 = vlaneseq
        %v2122 = vshrl.u32 %v2121, 7
        %v2123 = vsub.s32 %v2120, %v2122
        %v2124 = vrot.slane %v2116, %v2123
        %v2126 = vunpack.c.l.s4 1983009808
        %v2127 = vunpack.c.0.s8 %v2126
        %v2128 = vlaneseq
        %v2129 = vshrl.u32 %v2128, 7
        %v2130 = vsub.s32 %v2127, %v2129
        %v2131 = vrot.slane %v2117, %v2130
        %v2132 = vcombine.low %v2124, %v2131
        %v2133 = vcombine.low %v1286, %v1287
        %v2134 = vcombine.high %v1286, %v1287
        %v2135 = vcombine.low %v1288, %v1337
        %v2136 = vcombine.high %v1288, %v1337
        %v2138 = vunpack.c.l.s4 1983009808
        %v2139 = vunpack.c.0.s8 %v2138
        %v2140 = vlaneseq
        %v2141 = vshrl.u32 %v2140, 7
        %v2142 = vsub.s32 %v2139, %v2141
        %v2143 = vrot.slane %v2133, %v2142
        %v2145 = vunpack.c.l.s4 1983009808
        %v2146 = vunpack.c.0.s8 %v2145
        %v2147 = vlaneseq
        %v2148 = vshrl.u32 %v2147, 7
        %v2149 = vsub.s32 %v2146, %v2148
        %v2150 = vrot.slane %v2134, %v2149
        %v2152 = vunpack.c.l.s4 1983009808
        %v2153 = vunpack.c.0.s8 %v2152
        %v2154 = vlaneseq
        %v2155 = vshrl.u32 %v2154, 7
        %v2156 = vsub.s32 %v2153, %v2155
        %v2157 = vrot.slane %v2135, %v2156
        %v2159 = vunpack.c.l.s4 1983009808
        %v2160 = vunpack.c.0.s8 %v2159
        %v2161 = vlaneseq
        %v2162 = vshrl.u32 %v2161, 7
        %v2163 = vsub.s32 %v2160, %v2162
        %v2164 = vrot.slane %v2136, %v2163
        %v2165 = vcombine.low %v2143, %v2157
        %v2166 = vcombine.high %v2143, %v2157
        %v2167 = vcombine.low %v2150, %v2164
        %v2168 = vcombine.high %v2150, %v2164
        %v2169 = vcombine.low %v1296, %v1304
        %v2170 = vcombine.low %v1303, %v1348
        %v2172 = vunpack.c.l.s4 1983009808
        %v2173 = vunpack.c.0.s8 %v2172
        %v2174 = vlaneseq
        %v2175 = vshrl.u32 %v2174, 7
        %v2176 = vsub.s32 %v2173, %v2175
        %v2177 = vrot.slane %v2169, %v2176
        %v2179 = vunpack.c.l.s4 1983009808
        %v2180 = vunpack.c.0.s8 %v2179
        %v2181 = vlaneseq
        %v2182 = vshrl.u32 %v2181, 7
        %v2183 = vsub.s32 %v2180, %v2182
        %v2184 = vrot.slane %v2170, %v2183
        %v2185 = vcombine.low %v2177, %v2184
        %v2186 = vcombine.low %v1338, %v1339
        %v2187 = vcombine.high %v1338, %v1339
        %v2188 = vcombine.low %v1340, %v1390
        %v2189 = vcombine.high %v1340, %v1390
        %v2191 = vunpack.c.l.s4 1983009808
        %v2192 = vunpack.c.0.s8 %v2191
        %v2193 = vlaneseq
        %v2194 = vshrl.u32 %v2193, 7
        %v2195 = vsub.s32 %v2192, %v2194
        %v2196 = vrot.slane %v2186, %v2195
        %v2198 = vunpack.c.l.s4 1983009808
        %v2199 = vunpack.c.0.s8 %v2198
        %v2200 = vlaneseq
        %v2201 = vshrl.u32 %v2200, 7
        %v2202 = vsub.s32 %v2199, %v2201
        %v2203 = vrot.slane %v2187, %v2202
        %v2205 = vunpack.c.l.s4 1983009808
        %v2206 = vunpack.c.0.s8 %v2205
        %v2207 = vlaneseq
        %v2208 = vshrl.u32 %v2207, 7
        %v2209 = vsub.s32 %v2206, %v2208
        %v2210 = vrot.slane %v2188, %v2209
        %v2212 = vunpack.c.l.s4 1983009808
        %v2213 = vunpack.c.0.s8 %v2212
        %v2214 = vlaneseq
        %v2215 = vshrl.u32 %v2214, 7
        %v2216 = vsub.s32 %v2213, %v2215
        %v2217 = vrot.slane %v2189, %v2216
        %v2218 = vcombine.low %v2196, %v2210
        %v2219 = vcombine.high %v2196, %v2210
        %v2220 = vcombine.low %v2203, %v2217
        %v2221 = vcombine.high %v2203, %v2217
        %v2222 = vcombine.low %v1356, %v1355
        %v2223 = vcombine.low %v1357, %v1400
        %v2225 = vunpack.c.l.s4 1983009808
        %v2226 = vunpack.c.0.s8 %v2225
        %v2227 = vlaneseq
        %v2228 = vshrl.u32 %v2227, 7
        %v2229 = vsub.s32 %v2226, %v2228
        %v2230 = vrot.slane %v2222, %v2229
        %v2232 = vunpack.c.l.s4 1983009808
        %v2233 = vunpack.c.0.s8 %v2232
        %v2234 = vlaneseq
        %v2235 = vshrl.u32 %v2234, 7
        %v2236 = vsub.s32 %v2233, %v2235
        %v2237 = vrot.slane %v2223, %v2236
        %v2238 = vcombine.low %v2230, %v2237
        %v2239 = vcombine.low %v1391, %v1392
        %v2240 = vcombine.high %v1391, %v1392
        %v2241 = vcombine.low %v1441, %v1442
        %v2242 = vcombine.high %v1441, %v1442
        %v2244 = vunpack.c.l.s4 1983009808
        %v2245 = vunpack.c.0.s8 %v2244
        %v2246 = vlaneseq
        %v2247 = vshrl.u32 %v2246, 7
        %v2248 = vsub.s32 %v2245, %v2247
        %v2249 = vrot.slane %v2239, %v2248
        %v2251 = vunpack.c.l.s4 1983009808
        %v2252 = vunpack.c.0.s8 %v2251
        %v2253 = vlaneseq
        %v2254 = vshrl.u32 %v2253, 7
        %v2255 = vsub.s32 %v2252, %v2254
        %v2256 = vrot.slane %v2240, %v2255
        %v2258 = vunpack.c.l.s4 1983009808
        %v2259 = vunpack.c.0.s8 %v2258
        %v2260 = vlaneseq
        %v2261 = vshrl.u32 %v2260, 7
        %v2262 = vsub.s32 %v2259, %v2261
        %v2263 = vrot.slane %v2241, %v2262
        %v2265 = vunpack.c.l.s4 1983009808
        %v2266 = vunpack.c.0.s8 %v2265
        %v2267 = vlaneseq
        %v2268 = vshrl.u32 %v2267, 7
        %v2269 = vsub.s32 %v2266, %v2268
        %v2270 = vrot.slane %v2242, %v2269
        %v2271 = vcombine.low %v2249, %v2263
        %v2272 = vcombine.high %v2249, %v2263
        %v2273 = vcombine.low %v2256, %v2270
        %v2274 = vcombine.high %v2256, %v2270
        %v2275 = vcombine.low %v1408, %v1407
        %v2276 = vcombine.low %v1452, %v1460
        %v2278 = vunpack.c.l.s4 1983009808
        %v2279 = vunpack.c.0.s8 %v2278
        %v2280 = vlaneseq
        %v2281 = vshrl.u32 %v2280, 7
        %v2282 = vsub.s32 %v2279, %v2281
        %v2283 = vrot.slane %v2275, %v2282
        %v2285 = vunpack.c.l.s4 1983009808
        %v2286 = vunpack.c.0.s8 %v2285
        %v2287 = vlaneseq
        %v2288 = vshrl.u32 %v2287, 7
        %v2289 = vsub.s32 %v2286, %v2288
        %v2290 = vrot.slane %v2276, %v2289
        %v2291 = vcombine.low %v2283, %v2290
        %v2292 = vcombine.low %v1443, %v1444
        %v2293 = vcombine.high %v1443, %v1444
        %v2294 = vcombine.low %v1494, %v1495
        %v2295 = vcombine.high %v1494, %v1495
        %v2297 = vunpack.c.l.s4 1983009808
        %v2298 = vunpack.c.0.s8 %v2297
        %v2299 = vlaneseq
        %v2300 = vshrl.u32 %v2299, 7
        %v2301 = vsub.s32 %v2298, %v2300
        %v2302 = vrot.slane %v2292, %v2301
        %v2304 = vunpack.c.l.s4 1983009808
        %v2305 = vunpack.c.0.s8 %v2304
        %v2306 = vlaneseq
        %v2307 = vshrl.u32 %v2306, 7
        %v2308 = vsub.s32 %v2305, %v2307
        %v2309 = vrot.slane %v2293, %v2308
        %v2311 = vunpack.c.l.s4 1983009808
        %v2312 = vunpack.c.0.s8 %v2311
        %v2313 = vlaneseq
        %v2314 = vshrl.u32 %v2313, 7
        %v2315 = vsub.s32 %v2312, %v2314
        %v2316 = vrot.slane %v2294, %v2315
        %v2318 = vunpack.c.l.s4 1983009808
        %v2319 = vunpack.c.0.s8 %v2318
        %v2320 = vlaneseq
        %v2321 = vshrl.u32 %v2320, 7
        %v2322 = vsub.s32 %v2319, %v2321
        %v2323 = vrot.slane %v2295, %v2322
        %v2324 = vcombine.low %v2302, %v2316
        %v2325 = vcombine.high %v2302, %v2316
        %v2326 = vcombine.low %v2309, %v2323
        %v2327 = vcombine.high %v2309, %v2323
        %v2328 = vcombine.low %v1459, %v1461
        %v2329 = vcombine.low %v1504, %v1512
        %v2331 = vunpack.c.l.s4 1983009808
        %v2332 = vunpack.c.0.s8 %v2331
        %v2333 = vlaneseq
        %v2334 = vshrl.u32 %v2333, 7
        %v2335 = vsub.s32 %v2332, %v2334
        %v2336 = vrot.slane %v2328, %v2335
        %v2338 = vunpack.c.l.s4 1983009808
        %v2339 = vunpack.c.0.s8 %v2338
        %v2340 = vlaneseq
        %v2341 = vshrl.u32 %v2340, 7
        %v2342 = vsub.s32 %v2339, %v2341
        %v2343 = vrot.slane %v2329, %v2342
        %v2344 = vcombine.low %v2336, %v2343
        %v2345 = vcombine.low %v1496, %v1545
        %v2346 = vcombine.high %v1496, %v1545
        %v2347 = vcombine.low %v1546, %v1547
        %v2348 = vcombine.high %v1546, %v1547
        %v2350 = vunpack.c.l.s4 1983009808
        %v2351 = vunpack.c.0.s8 %v2350
        %v2352 = vlaneseq
        %v2353 = vshrl.u32 %v2352, 7
        %v2354 = vsub.s32 %v2351, %v2353
        %v2355 = vrot.slane %v2345, %v2354
        %v2357 = vunpack.c.l.s4 1983009808
        %v2358 = vunpack.c.0.s8 %v2357
        %v2359 = vlaneseq
        %v2360 = vshrl.u32 %v2359, 7
        %v2361 = vsub.s32 %v2358, %v2360
        %v2362 = vrot.slane %v2346, %v2361
        %v2364 = vunpack.c.l.s4 1983009808
        %v2365 = vunpack.c.0.s8 %v2364
        %v2366 = vlaneseq
        %v2367 = vshrl.u32 %v2366, 7
        %v2368 = vsub.s32 %v2365, %v2367
        %v2369 = vrot.slane %v2347, %v2368
        %v2371 = vunpack.c.l.s4 1983009808
        %v2372 = vunpack.c.0.s8 %v2371
        %v2373 = vlaneseq
        %v2374 = vshrl.u32 %v2373, 7
        %v2375 = vsub.s32 %v2372, %v2374
        %v2376 = vrot.slane %v2348, %v2375
        %v2377 = vcombine.low %v2355, %v2369
        %v2378 = vcombine.high %v2355, %v2369
        %v2379 = vcombine.low %v2362, %v2376
        %v2380 = vcombine.high %v2362, %v2376
        %v2381 = vcombine.low %v1511, %v1556
        %v2382 = vcombine.low %v1564, %v1563
        %v2384 = vunpack.c.l.s4 1983009808
        %v2385 = vunpack.c.0.s8 %v2384
        %v2386 = vlaneseq
        %v2387 = vshrl.u32 %v2386, 7
        %v2388 = vsub.s32 %v2385, %v2387
        %v2389 = vrot.slane %v2381, %v2388
        %v2391 = vunpack.c.l.s4 1983009808
        %v2392 = vunpack.c.0.s8 %v2391
        %v2393 = vlaneseq
        %v2394 = vshrl.u32 %v2393, 7
        %v2395 = vsub.s32 %v2392, %v2394
        %v2396 = vrot.slane %v2382, %v2395
        %v2397 = vcombine.low %v2389, %v2396
        %v2398 = vcombine.low %v1548, %v1598
        %v2399 = vcombine.high %v1548, %v1598
        %v2400 = vcombine.low %v1599, %v1600
        %v2401 = vcombine.high %v1599, %v1600
        %v2403 = vunpack.c.l.s4 1983009808
        %v2404 = vunpack.c.0.s8 %v2403
        %v2405 = vlaneseq
        %v2406 = vshrl.u32 %v2405, 7
        %v2407 = vsub.s32 %v2404, %v2406
        %v2408 = vrot.slane %v2398, %v2407
        %v2410 = vunpack.c.l.s4 1983009808
        %v2411 = vunpack.c.0.s8 %v2410
        %v2412 = vlaneseq
        %v2413 = vshrl.u32 %v2412, 7
        %v2414 = vsub.s32 %v2411, %v2413
        %v2415 = vrot.slane %v2399, %v2414
        %v2417 = vunpack.c.l.s4 1983009808
        %v2418 = vunpack.c.0.s8 %v2417
        %v2419 = vlaneseq
        %v2420 = vshrl.u32 %v2419, 7
        %v2421 = vsub.s32 %v2418, %v2420
        %v2422 = vrot.slane %v2400, %v2421
        %v2424 = vunpack.c.l.s4 1983009808
        %v2425 = vunpack.c.0.s8 %v2424
        %v2426 = vlaneseq
        %v2427 = vshrl.u32 %v2426, 7
        %v2428 = vsub.s32 %v2425, %v2427
        %v2429 = vrot.slane %v2401, %v2428
        %v2430 = vcombine.low %v2408, %v2422
        %v2431 = vcombine.high %v2408, %v2422
        %v2432 = vcombine.low %v2415, %v2429
        %v2433 = vcombine.high %v2415, %v2429
        %v2434 = vcombine.low %v1565, %v1608
        %v2435 = vcombine.low %v1616, %v1615
        %v2437 = vunpack.c.l.s4 1983009808
        %v2438 = vunpack.c.0.s8 %v2437
        %v2439 = vlaneseq
        %v2440 = vshrl.u32 %v2439, 7
        %v2441 = vsub.s32 %v2438, %v2440
        %v2442 = vrot.slane %v2434, %v2441
        %v2444 = vunpack.c.l.s4 1983009808
        %v2445 = vunpack.c.0.s8 %v2444
        %v2446 = vlaneseq
        %v2447 = vshrl.u32 %v2446, 7
        %v2448 = vsub.s32 %v2445, %v2447
        %v2449 = vrot.slane %v2435, %v2448
        %v2450 = vcombine.low %v2442, %v2449
        %v2601 = vunpack.c.l.b16 %v1617
        %v2602 = vunpack.c.h.b16 %v1617
        %v2603 = vunpack.c.l.b16 %v1618
        %v2604 = vunpack.c.h.b16 %v1618
        %v2605 = vunpack.c.l.b16 %v1619
        %v2606 = vunpack.c.h.b16 %v1619
        %v2607 = vunpack.c.l.b16 %v1620
        %v2608 = vunpack.c.h.b16 %v1620
        %v2609 = vunpack.c.l.b16 %v1621
        %v2610 = vunpack.c.h.b16 %v1621
        %v2611 = vunpack.c.l.b16 %v1622
        %v2612 = vunpack.c.h.b16 %v1622
        %v2613 = vunpack.c.l.b16 %v1623
        %v2614 = vunpack.c.h.b16 %v1623
        %v2615 = vunpack.c.l.b16 %v1624
        %v2616 = vunpack.c.h.b16 %v1624
        %v2617 = vunpack.c.l.b16 %v1625
        %v2618 = vunpack.c.h.b16 %v1625
        %v2619 = vunpack.c.l.b16 %v1626
        %v2620 = vunpack.c.h.b16 %v1626
        %v2621 = vunpack.c.l.b16 %v1627
        %v2622 = vunpack.c.h.b16 %v1627
        %v2623 = vunpack.c.l.b16 %v1628
        %v2624 = vunpack.c.h.b16 %v1628
        %v2625 = vunpack.c.l.b16 %v1629
        %v2626 = vunpack.c.h.b16 %v1629
        %v2627 = vunpack.c.l.b16 %v1630
        %v2628 = vunpack.c.h.b16 %v1630
        %v2629 = vunpack.c.l.b16 %v1631
        %v2630 = vunpack.c.h.b16 %v1631
        %v2631 = vunpack.c.l.b16 %v1632
        %v2632 = vunpack.c.h.b16 %v1632
        %v2633 = vunpack.c.l.b16 %v1633
        %v2634 = vunpack.c.h.b16 %v1633
        %v2635 = vunpack.c.l.b16 %v1634
        %v2636 = vunpack.c.h.b16 %v1634
        %v2637 = vunpack.c.l.b16 %v1635
        %v2638 = vunpack.c.h.b16 %v1635
        %v2639 = vunpack.c.l.b16 %v1636
        %v2640 = vunpack.c.h.b16 %v1636
        %v2641 = vunpack.c.l.b16 %v1637
        %v2642 = vunpack.c.h.b16 %v1637
        %v2643 = vunpack.c.l.b16 %v1638
        %v2644 = vunpack.c.h.b16 %v1638
        %v2645 = vunpack.c.l.b16 %v1639
        %v2646 = vunpack.c.h.b16 %v1639
        %v2647 = vunpack.c.l.b16 %v1640
        %v2648 = vunpack.c.h.b16 %v1640
        %v2649 = vunpack.c.l.b16 %v1641
        %v2650 = vunpack.c.h.b16 %v1641
        %v2651 = vunpack.c.l.b16 %v1642
        %v2652 = vunpack.c.h.b16 %v1642
        %v2653 = vunpack.c.l.b16 %v1643
        %v2654 = vunpack.c.h.b16 %v1643
        %v2655 = vunpack.c.l.b16 %v1644
        %v2656 = vunpack.c.h.b16 %v1644
        %v2657 = vunpack.c.l.b16 %v1645
        %v2658 = vunpack.c.h.b16 %v1645
        %v2659 = vunpack.c.l.b16 %v1646
        %v2660 = vunpack.c.h.b16 %v1646
        %v2661 = vunpack.c.l.b16 %v1647
        %v2662 = vunpack.c.h.b16 %v1647
        %v2663 = vunpack.c.l.b16 %v1648
        %v2664 = vunpack.c.h.b16 %v1648
        %v2665 = vunpack.c.l.b16 %v1649
        %v2666 = vunpack.c.h.b16 %v1649
        %v2667 = vunpack.c.l.b16 %v1650
        %v2668 = vunpack.c.h.b16 %v1650
        %v2669 = vunpack.c.l.b16 %v1651
        %v2670 = vunpack.c.h.b16 %v1651
        %v2671 = vunpack.c.l.b16 %v1652
        %v2672 = vunpack.c.h.b16 %v1652
        %v2673 = vunpack.c.l.b16 %v1653
        %v2674 = vunpack.c.h.b16 %v1653
        %v2675 = vunpack.c.l.b16 %v1654
        %v2676 = vunpack.c.h.b16 %v1654
        %v2677 = vunpack.c.l.b16 %v1655
        %v2678 = vunpack.c.h.b16 %v1655
        %v2679 = vunpack.c.l.b16 %v1656
        %v2680 = vunpack.c.h.b16 %v1656
        %v2681 = vunpack.c.l.b16 %v1657
        %v2682 = vunpack.c.h.b16 %v1657
        %v2683 = vunpack.c.l.b16 %v1658
        %v2684 = vunpack.c.h.b16 %v1658
        %v2685 = vunpack.c.l.b16 %v1659
        %v2686 = vunpack.c.h.b16 %v1659
        %v2687 = vunpack.c.l.b16 %v1660
        %v2688 = vunpack.c.h.b16 %v1660
        %v2689 = vunpack.c.l.b16 %v1661
        %v2690 = vunpack.c.h.b16 %v1661
        %v2691 = vunpack.c.l.b16 %v1662
        %v2692 = vunpack.c.h.b16 %v1662
        %v2693 = vunpack.c.l.b16 %v1663
        %v2694 = vunpack.c.h.b16 %v1663
        %v2695 = vunpack.c.l.b16 %v1664
        %v2696 = vunpack.c.h.b16 %v1664
        %v2697 = vunpack.c.l.b16 %v1665
        %v2698 = vunpack.c.h.b16 %v1665
        %v2699 = vunpack.c.l.b16 %v1666
        %v2700 = vunpack.c.h.b16 %v1666
        %v2701 = vunpack.c.l.b16 %v1667
        %v2702 = vunpack.c.h.b16 %v1667
        %v2703 = vunpack.c.l.b16 %v1668
        %v2704 = vunpack.c.h.b16 %v1668
        %v2705 = vunpack.c.l.b16 %v1669
        %v2706 = vunpack.c.h.b16 %v1669
        %v2707 = vunpack.c.l.b16 %v1670
        %v2708 = vunpack.c.h.b16 %v1670
        %v2709 = vunpack.c.l.b16 %v1671
        %v2710 = vunpack.c.h.b16 %v1671
        %v2711 = vunpack.c.l.b16 %v1672
        %v2712 = vunpack.c.h.b16 %v1672
        %v2713 = vunpack.c.l.b16 %v1673
        %v2714 = vunpack.c.h.b16 %v1673
        %v2715 = vunpack.c.l.b16 %v1674
        %v2716 = vunpack.c.h.b16 %v1674
        %v2717 = vunpack.c.l.b16 %v1675
        %v2718 = vunpack.c.h.b16 %v1675
        %v2719 = vunpack.c.l.b16 %v1676
        %v2720 = vunpack.c.h.b16 %v1676
        %v2721 = vunpack.c.l.b16 %v1677
        %v2722 = vunpack.c.h.b16 %v1677
        %v2723 = vunpack.c.l.b16 %v1678
        %v2724 = vunpack.c.h.b16 %v1678
        %v2725 = vunpack.c.l.b16 %v1679
        %v2726 = vunpack.c.h.b16 %v1679
        %v2727 = vunpack.c.l.b16 %v1680
        %v2728 = vunpack.c.h.b16 %v1680
        %v2729 = vunpack.c.l.b16 %v1681
        %v2730 = vunpack.c.h.b16 %v1681
        %v2731 = vunpack.c.l.b16 %v1682
        %v2732 = vunpack.c.h.b16 %v1682
        %v2733 = vunpack.c.l.b16 %v1683
        %v2734 = vunpack.c.h.b16 %v1683
        %v2735 = vunpack.c.l.b16 %v1684
        %v2736 = vunpack.c.h.b16 %v1684
        %v2737 = vunpack.c.l.b16 %v1685
        %v2738 = vunpack.c.h.b16 %v1685
        %v2739 = vunpack.c.l.b16 %v1686
        %v2740 = vunpack.c.h.b16 %v1686
        %v2741 = vunpack.c.l.b16 %v1687
        %v2742 = vunpack.c.h.b16 %v1687
        %v2743 = vunpack.c.l.b16 %v1688
        %v2744 = vunpack.c.h.b16 %v1688
        %v2745 = vunpack.c.l.b16 %v1689
        %v2746 = vunpack.c.h.b16 %v1689
        %v2747 = vunpack.c.l.b16 %v1690
        %v2748 = vunpack.c.h.b16 %v1690
        %v2749 = vunpack.c.l.b16 %v1691
        %v2750 = vunpack.c.h.b16 %v1691
        %v2751 = vunpack.c.l.b16 %v1692
        %v2752 = vunpack.c.h.b16 %v1692
        %v2753 = vunpack.c.l.b16 %v1693
        %v2754 = vunpack.c.h.b16 %v1693
        %v2755 = vunpack.c.l.b16 %v1694
        %v2756 = vunpack.c.h.b16 %v1694
        %v2757 = vunpack.c.l.b16 %v1695
        %v2758 = vunpack.c.h.b16 %v1695
        %v2759 = vunpack.c.l.b16 %v1696
        %v2760 = vunpack.c.h.b16 %v1696
        %v2761 = vpack.c.b16 %v2603, %v2601
        %v2762 = vpack.c.b16 %v2604, %v2602
        %v2763 = vpack.c.b16 %v2607, %v2605
        %v2764 = vpack.c.b16 %v2608, %v2606
        %v2765 = vpack.c.b16 %v2611, %v2609
        %v2766 = vpack.c.b16 %v2612, %v2610
        %v2767 = vpack.c.b16 %v2615, %v2613
        %v2768 = vpack.c.b16 %v2616, %v2614
        %v2769 = vpack.c.b16 %v2619, %v2617
        %v2770 = vpack.c.b16 %v2620, %v2618
        %v2771 = vpack.c.b16 %v2623, %v2621
        %v2772 = vpack.c.b16 %v2624, %v2622
        %v2773 = vpack.c.b16 %v2627, %v2625
        %v2774 = vpack.c.b16 %v2628, %v2626
        %v2775 = vpack.c.b16 %v2631, %v2629
        %v2776 = vpack.c.b16 %v2632, %v2630
        %v2777 = vpack.c.b16 %v2635, %v2633
        %v2778 = vpack.c.b16 %v2636, %v2634
        %v2779 = vpack.c.b16 %v2639, %v2637
        %v2780 = vpack.c.b16 %v2640, %v2638
        %v2781 = vpack.c.b16 %v2643, %v2641
        %v2782 = vpack.c.b16 %v2644, %v2642
        %v2783 = vpack.c.b16 %v2647, %v2645
        %v2784 = vpack.c.b16 %v2648, %v2646
        %v2785 = vpack.c.b16 %v2651, %v2649
        %v2786 = vpack.c.b16 %v2652, %v2650
        %v2787 = vpack.c.b16 %v2655, %v2653
        %v2788 = vpack.c.b16 %v2656, %v2654
        %v2789 = vpack.c.b16 %v2659, %v2657
        %v2790 = vpack.c.b16 %v2660, %v2658
        %v2791 = vpack.c.b16 %v2663, %v2661
        %v2792 = vpack.c.b16 %v2664, %v2662
        %v2793 = vpack.c.b16 %v2667, %v2665
        %v2794 = vpack.c.b16 %v2668, %v2666
        %v2795 = vpack.c.b16 %v2671, %v2669
        %v2796 = vpack.c.b16 %v2672, %v2670
        %v2797 = vpack.c.b16 %v2675, %v2673
        %v2798 = vpack.c.b16 %v2676, %v2674
        %v2799 = vpack.c.b16 %v2679, %v2677
        %v2800 = vpack.c.b16 %v2680, %v2678
        %v2801 = vpack.c.b16 %v2683, %v2681
        %v2802 = vpack.c.b16 %v2684, %v2682
        %v2803 = vpack.c.b16 %v2687, %v2685
        %v2804 = vpack.c.b16 %v2688, %v2686
        %v2805 = vpack.c.b16 %v2691, %v2689
        %v2806 = vpack.c.b16 %v2692, %v2690
        %v2807 = vpack.c.b16 %v2695, %v2693
        %v2808 = vpack.c.b16 %v2696, %v2694
        %v2809 = vpack.c.b16 %v2699, %v2697
        %v2810 = vpack.c.b16 %v2700, %v2698
        %v2811 = vpack.c.b16 %v2703, %v2701
        %v2812 = vpack.c.b16 %v2704, %v2702
        %v2813 = vpack.c.b16 %v2707, %v2705
        %v2814 = vpack.c.b16 %v2708, %v2706
        %v2815 = vpack.c.b16 %v2711, %v2709
        %v2816 = vpack.c.b16 %v2712, %v2710
        %v2817 = vpack.c.b16 %v2715, %v2713
        %v2818 = vpack.c.b16 %v2716, %v2714
        %v2819 = vpack.c.b16 %v2719, %v2717
        %v2820 = vpack.c.b16 %v2720, %v2718
        %v2821 = vpack.c.b16 %v2723, %v2721
        %v2822 = vpack.c.b16 %v2724, %v2722
        %v2823 = vpack.c.b16 %v2727, %v2725
        %v2824 = vpack.c.b16 %v2728, %v2726
        %v2825 = vpack.c.b16 %v2731, %v2729
        %v2826 = vpack.c.b16 %v2732, %v2730
        %v2827 = vpack.c.b16 %v2735, %v2733
        %v2828 = vpack.c.b16 %v2736, %v2734
        %v2829 = vpack.c.b16 %v2739, %v2737
        %v2830 = vpack.c.b16 %v2740, %v2738
        %v2831 = vpack.c.b16 %v2743, %v2741
        %v2832 = vpack.c.b16 %v2744, %v2742
        %v2833 = vpack.c.b16 %v2747, %v2745
        %v2834 = vpack.c.b16 %v2748, %v2746
        %v2835 = vpack.c.b16 %v2751, %v2749
        %v2836 = vpack.c.b16 %v2752, %v2750
        %v2837 = vpack.c.b16 %v2755, %v2753
        %v2838 = vpack.c.b16 %v2756, %v2754
        %v2839 = vpack.c.b16 %v2759, %v2757
        %v2840 = vpack.c.b16 %v2760, %v2758
        %2921 = vmatprep.subr.bf16.mxu0 %v2762
        %2922 = vmatpush1.bf16.msra.mxu0 %v2761
        %2923 = vmatprep.subr.bf16.mxu0 %v2764
        %2924 = vmatpush1.bf16.msra.mxu0 %v2763
        %2925 = vmatprep.subr.bf16.mxu0 %v2766
        %2926 = vmatpush1.bf16.msra.mxu0 %v2765
        %2927 = vmatprep.subr.bf16.mxu0 %v2768
        %2928 = vmatpush1.bf16.msra.mxu0 %v2767
        %2929 = vmatprep.subr.bf16.mxu0 %v2770
        %2930 = vmatpush1.bf16.msra.mxu0 %v2769
        %2931 = vmatprep.subr.bf16.mxu0 %v2772
        %2932 = vmatpush1.bf16.msra.mxu0 %v2771
        %2933 = vmatprep.subr.bf16.mxu0 %v2774
        %2934 = vmatpush1.bf16.msra.mxu0 %v2773
        %2935 = vmatprep.subr.bf16.mxu0 %v2776
        %2936 = vmatpush1.bf16.msra.mxu0 %v2775
        %2937 = vmatprep.subr.bf16.mxu0 %v2778
        %2938 = vmatpush1.bf16.msra.mxu0 %v2777
        %2939 = vmatprep.subr.bf16.mxu0 %v2780
        %2940 = vmatpush1.bf16.msra.mxu0 %v2779
        %2941 = vmatprep.subr.bf16.mxu0 %v2782
        %2942 = vmatpush1.bf16.msra.mxu0 %v2781
        %2943 = vmatprep.subr.bf16.mxu0 %v2784
        %2944 = vmatpush1.bf16.msra.mxu0 %v2783
        %2945 = vmatprep.subr.bf16.mxu0 %v2786
        %2946 = vmatpush1.bf16.msra.mxu0 %v2785
        %2947 = vmatprep.subr.bf16.mxu0 %v2788
        %2948 = vmatpush1.bf16.msra.mxu0 %v2787
        %2949 = vmatprep.subr.bf16.mxu0 %v2790
        %2950 = vmatpush1.bf16.msra.mxu0 %v2789
        %2951 = vmatprep.subr.bf16.mxu0 %v2792
        %2952 = vmatpush1.bf16.msra.mxu0 %v2791
        %2953 = vmatprep.mubr.bf16.mxu0 %v1742
        %2954 = vmatmul.mubr.bf16.gmra.mrb[0].mxu0 %v1741
        %v2955 = vpop.f32.mrb[0].mxu0
        %v2956 = vadd.f32 %v1702, %v2955
        %v2957 = vpop.f32.mrb[0].mxu0
        %v2958 = vadd.f32 %v1706, %v2957
        %v2959 = vpop.f32.mrb[0].mxu0
        %v2960 = vadd.f32 %v1702, %v2959
        %v2961 = vpop.f32.mrb[0].mxu0
        %v2962 = vadd.f32 %v1706, %v2961
        %2963 = vmatprep.mubr.bf16.mxu0 %v1795
        %2964 = vmatmul.mubr.bf16.gmra.mrb[0].mxu0 %v1794
        %v2965 = vpop.f32.mrb[0].mxu0
        %v2966 = vadd.f32 %v1702, %v2965
        %v2967 = vpop.f32.mrb[0].mxu0
        %v2968 = vadd.f32 %v1706, %v2967
        %v2969 = vpop.f32.mrb[0].mxu0
        %v2970 = vadd.f32 %v1702, %v2969
        %v2971 = vpop.f32.mrb[0].mxu0
        %v2972 = vadd.f32 %v1706, %v2971
        %2973 = vmatprep.mubr.bf16.mxu0 %v1848
        %2974 = vmatmul.mubr.bf16.gmra.mrb[0].mxu0 %v1847
        %v2975 = vpop.f32.mrb[0].mxu0
        %v2976 = vadd.f32 %v1702, %v2975
        %v2977 = vpop.f32.mrb[0].mxu0
        %v2978 = vadd.f32 %v1706, %v2977
        %v2979 = vpop.f32.mrb[0].mxu0
        %v2980 = vadd.f32 %v1702, %v2979
        %v2981 = vpop.f32.mrb[0].mxu0
        %v2982 = vadd.f32 %v1706, %v2981
        %2983 = vmatprep.mubr.bf16.mxu0 %v1901
        %2984 = vmatmul.mubr.bf16.gmra.mrb[0].mxu0 %v1900
        %v2985 = vpop.f32.mrb[0].mxu0
        %v2986 = vadd.f32 %v1702, %v2985
        %v2987 = vpop.f32.mrb[0].mxu0
        %v2988 = vadd.f32 %v1706, %v2987
        %v2989 = vpop.f32.mrb[0].mxu0
        %v2990 = vadd.f32 %v1702, %v2989
        %v2991 = vpop.f32.mrb[0].mxu0
        %v2992 = vadd.f32 %v1706, %v2991
        %2993 = vmatprep.mubr.bf16.mxu0 %v1954
        %2994 = vmatmul.mubr.bf16.gmra.mrb[0].mxu0 %v1953
        %v2995 = vpop.f32.mrb[0].mxu0
        %v2996 = vadd.f32 %v1702, %v2995
        %v2997 = vpop.f32.mrb[0].mxu0
        %v2998 = vadd.f32 %v1706, %v2997
        %v2999 = vpop.f32.mrb[0].mxu0
        %v3000 = vadd.f32 %v1702, %v2999
        %v3001 = vpop.f32.mrb[0].mxu0
        %v3002 = vadd.f32 %v1706, %v3001
        %3003 = vmatprep.mubr.bf16.mxu0 %v2007
        %3004 = vmatmul.mubr.bf16.gmra.mrb[0].mxu0 %v2006
        %v3005 = vpop.f32.mrb[0].mxu0
        %v3006 = vadd.f32 %v1702, %v3005
        %v3007 = vpop.f32.mrb[0].mxu0
        %v3008 = vadd.f32 %v1706, %v3007
        %v3009 = vpop.f32.mrb[0].mxu0
        %v3010 = vadd.f32 %v1702, %v3009
        %v3011 = vpop.f32.mrb[0].mxu0
        %v3012 = vadd.f32 %v1706, %v3011
        %3013 = vmatprep.mubr.bf16.mxu0 %v2060
        %3014 = vmatmul.mubr.bf16.gmra.mrb[0].mxu0 %v2059
        %v3015 = vpop.f32.mrb[0].mxu0
        %v3016 = vadd.f32 %v1702, %v3015
        %v3017 = vpop.f32.mrb[0].mxu0
        %v3018 = vadd.f32 %v1706, %v3017
        %v3019 = vpop.f32.mrb[0].mxu0
        %v3020 = vadd.f32 %v1702, %v3019
        %v3021 = vpop.f32.mrb[0].mxu0
        %v3022 = vadd.f32 %v1706, %v3021
        %3023 = vmatprep.mubr.bf16.mxu0 %v2113
        %3024 = vmatmul.mubr.bf16.gmra.mrb[0].mxu0 %v2112
        %v3025 = vpop.f32.mrb[0].mxu0
        %v3026 = vadd.f32 %v1702, %v3025
        %v3027 = vpop.f32.mrb[0].mxu0
        %v3028 = vadd.f32 %v1706, %v3027
        %v3029 = vpop.f32.mrb[0].mxu0
        %v3030 = vadd.f32 %v1702, %v3029
        %v3031 = vpop.f32.mrb[0].mxu0
        %v3032 = vadd.f32 %v1706, %v3031
        %3033 = vmatprep.mubr.bf16.mxu0 %v2166
        %3034 = vmatmul.mubr.bf16.gmra.mrb[0].mxu0 %v2165
        %v3035 = vpop.f32.mrb[0].mxu0
        %v3036 = vadd.f32 %v1702, %v3035
        %v3037 = vpop.f32.mrb[0].mxu0
        %v3038 = vadd.f32 %v1706, %v3037
        %v3039 = vpop.f32.mrb[0].mxu0
        %v3040 = vadd.f32 %v1702, %v3039
        %v3041 = vpop.f32.mrb[0].mxu0
        %v3042 = vadd.f32 %v1706, %v3041
        %3043 = vmatprep.mubr.bf16.mxu0 %v2219
        %3044 = vmatmul.mubr.bf16.gmra.mrb[0].mxu0 %v2218
        %v3045 = vpop.f32.mrb[0].mxu0
        %v3046 = vadd.f32 %v1702, %v3045
        %v3047 = vpop.f32.mrb[0].mxu0
        %v3048 = vadd.f32 %v1706, %v3047
        %v3049 = vpop.f32.mrb[0].mxu0
        %v3050 = vadd.f32 %v1702, %v3049
        %v3051 = vpop.f32.mrb[0].mxu0
        %v3052 = vadd.f32 %v1706, %v3051
        %3053 = vmatprep.mubr.bf16.mxu0 %v2272
        %3054 = vmatmul.mubr.bf16.gmra.mrb[0].mxu0 %v2271
        %v3055 = vpop.f32.mrb[0].mxu0
        %v3056 = vadd.f32 %v1702, %v3055
        %v3057 = vpop.f32.mrb[0].mxu0
        %v3058 = vadd.f32 %v1706, %v3057
        %v3059 = vpop.f32.mrb[0].mxu0
        %v3060 = vadd.f32 %v1702, %v3059
        %v3061 = vpop.f32.mrb[0].mxu0
        %v3062 = vadd.f32 %v1706, %v3061
        %3063 = vmatprep.mubr.bf16.mxu0 %v2325
        %3064 = vmatmul.mubr.bf16.gmra.mrb[0].mxu0 %v2324
        %v3065 = vpop.f32.mrb[0].mxu0
        %v3066 = vadd.f32 %v1702, %v3065
        %v3067 = vpop.f32.mrb[0].mxu0
        %v3068 = vadd.f32 %v1706, %v3067
        %v3069 = vpop.f32.mrb[0].mxu0
        %v3070 = vadd.f32 %v1702, %v3069
        %v3071 = vpop.f32.mrb[0].mxu0
        %v3072 = vadd.f32 %v1706, %v3071
        %3073 = vmatprep.mubr.bf16.mxu0 %v2378
        %3074 = vmatmul.mubr.bf16.gmra.mrb[0].mxu0 %v2377
        %v3075 = vpop.f32.mrb[0].mxu0
        %v3076 = vadd.f32 %v1702, %v3075
        %v3077 = vpop.f32.mrb[0].mxu0
        %v3078 = vadd.f32 %v1706, %v3077
        %v3079 = vpop.f32.mrb[0].mxu0
        %v3080 = vadd.f32 %v1702, %v3079
        %v3081 = vpop.f32.mrb[0].mxu0
        %v3082 = vadd.f32 %v1706, %v3081
        %3083 = vmatprep.mubr.bf16.mxu0 %v2431
        %3084 = vmatmul.mubr.bf16.gmra.mrb[0].mxu0 %v2430
        %v3085 = vpop.f32.mrb[0].mxu0
        %v3086 = vadd.f32 %v1702, %v3085
        %v3087 = vpop.f32.mrb[0].mxu0
        %v3088 = vadd.f32 %v1706, %v3087
        %v3089 = vpop.f32.mrb[0].mxu0
        %v3090 = vadd.f32 %v1702, %v3089
        %v3091 = vpop.f32.mrb[0].mxu0
        %v3092 = vadd.f32 %v1706, %v3091
        %3093 = vdwg.mxu0
        %3094 = vmatprep.subr.bf16.mxu0 %v2794
        %3095 = vmatpush1.bf16.msra.mxu0 %v2793
        %3096 = vmatprep.subr.bf16.mxu0 %v2796
        %3097 = vmatpush1.bf16.msra.mxu0 %v2795
        %3098 = vmatprep.subr.bf16.mxu0 %v2798
        %3099 = vmatpush1.bf16.msra.mxu0 %v2797
        %3100 = vmatprep.subr.bf16.mxu0 %v2800
        %3101 = vmatpush1.bf16.msra.mxu0 %v2799
        %3102 = vmatprep.subr.bf16.mxu0 %v2802
        %3103 = vmatpush1.bf16.msra.mxu0 %v2801
        %3104 = vmatprep.subr.bf16.mxu0 %v2804
        %3105 = vmatpush1.bf16.msra.mxu0 %v2803
        %3106 = vmatprep.subr.bf16.mxu0 %v2806
        %3107 = vmatpush1.bf16.msra.mxu0 %v2805
        %3108 = vmatprep.subr.bf16.mxu0 %v2808
        %3109 = vmatpush1.bf16.msra.mxu0 %v2807
        %3110 = vmatprep.subr.bf16.mxu0 %v2810
        %3111 = vmatpush1.bf16.msra.mxu0 %v2809
        %3112 = vmatprep.subr.bf16.mxu0 %v2812
        %3113 = vmatpush1.bf16.msra.mxu0 %v2811
        %3114 = vmatprep.subr.bf16.mxu0 %v2814
        %3115 = vmatpush1.bf16.msra.mxu0 %v2813
        %3116 = vmatprep.subr.bf16.mxu0 %v2816
        %3117 = vmatpush1.bf16.msra.mxu0 %v2815
        %3118 = vmatprep.subr.bf16.mxu0 %v2818
        %3119 = vmatpush1.bf16.msra.mxu0 %v2817
        %3120 = vmatprep.subr.bf16.mxu0 %v2820
        %3121 = vmatpush1.bf16.msra.mxu0 %v2819
        %3122 = vmatprep.subr.bf16.mxu0 %v2822
        %3123 = vmatpush1.bf16.msra.mxu0 %v2821
        %3124 = vmatprep.subr.bf16.mxu0 %v2824
        %3125 = vmatpush1.bf16.msra.mxu0 %v2823
        %3126 = vmatprep.mubr.bf16.mxu0 %v1744
        %3127 = vmatmul.mubr.bf16.gmra.mrb[0].mxu0 %v1743
        %v3128 = vpop.f32.mrb[0].mxu0
        %v3129 = vadd.f32 %v2956, %v3128
        %v3130 = vpop.f32.mrb[0].mxu0
        %v3131 = vadd.f32 %v2958, %v3130
        %v3132 = vpop.f32.mrb[0].mxu0
        %v3133 = vadd.f32 %v2960, %v3132
        %v3134 = vpop.f32.mrb[0].mxu0
        %v3135 = vadd.f32 %v2962, %v3134
        %3136 = vmatprep.mubr.bf16.mxu0 %v1797
        %3137 = vmatmul.mubr.bf16.gmra.mrb[0].mxu0 %v1796
        %v3138 = vpop.f32.mrb[0].mxu0
        %v3139 = vadd.f32 %v2966, %v3138
        %v3140 = vpop.f32.mrb[0].mxu0
        %v3141 = vadd.f32 %v2968, %v3140
        %v3142 = vpop.f32.mrb[0].mxu0
        %v3143 = vadd.f32 %v2970, %v3142
        %v3144 = vpop.f32.mrb[0].mxu0
        %v3145 = vadd.f32 %v2972, %v3144
        %3146 = vmatprep.mubr.bf16.mxu0 %v1850
        %3147 = vmatmul.mubr.bf16.gmra.mrb[0].mxu0 %v1849
        %v3148 = vpop.f32.mrb[0].mxu0
        %v3149 = vadd.f32 %v2976, %v3148
        %v3150 = vpop.f32.mrb[0].mxu0
        %v3151 = vadd.f32 %v2978, %v3150
        %v3152 = vpop.f32.mrb[0].mxu0
        %v3153 = vadd.f32 %v2980, %v3152
        %v3154 = vpop.f32.mrb[0].mxu0
        %v3155 = vadd.f32 %v2982, %v3154
        %3156 = vmatprep.mubr.bf16.mxu0 %v1903
        %3157 = vmatmul.mubr.bf16.gmra.mrb[0].mxu0 %v1902
        %v3158 = vpop.f32.mrb[0].mxu0
        %v3159 = vadd.f32 %v2986, %v3158
        %v3160 = vpop.f32.mrb[0].mxu0
        %v3161 = vadd.f32 %v2988, %v3160
        %v3162 = vpop.f32.mrb[0].mxu0
        %v3163 = vadd.f32 %v2990, %v3162
        %v3164 = vpop.f32.mrb[0].mxu0
        %v3165 = vadd.f32 %v2992, %v3164
        %3166 = vmatprep.mubr.bf16.mxu0 %v1956
        %3167 = vmatmul.mubr.bf16.gmra.mrb[0].mxu0 %v1955
        %v3168 = vpop.f32.mrb[0].mxu0
        %v3169 = vadd.f32 %v2996, %v3168
        %v3170 = vpop.f32.mrb[0].mxu0
        %v3171 = vadd.f32 %v2998, %v3170
        %v3172 = vpop.f32.mrb[0].mxu0
        %v3173 = vadd.f32 %v3000, %v3172
        %v3174 = vpop.f32.mrb[0].mxu0
        %v3175 = vadd.f32 %v3002, %v3174
        %3176 = vmatprep.mubr.bf16.mxu0 %v2009
        %3177 = vmatmul.mubr.bf16.gmra.mrb[0].mxu0 %v2008
        %v3178 = vpop.f32.mrb[0].mxu0
        %v3179 = vadd.f32 %v3006, %v3178
        %v3180 = vpop.f32.mrb[0].mxu0
        %v3181 = vadd.f32 %v3008, %v3180
        %v3182 = vpop.f32.mrb[0].mxu0
        %v3183 = vadd.f32 %v3010, %v3182
        %v3184 = vpop.f32.mrb[0].mxu0
        %v3185 = vadd.f32 %v3012, %v3184
        %3186 = vmatprep.mubr.bf16.mxu0 %v2062
        %3187 = vmatmul.mubr.bf16.gmra.mrb[0].mxu0 %v2061
        %v3188 = vpop.f32.mrb[0].mxu0
        %v3189 = vadd.f32 %v3016, %v3188
        %v3190 = vpop.f32.mrb[0].mxu0
        %v3191 = vadd.f32 %v3018, %v3190
        %v3192 = vpop.f32.mrb[0].mxu0
        %v3193 = vadd.f32 %v3020, %v3192
        %v3194 = vpop.f32.mrb[0].mxu0
        %v3195 = vadd.f32 %v3022, %v3194
        %3196 = vmatprep.mubr.bf16.mxu0 %v2115
        %3197 = vmatmul.mubr.bf16.gmra.mrb[0].mxu0 %v2114
        %v3198 = vpop.f32.mrb[0].mxu0
        %v3199 = vadd.f32 %v3026, %v3198
        %v3200 = vpop.f32.mrb[0].mxu0
        %v3201 = vadd.f32 %v3028, %v3200
        %v3202 = vpop.f32.mrb[0].mxu0
        %v3203 = vadd.f32 %v3030, %v3202
        %v3204 = vpop.f32.mrb[0].mxu0
        %v3205 = vadd.f32 %v3032, %v3204
        %3206 = vmatprep.mubr.bf16.mxu0 %v2168
        %3207 = vmatmul.mubr.bf16.gmra.mrb[0].mxu0 %v2167
        %v3208 = vpop.f32.mrb[0].mxu0
        %v3209 = vadd.f32 %v3036, %v3208
        %v3210 = vpop.f32.mrb[0].mxu0
        %v3211 = vadd.f32 %v3038, %v3210
        %v3212 = vpop.f32.mrb[0].mxu0
        %v3213 = vadd.f32 %v3040, %v3212
        %v3214 = vpop.f32.mrb[0].mxu0
        %v3215 = vadd.f32 %v3042, %v3214
        %3216 = vmatprep.mubr.bf16.mxu0 %v2221
        %3217 = vmatmul.mubr.bf16.gmra.mrb[0].mxu0 %v2220
        %v3218 = vpop.f32.mrb[0].mxu0
        %v3219 = vadd.f32 %v3046, %v3218
        %v3220 = vpop.f32.mrb[0].mxu0
        %v3221 = vadd.f32 %v3048, %v3220
        %v3222 = vpop.f32.mrb[0].mxu0
        %v3223 = vadd.f32 %v3050, %v3222
        %v3224 = vpop.f32.mrb[0].mxu0
        %v3225 = vadd.f32 %v3052, %v3224
        %3226 = vmatprep.mubr.bf16.mxu0 %v2274
        %3227 = vmatmul.mubr.bf16.gmra.mrb[0].mxu0 %v2273
        %v3228 = vpop.f32.mrb[0].mxu0
        %v3229 = vadd.f32 %v3056, %v3228
        %v3230 = vpop.f32.mrb[0].mxu0
        %v3231 = vadd.f32 %v3058, %v3230
        %v3232 = vpop.f32.mrb[0].mxu0
        %v3233 = vadd.f32 %v3060, %v3232
        %v3234 = vpop.f32.mrb[0].mxu0
        %v3235 = vadd.f32 %v3062, %v3234
        %3236 = vmatprep.mubr.bf16.mxu0 %v2327
        %3237 = vmatmul.mubr.bf16.gmra.mrb[0].mxu0 %v2326
        %v3238 = vpop.f32.mrb[0].mxu0
        %v3239 = vadd.f32 %v3066, %v3238
        %v3240 = vpop.f32.mrb[0].mxu0
        %v3241 = vadd.f32 %v3068, %v3240
        %v3242 = vpop.f32.mrb[0].mxu0
        %v3243 = vadd.f32 %v3070, %v3242
        %v3244 = vpop.f32.mrb[0].mxu0
        %v3245 = vadd.f32 %v3072, %v3244
        %3246 = vmatprep.mubr.bf16.mxu0 %v2380
        %3247 = vmatmul.mubr.bf16.gmra.mrb[0].mxu0 %v2379
        %v3248 = vpop.f32.mrb[0].mxu0
        %v3249 = vadd.f32 %v3076, %v3248
        %v3250 = vpop.f32.mrb[0].mxu0
        %v3251 = vadd.f32 %v3078, %v3250
        %v3252 = vpop.f32.mrb[0].mxu0
        %v3253 = vadd.f32 %v3080, %v3252
        %v3254 = vpop.f32.mrb[0].mxu0
        %v3255 = vadd.f32 %v3082, %v3254
        %3256 = vmatprep.mubr.bf16.mxu0 %v2433
        %3257 = vmatmul.mubr.bf16.gmra.mrb[0].mxu0 %v2432
        %v3258 = vpop.f32.mrb[0].mxu0
        %v3259 = vadd.f32 %v3086, %v3258
        %v3260 = vpop.f32.mrb[0].mxu0
        %v3261 = vadd.f32 %v3088, %v3260
        %v3262 = vpop.f32.mrb[0].mxu0
        %v3263 = vadd.f32 %v3090, %v3262
        %v3264 = vpop.f32.mrb[0].mxu0
        %v3265 = vadd.f32 %v3092, %v3264
        %3266 = vdwg.mxu0
        %3267 = vmatprep.subr.bf16.mxu0 %v2826
        %3268 = vmatpush1.bf16.msra.mxu0 %v2825
        %3269 = vmatprep.subr.bf16.mxu0 %v2828
        %3270 = vmatpush1.bf16.msra.mxu0 %v2827
        %3271 = vmatprep.subr.bf16.mxu0 %v2830
        %3272 = vmatpush1.bf16.msra.mxu0 %v2829
        %3273 = vmatprep.subr.bf16.mxu0 %v2832
        %3274 = vmatpush1.bf16.msra.mxu0 %v2831
        %3275 = vmatprep.subr.bf16.mxu0 %v2834
        %3276 = vmatpush1.bf16.msra.mxu0 %v2833
        %3277 = vmatprep.subr.bf16.mxu0 %v2836
        %3278 = vmatpush1.bf16.msra.mxu0 %v2835
        %3279 = vmatprep.subr.bf16.mxu0 %v2838
        %3280 = vmatpush1.bf16.msra.mxu0 %v2837
        %3281 = vmatprep.subr.bf16.mxu0 %v2840
        %3282 = vmatpush1.bf16.msra.mxu0 %v2839
        %3283 = vmatprep.subr.bf16.mxu0 0
        %3284 = vmatpush1.bf16.msra.mxu0 0
        %3285 = vmatprep.subr.bf16.mxu0 0
        %3286 = vmatpush1.bf16.msra.mxu0 0
        %3287 = vmatprep.subr.bf16.mxu0 0
        %3288 = vmatpush1.bf16.msra.mxu0 0
        %3289 = vmatprep.subr.bf16.mxu0 0
        %3290 = vmatpush1.bf16.msra.mxu0 0
        %3291 = vmatprep.subr.bf16.mxu0 0
        %3292 = vmatpush1.bf16.msra.mxu0 0
        %3293 = vmatprep.subr.bf16.mxu0 0
        %3294 = vmatpush1.bf16.msra.mxu0 0
        %3295 = vmatprep.subr.bf16.mxu0 0
        %3296 = vmatpush1.bf16.msra.mxu0 0
        %3297 = vmatprep.subr.bf16.mxu0 0
        %3298 = vmatpush1.bf16.msra.mxu0 0
        %3299 = vmatprep.mubr.bf16.mxu0 0
        %3300 = vmatmul.mubr.bf16.gmra.mrb[0].mxu0 %v1761
        %v3301 = vpop.f32.mrb[0].mxu0
        %v3302 = vadd.f32 %v3129, %v3301
        %v3303 = vpop.f32.mrb[0].mxu0
        %v3304 = vadd.f32 %v3131, %v3303
        %v3305 = vpop.f32.mrb[0].mxu0
        %v3306 = vadd.f32 %v3133, %v3305
        %v3307 = vpop.f32.mrb[0].mxu0
        %v3308 = vadd.f32 %v3135, %v3307
        %3309 = vmatprep.mubr.bf16.mxu0 0
        %3310 = vmatmul.mubr.bf16.gmra.mrb[0].mxu0 %v1814
        %v3311 = vpop.f32.mrb[0].mxu0
        %v3312 = vadd.f32 %v3139, %v3311
        %v3313 = vpop.f32.mrb[0].mxu0
        %v3314 = vadd.f32 %v3141, %v3313
        %v3315 = vpop.f32.mrb[0].mxu0
        %v3316 = vadd.f32 %v3143, %v3315
        %v3317 = vpop.f32.mrb[0].mxu0
        %v3318 = vadd.f32 %v3145, %v3317
        %3319 = vmatprep.mubr.bf16.mxu0 0
        %3320 = vmatmul.mubr.bf16.gmra.mrb[0].mxu0 %v1867
        %v3321 = vpop.f32.mrb[0].mxu0
        %v3322 = vadd.f32 %v3149, %v3321
        %v3323 = vpop.f32.mrb[0].mxu0
        %v3324 = vadd.f32 %v3151, %v3323
        %v3325 = vpop.f32.mrb[0].mxu0
        %v3326 = vadd.f32 %v3153, %v3325
        %v3327 = vpop.f32.mrb[0].mxu0
        %v3328 = vadd.f32 %v3155, %v3327
        %3329 = vmatprep.mubr.bf16.mxu0 0
        %3330 = vmatmul.mubr.bf16.gmra.mrb[0].mxu0 %v1920
        %v3331 = vpop.f32.mrb[0].mxu0
        %v3332 = vadd.f32 %v3159, %v3331
        %v3333 = vpop.f32.mrb[0].mxu0
        %v3334 = vadd.f32 %v3161, %v3333
        %v3335 = vpop.f32.mrb[0].mxu0
        %v3336 = vadd.f32 %v3163, %v3335
        %v3337 = vpop.f32.mrb[0].mxu0
        %v3338 = vadd.f32 %v3165, %v3337
        %3339 = vmatprep.mubr.bf16.mxu0 0
        %3340 = vmatmul.mubr.bf16.gmra.mrb[0].mxu0 %v1973
        %v3341 = vpop.f32.mrb[0].mxu0
        %v3342 = vadd.f32 %v3169, %v3341
        %v3343 = vpop.f32.mrb[0].mxu0
        %v3344 = vadd.f32 %v3171, %v3343
        %v3345 = vpop.f32.mrb[0].mxu0
        %v3346 = vadd.f32 %v3173, %v3345
        %v3347 = vpop.f32.mrb[0].mxu0
        %v3348 = vadd.f32 %v3175, %v3347
        %3349 = vmatprep.mubr.bf16.mxu0 0
        %3350 = vmatmul.mubr.bf16.gmra.mrb[0].mxu0 %v2026
        %v3351 = vpop.f32.mrb[0].mxu0
        %v3352 = vadd.f32 %v3179, %v3351
        %v3353 = vpop.f32.mrb[0].mxu0
        %v3354 = vadd.f32 %v3181, %v3353
        %v3355 = vpop.f32.mrb[0].mxu0
        %v3356 = vadd.f32 %v3183, %v3355
        %v3357 = vpop.f32.mrb[0].mxu0
        %v3358 = vadd.f32 %v3185, %v3357
        %3359 = vmatprep.mubr.bf16.mxu0 0
        %3360 = vmatmul.mubr.bf16.gmra.mrb[0].mxu0 %v2079
        %v3361 = vpop.f32.mrb[0].mxu0
        %v3362 = vadd.f32 %v3189, %v3361
        %v3363 = vpop.f32.mrb[0].mxu0
        %v3364 = vadd.f32 %v3191, %v3363
        %v3365 = vpop.f32.mrb[0].mxu0
        %v3366 = vadd.f32 %v3193, %v3365
        %v3367 = vpop.f32.mrb[0].mxu0
        %v3368 = vadd.f32 %v3195, %v3367
        %3369 = vmatprep.mubr.bf16.mxu0 0
        %3370 = vmatmul.mubr.bf16.gmra.mrb[0].mxu0 %v2132
        %v3371 = vpop.f32.mrb[0].mxu0
        %v3372 = vadd.f32 %v3199, %v3371
        %v3373 = vpop.f32.mrb[0].mxu0
        %v3374 = vadd.f32 %v3201, %v3373
        %v3375 = vpop.f32.mrb[0].mxu0
        %v3376 = vadd.f32 %v3203, %v3375
        %v3377 = vpop.f32.mrb[0].mxu0
        %v3378 = vadd.f32 %v3205, %v3377
        %3379 = vmatprep.mubr.bf16.mxu0 0
        %3380 = vmatmul.mubr.bf16.gmra.mrb[0].mxu0 %v2185
        %v3381 = vpop.f32.mrb[0].mxu0
        %v3382 = vadd.f32 %v3209, %v3381
        %v3383 = vpop.f32.mrb[0].mxu0
        %v3384 = vadd.f32 %v3211, %v3383
        %v3385 = vpop.f32.mrb[0].mxu0
        %v3386 = vadd.f32 %v3213, %v3385
        %v3387 = vpop.f32.mrb[0].mxu0
        %v3388 = vadd.f32 %v3215, %v3387
        %3389 = vmatprep.mubr.bf16.mxu0 0
        %3390 = vmatmul.mubr.bf16.gmra.mrb[0].mxu0 %v2238
        %v3391 = vpop.f32.mrb[0].mxu0
        %v3392 = vadd.f32 %v3219, %v3391
        %v3393 = vpop.f32.mrb[0].mxu0
        %v3394 = vadd.f32 %v3221, %v3393
        %v3395 = vpop.f32.mrb[0].mxu0
        %v3396 = vadd.f32 %v3223, %v3395
        %v3397 = vpop.f32.mrb[0].mxu0
        %v3398 = vadd.f32 %v3225, %v3397
        %3399 = vmatprep.mubr.bf16.mxu0 0
        %3400 = vmatmul.mubr.bf16.gmra.mrb[0].mxu0 %v2291
        %v3401 = vpop.f32.mrb[0].mxu0
        %v3402 = vadd.f32 %v3229, %v3401
        %v3403 = vpop.f32.mrb[0].mxu0
        %v3404 = vadd.f32 %v3231, %v3403
        %v3405 = vpop.f32.mrb[0].mxu0
        %v3406 = vadd.f32 %v3233, %v3405
        %v3407 = vpop.f32.mrb[0].mxu0
        %v3408 = vadd.f32 %v3235, %v3407
        %3409 = vmatprep.mubr.bf16.mxu0 0
        %3410 = vmatmul.mubr.bf16.gmra.mrb[0].mxu0 %v2344
        %v3411 = vpop.f32.mrb[0].mxu0
        %v3412 = vadd.f32 %v3239, %v3411
        %v3413 = vpop.f32.mrb[0].mxu0
        %v3414 = vadd.f32 %v3241, %v3413
        %v3415 = vpop.f32.mrb[0].mxu0
        %v3416 = vadd.f32 %v3243, %v3415
        %v3417 = vpop.f32.mrb[0].mxu0
        %v3418 = vadd.f32 %v3245, %v3417
        %3419 = vmatprep.mubr.bf16.mxu0 0
        %3420 = vmatmul.mubr.bf16.gmra.mrb[0].mxu0 %v2397
        %v3421 = vpop.f32.mrb[0].mxu0
        %v3422 = vadd.f32 %v3249, %v3421
        %v3423 = vpop.f32.mrb[0].mxu0
        %v3424 = vadd.f32 %v3251, %v3423
        %v3425 = vpop.f32.mrb[0].mxu0
        %v3426 = vadd.f32 %v3253, %v3425
        %v3427 = vpop.f32.mrb[0].mxu0
        %v3428 = vadd.f32 %v3255, %v3427
        %3429 = vmatprep.mubr.bf16.mxu0 0
        %3430 = vmatmul.mubr.bf16.gmra.mrb[0].mxu0 %v2450
        %v3431 = vpop.f32.mrb[0].mxu0
        %v3432 = vadd.f32 %v3259, %v3431
        %v3433 = vpop.f32.mrb[0].mxu0
        %v3434 = vadd.f32 %v3261, %v3433
        %v3435 = vpop.f32.mrb[0].mxu0
        %v3436 = vadd.f32 %v3263, %v3435
        %v3437 = vpop.f32.mrb[0].mxu0
        %v3438 = vadd.f32 %v3265, %v3437
        %3439 = vdwg.mxu0
        %v3440 = vmax.f32 %v3302, 0.0
        %v3441 = vmax.f32 %v3304, 0.0
        %v3442 = vmax.f32 %v3306, 0.0
        %v3443 = vmax.f32 %v3308, 0.0
        %v3444 = vmax.f32 %v3312, 0.0
        %v3445 = vmax.f32 %v3314, 0.0
        %v3446 = vmax.f32 %v3316, 0.0
        %v3447 = vmax.f32 %v3318, 0.0
        %v3448 = vmax.f32 %v3322, 0.0
        %v3449 = vmax.f32 %v3324, 0.0
        %v3450 = vmax.f32 %v3326, 0.0
        %v3451 = vmax.f32 %v3328, 0.0
        %v3452 = vmax.f32 %v3332, 0.0
        %v3453 = vmax.f32 %v3334, 0.0
        %v3454 = vmax.f32 %v3336, 0.0
        %v3455 = vmax.f32 %v3338, 0.0
        %v3456 = vmax.f32 %v3342, 0.0
        %v3457 = vmax.f32 %v3344, 0.0
        %v3458 = vmax.f32 %v3346, 0.0
        %v3459 = vmax.f32 %v3348, 0.0
        %v3460 = vmax.f32 %v3352, 0.0
        %v3461 = vmax.f32 %v3354, 0.0
        %v3462 = vmax.f32 %v3356, 0.0
        %v3463 = vmax.f32 %v3358, 0.0
        %v3464 = vmax.f32 %v3362, 0.0
        %v3465 = vmax.f32 %v3364, 0.0
        %v3466 = vmax.f32 %v3366, 0.0
        %v3467 = vmax.f32 %v3368, 0.0
        %v3468 = vmax.f32 %v3372, 0.0
        %v3469 = vmax.f32 %v3374, 0.0
        %v3470 = vmax.f32 %v3376, 0.0
        %v3471 = vmax.f32 %v3378, 0.0
        %v3472 = vmax.f32 %v3382, 0.0
        %v3473 = vmax.f32 %v3384, 0.0
        %v3474 = vmax.f32 %v3386, 0.0
        %v3475 = vmax.f32 %v3388, 0.0
        %v3476 = vmax.f32 %v3392, 0.0
        %v3477 = vmax.f32 %v3394, 0.0
        %v3478 = vmax.f32 %v3396, 0.0
        %v3479 = vmax.f32 %v3398, 0.0
        %v3480 = vmax.f32 %v3402, 0.0
        %v3481 = vmax.f32 %v3404, 0.0
        %v3482 = vmax.f32 %v3406, 0.0
        %v3483 = vmax.f32 %v3408, 0.0
        %v3484 = vmax.f32 %v3412, 0.0
        %v3485 = vmax.f32 %v3414, 0.0
        %v3486 = vmax.f32 %v3416, 0.0
        %v3487 = vmax.f32 %v3418, 0.0
        %v3488 = vmax.f32 %v3422, 0.0
        %v3489 = vmax.f32 %v3424, 0.0
        %v3490 = vmax.f32 %v3426, 0.0
        %v3491 = vmax.f32 %v3428, 0.0
        %v3492 = vmax.f32 %v3432, 0.0
        %v3493 = vmax.f32 %v3434, 0.0
        %v3494 = vmax.f32 %v3436, 0.0
        %v3495 = vmax.f32 %v3438, 0.0
        %v3496 = vpack.c.bf16 %v3442, %v3440
        %v3497 = vpack.c.bf16 %v3443, %v3441
        %v3498 = vpack.c.bf16 %v3446, %v3444
        %v3499 = vpack.c.bf16 %v3447, %v3445
        %v3500 = vpack.c.bf16 %v3450, %v3448
        %v3501 = vpack.c.bf16 %v3451, %v3449
        %v3502 = vpack.c.bf16 %v3454, %v3452
        %v3503 = vpack.c.bf16 %v3455, %v3453
        %v3504 = vpack.c.bf16 %v3458, %v3456
        %v3505 = vpack.c.bf16 %v3459, %v3457
        %v3506 = vpack.c.bf16 %v3462, %v3460
        %v3507 = vpack.c.bf16 %v3463, %v3461
        %v3508 = vpack.c.bf16 %v3466, %v3464
        %v3509 = vpack.c.bf16 %v3467, %v3465
        %v3510 = vpack.c.bf16 %v3470, %v3468
        %v3511 = vpack.c.bf16 %v3471, %v3469
        %v3512 = vpack.c.bf16 %v3474, %v3472
        %v3513 = vpack.c.bf16 %v3475, %v3473
        %v3514 = vpack.c.bf16 %v3478, %v3476
        %v3515 = vpack.c.bf16 %v3479, %v3477
        %v3516 = vpack.c.bf16 %v3482, %v3480
        %v3517 = vpack.c.bf16 %v3483, %v3481
        %v3518 = vpack.c.bf16 %v3486, %v3484
        %v3519 = vpack.c.bf16 %v3487, %v3485
        %v3520 = vpack.c.bf16 %v3490, %v3488
        %v3521 = vpack.c.bf16 %v3491, %v3489
        %v3522 = vpack.c.bf16 %v3494, %v3492
        %v3523 = vpack.c.bf16 %v3495, %v3493
        %v3524 = vld [vmem:[%s3] sm:$0xf]
        %v3525 = vld [vmem:[%s3 + $0x4] sm:$0xf]
        %v3526 = vld [vmem:[%s3 + $0x8] sm:$0xf]
        %v3527 = vld [vmem:[%s3 + $0xc] sm:$0xf]
        %v3528 = vld [vmem:[%s3 + $0x10] sm:$0xf]
        %v3529 = vld [vmem:[%s3 + $0x14] sm:$0xf]
        %v3530 = vld [vmem:[%s3 + $0x18] sm:$0xf]
        %v3531 = vld [vmem:[%s3 + $0x1c] sm:$0xf]
        %v3532 = vld [vmem:[%s3 + $0x20] sm:$0xf]
        %v3533 = vld [vmem:[%s3 + $0x24] sm:$0xf]
        %v3534 = vld [vmem:[%s3 + $0x28] sm:$0xf]
        %v3535 = vld [vmem:[%s3 + $0x2c] sm:$0xf]
        %v3536 = vld [vmem:[%s3 + $0x30] sm:$0xf]
        %v3537 = vld [vmem:[%s3 + $0x34] sm:$0xf]
        %v3538 = vld [vmem:[%s3 + $0x38] sm:$0xf]
        %v3539 = vld [vmem:[%s3 + $0x3c] sm:$0xf]
        %v3540 = vld [vmem:[%s3 + $0x40] sm:$0xf]
        %v3541 = vld [vmem:[%s3 + $0x44] sm:$0xf]
        %v3542 = vld [vmem:[%s3 + $0x48] sm:$0xf]
        %v3543 = vld [vmem:[%s3 + $0x4c] sm:$0xf]
        %v3544 = vld [vmem:[%s3 + $0x50] sm:$0xf]
        %v3566 = vunpack.c.l.b16 %v3524
        %v3567 = vunpack.c.l.b16 %v3525
        %v3568 = vunpack.c.l.b16 %v3526
        %v3569 = vunpack.c.l.b16 %v3527
        %v3570 = vunpack.c.l.b16 %v3528
        %v3571 = vunpack.c.l.b16 %v3529
        %v3572 = vunpack.c.l.b16 %v3530
        %v3573 = vunpack.c.l.b16 %v3531
        %v3574 = vunpack.c.l.b16 %v3532
        %v3575 = vunpack.c.l.b16 %v3533
        %v3576 = vunpack.c.l.b16 %v3534
        %v3577 = vunpack.c.l.b16 %v3535
        %v3578 = vunpack.c.l.b16 %v3536
        %v3579 = vunpack.c.l.b16 %v3537
        %v3580 = vunpack.c.l.b16 %v3538
        %v3581 = vunpack.c.l.b16 %v3539
        %v3582 = vunpack.c.l.b16 %v3540
        %v3583 = vunpack.c.l.b16 %v3541
        %v3584 = vunpack.c.l.b16 %v3542
        %v3585 = vunpack.c.l.b16 %v3543
        %v3586 = vunpack.c.l.b16 %v3544
        %v3587 = vpack.c.b16 %v3567, %v3566
        %v3588 = vpack.c.b16 %v3569, %v3568
        %v3589 = vpack.c.b16 %v3571, %v3570
        %v3590 = vpack.c.b16 %v3573, %v3572
        %v3591 = vpack.c.b16 %v3575, %v3574
        %v3592 = vpack.c.b16 %v3577, %v3576
        %v3593 = vpack.c.b16 %v3579, %v3578
        %v3594 = vpack.c.b16 %v3581, %v3580
        %v3595 = vpack.c.b16 %v3583, %v3582
        %v3596 = vpack.c.b16 %v3585, %v3584
        %v3597 = vpack.c.b16 %v3586, %v3586
        %vm3608 = vcmask 326656
        %v3610 = vsel %vm3608, %v3497, 0
        %v3613 = vsel %vm3608, %v3499, 0
        %v3616 = vsel %vm3608, %v3501, 0
        %v3619 = vsel %vm3608, %v3503, 0
        %v3622 = vsel %vm3608, %v3505, 0
        %v3625 = vsel %vm3608, %v3507, 0
        %v3628 = vsel %vm3608, %v3509, 0
        %v3631 = vsel %vm3608, %v3511, 0
        %v3634 = vsel %vm3608, %v3513, 0
        %v3637 = vsel %vm3608, %v3515, 0
        %v3640 = vsel %vm3608, %v3517, 0
        %v3643 = vsel %vm3608, %v3519, 0
        %v3646 = vsel %vm3608, %v3521, 0
        %v3649 = vsel %vm3608, %v3523, 0
        %vm3651 = vcmask 1043456
        %v3653 = vsel %vm3651, %v3597, 0
        %3655 = vmatprep.subr.bf16.mxu0 0
        %3656 = vmatpush1.bf16.msra.mxu0 %v3587
        %3657 = vmatprep.subr.bf16.mxu0 0
        %3658 = vmatpush1.bf16.msra.mxu0 %v3588
        %3659 = vmatprep.subr.bf16.mxu0 0
        %3660 = vmatpush1.bf16.msra.mxu0 %v3589
        %3661 = vmatprep.subr.bf16.mxu0 0
        %3662 = vmatpush1.bf16.msra.mxu0 %v3590
        %3663 = vmatprep.subr.bf16.mxu0 0
        %3664 = vmatpush1.bf16.msra.mxu0 %v3591
        %3665 = vmatprep.subr.bf16.mxu0 0
        %3666 = vmatpush1.bf16.msra.mxu0 %v3592
        %3667 = vmatprep.subr.bf16.mxu0 0
        %3668 = vmatpush1.bf16.msra.mxu0 %v3593
        %3669 = vmatprep.subr.bf16.mxu0 0
        %3670 = vmatpush1.bf16.msra.mxu0 %v3594
        %3671 = vmatprep.subr.bf16.mxu0 0
        %3672 = vmatpush1.bf16.msra.mxu0 %v3595
        %3673 = vmatprep.subr.bf16.mxu0 0
        %3674 = vmatpush1.bf16.msra.mxu0 %v3596
        %3675 = vmatprep.subr.bf16.mxu0 0
        %3676 = vmatpush1.bf16.msra.mxu0 %v3653
        %3677 = vmatprep.subr.bf16.mxu0 0
        %3678 = vmatpush1.bf16.msra.mxu0 0
        %3679 = vmatprep.subr.bf16.mxu0 0
        %3680 = vmatpush1.bf16.msra.mxu0 0
        %3681 = vmatprep.subr.bf16.mxu0 0
        %3682 = vmatpush1.bf16.msra.mxu0 0
        %3683 = vmatprep.subr.bf16.mxu0 0
        %3684 = vmatpush1.bf16.msra.mxu0 0
        %3685 = vmatprep.subr.bf16.mxu0 0
        %3686 = vmatpush1.bf16.msra.mxu0 0
        %3687 = vmatprep.mubr.bf16.mxu0 %v3610
        %3688 = vmatmul.mubr.bf16.gmra.mrb[0].mxu0 %v3496
        %v3689 = vpop.f32.mrb[0].mxu0
        %v3690 = vadd.f32 0.0, %v3689
        %v3691 = vpop.f32.mrb[0].mxu0
        %v3692 = vpop.f32.mrb[0].mxu0
        %v3693 = vadd.f32 0.0, %v3692
        %v3694 = vpop.f32.mrb[0].mxu0
        %3695 = vmatprep.mubr.bf16.mxu0 %v3613
        %3696 = vmatmul.mubr.bf16.gmra.mrb[0].mxu0 %v3498
        %v3697 = vpop.f32.mrb[0].mxu0
        %v3698 = vadd.f32 0.0, %v3697
        %v3699 = vpop.f32.mrb[0].mxu0
        %v3700 = vpop.f32.mrb[0].mxu0
        %v3701 = vadd.f32 0.0, %v3700
        %v3702 = vpop.f32.mrb[0].mxu0
        %3703 = vmatprep.mubr.bf16.mxu0 %v3616
        %3704 = vmatmul.mubr.bf16.gmra.mrb[0].mxu0 %v3500
        %v3705 = vpop.f32.mrb[0].mxu0
        %v3706 = vadd.f32 0.0, %v3705
        %v3707 = vpop.f32.mrb[0].mxu0
        %v3708 = vpop.f32.mrb[0].mxu0
        %v3709 = vadd.f32 0.0, %v3708
        %v3710 = vpop.f32.mrb[0].mxu0
        %3711 = vmatprep.mubr.bf16.mxu0 %v3619
        %3712 = vmatmul.mubr.bf16.gmra.mrb[0].mxu0 %v3502
        %v3713 = vpop.f32.mrb[0].mxu0
        %v3714 = vadd.f32 0.0, %v3713
        %v3715 = vpop.f32.mrb[0].mxu0
        %v3716 = vpop.f32.mrb[0].mxu0
        %v3717 = vadd.f32 0.0, %v3716
        %v3718 = vpop.f32.mrb[0].mxu0
        %3719 = vmatprep.mubr.bf16.mxu0 %v3622
        %3720 = vmatmul.mubr.bf16.gmra.mrb[0].mxu0 %v3504
        %v3721 = vpop.f32.mrb[0].mxu0
        %v3722 = vadd.f32 0.0, %v3721
        %v3723 = vpop.f32.mrb[0].mxu0
        %v3724 = vpop.f32.mrb[0].mxu0
        %v3725 = vadd.f32 0.0, %v3724
        %v3726 = vpop.f32.mrb[0].mxu0
        %3727 = vmatprep.mubr.bf16.mxu0 %v3625
        %3728 = vmatmul.mubr.bf16.gmra.mrb[0].mxu0 %v3506
        %v3729 = vpop.f32.mrb[0].mxu0
        %v3730 = vadd.f32 0.0, %v3729
        %v3731 = vpop.f32.mrb[0].mxu0
        %v3732 = vpop.f32.mrb[0].mxu0
        %v3733 = vadd.f32 0.0, %v3732
        %v3734 = vpop.f32.mrb[0].mxu0
        %3735 = vmatprep.mubr.bf16.mxu0 %v3628
        %3736 = vmatmul.mubr.bf16.gmra.mrb[0].mxu0 %v3508
        %v3737 = vpop.f32.mrb[0].mxu0
        %v3738 = vadd.f32 0.0, %v3737
        %v3739 = vpop.f32.mrb[0].mxu0
        %v3740 = vpop.f32.mrb[0].mxu0
        %v3741 = vadd.f32 0.0, %v3740
        %v3742 = vpop.f32.mrb[0].mxu0
        %3743 = vmatprep.mubr.bf16.mxu0 %v3631
        %3744 = vmatmul.mubr.bf16.gmra.mrb[0].mxu0 %v3510
        %v3745 = vpop.f32.mrb[0].mxu0
        %v3746 = vadd.f32 0.0, %v3745
        %v3747 = vpop.f32.mrb[0].mxu0
        %v3748 = vpop.f32.mrb[0].mxu0
        %v3749 = vadd.f32 0.0, %v3748
        %v3750 = vpop.f32.mrb[0].mxu0
        %3751 = vmatprep.mubr.bf16.mxu0 %v3634
        %3752 = vmatmul.mubr.bf16.gmra.mrb[0].mxu0 %v3512
        %v3753 = vpop.f32.mrb[0].mxu0
        %v3754 = vadd.f32 0.0, %v3753
        %v3755 = vpop.f32.mrb[0].mxu0
        %v3756 = vpop.f32.mrb[0].mxu0
        %v3757 = vadd.f32 0.0, %v3756
        %v3758 = vpop.f32.mrb[0].mxu0
        %3759 = vmatprep.mubr.bf16.mxu0 %v3637
        %3760 = vmatmul.mubr.bf16.gmra.mrb[0].mxu0 %v3514
        %v3761 = vpop.f32.mrb[0].mxu0
        %v3762 = vadd.f32 0.0, %v3761
        %v3763 = vpop.f32.mrb[0].mxu0
        %v3764 = vpop.f32.mrb[0].mxu0
        %v3765 = vadd.f32 0.0, %v3764
        %v3766 = vpop.f32.mrb[0].mxu0
        %3767 = vmatprep.mubr.bf16.mxu0 %v3640
        %3768 = vmatmul.mubr.bf16.gmra.mrb[0].mxu0 %v3516
        %v3769 = vpop.f32.mrb[0].mxu0
        %v3770 = vadd.f32 0.0, %v3769
        %v3771 = vpop.f32.mrb[0].mxu0
        %v3772 = vpop.f32.mrb[0].mxu0
        %v3773 = vadd.f32 0.0, %v3772
        %v3774 = vpop.f32.mrb[0].mxu0
        %3775 = vmatprep.mubr.bf16.mxu0 %v3643
        %3776 = vmatmul.mubr.bf16.gmra.mrb[0].mxu0 %v3518
        %v3777 = vpop.f32.mrb[0].mxu0
        %v3778 = vadd.f32 0.0, %v3777
        %v3779 = vpop.f32.mrb[0].mxu0
        %v3780 = vpop.f32.mrb[0].mxu0
        %v3781 = vadd.f32 0.0, %v3780
        %v3782 = vpop.f32.mrb[0].mxu0
        %3783 = vmatprep.mubr.bf16.mxu0 %v3646
        %3784 = vmatmul.mubr.bf16.gmra.mrb[0].mxu0 %v3520
        %v3785 = vpop.f32.mrb[0].mxu0
        %v3786 = vadd.f32 0.0, %v3785
        %v3787 = vpop.f32.mrb[0].mxu0
        %v3788 = vpop.f32.mrb[0].mxu0
        %v3789 = vadd.f32 0.0, %v3788
        %v3790 = vpop.f32.mrb[0].mxu0
        %3791 = vmatprep.mubr.bf16.mxu0 %v3649
        %3792 = vmatmul.mubr.bf16.gmra.mrb[0].mxu0 %v3522
        %v3793 = vpop.f32.mrb[0].mxu0
        %v3794 = vadd.f32 0.0, %v3793
        %v3795 = vpop.f32.mrb[0].mxu0
        %v3796 = vpop.f32.mrb[0].mxu0
        %v3797 = vadd.f32 0.0, %v3796
        %v3798 = vpop.f32.mrb[0].mxu0
        %3799 = vdwg.mxu0
        %s3800 = scalar_lea.vmem %s3, 84
        %v3801 = vld [vmem:[%s3800] sm:$0xf]
        %v3802 = vld [vmem:[%s3800 + $0x4] sm:$0xf]
        %v3803 = vld [vmem:[%s3800 + $0x8] sm:$0xf]
        %v3804 = vld [vmem:[%s3800 + $0xc] sm:$0xf]
        %v3805 = vld [vmem:[%s3800 + $0x10] sm:$0xf]
        %v3806 = vld [vmem:[%s3800 + $0x14] sm:$0xf]
        %v3807 = vld [vmem:[%s3800 + $0x18] sm:$0xf]
        %v3808 = vld [vmem:[%s3800 + $0x1c] sm:$0xf]
        %v3809 = vld [vmem:[%s3800 + $0x20] sm:$0xf]
        %v3810 = vld [vmem:[%s3800 + $0x24] sm:$0xf]
        %v3811 = vld [vmem:[%s3800 + $0x28] sm:$0xf]
        %v3812 = vld [vmem:[%s3800 + $0x2c] sm:$0xf]
        %v3813 = vld [vmem:[%s3800 + $0x30] sm:$0xf]
        %v3814 = vld [vmem:[%s3800 + $0x34] sm:$0xf]
        %v3815 = vld [vmem:[%s3800 + $0x38] sm:$0xf]
        %v3816 = vld [vmem:[%s3800 + $0x3c] sm:$0xf]
        %v3817 = vld [vmem:[%s3800 + $0x40] sm:$0xf]
        %v3818 = vld [vmem:[%s3800 + $0x44] sm:$0xf]
        %v3819 = vld [vmem:[%s3800 + $0x48] sm:$0xf]
        %v3820 = vld [vmem:[%s3800 + $0x4c] sm:$0xf]
        %v3821 = vld [vmem:[%s3800 + $0x50] sm:$0xf]
        %v3843 = vunpack.c.l.b16 %v3801
        %v3844 = vunpack.c.l.b16 %v3802
        %v3845 = vunpack.c.l.b16 %v3803
        %v3846 = vunpack.c.l.b16 %v3804
        %v3847 = vunpack.c.l.b16 %v3805
        %v3848 = vunpack.c.l.b16 %v3806
        %v3849 = vunpack.c.l.b16 %v3807
        %v3850 = vunpack.c.l.b16 %v3808
        %v3851 = vunpack.c.l.b16 %v3809
        %v3852 = vunpack.c.l.b16 %v3810
        %v3853 = vunpack.c.l.b16 %v3811
        %v3854 = vunpack.c.l.b16 %v3812
        %v3855 = vunpack.c.l.b16 %v3813
        %v3856 = vunpack.c.l.b16 %v3814
        %v3857 = vunpack.c.l.b16 %v3815
        %v3858 = vunpack.c.l.b16 %v3816
        %v3859 = vunpack.c.l.b16 %v3817
        %v3860 = vunpack.c.l.b16 %v3818
        %v3861 = vunpack.c.l.b16 %v3819
        %v3862 = vunpack.c.l.b16 %v3820
        %v3863 = vunpack.c.l.b16 %v3821
        %v3864 = vpack.c.b16 %v3844, %v3843
        %v3865 = vpack.c.b16 %v3846, %v3845
        %v3866 = vpack.c.b16 %v3848, %v3847
        %v3867 = vpack.c.b16 %v3850, %v3849
        %v3868 = vpack.c.b16 %v3852, %v3851
        %v3869 = vpack.c.b16 %v3854, %v3853
        %v3870 = vpack.c.b16 %v3856, %v3855
        %v3871 = vpack.c.b16 %v3858, %v3857
        %v3872 = vpack.c.b16 %v3860, %v3859
        %v3873 = vpack.c.b16 %v3862, %v3861
        %v3874 = vpack.c.b16 %v3863, %v3863
        %v3886 = vsel %vm3651, %v3874, 0
        %3888 = vmatprep.subr.bf16.mxu0 0
        %3889 = vmatpush1.bf16.msra.mxu0 %v3864
        %3890 = vmatprep.subr.bf16.mxu0 0
        %3891 = vmatpush1.bf16.msra.mxu0 %v3865
        %3892 = vmatprep.subr.bf16.mxu0 0
        %3893 = vmatpush1.bf16.msra.mxu0 %v3866
        %3894 = vmatprep.subr.bf16.mxu0 0
        %3895 = vmatpush1.bf16.msra.mxu0 %v3867
        %3896 = vmatprep.subr.bf16.mxu0 0
        %3897 = vmatpush1.bf16.msra.mxu0 %v3868
        %3898 = vmatprep.subr.bf16.mxu0 0
        %3899 = vmatpush1.bf16.msra.mxu0 %v3869
        %3900 = vmatprep.subr.bf16.mxu0 0
        %3901 = vmatpush1.bf16.msra.mxu0 %v3870
        %3902 = vmatprep.subr.bf16.mxu0 0
        %3903 = vmatpush1.bf16.msra.mxu0 %v3871
        %3904 = vmatprep.subr.bf16.mxu0 0
        %3905 = vmatpush1.bf16.msra.mxu0 %v3872
        %3906 = vmatprep.subr.bf16.mxu0 0
        %3907 = vmatpush1.bf16.msra.mxu0 %v3873
        %3908 = vmatprep.subr.bf16.mxu0 0
        %3909 = vmatpush1.bf16.msra.mxu0 %v3886
        %3910 = vmatprep.subr.bf16.mxu0 0
        %3911 = vmatpush1.bf16.msra.mxu0 0
        %3912 = vmatprep.subr.bf16.mxu0 0
        %3913 = vmatpush1.bf16.msra.mxu0 0
        %3914 = vmatprep.subr.bf16.mxu0 0
        %3915 = vmatpush1.bf16.msra.mxu0 0
        %3916 = vmatprep.subr.bf16.mxu0 0
        %3917 = vmatpush1.bf16.msra.mxu0 0
        %3918 = vmatprep.subr.bf16.mxu0 0
        %3919 = vmatpush1.bf16.msra.mxu0 0
        %3920 = vmatprep.mubr.bf16.mxu0 %v3610
        %3921 = vmatmul.mubr.bf16.gmra.mrb[0].mxu0 %v3496
        %v3922 = vpop.f32.mrb[0].mxu0
        %v3923 = vadd.f32 0.0, %v3922
        %v3924 = vpop.f32.mrb[0].mxu0
        %v3925 = vpop.f32.mrb[0].mxu0
        %v3926 = vadd.f32 0.0, %v3925
        %v3927 = vpop.f32.mrb[0].mxu0
        %3928 = vmatprep.mubr.bf16.mxu0 %v3613
        %3929 = vmatmul.mubr.bf16.gmra.mrb[0].mxu0 %v3498
        %v3930 = vpop.f32.mrb[0].mxu0
        %v3931 = vadd.f32 0.0, %v3930
        %v3932 = vpop.f32.mrb[0].mxu0
        %v3933 = vpop.f32.mrb[0].mxu0
        %v3934 = vadd.f32 0.0, %v3933
        %v3935 = vpop.f32.mrb[0].mxu0
        %3936 = vmatprep.mubr.bf16.mxu0 %v3616
        %3937 = vmatmul.mubr.bf16.gmra.mrb[0].mxu0 %v3500
        %v3938 = vpop.f32.mrb[0].mxu0
        %v3939 = vadd.f32 0.0, %v3938
        %v3940 = vpop.f32.mrb[0].mxu0
        %v3941 = vpop.f32.mrb[0].mxu0
        %v3942 = vadd.f32 0.0, %v3941
        %v3943 = vpop.f32.mrb[0].mxu0
        %3944 = vmatprep.mubr.bf16.mxu0 %v3619
        %3945 = vmatmul.mubr.bf16.gmra.mrb[0].mxu0 %v3502
        %v3946 = vpop.f32.mrb[0].mxu0
        %v3947 = vadd.f32 0.0, %v3946
        %v3948 = vpop.f32.mrb[0].mxu0
        %v3949 = vpop.f32.mrb[0].mxu0
        %v3950 = vadd.f32 0.0, %v3949
        %v3951 = vpop.f32.mrb[0].mxu0
        %3952 = vmatprep.mubr.bf16.mxu0 %v3622
        %3953 = vmatmul.mubr.bf16.gmra.mrb[0].mxu0 %v3504
        %v3954 = vpop.f32.mrb[0].mxu0
        %v3955 = vadd.f32 0.0, %v3954
        %v3956 = vpop.f32.mrb[0].mxu0
        %v3957 = vpop.f32.mrb[0].mxu0
        %v3958 = vadd.f32 0.0, %v3957
        %v3959 = vpop.f32.mrb[0].mxu0
        %3960 = vmatprep.mubr.bf16.mxu0 %v3625
        %3961 = vmatmul.mubr.bf16.gmra.mrb[0].mxu0 %v3506
        %v3962 = vpop.f32.mrb[0].mxu0
        %v3963 = vadd.f32 0.0, %v3962
        %v3964 = vpop.f32.mrb[0].mxu0
        %v3965 = vpop.f32.mrb[0].mxu0
        %v3966 = vadd.f32 0.0, %v3965
        %v3967 = vpop.f32.mrb[0].mxu0
        %3968 = vmatprep.mubr.bf16.mxu0 %v3628
        %3969 = vmatmul.mubr.bf16.gmra.mrb[0].mxu0 %v3508
        %v3970 = vpop.f32.mrb[0].mxu0
        %v3971 = vadd.f32 0.0, %v3970
        %v3972 = vpop.f32.mrb[0].mxu0
        %v3973 = vpop.f32.mrb[0].mxu0
        %v3974 = vadd.f32 0.0, %v3973
        %v3975 = vpop.f32.mrb[0].mxu0
        %3976 = vmatprep.mubr.bf16.mxu0 %v3631
        %3977 = vmatmul.mubr.bf16.gmra.mrb[0].mxu0 %v3510
        %v3978 = vpop.f32.mrb[0].mxu0
        %v3979 = vadd.f32 0.0, %v3978
        %v3980 = vpop.f32.mrb[0].mxu0
        %v3981 = vpop.f32.mrb[0].mxu0
        %v3982 = vadd.f32 0.0, %v3981
        %v3983 = vpop.f32.mrb[0].mxu0
        %3984 = vmatprep.mubr.bf16.mxu0 %v3634
        %3985 = vmatmul.mubr.bf16.gmra.mrb[0].mxu0 %v3512
        %v3986 = vpop.f32.mrb[0].mxu0
        %v3987 = vadd.f32 0.0, %v3986
        %v3988 = vpop.f32.mrb[0].mxu0
        %v3989 = vpop.f32.mrb[0].mxu0
        %v3990 = vadd.f32 0.0, %v3989
        %v3991 = vpop.f32.mrb[0].mxu0
        %3992 = vmatprep.mubr.bf16.mxu0 %v3637
        %3993 = vmatmul.mubr.bf16.gmra.mrb[0].mxu0 %v3514
        %v3994 = vpop.f32.mrb[0].mxu0
        %v3995 = vadd.f32 0.0, %v3994
        %v3996 = vpop.f32.mrb[0].mxu0
        %v3997 = vpop.f32.mrb[0].mxu0
        %v3998 = vadd.f32 0.0, %v3997
        %v3999 = vpop.f32.mrb[0].mxu0
        %4000 = vmatprep.mubr.bf16.mxu0 %v3640
        %4001 = vmatmul.mubr.bf16.gmra.mrb[0].mxu0 %v3516
        %v4002 = vpop.f32.mrb[0].mxu0
        %v4003 = vadd.f32 0.0, %v4002
        %v4004 = vpop.f32.mrb[0].mxu0
        %v4005 = vpop.f32.mrb[0].mxu0
        %v4006 = vadd.f32 0.0, %v4005
        %v4007 = vpop.f32.mrb[0].mxu0
        %4008 = vmatprep.mubr.bf16.mxu0 %v3643
        %4009 = vmatmul.mubr.bf16.gmra.mrb[0].mxu0 %v3518
        %v4010 = vpop.f32.mrb[0].mxu0
        %v4011 = vadd.f32 0.0, %v4010
        %v4012 = vpop.f32.mrb[0].mxu0
        %v4013 = vpop.f32.mrb[0].mxu0
        %v4014 = vadd.f32 0.0, %v4013
        %v4015 = vpop.f32.mrb[0].mxu0
        %4016 = vmatprep.mubr.bf16.mxu0 %v3646
        %4017 = vmatmul.mubr.bf16.gmra.mrb[0].mxu0 %v3520
        %v4018 = vpop.f32.mrb[0].mxu0
        %v4019 = vadd.f32 0.0, %v4018
        %v4020 = vpop.f32.mrb[0].mxu0
        %v4021 = vpop.f32.mrb[0].mxu0
        %v4022 = vadd.f32 0.0, %v4021
        %v4023 = vpop.f32.mrb[0].mxu0
        %4024 = vmatprep.mubr.bf16.mxu0 %v3649
        %4025 = vmatmul.mubr.bf16.gmra.mrb[0].mxu0 %v3522
        %v4026 = vpop.f32.mrb[0].mxu0
        %v4027 = vadd.f32 0.0, %v4026
        %v4028 = vpop.f32.mrb[0].mxu0
        %v4029 = vpop.f32.mrb[0].mxu0
        %v4030 = vadd.f32 0.0, %v4029
        %v4031 = vpop.f32.mrb[0].mxu0
        %4032 = vdwg.mxu0
        %v4033 = vmax.f32 %v3690, %v3923
        %v4034 = vmax.f32 %v3693, %v3926
        %v4035 = vmax.f32 %v3698, %v3931
        %v4036 = vmax.f32 %v3701, %v3934
        %v4037 = vmax.f32 %v3706, %v3939
        %v4038 = vmax.f32 %v3709, %v3942
        %v4039 = vmax.f32 %v3714, %v3947
        %v4040 = vmax.f32 %v3717, %v3950
        %v4041 = vmax.f32 %v3722, %v3955
        %v4042 = vmax.f32 %v3725, %v3958
        %v4043 = vmax.f32 %v3730, %v3963
        %v4044 = vmax.f32 %v3733, %v3966
        %v4045 = vmax.f32 %v3738, %v3971
        %v4046 = vmax.f32 %v3741, %v3974
        %v4047 = vmax.f32 %v3746, %v3979
        %v4048 = vmax.f32 %v3749, %v3982
        %v4049 = vmax.f32 %v3754, %v3987
        %v4050 = vmax.f32 %v3757, %v3990
        %v4051 = vmax.f32 %v3762, %v3995
        %v4052 = vmax.f32 %v3765, %v3998
        %v4053 = vmax.f32 %v3770, %v4003
        %v4054 = vmax.f32 %v3773, %v4006
        %v4055 = vmax.f32 %v3778, %v4011
        %v4056 = vmax.f32 %v3781, %v4014
        %v4057 = vmax.f32 %v3786, %v4019
        %v4058 = vmax.f32 %v3789, %v4022
        %v4059 = vmax.f32 %v3794, %v4027
        %v4060 = vmax.f32 %v3797, %v4030
        %4061 = vst [vmem:[#allocation2] sm:$0xff] %v4033
        %4062 = vst [vmem:[#allocation2 + $0x8] sm:$0xff] %v4034
        %4063 = vst [vmem:[#allocation2 + $0x10] sm:$0xff] %v4035
        %4064 = vst [vmem:[#allocation2 + $0x18] sm:$0xff] %v4036
        %4065 = vst [vmem:[#allocation2 + $0x20] sm:$0xff] %v4037
        %4066 = vst [vmem:[#allocation2 + $0x28] sm:$0xff] %v4038
        %4067 = vst [vmem:[#allocation2 + $0x30] sm:$0xff] %v4039
        %4068 = vst [vmem:[#allocation2 + $0x38] sm:$0xff] %v4040
        %4069 = vst [vmem:[#allocation2 + $0x40] sm:$0xff] %v4041
        %4070 = vst [vmem:[#allocation2 + $0x48] sm:$0xff] %v4042
        %4071 = vst [vmem:[#allocation2 + $0x50] sm:$0xff] %v4043
        %4072 = vst [vmem:[#allocation2 + $0x58] sm:$0xff] %v4044
        %4073 = vst [vmem:[#allocation2 + $0x60] sm:$0xff] %v4045
        %4074 = vst [vmem:[#allocation2 + $0x68] sm:$0xff] %v4046
        %4075 = vst [vmem:[#allocation2 + $0x70] sm:$0xff] %v4047
        %4076 = vst [vmem:[#allocation2 + $0x78] sm:$0xff] %v4048
        %4077 = vst [vmem:[#allocation2 + $0x80] sm:$0xff] %v4049
        %4078 = vst [vmem:[#allocation2 + $0x88] sm:$0xff] %v4050
        %4079 = vst [vmem:[#allocation2 + $0x90] sm:$0xff] %v4051
        %4080 = vst [vmem:[#allocation2 + $0x98] sm:$0xff] %v4052
        %4081 = vst [vmem:[#allocation2 + $0xa0] sm:$0xff] %v4053
        %4082 = vst [vmem:[#allocation2 + $0xa8] sm:$0xff] %v4054
        %4083 = vst [vmem:[#allocation2 + $0xb0] sm:$0xff] %v4055
        %4084 = vst [vmem:[#allocation2 + $0xb8] sm:$0xff] %v4056
        %4085 = vst [vmem:[#allocation2 + $0xc0] sm:$0xff] %v4057
        %4086 = vst [vmem:[#allocation2 + $0xc8] sm:$0xff] %v4058
        %4087 = vst [vmem:[#allocation2 + $0xd0] sm:$0xff] %v4059
        %4088 = vst [vmem:[#allocation2 + $0xd8] sm:$0xff] %v4060
        %v4089 = vld [vmem:[#allocation2] ss:$2 sm:$0xff]
        %s4090 = scalar_lea.vmem [#allocation2], 16
        %v4091 = vld [vmem:[%s4090] ss:$2 sm:$0xff]
        %s4092 = scalar_lea.vmem [#allocation2], 32
        %v4093 = vld [vmem:[%s4092] ss:$2 sm:$0xff]
        %s4094 = scalar_lea.vmem [#allocation2], 48
        %v4095 = vld [vmem:[%s4094] ss:$2 sm:$0xff]
        %s4096 = scalar_lea.vmem [#allocation2], 64
        %v4097 = vld [vmem:[%s4096] ss:$2 sm:$0xff]
        %s4098 = scalar_lea.vmem [#allocation2], 80
        %v4099 = vld [vmem:[%s4098] ss:$2 sm:$0xff]
        %s4100 = scalar_lea.vmem [#allocation2], 96
        %v4101 = vld [vmem:[%s4100] ss:$2 sm:$0xff]
        %s4102 = scalar_lea.vmem [#allocation2], 112
        %v4103 = vld [vmem:[%s4102] ss:$2 sm:$0xff]
        %s4104 = scalar_lea.vmem [#allocation2], 128
        %v4105 = vld [vmem:[%s4104] ss:$2 sm:$0xff]
        %s4106 = scalar_lea.vmem [#allocation2], 144
        %v4107 = vld [vmem:[%s4106] ss:$2 sm:$0xff]
        %s4108 = scalar_lea.vmem [#allocation2], 160
        %v4109 = vld [vmem:[%s4108] ss:$2 sm:$0xff]
        %s4110 = scalar_lea.vmem [#allocation2], 176
        %v4111 = vld [vmem:[%s4110] ss:$2 sm:$0xff]
        %s4112 = scalar_lea.vmem [#allocation2], 192
        %v4113 = vld [vmem:[%s4112] ss:$2 sm:$0xff]
        %s4114 = scalar_lea.vmem [#allocation2], 208
        %v4115 = vld [vmem:[%s4114] ss:$2 sm:$0xff]
        %s4116 = scalar_lea.vmem [#allocation2], 1
        %v4117 = vld [vmem:[%s4116] ss:$2 sm:$0xff]
        %s4118 = scalar_lea.vmem [#allocation2], 17
        %v4119 = vld [vmem:[%s4118] ss:$2 sm:$0xff]
        %s4120 = scalar_lea.vmem [#allocation2], 33
        %v4121 = vld [vmem:[%s4120] ss:$2 sm:$0xff]
        %s4122 = scalar_lea.vmem [#allocation2], 49
        %v4123 = vld [vmem:[%s4122] ss:$2 sm:$0xff]
        %s4124 = scalar_lea.vmem [#allocation2], 65
        %v4125 = vld [vmem:[%s4124] ss:$2 sm:$0xff]
        %s4126 = scalar_lea.vmem [#allocation2], 81
        %v4127 = vld [vmem:[%s4126] ss:$2 sm:$0xff]
        %s4128 = scalar_lea.vmem [#allocation2], 97
        %v4129 = vld [vmem:[%s4128] ss:$2 sm:$0xff]
        %s4130 = scalar_lea.vmem [#allocation2], 113
        %v4131 = vld [vmem:[%s4130] ss:$2 sm:$0xff]
        %s4132 = scalar_lea.vmem [#allocation2], 129
        %v4133 = vld [vmem:[%s4132] ss:$2 sm:$0xff]
        %s4134 = scalar_lea.vmem [#allocation2], 145
        %v4135 = vld [vmem:[%s4134] ss:$2 sm:$0xff]
        %s4136 = scalar_lea.vmem [#allocation2], 161
        %v4137 = vld [vmem:[%s4136] ss:$2 sm:$0xff]
        %s4138 = scalar_lea.vmem [#allocation2], 177
        %v4139 = vld [vmem:[%s4138] ss:$2 sm:$0xff]
        %s4140 = scalar_lea.vmem [#allocation2], 193
        %v4141 = vld [vmem:[%s4140] ss:$2 sm:$0xff]
        %s4142 = scalar_lea.vmem [#allocation2], 209
        %v4143 = vld [vmem:[%s4142] ss:$2 sm:$0xff]
        %v4144 = vmax.f32 %v4089, %v4117
        %v4145 = vmax.f32 %v4091, %v4119
        %v4146 = vmax.f32 %v4093, %v4121
        %v4147 = vmax.f32 %v4095, %v4123
        %v4148 = vmax.f32 %v4097, %v4125
        %v4149 = vmax.f32 %v4099, %v4127
        %v4150 = vmax.f32 %v4101, %v4129
        %v4151 = vmax.f32 %v4103, %v4131
        %v4152 = vmax.f32 %v4105, %v4133
        %v4153 = vmax.f32 %v4107, %v4135
        %v4154 = vmax.f32 %v4109, %v4137
        %v4155 = vmax.f32 %v4111, %v4139
        %v4156 = vmax.f32 %v4113, %v4141
        %v4157 = vmax.f32 %v4115, %v4143
        %v4158 = vpack.c.bf16 %v4145, %v4144
        %v4159 = vpack.c.bf16 %v4147, %v4146
        %v4160 = vpack.c.bf16 %v4149, %v4148
        %v4161 = vpack.c.bf16 %v4151, %v4150
        %v4162 = vpack.c.bf16 %v4153, %v4152
        %v4163 = vpack.c.bf16 %v4155, %v4154
        %v4164 = vpack.c.bf16 %v4157, %v4156
        %v4172 = vcombine.high %v4158, %v4158
        %v4174 = vunpack.c.l.s4 1966171168
        %v4175 = vunpack.c.0.s8 %v4174
        %v4176 = vlaneseq
        %v4177 = vshrl.u32 %v4176, 7
        %v4178 = vsub.s32 %v4175, %v4177
        %v4179 = vrot.slane %v4158, %v4178
        %v4181 = vunpack.c.l.s4 1966171168
        %v4182 = vunpack.c.0.s8 %v4181
        %v4183 = vlaneseq
        %v4184 = vshrl.u32 %v4183, 7
        %v4185 = vsub.s32 %v4182, %v4184
        %v4186 = vrot.slane %v4172, %v4185
        %v4187 = vcombine.high %v4179, %v4179
        %v4188 = vcombine.high %v4186, %v4186
        %v4190 = vunpack.c.l.s4 1966171168
        %v4191 = vunpack.c.0.s8 %v4190
        %v4192 = vlaneseq
        %v4193 = vshrl.u32 %v4192, 7
        %v4194 = vsub.s32 %v4191, %v4193
        %v4195 = vrot.slane %v4179, %v4194
        %v4197 = vunpack.c.l.s4 1966171168
        %v4198 = vunpack.c.0.s8 %v4197
        %v4199 = vlaneseq
        %v4200 = vshrl.u32 %v4199, 7
        %v4201 = vsub.s32 %v4198, %v4200
        %v4202 = vrot.slane %v4186, %v4201
        %v4204 = vunpack.c.l.s4 1966171168
        %v4205 = vunpack.c.0.s8 %v4204
        %v4206 = vlaneseq
        %v4207 = vshrl.u32 %v4206, 7
        %v4208 = vsub.s32 %v4205, %v4207
        %v4209 = vrot.slane %v4187, %v4208
        %v4211 = vunpack.c.l.s4 1966171168
        %v4212 = vunpack.c.0.s8 %v4211
        %v4213 = vlaneseq
        %v4214 = vshrl.u32 %v4213, 7
        %v4215 = vsub.s32 %v4212, %v4214
        %v4216 = vrot.slane %v4188, %v4215
        %v4217 = vcombine.high %v4195, %v4195
        %v4218 = vcombine.high %v4202, %v4202
        %v4219 = vcombine.high %v4209, %v4209
        %v4220 = vcombine.high %v4216, %v4216
        %v4221 = vcombine.high %v4159, %v4159
        %v4223 = vunpack.c.l.s4 1966171168
        %v4224 = vunpack.c.0.s8 %v4223
        %v4225 = vlaneseq
        %v4226 = vshrl.u32 %v4225, 7
        %v4227 = vsub.s32 %v4224, %v4226
        %v4228 = vrot.slane %v4159, %v4227
        %v4230 = vunpack.c.l.s4 1966171168
        %v4231 = vunpack.c.0.s8 %v4230
        %v4232 = vlaneseq
        %v4233 = vshrl.u32 %v4232, 7
        %v4234 = vsub.s32 %v4231, %v4233
        %v4235 = vrot.slane %v4221, %v4234
        %v4236 = vcombine.high %v4228, %v4228
        %v4237 = vcombine.high %v4235, %v4235
        %v4239 = vunpack.c.l.s4 1966171168
        %v4240 = vunpack.c.0.s8 %v4239
        %v4241 = vlaneseq
        %v4242 = vshrl.u32 %v4241, 7
        %v4243 = vsub.s32 %v4240, %v4242
        %v4244 = vrot.slane %v4228, %v4243
        %v4246 = vunpack.c.l.s4 1966171168
        %v4247 = vunpack.c.0.s8 %v4246
        %v4248 = vlaneseq
        %v4249 = vshrl.u32 %v4248, 7
        %v4250 = vsub.s32 %v4247, %v4249
        %v4251 = vrot.slane %v4235, %v4250
        %v4253 = vunpack.c.l.s4 1966171168
        %v4254 = vunpack.c.0.s8 %v4253
        %v4255 = vlaneseq
        %v4256 = vshrl.u32 %v4255, 7
        %v4257 = vsub.s32 %v4254, %v4256
        %v4258 = vrot.slane %v4236, %v4257
        %v4260 = vunpack.c.l.s4 1966171168
        %v4261 = vunpack.c.0.s8 %v4260
        %v4262 = vlaneseq
        %v4263 = vshrl.u32 %v4262, 7
        %v4264 = vsub.s32 %v4261, %v4263
        %v4265 = vrot.slane %v4237, %v4264
        %v4266 = vcombine.high %v4244, %v4244
        %v4267 = vcombine.high %v4251, %v4251
        %v4268 = vcombine.high %v4258, %v4258
        %v4269 = vcombine.high %v4265, %v4265
        %v4270 = vcombine.high %v4160, %v4160
        %v4272 = vunpack.c.l.s4 1966171168
        %v4273 = vunpack.c.0.s8 %v4272
        %v4274 = vlaneseq
        %v4275 = vshrl.u32 %v4274, 7
        %v4276 = vsub.s32 %v4273, %v4275
        %v4277 = vrot.slane %v4160, %v4276
        %v4279 = vunpack.c.l.s4 1966171168
        %v4280 = vunpack.c.0.s8 %v4279
        %v4281 = vlaneseq
        %v4282 = vshrl.u32 %v4281, 7
        %v4283 = vsub.s32 %v4280, %v4282
        %v4284 = vrot.slane %v4270, %v4283
        %v4285 = vcombine.high %v4277, %v4277
        %v4286 = vcombine.high %v4284, %v4284
        %v4288 = vunpack.c.l.s4 1966171168
        %v4289 = vunpack.c.0.s8 %v4288
        %v4290 = vlaneseq
        %v4291 = vshrl.u32 %v4290, 7
        %v4292 = vsub.s32 %v4289, %v4291
        %v4293 = vrot.slane %v4277, %v4292
        %v4295 = vunpack.c.l.s4 1966171168
        %v4296 = vunpack.c.0.s8 %v4295
        %v4297 = vlaneseq
        %v4298 = vshrl.u32 %v4297, 7
        %v4299 = vsub.s32 %v4296, %v4298
        %v4300 = vrot.slane %v4284, %v4299
        %v4302 = vunpack.c.l.s4 1966171168
        %v4303 = vunpack.c.0.s8 %v4302
        %v4304 = vlaneseq
        %v4305 = vshrl.u32 %v4304, 7
        %v4306 = vsub.s32 %v4303, %v4305
        %v4307 = vrot.slane %v4285, %v4306
        %v4309 = vunpack.c.l.s4 1966171168
        %v4310 = vunpack.c.0.s8 %v4309
        %v4311 = vlaneseq
        %v4312 = vshrl.u32 %v4311, 7
        %v4313 = vsub.s32 %v4310, %v4312
        %v4314 = vrot.slane %v4286, %v4313
        %v4315 = vcombine.high %v4293, %v4293
        %v4316 = vcombine.high %v4300, %v4300
        %v4317 = vcombine.high %v4307, %v4307
        %v4318 = vcombine.high %v4314, %v4314
        %v4319 = vcombine.high %v4161, %v4161
        %v4321 = vunpack.c.l.s4 1966171168
        %v4322 = vunpack.c.0.s8 %v4321
        %v4323 = vlaneseq
        %v4324 = vshrl.u32 %v4323, 7
        %v4325 = vsub.s32 %v4322, %v4324
        %v4326 = vrot.slane %v4161, %v4325
        %v4328 = vunpack.c.l.s4 1966171168
        %v4329 = vunpack.c.0.s8 %v4328
        %v4330 = vlaneseq
        %v4331 = vshrl.u32 %v4330, 7
        %v4332 = vsub.s32 %v4329, %v4331
        %v4333 = vrot.slane %v4319, %v4332
        %v4334 = vcombine.high %v4326, %v4326
        %v4335 = vcombine.high %v4333, %v4333
        %v4337 = vunpack.c.l.s4 1966171168
        %v4338 = vunpack.c.0.s8 %v4337
        %v4339 = vlaneseq
        %v4340 = vshrl.u32 %v4339, 7
        %v4341 = vsub.s32 %v4338, %v4340
        %v4342 = vrot.slane %v4326, %v4341
        %v4344 = vunpack.c.l.s4 1966171168
        %v4345 = vunpack.c.0.s8 %v4344
        %v4346 = vlaneseq
        %v4347 = vshrl.u32 %v4346, 7
        %v4348 = vsub.s32 %v4345, %v4347
        %v4349 = vrot.slane %v4333, %v4348
        %v4351 = vunpack.c.l.s4 1966171168
        %v4352 = vunpack.c.0.s8 %v4351
        %v4353 = vlaneseq
        %v4354 = vshrl.u32 %v4353, 7
        %v4355 = vsub.s32 %v4352, %v4354
        %v4356 = vrot.slane %v4334, %v4355
        %v4358 = vunpack.c.l.s4 1966171168
        %v4359 = vunpack.c.0.s8 %v4358
        %v4360 = vlaneseq
        %v4361 = vshrl.u32 %v4360, 7
        %v4362 = vsub.s32 %v4359, %v4361
        %v4363 = vrot.slane %v4335, %v4362
        %v4364 = vcombine.high %v4342, %v4342
        %v4365 = vcombine.high %v4349, %v4349
        %v4366 = vcombine.high %v4356, %v4356
        %v4367 = vcombine.high %v4363, %v4363
        %v4368 = vcombine.high %v4162, %v4162
        %v4370 = vunpack.c.l.s4 1966171168
        %v4371 = vunpack.c.0.s8 %v4370
        %v4372 = vlaneseq
        %v4373 = vshrl.u32 %v4372, 7
        %v4374 = vsub.s32 %v4371, %v4373
        %v4375 = vrot.slane %v4162, %v4374
        %v4377 = vunpack.c.l.s4 1966171168
        %v4378 = vunpack.c.0.s8 %v4377
        %v4379 = vlaneseq
        %v4380 = vshrl.u32 %v4379, 7
        %v4381 = vsub.s32 %v4378, %v4380
        %v4382 = vrot.slane %v4368, %v4381
        %v4383 = vcombine.high %v4375, %v4375
        %v4384 = vcombine.high %v4382, %v4382
        %v4386 = vunpack.c.l.s4 1966171168
        %v4387 = vunpack.c.0.s8 %v4386
        %v4388 = vlaneseq
        %v4389 = vshrl.u32 %v4388, 7
        %v4390 = vsub.s32 %v4387, %v4389
        %v4391 = vrot.slane %v4375, %v4390
        %v4393 = vunpack.c.l.s4 1966171168
        %v4394 = vunpack.c.0.s8 %v4393
        %v4395 = vlaneseq
        %v4396 = vshrl.u32 %v4395, 7
        %v4397 = vsub.s32 %v4394, %v4396
        %v4398 = vrot.slane %v4382, %v4397
        %v4400 = vunpack.c.l.s4 1966171168
        %v4401 = vunpack.c.0.s8 %v4400
        %v4402 = vlaneseq
        %v4403 = vshrl.u32 %v4402, 7
        %v4404 = vsub.s32 %v4401, %v4403
        %v4405 = vrot.slane %v4383, %v4404
        %v4407 = vunpack.c.l.s4 1966171168
        %v4408 = vunpack.c.0.s8 %v4407
        %v4409 = vlaneseq
        %v4410 = vshrl.u32 %v4409, 7
        %v4411 = vsub.s32 %v4408, %v4410
        %v4412 = vrot.slane %v4384, %v4411
        %v4413 = vcombine.high %v4391, %v4391
        %v4414 = vcombine.high %v4398, %v4398
        %v4415 = vcombine.high %v4405, %v4405
        %v4416 = vcombine.high %v4412, %v4412
        %v4417 = vcombine.high %v4163, %v4163
        %v4419 = vunpack.c.l.s4 1966171168
        %v4420 = vunpack.c.0.s8 %v4419
        %v4421 = vlaneseq
        %v4422 = vshrl.u32 %v4421, 7
        %v4423 = vsub.s32 %v4420, %v4422
        %v4424 = vrot.slane %v4163, %v4423
        %v4426 = vunpack.c.l.s4 1966171168
        %v4427 = vunpack.c.0.s8 %v4426
        %v4428 = vlaneseq
        %v4429 = vshrl.u32 %v4428, 7
        %v4430 = vsub.s32 %v4427, %v4429
        %v4431 = vrot.slane %v4417, %v4430
        %v4432 = vcombine.high %v4424, %v4424
        %v4433 = vcombine.high %v4431, %v4431
        %v4435 = vunpack.c.l.s4 1966171168
        %v4436 = vunpack.c.0.s8 %v4435
        %v4437 = vlaneseq
        %v4438 = vshrl.u32 %v4437, 7
        %v4439 = vsub.s32 %v4436, %v4438
        %v4440 = vrot.slane %v4424, %v4439
        %v4442 = vunpack.c.l.s4 1966171168
        %v4443 = vunpack.c.0.s8 %v4442
        %v4444 = vlaneseq
        %v4445 = vshrl.u32 %v4444, 7
        %v4446 = vsub.s32 %v4443, %v4445
        %v4447 = vrot.slane %v4431, %v4446
        %v4449 = vunpack.c.l.s4 1966171168
        %v4450 = vunpack.c.0.s8 %v4449
        %v4451 = vlaneseq
        %v4452 = vshrl.u32 %v4451, 7
        %v4453 = vsub.s32 %v4450, %v4452
        %v4454 = vrot.slane %v4432, %v4453
        %v4456 = vunpack.c.l.s4 1966171168
        %v4457 = vunpack.c.0.s8 %v4456
        %v4458 = vlaneseq
        %v4459 = vshrl.u32 %v4458, 7
        %v4460 = vsub.s32 %v4457, %v4459
        %v4461 = vrot.slane %v4433, %v4460
        %v4462 = vcombine.high %v4440, %v4440
        %v4463 = vcombine.high %v4447, %v4447
        %v4464 = vcombine.high %v4454, %v4454
        %v4465 = vcombine.high %v4461, %v4461
        %v4466 = vcombine.high %v4164, %v4164
        %v4468 = vunpack.c.l.s4 1966171168
        %v4469 = vunpack.c.0.s8 %v4468
        %v4470 = vlaneseq
        %v4471 = vshrl.u32 %v4470, 7
        %v4472 = vsub.s32 %v4469, %v4471
        %v4473 = vrot.slane %v4164, %v4472
        %v4475 = vunpack.c.l.s4 1966171168
        %v4476 = vunpack.c.0.s8 %v4475
        %v4477 = vlaneseq
        %v4478 = vshrl.u32 %v4477, 7
        %v4479 = vsub.s32 %v4476, %v4478
        %v4480 = vrot.slane %v4466, %v4479
        %v4481 = vcombine.high %v4473, %v4473
        %v4482 = vcombine.high %v4480, %v4480
        %v4484 = vunpack.c.l.s4 1966171168
        %v4485 = vunpack.c.0.s8 %v4484
        %v4486 = vlaneseq
        %v4487 = vshrl.u32 %v4486, 7
        %v4488 = vsub.s32 %v4485, %v4487
        %v4489 = vrot.slane %v4473, %v4488
        %v4491 = vunpack.c.l.s4 1966171168
        %v4492 = vunpack.c.0.s8 %v4491
        %v4493 = vlaneseq
        %v4494 = vshrl.u32 %v4493, 7
        %v4495 = vsub.s32 %v4492, %v4494
        %v4496 = vrot.slane %v4480, %v4495
        %v4498 = vunpack.c.l.s4 1966171168
        %v4499 = vunpack.c.0.s8 %v4498
        %v4500 = vlaneseq
        %v4501 = vshrl.u32 %v4500, 7
        %v4502 = vsub.s32 %v4499, %v4501
        %v4503 = vrot.slane %v4481, %v4502
        %v4505 = vunpack.c.l.s4 1966171168
        %v4506 = vunpack.c.0.s8 %v4505
        %v4507 = vlaneseq
        %v4508 = vshrl.u32 %v4507, 7
        %v4509 = vsub.s32 %v4506, %v4508
        %v4510 = vrot.slane %v4482, %v4509
        %v4511 = vcombine.high %v4489, %v4489
        %v4512 = vcombine.high %v4496, %v4496
        %v4513 = vcombine.high %v4503, %v4503
        %v4514 = vcombine.high %v4510, %v4510
        %v4515 = vcombine.low %v4195, %v4209
        %v4516 = vcombine.low %v4217, %v4219
        %v4518 = vunpack.c.l.s4 1966171168
        %v4519 = vunpack.c.0.s8 %v4518
        %v4520 = vlaneseq
        %v4521 = vshrl.u32 %v4520, 7
        %v4522 = vsub.s32 %v4519, %v4521
        %v4523 = vrot.slane %v4515, %v4522
        %v4525 = vunpack.c.l.s4 1966171168
        %v4526 = vunpack.c.0.s8 %v4525
        %v4527 = vlaneseq
        %v4528 = vshrl.u32 %v4527, 7
        %v4529 = vsub.s32 %v4526, %v4528
        %v4530 = vrot.slane %v4516, %v4529
        %v4532 = vunpack.c.l.s4 1966171168
        %v4533 = vunpack.c.0.s8 %v4532
        %v4534 = vlaneseq
        %v4535 = vshrl.u32 %v4534, 7
        %v4536 = vsub.s32 %v4533, %v4535
        %v4537 = vrot.slane %v4202, %v4536
        %v4538 = vcombine.low %v4523, %v4530
        %v4540 = vunpack.c.l.s4 1966171168
        %v4541 = vunpack.c.0.s8 %v4540
        %v4542 = vlaneseq
        %v4543 = vshrl.u32 %v4542, 7
        %v4544 = vsub.s32 %v4541, %v4543
        %v4545 = vrot.slane %v4538, %v4544
        %v4547 = vunpack.c.l.s4 1966171168
        %v4548 = vunpack.c.0.s8 %v4547
        %v4549 = vlaneseq
        %v4550 = vshrl.u32 %v4549, 7
        %v4551 = vsub.s32 %v4548, %v4550
        %v4552 = vrot.slane %v4537, %v4551
        %v4553 = vcombine.low %v4545, %v4552
        %v4554 = vcombine.low %v4220, %v4244
        %v4555 = vcombine.low %v4258, %v4266
        %v4557 = vunpack.c.l.s4 1966171168
        %v4558 = vunpack.c.0.s8 %v4557
        %v4559 = vlaneseq
        %v4560 = vshrl.u32 %v4559, 7
        %v4561 = vsub.s32 %v4558, %v4560
        %v4562 = vrot.slane %v4554, %v4561
        %v4564 = vunpack.c.l.s4 1966171168
        %v4565 = vunpack.c.0.s8 %v4564
        %v4566 = vlaneseq
        %v4567 = vshrl.u32 %v4566, 7
        %v4568 = vsub.s32 %v4565, %v4567
        %v4569 = vrot.slane %v4555, %v4568
        %v4571 = vunpack.c.l.s4 1966171168
        %v4572 = vunpack.c.0.s8 %v4571
        %v4573 = vlaneseq
        %v4574 = vshrl.u32 %v4573, 7
        %v4575 = vsub.s32 %v4572, %v4574
        %v4576 = vrot.slane %v4268, %v4575
        %v4577 = vcombine.low %v4562, %v4569
        %v4579 = vunpack.c.l.s4 1966171168
        %v4580 = vunpack.c.0.s8 %v4579
        %v4581 = vlaneseq
        %v4582 = vshrl.u32 %v4581, 7
        %v4583 = vsub.s32 %v4580, %v4582
        %v4584 = vrot.slane %v4577, %v4583
        %v4586 = vunpack.c.l.s4 1966171168
        %v4587 = vunpack.c.0.s8 %v4586
        %v4588 = vlaneseq
        %v4589 = vshrl.u32 %v4588, 7
        %v4590 = vsub.s32 %v4587, %v4589
        %v4591 = vrot.slane %v4576, %v4590
        %v4592 = vcombine.low %v4584, %v4591
        %v4593 = vcombine.low %v4267, %v4269
        %v4594 = vcombine.low %v4293, %v4307
        %v4596 = vunpack.c.l.s4 1966171168
        %v4597 = vunpack.c.0.s8 %v4596
        %v4598 = vlaneseq
        %v4599 = vshrl.u32 %v4598, 7
        %v4600 = vsub.s32 %v4597, %v4599
        %v4601 = vrot.slane %v4593, %v4600
        %v4603 = vunpack.c.l.s4 1966171168
        %v4604 = vunpack.c.0.s8 %v4603
        %v4605 = vlaneseq
        %v4606 = vshrl.u32 %v4605, 7
        %v4607 = vsub.s32 %v4604, %v4606
        %v4608 = vrot.slane %v4594, %v4607
        %v4610 = vunpack.c.l.s4 1966171168
        %v4611 = vunpack.c.0.s8 %v4610
        %v4612 = vlaneseq
        %v4613 = vshrl.u32 %v4612, 7
        %v4614 = vsub.s32 %v4611, %v4613
        %v4615 = vrot.slane %v4315, %v4614
        %v4616 = vcombine.low %v4601, %v4608
        %v4618 = vunpack.c.l.s4 1966171168
        %v4619 = vunpack.c.0.s8 %v4618
        %v4620 = vlaneseq
        %v4621 = vshrl.u32 %v4620, 7
        %v4622 = vsub.s32 %v4619, %v4621
        %v4623 = vrot.slane %v4616, %v4622
        %v4625 = vunpack.c.l.s4 1966171168
        %v4626 = vunpack.c.0.s8 %v4625
        %v4627 = vlaneseq
        %v4628 = vshrl.u32 %v4627, 7
        %v4629 = vsub.s32 %v4626, %v4628
        %v4630 = vrot.slane %v4615, %v4629
        %v4631 = vcombine.low %v4623, %v4630
        %v4632 = vcombine.low %v4314, %v4316
        %v4633 = vcombine.low %v4318, %v4342
        %v4635 = vunpack.c.l.s4 1966171168
        %v4636 = vunpack.c.0.s8 %v4635
        %v4637 = vlaneseq
        %v4638 = vshrl.u32 %v4637, 7
        %v4639 = vsub.s32 %v4636, %v4638
        %v4640 = vrot.slane %v4632, %v4639
        %v4642 = vunpack.c.l.s4 1966171168
        %v4643 = vunpack.c.0.s8 %v4642
        %v4644 = vlaneseq
        %v4645 = vshrl.u32 %v4644, 7
        %v4646 = vsub.s32 %v4643, %v4645
        %v4647 = vrot.slane %v4633, %v4646
        %v4649 = vunpack.c.l.s4 1966171168
        %v4650 = vunpack.c.0.s8 %v4649
        %v4651 = vlaneseq
        %v4652 = vshrl.u32 %v4651, 7
        %v4653 = vsub.s32 %v4650, %v4652
        %v4654 = vrot.slane %v4356, %v4653
        %v4655 = vcombine.low %v4640, %v4647
        %v4657 = vunpack.c.l.s4 1966171168
        %v4658 = vunpack.c.0.s8 %v4657
        %v4659 = vlaneseq
        %v4660 = vshrl.u32 %v4659, 7
        %v4661 = vsub.s32 %v4658, %v4660
        %v4662 = vrot.slane %v4655, %v4661
        %v4664 = vunpack.c.l.s4 1966171168
        %v4665 = vunpack.c.0.s8 %v4664
        %v4666 = vlaneseq
        %v4667 = vshrl.u32 %v4666, 7
        %v4668 = vsub.s32 %v4665, %v4667
        %v4669 = vrot.slane %v4654, %v4668
        %v4670 = vcombine.low %v4662, %v4669
        %v4671 = vcombine.low %v4349, %v4363
        %v4672 = vcombine.low %v4365, %v4367
        %v4674 = vunpack.c.l.s4 1966171168
        %v4675 = vunpack.c.0.s8 %v4674
        %v4676 = vlaneseq
        %v4677 = vshrl.u32 %v4676, 7
        %v4678 = vsub.s32 %v4675, %v4677
        %v4679 = vrot.slane %v4671, %v4678
        %v4681 = vunpack.c.l.s4 1966171168
        %v4682 = vunpack.c.0.s8 %v4681
        %v4683 = vlaneseq
        %v4684 = vshrl.u32 %v4683, 7
        %v4685 = vsub.s32 %v4682, %v4684
        %v4686 = vrot.slane %v4672, %v4685
        %v4688 = vunpack.c.l.s4 1966171168
        %v4689 = vunpack.c.0.s8 %v4688
        %v4690 = vlaneseq
        %v4691 = vshrl.u32 %v4690, 7
        %v4692 = vsub.s32 %v4689, %v4691
        %v4693 = vrot.slane %v4391, %v4692
        %v4694 = vcombine.low %v4679, %v4686
        %v4696 = vunpack.c.l.s4 1966171168
        %v4697 = vunpack.c.0.s8 %v4696
        %v4698 = vlaneseq
        %v4699 = vshrl.u32 %v4698, 7
        %v4700 = vsub.s32 %v4697, %v4699
        %v4701 = vrot.slane %v4694, %v4700
        %v4703 = vunpack.c.l.s4 1966171168
        %v4704 = vunpack.c.0.s8 %v4703
        %v4705 = vlaneseq
        %v4706 = vshrl.u32 %v4705, 7
        %v4707 = vsub.s32 %v4704, %v4706
        %v4708 = vrot.slane %v4693, %v4707
        %v4709 = vcombine.low %v4701, %v4708
        %v4710 = vcombine.low %v4415, %v4398
        %v4711 = vcombine.low %v4412, %v4414
        %v4713 = vunpack.c.l.s4 1966171168
        %v4714 = vunpack.c.0.s8 %v4713
        %v4715 = vlaneseq
        %v4716 = vshrl.u32 %v4715, 7
        %v4717 = vsub.s32 %v4714, %v4716
        %v4718 = vrot.slane %v4710, %v4717
        %v4720 = vunpack.c.l.s4 1966171168
        %v4721 = vunpack.c.0.s8 %v4720
        %v4722 = vlaneseq
        %v4723 = vshrl.u32 %v4722, 7
        %v4724 = vsub.s32 %v4721, %v4723
        %v4725 = vrot.slane %v4711, %v4724
        %v4727 = vunpack.c.l.s4 1966171168
        %v4728 = vunpack.c.0.s8 %v4727
        %v4729 = vlaneseq
        %v4730 = vshrl.u32 %v4729, 7
        %v4731 = vsub.s32 %v4728, %v4730
        %v4732 = vrot.slane %v4416, %v4731
        %v4733 = vcombine.low %v4718, %v4725
        %v4735 = vunpack.c.l.s4 1966171168
        %v4736 = vunpack.c.0.s8 %v4735
        %v4737 = vlaneseq
        %v4738 = vshrl.u32 %v4737, 7
        %v4739 = vsub.s32 %v4736, %v4738
        %v4740 = vrot.slane %v4733, %v4739
        %v4742 = vunpack.c.l.s4 1966171168
        %v4743 = vunpack.c.0.s8 %v4742
        %v4744 = vlaneseq
        %v4745 = vshrl.u32 %v4744, 7
        %v4746 = vsub.s32 %v4743, %v4745
        %v4747 = vrot.slane %v4732, %v4746
        %v4748 = vcombine.low %v4740, %v4747
        %v4749 = vcombine.low %v4462, %v4464
        %v4750 = vcombine.low %v4447, %v4461
        %v4752 = vunpack.c.l.s4 1966171168
        %v4753 = vunpack.c.0.s8 %v4752
        %v4754 = vlaneseq
        %v4755 = vshrl.u32 %v4754, 7
        %v4756 = vsub.s32 %v4753, %v4755
        %v4757 = vrot.slane %v4749, %v4756
        %v4759 = vunpack.c.l.s4 1966171168
        %v4760 = vunpack.c.0.s8 %v4759
        %v4761 = vlaneseq
        %v4762 = vshrl.u32 %v4761, 7
        %v4763 = vsub.s32 %v4760, %v4762
        %v4764 = vrot.slane %v4750, %v4763
        %v4766 = vunpack.c.l.s4 1966171168
        %v4767 = vunpack.c.0.s8 %v4766
        %v4768 = vlaneseq
        %v4769 = vshrl.u32 %v4768, 7
        %v4770 = vsub.s32 %v4767, %v4769
        %v4771 = vrot.slane %v4463, %v4770
        %v4772 = vcombine.low %v4757, %v4764
        %v4774 = vunpack.c.l.s4 1966171168
        %v4775 = vunpack.c.0.s8 %v4774
        %v4776 = vlaneseq
        %v4777 = vshrl.u32 %v4776, 7
        %v4778 = vsub.s32 %v4775, %v4777
        %v4779 = vrot.slane %v4772, %v4778
        %v4781 = vunpack.c.l.s4 1966171168
        %v4782 = vunpack.c.0.s8 %v4781
        %v4783 = vlaneseq
        %v4784 = vshrl.u32 %v4783, 7
        %v4785 = vsub.s32 %v4782, %v4784
        %v4786 = vrot.slane %v4771, %v4785
        %v4787 = vcombine.low %v4779, %v4786
        %v4788 = vcombine.low %v4503, %v4511
        %v4789 = vcombine.low %v4513, %v4496
        %v4791 = vunpack.c.l.s4 1966171168
        %v4792 = vunpack.c.0.s8 %v4791
        %v4793 = vlaneseq
        %v4794 = vshrl.u32 %v4793, 7
        %v4795 = vsub.s32 %v4792, %v4794
        %v4796 = vrot.slane %v4788, %v4795
        %v4798 = vunpack.c.l.s4 1966171168
        %v4799 = vunpack.c.0.s8 %v4798
        %v4800 = vlaneseq
        %v4801 = vshrl.u32 %v4800, 7
        %v4802 = vsub.s32 %v4799, %v4801
        %v4803 = vrot.slane %v4789, %v4802
        %v4805 = vunpack.c.l.s4 1966171168
        %v4806 = vunpack.c.0.s8 %v4805
        %v4807 = vlaneseq
        %v4808 = vshrl.u32 %v4807, 7
        %v4809 = vsub.s32 %v4806, %v4808
        %v4810 = vrot.slane %v4510, %v4809
        %v4811 = vcombine.low %v4796, %v4803
        %v4813 = vunpack.c.l.s4 1966171168
        %v4814 = vunpack.c.0.s8 %v4813
        %v4815 = vlaneseq
        %v4816 = vshrl.u32 %v4815, 7
        %v4817 = vsub.s32 %v4814, %v4816
        %v4818 = vrot.slane %v4811, %v4817
        %v4820 = vunpack.c.l.s4 1966171168
        %v4821 = vunpack.c.0.s8 %v4820
        %v4822 = vlaneseq
        %v4823 = vshrl.u32 %v4822, 7
        %v4824 = vsub.s32 %v4821, %v4823
        %v4825 = vrot.slane %v4810, %v4824
        %v4826 = vcombine.low %v4818, %v4825
        %v4827 = vcombine.low %v4202, %v4216
        %v4829 = vunpack.c.l.s4 1966171168
        %v4830 = vunpack.c.0.s8 %v4829
        %v4831 = vlaneseq
        %v4832 = vshrl.u32 %v4831, 7
        %v4833 = vsub.s32 %v4830, %v4832
        %v4834 = vrot.slane %v4827, %v4833
        %v4836 = vunpack.c.l.s4 1966171168
        %v4837 = vunpack.c.0.s8 %v4836
        %v4838 = vlaneseq
        %v4839 = vshrl.u32 %v4838, 7
        %v4840 = vsub.s32 %v4837, %v4839
        %v4841 = vrot.slane %v4834, %v4840
        %v4842 = vcombine.low %v4545, %v4841
        %v4843 = vcombine.low %v4268, %v4251
        %v4845 = vunpack.c.l.s4 1966171168
        %v4846 = vunpack.c.0.s8 %v4845
        %v4847 = vlaneseq
        %v4848 = vshrl.u32 %v4847, 7
        %v4849 = vsub.s32 %v4846, %v4848
        %v4850 = vrot.slane %v4843, %v4849
        %v4852 = vunpack.c.l.s4 1966171168
        %v4853 = vunpack.c.0.s8 %v4852
        %v4854 = vlaneseq
        %v4855 = vshrl.u32 %v4854, 7
        %v4856 = vsub.s32 %v4853, %v4855
        %v4857 = vrot.slane %v4850, %v4856
        %v4858 = vcombine.low %v4584, %v4857
        %v4859 = vcombine.low %v4315, %v4317
        %v4861 = vunpack.c.l.s4 1966171168
        %v4862 = vunpack.c.0.s8 %v4861
        %v4863 = vlaneseq
        %v4864 = vshrl.u32 %v4863, 7
        %v4865 = vsub.s32 %v4862, %v4864
        %v4866 = vrot.slane %v4859, %v4865
        %v4868 = vunpack.c.l.s4 1966171168
        %v4869 = vunpack.c.0.s8 %v4868
        %v4870 = vlaneseq
        %v4871 = vshrl.u32 %v4870, 7
        %v4872 = vsub.s32 %v4869, %v4871
        %v4873 = vrot.slane %v4866, %v4872
        %v4874 = vcombine.low %v4623, %v4873
        %v4875 = vcombine.low %v4356, %v4364
        %v4877 = vunpack.c.l.s4 1966171168
        %v4878 = vunpack.c.0.s8 %v4877
        %v4879 = vlaneseq
        %v4880 = vshrl.u32 %v4879, 7
        %v4881 = vsub.s32 %v4878, %v4880
        %v4882 = vrot.slane %v4875, %v4881
        %v4884 = vunpack.c.l.s4 1966171168
        %v4885 = vunpack.c.0.s8 %v4884
        %v4886 = vlaneseq
        %v4887 = vshrl.u32 %v4886, 7
        %v4888 = vsub.s32 %v4885, %v4887
        %v4889 = vrot.slane %v4882, %v4888
        %v4890 = vcombine.low %v4662, %v4889
        %v4891 = vcombine.low %v4391, %v4405
        %v4893 = vunpack.c.l.s4 1966171168
        %v4894 = vunpack.c.0.s8 %v4893
        %v4895 = vlaneseq
        %v4896 = vshrl.u32 %v4895, 7
        %v4897 = vsub.s32 %v4894, %v4896
        %v4898 = vrot.slane %v4891, %v4897
        %v4900 = vunpack.c.l.s4 1966171168
        %v4901 = vunpack.c.0.s8 %v4900
        %v4902 = vlaneseq
        %v4903 = vshrl.u32 %v4902, 7
        %v4904 = vsub.s32 %v4901, %v4903
        %v4905 = vrot.slane %v4898, %v4904
        %v4906 = vcombine.low %v4701, %v4905
        %v4907 = vcombine.low %v4416, %v4440
        %v4909 = vunpack.c.l.s4 1966171168
        %v4910 = vunpack.c.0.s8 %v4909
        %v4911 = vlaneseq
        %v4912 = vshrl.u32 %v4911, 7
        %v4913 = vsub.s32 %v4910, %v4912
        %v4914 = vrot.slane %v4907, %v4913
        %v4916 = vunpack.c.l.s4 1966171168
        %v4917 = vunpack.c.0.s8 %v4916
        %v4918 = vlaneseq
        %v4919 = vshrl.u32 %v4918, 7
        %v4920 = vsub.s32 %v4917, %v4919
        %v4921 = vrot.slane %v4914, %v4920
        %v4922 = vcombine.low %v4740, %v4921
        %v4923 = vcombine.low %v4463, %v4465
        %v4925 = vunpack.c.l.s4 1966171168
        %v4926 = vunpack.c.0.s8 %v4925
        %v4927 = vlaneseq
        %v4928 = vshrl.u32 %v4927, 7
        %v4929 = vsub.s32 %v4926, %v4928
        %v4930 = vrot.slane %v4923, %v4929
        %v4932 = vunpack.c.l.s4 1966171168
        %v4933 = vunpack.c.0.s8 %v4932
        %v4934 = vlaneseq
        %v4935 = vshrl.u32 %v4934, 7
        %v4936 = vsub.s32 %v4933, %v4935
        %v4937 = vrot.slane %v4930, %v4936
        %v4938 = vcombine.low %v4779, %v4937
        %v4939 = vcombine.low %v4510, %v4512
        %v4941 = vunpack.c.l.s4 1966171168
        %v4942 = vunpack.c.0.s8 %v4941
        %v4943 = vlaneseq
        %v4944 = vshrl.u32 %v4943, 7
        %v4945 = vsub.s32 %v4942, %v4944
        %v4946 = vrot.slane %v4939, %v4945
        %v4948 = vunpack.c.l.s4 1966171168
        %v4949 = vunpack.c.0.s8 %v4948
        %v4950 = vlaneseq
        %v4951 = vshrl.u32 %v4950, 7
        %v4952 = vsub.s32 %v4949, %v4951
        %v4953 = vrot.slane %v4946, %v4952
        %v4954 = vcombine.low %v4818, %v4953
        %v4956 = vshrl.u32 %v4842, 16
        %v4958 = vshll.u32 %v4842, 16
        %v4960 = vrot.slane %v4958, 1
        %v4961 = vor.u32 %v4956, %v4960
        %v4963 = vshrl.u32 %v4858, 16
        %v4965 = vshll.u32 %v4858, 16
        %v4967 = vrot.slane %v4965, 1
        %v4968 = vor.u32 %v4963, %v4967
        %v4970 = vshrl.u32 %v4874, 16
        %v4972 = vshll.u32 %v4874, 16
        %v4974 = vrot.slane %v4972, 1
        %v4975 = vor.u32 %v4970, %v4974
        %v4977 = vshrl.u32 %v4890, 16
        %v4979 = vshll.u32 %v4890, 16
        %v4981 = vrot.slane %v4979, 1
        %v4982 = vor.u32 %v4977, %v4981
        %v4984 = vshrl.u32 %v4906, 16
        %v4986 = vshll.u32 %v4906, 16
        %v4988 = vrot.slane %v4986, 1
        %v4989 = vor.u32 %v4984, %v4988
        %v4991 = vshrl.u32 %v4922, 16
        %v4993 = vshll.u32 %v4922, 16
        %v4995 = vrot.slane %v4993, 1
        %v4996 = vor.u32 %v4991, %v4995
        %v4998 = vshrl.u32 %v4938, 16
        %v5000 = vshll.u32 %v4938, 16
        %v5002 = vrot.slane %v5000, 1
        %v5003 = vor.u32 %v4998, %v5002
        %v5005 = vshrl.u32 %v4954, 16
        %v5007 = vshll.u32 %v4954, 16
        %v5009 = vrot.slane %v5007, 1
        %v5010 = vor.u32 %v5005, %v5009
        %v5011 = vcombine.low %v4209, %v4217
        %v5012 = vcombine.low %v4219, %v4202
        %v5014 = vunpack.c.l.s4 1966171168
        %v5015 = vunpack.c.0.s8 %v5014
        %v5016 = vlaneseq
        %v5017 = vshrl.u32 %v5016, 7
        %v5018 = vsub.s32 %v5015, %v5017
        %v5019 = vrot.slane %v5011, %v5018
        %v5021 = vunpack.c.l.s4 1966171168
        %v5022 = vunpack.c.0.s8 %v5021
        %v5023 = vlaneseq
        %v5024 = vshrl.u32 %v5023, 7
        %v5025 = vsub.s32 %v5022, %v5024
        %v5026 = vrot.slane %v5012, %v5025
        %v5028 = vunpack.c.l.s4 1966171168
        %v5029 = vunpack.c.0.s8 %v5028
        %v5030 = vlaneseq
        %v5031 = vshrl.u32 %v5030, 7
        %v5032 = vsub.s32 %v5029, %v5031
        %v5033 = vrot.slane %v4216, %v5032
        %v5034 = vcombine.low %v5019, %v5026
        %v5036 = vunpack.c.l.s4 1966171168
        %v5037 = vunpack.c.0.s8 %v5036
        %v5038 = vlaneseq
        %v5039 = vshrl.u32 %v5038, 7
        %v5040 = vsub.s32 %v5037, %v5039
        %v5041 = vrot.slane %v5034, %v5040
        %v5043 = vunpack.c.l.s4 1966171168
        %v5044 = vunpack.c.0.s8 %v5043
        %v5045 = vlaneseq
        %v5046 = vshrl.u32 %v5045, 7
        %v5047 = vsub.s32 %v5044, %v5046
        %v5048 = vrot.slane %v5033, %v5047
        %v5049 = vcombine.low %v5041, %v5048
        %v5050 = vcombine.low %v4244, %v4258
        %v5051 = vcombine.low %v4266, %v4268
        %v5053 = vunpack.c.l.s4 1966171168
        %v5054 = vunpack.c.0.s8 %v5053
        %v5055 = vlaneseq
        %v5056 = vshrl.u32 %v5055, 7
        %v5057 = vsub.s32 %v5054, %v5056
        %v5058 = vrot.slane %v5050, %v5057
        %v5060 = vunpack.c.l.s4 1966171168
        %v5061 = vunpack.c.0.s8 %v5060
        %v5062 = vlaneseq
        %v5063 = vshrl.u32 %v5062, 7
        %v5064 = vsub.s32 %v5061, %v5063
        %v5065 = vrot.slane %v5051, %v5064
        %v5067 = vunpack.c.l.s4 1966171168
        %v5068 = vunpack.c.0.s8 %v5067
        %v5069 = vlaneseq
        %v5070 = vshrl.u32 %v5069, 7
        %v5071 = vsub.s32 %v5068, %v5070
        %v5072 = vrot.slane %v4251, %v5071
        %v5073 = vcombine.low %v5058, %v5065
        %v5075 = vunpack.c.l.s4 1966171168
        %v5076 = vunpack.c.0.s8 %v5075
        %v5077 = vlaneseq
        %v5078 = vshrl.u32 %v5077, 7
        %v5079 = vsub.s32 %v5076, %v5078
        %v5080 = vrot.slane %v5073, %v5079
        %v5082 = vunpack.c.l.s4 1966171168
        %v5083 = vunpack.c.0.s8 %v5082
        %v5084 = vlaneseq
        %v5085 = vshrl.u32 %v5084, 7
        %v5086 = vsub.s32 %v5083, %v5085
        %v5087 = vrot.slane %v5072, %v5086
        %v5088 = vcombine.low %v5080, %v5087
        %v5089 = vcombine.low %v4269, %v4293
        %v5090 = vcombine.low %v4307, %v4315
        %v5092 = vunpack.c.l.s4 1966171168
        %v5093 = vunpack.c.0.s8 %v5092
        %v5094 = vlaneseq
        %v5095 = vshrl.u32 %v5094, 7
        %v5096 = vsub.s32 %v5093, %v5095
        %v5097 = vrot.slane %v5089, %v5096
        %v5099 = vunpack.c.l.s4 1966171168
        %v5100 = vunpack.c.0.s8 %v5099
        %v5101 = vlaneseq
        %v5102 = vshrl.u32 %v5101, 7
        %v5103 = vsub.s32 %v5100, %v5102
        %v5104 = vrot.slane %v5090, %v5103
        %v5106 = vunpack.c.l.s4 1966171168
        %v5107 = vunpack.c.0.s8 %v5106
        %v5108 = vlaneseq
        %v5109 = vshrl.u32 %v5108, 7
        %v5110 = vsub.s32 %v5107, %v5109
        %v5111 = vrot.slane %v4317, %v5110
        %v5112 = vcombine.low %v5097, %v5104
        %v5114 = vunpack.c.l.s4 1966171168
        %v5115 = vunpack.c.0.s8 %v5114
        %v5116 = vlaneseq
        %v5117 = vshrl.u32 %v5116, 7
        %v5118 = vsub.s32 %v5115, %v5117
        %v5119 = vrot.slane %v5112, %v5118
        %v5121 = vunpack.c.l.s4 1966171168
        %v5122 = vunpack.c.0.s8 %v5121
        %v5123 = vlaneseq
        %v5124 = vshrl.u32 %v5123, 7
        %v5125 = vsub.s32 %v5122, %v5124
        %v5126 = vrot.slane %v5111, %v5125
        %v5127 = vcombine.low %v5119, %v5126
        %v5128 = vcombine.low %v4316, %v4318
        %v5129 = vcombine.low %v4342, %v4356
        %v5131 = vunpack.c.l.s4 1966171168
        %v5132 = vunpack.c.0.s8 %v5131
        %v5133 = vlaneseq
        %v5134 = vshrl.u32 %v5133, 7
        %v5135 = vsub.s32 %v5132, %v5134
        %v5136 = vrot.slane %v5128, %v5135
        %v5138 = vunpack.c.l.s4 1966171168
        %v5139 = vunpack.c.0.s8 %v5138
        %v5140 = vlaneseq
        %v5141 = vshrl.u32 %v5140, 7
        %v5142 = vsub.s32 %v5139, %v5141
        %v5143 = vrot.slane %v5129, %v5142
        %v5145 = vunpack.c.l.s4 1966171168
        %v5146 = vunpack.c.0.s8 %v5145
        %v5147 = vlaneseq
        %v5148 = vshrl.u32 %v5147, 7
        %v5149 = vsub.s32 %v5146, %v5148
        %v5150 = vrot.slane %v4364, %v5149
        %v5151 = vcombine.low %v5136, %v5143
        %v5153 = vunpack.c.l.s4 1966171168
        %v5154 = vunpack.c.0.s8 %v5153
        %v5155 = vlaneseq
        %v5156 = vshrl.u32 %v5155, 7
        %v5157 = vsub.s32 %v5154, %v5156
        %v5158 = vrot.slane %v5151, %v5157
        %v5160 = vunpack.c.l.s4 1966171168
        %v5161 = vunpack.c.0.s8 %v5160
        %v5162 = vlaneseq
        %v5163 = vshrl.u32 %v5162, 7
        %v5164 = vsub.s32 %v5161, %v5163
        %v5165 = vrot.slane %v5150, %v5164
        %v5166 = vcombine.low %v5158, %v5165
        %v5167 = vcombine.low %v4363, %v4365
        %v5168 = vcombine.low %v4367, %v4391
        %v5170 = vunpack.c.l.s4 1966171168
        %v5171 = vunpack.c.0.s8 %v5170
        %v5172 = vlaneseq
        %v5173 = vshrl.u32 %v5172, 7
        %v5174 = vsub.s32 %v5171, %v5173
        %v5175 = vrot.slane %v5167, %v5174
        %v5177 = vunpack.c.l.s4 1966171168
        %v5178 = vunpack.c.0.s8 %v5177
        %v5179 = vlaneseq
        %v5180 = vshrl.u32 %v5179, 7
        %v5181 = vsub.s32 %v5178, %v5180
        %v5182 = vrot.slane %v5168, %v5181
        %v5184 = vunpack.c.l.s4 1966171168
        %v5185 = vunpack.c.0.s8 %v5184
        %v5186 = vlaneseq
        %v5187 = vshrl.u32 %v5186, 7
        %v5188 = vsub.s32 %v5185, %v5187
        %v5189 = vrot.slane %v4405, %v5188
        %v5190 = vcombine.low %v5175, %v5182
        %v5192 = vunpack.c.l.s4 1966171168
        %v5193 = vunpack.c.0.s8 %v5192
        %v5194 = vlaneseq
        %v5195 = vshrl.u32 %v5194, 7
        %v5196 = vsub.s32 %v5193, %v5195
        %v5197 = vrot.slane %v5190, %v5196
        %v5199 = vunpack.c.l.s4 1966171168
        %v5200 = vunpack.c.0.s8 %v5199
        %v5201 = vlaneseq
        %v5202 = vshrl.u32 %v5201, 7
        %v5203 = vsub.s32 %v5200, %v5202
        %v5204 = vrot.slane %v5189, %v5203
        %v5205 = vcombine.low %v5197, %v5204
        %v5206 = vcombine.low %v4398, %v4412
        %v5207 = vcombine.low %v4414, %v4416
        %v5209 = vunpack.c.l.s4 1966171168
        %v5210 = vunpack.c.0.s8 %v5209
        %v5211 = vlaneseq
        %v5212 = vshrl.u32 %v5211, 7
        %v5213 = vsub.s32 %v5210, %v5212
        %v5214 = vrot.slane %v5206, %v5213
        %v5216 = vunpack.c.l.s4 1966171168
        %v5217 = vunpack.c.0.s8 %v5216
        %v5218 = vlaneseq
        %v5219 = vshrl.u32 %v5218, 7
        %v5220 = vsub.s32 %v5217, %v5219
        %v5221 = vrot.slane %v5207, %v5220
        %v5223 = vunpack.c.l.s4 1966171168
        %v5224 = vunpack.c.0.s8 %v5223
        %v5225 = vlaneseq
        %v5226 = vshrl.u32 %v5225, 7
        %v5227 = vsub.s32 %v5224, %v5226
        %v5228 = vrot.slane %v4440, %v5227
        %v5229 = vcombine.low %v5214, %v5221
        %v5231 = vunpack.c.l.s4 1966171168
        %v5232 = vunpack.c.0.s8 %v5231
        %v5233 = vlaneseq
        %v5234 = vshrl.u32 %v5233, 7
        %v5235 = vsub.s32 %v5232, %v5234
        %v5236 = vrot.slane %v5229, %v5235
        %v5238 = vunpack.c.l.s4 1966171168
        %v5239 = vunpack.c.0.s8 %v5238
        %v5240 = vlaneseq
        %v5241 = vshrl.u32 %v5240, 7
        %v5242 = vsub.s32 %v5239, %v5241
        %v5243 = vrot.slane %v5228, %v5242
        %v5244 = vcombine.low %v5236, %v5243
        %v5245 = vcombine.low %v4464, %v4447
        %v5246 = vcombine.low %v4461, %v4463
        %v5248 = vunpack.c.l.s4 1966171168
        %v5249 = vunpack.c.0.s8 %v5248
        %v5250 = vlaneseq
        %v5251 = vshrl.u32 %v5250, 7
        %v5252 = vsub.s32 %v5249, %v5251
        %v5253 = vrot.slane %v5245, %v5252
        %v5255 = vunpack.c.l.s4 1966171168
        %v5256 = vunpack.c.0.s8 %v5255
        %v5257 = vlaneseq
        %v5258 = vshrl.u32 %v5257, 7
        %v5259 = vsub.s32 %v5256, %v5258
        %v5260 = vrot.slane %v5246, %v5259
        %v5262 = vunpack.c.l.s4 1966171168
        %v5263 = vunpack.c.0.s8 %v5262
        %v5264 = vlaneseq
        %v5265 = vshrl.u32 %v5264, 7
        %v5266 = vsub.s32 %v5263, %v5265
        %v5267 = vrot.slane %v4465, %v5266
        %v5268 = vcombine.low %v5253, %v5260
        %v5270 = vunpack.c.l.s4 1966171168
        %v5271 = vunpack.c.0.s8 %v5270
        %v5272 = vlaneseq
        %v5273 = vshrl.u32 %v5272, 7
        %v5274 = vsub.s32 %v5271, %v5273
        %v5275 = vrot.slane %v5268, %v5274
        %v5277 = vunpack.c.l.s4 1966171168
        %v5278 = vunpack.c.0.s8 %v5277
        %v5279 = vlaneseq
        %v5280 = vshrl.u32 %v5279, 7
        %v5281 = vsub.s32 %v5278, %v5280
        %v5282 = vrot.slane %v5267, %v5281
        %v5283 = vcombine.low %v5275, %v5282
        %v5284 = vcombine.low %v4511, %v4513
        %v5285 = vcombine.low %v4496, %v4510
        %v5287 = vunpack.c.l.s4 1966171168
        %v5288 = vunpack.c.0.s8 %v5287
        %v5289 = vlaneseq
        %v5290 = vshrl.u32 %v5289, 7
        %v5291 = vsub.s32 %v5288, %v5290
        %v5292 = vrot.slane %v5284, %v5291
        %v5294 = vunpack.c.l.s4 1966171168
        %v5295 = vunpack.c.0.s8 %v5294
        %v5296 = vlaneseq
        %v5297 = vshrl.u32 %v5296, 7
        %v5298 = vsub.s32 %v5295, %v5297
        %v5299 = vrot.slane %v5285, %v5298
        %v5301 = vunpack.c.l.s4 1966171168
        %v5302 = vunpack.c.0.s8 %v5301
        %v5303 = vlaneseq
        %v5304 = vshrl.u32 %v5303, 7
        %v5305 = vsub.s32 %v5302, %v5304
        %v5306 = vrot.slane %v4512, %v5305
        %v5307 = vcombine.low %v5292, %v5299
        %v5309 = vunpack.c.l.s4 1966171168
        %v5310 = vunpack.c.0.s8 %v5309
        %v5311 = vlaneseq
        %v5312 = vshrl.u32 %v5311, 7
        %v5313 = vsub.s32 %v5310, %v5312
        %v5314 = vrot.slane %v5307, %v5313
        %v5316 = vunpack.c.l.s4 1966171168
        %v5317 = vunpack.c.0.s8 %v5316
        %v5318 = vlaneseq
        %v5319 = vshrl.u32 %v5318, 7
        %v5320 = vsub.s32 %v5317, %v5319
        %v5321 = vrot.slane %v5306, %v5320
        %v5322 = vcombine.low %v5314, %v5321
        %v5323 = vcombine.low %v4216, %v4218
        %v5325 = vunpack.c.l.s4 1966171168
        %v5326 = vunpack.c.0.s8 %v5325
        %v5327 = vlaneseq
        %v5328 = vshrl.u32 %v5327, 7
        %v5329 = vsub.s32 %v5326, %v5328
        %v5330 = vrot.slane %v5323, %v5329
        %v5332 = vunpack.c.l.s4 1966171168
        %v5333 = vunpack.c.0.s8 %v5332
        %v5334 = vlaneseq
        %v5335 = vshrl.u32 %v5334, 7
        %v5336 = vsub.s32 %v5333, %v5335
        %v5337 = vrot.slane %v5330, %v5336
        %v5338 = vcombine.low %v5041, %v5337
        %v5339 = vcombine.low %v4251, %v4265
        %v5341 = vunpack.c.l.s4 1966171168
        %v5342 = vunpack.c.0.s8 %v5341
        %v5343 = vlaneseq
        %v5344 = vshrl.u32 %v5343, 7
        %v5345 = vsub.s32 %v5342, %v5344
        %v5346 = vrot.slane %v5339, %v5345
        %v5348 = vunpack.c.l.s4 1966171168
        %v5349 = vunpack.c.0.s8 %v5348
        %v5350 = vlaneseq
        %v5351 = vshrl.u32 %v5350, 7
        %v5352 = vsub.s32 %v5349, %v5351
        %v5353 = vrot.slane %v5346, %v5352
        %v5354 = vcombine.low %v5080, %v5353
        %v5355 = vcombine.low %v4317, %v4300
        %v5357 = vunpack.c.l.s4 1966171168
        %v5358 = vunpack.c.0.s8 %v5357
        %v5359 = vlaneseq
        %v5360 = vshrl.u32 %v5359, 7
        %v5361 = vsub.s32 %v5358, %v5360
        %v5362 = vrot.slane %v5355, %v5361
        %v5364 = vunpack.c.l.s4 1966171168
        %v5365 = vunpack.c.0.s8 %v5364
        %v5366 = vlaneseq
        %v5367 = vshrl.u32 %v5366, 7
        %v5368 = vsub.s32 %v5365, %v5367
        %v5369 = vrot.slane %v5362, %v5368
        %v5370 = vcombine.low %v5119, %v5369
        %v5371 = vcombine.low %v4364, %v4366
        %v5373 = vunpack.c.l.s4 1966171168
        %v5374 = vunpack.c.0.s8 %v5373
        %v5375 = vlaneseq
        %v5376 = vshrl.u32 %v5375, 7
        %v5377 = vsub.s32 %v5374, %v5376
        %v5378 = vrot.slane %v5371, %v5377
        %v5380 = vunpack.c.l.s4 1966171168
        %v5381 = vunpack.c.0.s8 %v5380
        %v5382 = vlaneseq
        %v5383 = vshrl.u32 %v5382, 7
        %v5384 = vsub.s32 %v5381, %v5383
        %v5385 = vrot.slane %v5378, %v5384
        %v5386 = vcombine.low %v5158, %v5385
        %v5387 = vcombine.low %v4405, %v4413
        %v5389 = vunpack.c.l.s4 1966171168
        %v5390 = vunpack.c.0.s8 %v5389
        %v5391 = vlaneseq
        %v5392 = vshrl.u32 %v5391, 7
        %v5393 = vsub.s32 %v5390, %v5392
        %v5394 = vrot.slane %v5387, %v5393
        %v5396 = vunpack.c.l.s4 1966171168
        %v5397 = vunpack.c.0.s8 %v5396
        %v5398 = vlaneseq
        %v5399 = vshrl.u32 %v5398, 7
        %v5400 = vsub.s32 %v5397, %v5399
        %v5401 = vrot.slane %v5394, %v5400
        %v5402 = vcombine.low %v5197, %v5401
        %v5403 = vcombine.low %v4440, %v4454
        %v5405 = vunpack.c.l.s4 1966171168
        %v5406 = vunpack.c.0.s8 %v5405
        %v5407 = vlaneseq
        %v5408 = vshrl.u32 %v5407, 7
        %v5409 = vsub.s32 %v5406, %v5408
        %v5410 = vrot.slane %v5403, %v5409
        %v5412 = vunpack.c.l.s4 1966171168
        %v5413 = vunpack.c.0.s8 %v5412
        %v5414 = vlaneseq
        %v5415 = vshrl.u32 %v5414, 7
        %v5416 = vsub.s32 %v5413, %v5415
        %v5417 = vrot.slane %v5410, %v5416
        %v5418 = vcombine.low %v5236, %v5417
        %v5419 = vcombine.low %v4465, %v4489
        %v5421 = vunpack.c.l.s4 1966171168
        %v5422 = vunpack.c.0.s8 %v5421
        %v5423 = vlaneseq
        %v5424 = vshrl.u32 %v5423, 7
        %v5425 = vsub.s32 %v5422, %v5424
        %v5426 = vrot.slane %v5419, %v5425
        %v5428 = vunpack.c.l.s4 1966171168
        %v5429 = vunpack.c.0.s8 %v5428
        %v5430 = vlaneseq
        %v5431 = vshrl.u32 %v5430, 7
        %v5432 = vsub.s32 %v5429, %v5431
        %v5433 = vrot.slane %v5426, %v5432
        %v5434 = vcombine.low %v5275, %v5433
        %v5435 = vcombine.low %v4512, %v4514
        %v5437 = vunpack.c.l.s4 1966171168
        %v5438 = vunpack.c.0.s8 %v5437
        %v5439 = vlaneseq
        %v5440 = vshrl.u32 %v5439, 7
        %v5441 = vsub.s32 %v5438, %v5440
        %v5442 = vrot.slane %v5435, %v5441
        %v5444 = vunpack.c.l.s4 1966171168
        %v5445 = vunpack.c.0.s8 %v5444
        %v5446 = vlaneseq
        %v5447 = vshrl.u32 %v5446, 7
        %v5448 = vsub.s32 %v5445, %v5447
        %v5449 = vrot.slane %v5442, %v5448
        %v5450 = vcombine.low %v5314, %v5449
        %v5452 = vshrl.u32 %v5338, 16
        %v5454 = vshll.u32 %v5338, 16
        %v5456 = vrot.slane %v5454, 1
        %v5457 = vor.u32 %v5452, %v5456
        %v5459 = vshrl.u32 %v5354, 16
        %v5461 = vshll.u32 %v5354, 16
        %v5463 = vrot.slane %v5461, 1
        %v5464 = vor.u32 %v5459, %v5463
        %v5466 = vshrl.u32 %v5370, 16
        %v5468 = vshll.u32 %v5370, 16
        %v5470 = vrot.slane %v5468, 1
        %v5471 = vor.u32 %v5466, %v5470
        %v5473 = vshrl.u32 %v5386, 16
        %v5475 = vshll.u32 %v5386, 16
        %v5477 = vrot.slane %v5475, 1
        %v5478 = vor.u32 %v5473, %v5477
        %v5480 = vshrl.u32 %v5402, 16
        %v5482 = vshll.u32 %v5402, 16
        %v5484 = vrot.slane %v5482, 1
        %v5485 = vor.u32 %v5480, %v5484
        %v5487 = vshrl.u32 %v5418, 16
        %v5489 = vshll.u32 %v5418, 16
        %v5491 = vrot.slane %v5489, 1
        %v5492 = vor.u32 %v5487, %v5491
        %v5494 = vshrl.u32 %v5434, 16
        %v5496 = vshll.u32 %v5434, 16
        %v5498 = vrot.slane %v5496, 1
        %v5499 = vor.u32 %v5494, %v5498
        %v5501 = vshrl.u32 %v5450, 16
        %v5503 = vshll.u32 %v5450, 16
        %v5505 = vrot.slane %v5503, 1
        %v5506 = vor.u32 %v5501, %v5505
        %v5508 = vunpack.c.l.s4 1966171168
        %v5509 = vunpack.c.0.s8 %v5508
        %v5510 = vlaneseq
        %v5511 = vshrl.u32 %v5510, 7
        %v5512 = vsub.s32 %v5509, %v5511
        %v5513 = vrot.slane %v4218, %v5512
        %v5514 = vcombine.low %v4530, %v4834
        %v5516 = vunpack.c.l.s4 1966171168
        %v5517 = vunpack.c.0.s8 %v5516
        %v5518 = vlaneseq
        %v5519 = vshrl.u32 %v5518, 7
        %v5520 = vsub.s32 %v5517, %v5519
        %v5521 = vrot.slane %v5514, %v5520
        %v5523 = vunpack.c.l.s4 1966171168
        %v5524 = vunpack.c.0.s8 %v5523
        %v5525 = vlaneseq
        %v5526 = vshrl.u32 %v5525, 7
        %v5527 = vsub.s32 %v5524, %v5526
        %v5528 = vrot.slane %v5513, %v5527
        %v5529 = vcombine.low %v5521, %v5528
        %v5531 = vunpack.c.l.s4 1966171168
        %v5532 = vunpack.c.0.s8 %v5531
        %v5533 = vlaneseq
        %v5534 = vshrl.u32 %v5533, 7
        %v5535 = vsub.s32 %v5532, %v5534
        %v5536 = vrot.slane %v4265, %v5535
        %v5537 = vcombine.low %v4569, %v4850
        %v5539 = vunpack.c.l.s4 1966171168
        %v5540 = vunpack.c.0.s8 %v5539
        %v5541 = vlaneseq
        %v5542 = vshrl.u32 %v5541, 7
        %v5543 = vsub.s32 %v5540, %v5542
        %v5544 = vrot.slane %v5537, %v5543
        %v5546 = vunpack.c.l.s4 1966171168
        %v5547 = vunpack.c.0.s8 %v5546
        %v5548 = vlaneseq
        %v5549 = vshrl.u32 %v5548, 7
        %v5550 = vsub.s32 %v5547, %v5549
        %v5551 = vrot.slane %v5536, %v5550
        %v5552 = vcombine.low %v5544, %v5551
        %v5554 = vunpack.c.l.s4 1966171168
        %v5555 = vunpack.c.0.s8 %v5554
        %v5556 = vlaneseq
        %v5557 = vshrl.u32 %v5556, 7
        %v5558 = vsub.s32 %v5555, %v5557
        %v5559 = vrot.slane %v4300, %v5558
        %v5560 = vcombine.low %v4608, %v4866
        %v5562 = vunpack.c.l.s4 1966171168
        %v5563 = vunpack.c.0.s8 %v5562
        %v5564 = vlaneseq
        %v5565 = vshrl.u32 %v5564, 7
        %v5566 = vsub.s32 %v5563, %v5565
        %v5567 = vrot.slane %v5560, %v5566
        %v5569 = vunpack.c.l.s4 1966171168
        %v5570 = vunpack.c.0.s8 %v5569
        %v5571 = vlaneseq
        %v5572 = vshrl.u32 %v5571, 7
        %v5573 = vsub.s32 %v5570, %v5572
        %v5574 = vrot.slane %v5559, %v5573
        %v5575 = vcombine.low %v5567, %v5574
        %v5577 = vunpack.c.l.s4 1966171168
        %v5578 = vunpack.c.0.s8 %v5577
        %v5579 = vlaneseq
        %v5580 = vshrl.u32 %v5579, 7
        %v5581 = vsub.s32 %v5578, %v5580
        %v5582 = vrot.slane %v4366, %v5581
        %v5583 = vcombine.low %v4647, %v4882
        %v5585 = vunpack.c.l.s4 1966171168
        %v5586 = vunpack.c.0.s8 %v5585
        %v5587 = vlaneseq
        %v5588 = vshrl.u32 %v5587, 7
        %v5589 = vsub.s32 %v5586, %v5588
        %v5590 = vrot.slane %v5583, %v5589
        %v5592 = vunpack.c.l.s4 1966171168
        %v5593 = vunpack.c.0.s8 %v5592
        %v5594 = vlaneseq
        %v5595 = vshrl.u32 %v5594, 7
        %v5596 = vsub.s32 %v5593, %v5595
        %v5597 = vrot.slane %v5582, %v5596
        %v5598 = vcombine.low %v5590, %v5597
        %v5600 = vunpack.c.l.s4 1966171168
        %v5601 = vunpack.c.0.s8 %v5600
        %v5602 = vlaneseq
        %v5603 = vshrl.u32 %v5602, 7
        %v5604 = vsub.s32 %v5601, %v5603
        %v5605 = vrot.slane %v4413, %v5604
        %v5606 = vcombine.low %v4686, %v4898
        %v5608 = vunpack.c.l.s4 1966171168
        %v5609 = vunpack.c.0.s8 %v5608
        %v5610 = vlaneseq
        %v5611 = vshrl.u32 %v5610, 7
        %v5612 = vsub.s32 %v5609, %v5611
        %v5613 = vrot.slane %v5606, %v5612
        %v5615 = vunpack.c.l.s4 1966171168
        %v5616 = vunpack.c.0.s8 %v5615
        %v5617 = vlaneseq
        %v5618 = vshrl.u32 %v5617, 7
        %v5619 = vsub.s32 %v5616, %v5618
        %v5620 = vrot.slane %v5605, %v5619
        %v5621 = vcombine.low %v5613, %v5620
        %v5623 = vunpack.c.l.s4 1966171168
        %v5624 = vunpack.c.0.s8 %v5623
        %v5625 = vlaneseq
        %v5626 = vshrl.u32 %v5625, 7
        %v5627 = vsub.s32 %v5624, %v5626
        %v5628 = vrot.slane %v4454, %v5627
        %v5629 = vcombine.low %v4725, %v4914
        %v5631 = vunpack.c.l.s4 1966171168
        %v5632 = vunpack.c.0.s8 %v5631
        %v5633 = vlaneseq
        %v5634 = vshrl.u32 %v5633, 7
        %v5635 = vsub.s32 %v5632, %v5634
        %v5636 = vrot.slane %v5629, %v5635
        %v5638 = vunpack.c.l.s4 1966171168
        %v5639 = vunpack.c.0.s8 %v5638
        %v5640 = vlaneseq
        %v5641 = vshrl.u32 %v5640, 7
        %v5642 = vsub.s32 %v5639, %v5641
        %v5643 = vrot.slane %v5628, %v5642
        %v5644 = vcombine.low %v5636, %v5643
        %v5646 = vunpack.c.l.s4 1966171168
        %v5647 = vunpack.c.0.s8 %v5646
        %v5648 = vlaneseq
        %v5649 = vshrl.u32 %v5648, 7
        %v5650 = vsub.s32 %v5647, %v5649
        %v5651 = vrot.slane %v4489, %v5650
        %v5652 = vcombine.low %v4764, %v4930
        %v5654 = vunpack.c.l.s4 1966171168
        %v5655 = vunpack.c.0.s8 %v5654
        %v5656 = vlaneseq
        %v5657 = vshrl.u32 %v5656, 7
        %v5658 = vsub.s32 %v5655, %v5657
        %v5659 = vrot.slane %v5652, %v5658
        %v5661 = vunpack.c.l.s4 1966171168
        %v5662 = vunpack.c.0.s8 %v5661
        %v5663 = vlaneseq
        %v5664 = vshrl.u32 %v5663, 7
        %v5665 = vsub.s32 %v5662, %v5664
        %v5666 = vrot.slane %v5651, %v5665
        %v5667 = vcombine.low %v5659, %v5666
        %v5669 = vunpack.c.l.s4 1966171168
        %v5670 = vunpack.c.0.s8 %v5669
        %v5671 = vlaneseq
        %v5672 = vshrl.u32 %v5671, 7
        %v5673 = vsub.s32 %v5670, %v5672
        %v5674 = vrot.slane %v4514, %v5673
        %v5675 = vcombine.low %v4803, %v4946
        %v5677 = vunpack.c.l.s4 1966171168
        %v5678 = vunpack.c.0.s8 %v5677
        %v5679 = vlaneseq
        %v5680 = vshrl.u32 %v5679, 7
        %v5681 = vsub.s32 %v5678, %v5680
        %v5682 = vrot.slane %v5675, %v5681
        %v5684 = vunpack.c.l.s4 1966171168
        %v5685 = vunpack.c.0.s8 %v5684
        %v5686 = vlaneseq
        %v5687 = vshrl.u32 %v5686, 7
        %v5688 = vsub.s32 %v5685, %v5687
        %v5689 = vrot.slane %v5674, %v5688
        %v5690 = vcombine.low %v5682, %v5689
        %v5691 = vcombine.low %v4553, %v4961
        %v5692 = vcombine.high %v4553, %v4961
        %v5693 = vcombine.low %v5049, %v5457
        %v5694 = vcombine.high %v5049, %v5457
        %v5695 = vcombine.high %v5529, %v5529
        %v5697 = vunpack.c.l.s4 1966171168
        %v5698 = vunpack.c.0.s8 %v5697
        %v5699 = vlaneseq
        %v5700 = vshrl.u32 %v5699, 7
        %v5701 = vsub.s32 %v5698, %v5700
        %v5702 = vrot.slane %v5691, %v5701
        %v5704 = vunpack.c.l.s4 1966171168
        %v5705 = vunpack.c.0.s8 %v5704
        %v5706 = vlaneseq
        %v5707 = vshrl.u32 %v5706, 7
        %v5708 = vsub.s32 %v5705, %v5707
        %v5709 = vrot.slane %v5692, %v5708
        %v5711 = vunpack.c.l.s4 1966171168
        %v5712 = vunpack.c.0.s8 %v5711
        %v5713 = vlaneseq
        %v5714 = vshrl.u32 %v5713, 7
        %v5715 = vsub.s32 %v5712, %v5714
        %v5716 = vrot.slane %v5693, %v5715
        %v5718 = vunpack.c.l.s4 1966171168
        %v5719 = vunpack.c.0.s8 %v5718
        %v5720 = vlaneseq
        %v5721 = vshrl.u32 %v5720, 7
        %v5722 = vsub.s32 %v5719, %v5721
        %v5723 = vrot.slane %v5694, %v5722
        %v5725 = vunpack.c.l.s4 1966171168
        %v5726 = vunpack.c.0.s8 %v5725
        %v5727 = vlaneseq
        %v5728 = vshrl.u32 %v5727, 7
        %v5729 = vsub.s32 %v5726, %v5728
        %v5730 = vrot.slane %v5529, %v5729
        %v5732 = vunpack.c.l.s4 1966171168
        %v5733 = vunpack.c.0.s8 %v5732
        %v5734 = vlaneseq
        %v5735 = vshrl.u32 %v5734, 7
        %v5736 = vsub.s32 %v5733, %v5735
        %v5737 = vrot.slane %v5695, %v5736
        %v5738 = vcombine.low %v5702, %v5716
        %v5739 = vcombine.high %v5702, %v5716
        %v5740 = vcombine.low %v5709, %v5723
        %v5741 = vcombine.high %v5730, %v5730
        %v5743 = vunpack.c.l.s4 1966171168
        %v5744 = vunpack.c.0.s8 %v5743
        %v5745 = vlaneseq
        %v5746 = vshrl.u32 %v5745, 7
        %v5747 = vsub.s32 %v5744, %v5746
        %v5748 = vrot.slane %v5738, %v5747
        %v5750 = vunpack.c.l.s4 1966171168
        %v5751 = vunpack.c.0.s8 %v5750
        %v5752 = vlaneseq
        %v5753 = vshrl.u32 %v5752, 7
        %v5754 = vsub.s32 %v5751, %v5753
        %v5755 = vrot.slane %v5740, %v5754
        %v5757 = vunpack.c.l.s4 1966171168
        %v5758 = vunpack.c.0.s8 %v5757
        %v5759 = vlaneseq
        %v5760 = vshrl.u32 %v5759, 7
        %v5761 = vsub.s32 %v5758, %v5760
        %v5762 = vrot.slane %v5739, %v5761
        %v5764 = vunpack.c.l.s4 1966171168
        %v5765 = vunpack.c.0.s8 %v5764
        %v5766 = vlaneseq
        %v5767 = vshrl.u32 %v5766, 7
        %v5768 = vsub.s32 %v5765, %v5767
        %v5769 = vrot.slane %v5730, %v5768
        %v5771 = vunpack.c.l.s4 1966171168
        %v5772 = vunpack.c.0.s8 %v5771
        %v5773 = vlaneseq
        %v5774 = vshrl.u32 %v5773, 7
        %v5775 = vsub.s32 %v5772, %v5774
        %v5776 = vrot.slane %v5737, %v5775
        %v5778 = vunpack.c.l.s4 1966171168
        %v5779 = vunpack.c.0.s8 %v5778
        %v5780 = vlaneseq
        %v5781 = vshrl.u32 %v5780, 7
        %v5782 = vsub.s32 %v5779, %v5781
        %v5783 = vrot.slane %v5741, %v5782
        %v5784 = vcombine.low %v5748, %v5769
        %v5785 = vcombine.high %v5748, %v5769
        %v5786 = vcombine.low %v5755, %v5776
        %v5787 = vcombine.low %v5762, %v5783
        %v5788 = vcombine.high %v5762, %v5783
        %v5789 = vcombine.low %v4592, %v4968
        %v5790 = vcombine.high %v4592, %v4968
        %v5791 = vcombine.low %v5088, %v5464
        %v5792 = vcombine.high %v5088, %v5464
        %v5793 = vcombine.high %v5552, %v5552
        %v5795 = vunpack.c.l.s4 1966171168
        %v5796 = vunpack.c.0.s8 %v5795
        %v5797 = vlaneseq
        %v5798 = vshrl.u32 %v5797, 7
        %v5799 = vsub.s32 %v5796, %v5798
        %v5800 = vrot.slane %v5789, %v5799
        %v5802 = vunpack.c.l.s4 1966171168
        %v5803 = vunpack.c.0.s8 %v5802
        %v5804 = vlaneseq
        %v5805 = vshrl.u32 %v5804, 7
        %v5806 = vsub.s32 %v5803, %v5805
        %v5807 = vrot.slane %v5790, %v5806
        %v5809 = vunpack.c.l.s4 1966171168
        %v5810 = vunpack.c.0.s8 %v5809
        %v5811 = vlaneseq
        %v5812 = vshrl.u32 %v5811, 7
        %v5813 = vsub.s32 %v5810, %v5812
        %v5814 = vrot.slane %v5791, %v5813
        %v5816 = vunpack.c.l.s4 1966171168
        %v5817 = vunpack.c.0.s8 %v5816
        %v5818 = vlaneseq
        %v5819 = vshrl.u32 %v5818, 7
        %v5820 = vsub.s32 %v5817, %v5819
        %v5821 = vrot.slane %v5792, %v5820
        %v5823 = vunpack.c.l.s4 1966171168
        %v5824 = vunpack.c.0.s8 %v5823
        %v5825 = vlaneseq
        %v5826 = vshrl.u32 %v5825, 7
        %v5827 = vsub.s32 %v5824, %v5826
        %v5828 = vrot.slane %v5552, %v5827
        %v5830 = vunpack.c.l.s4 1966171168
        %v5831 = vunpack.c.0.s8 %v5830
        %v5832 = vlaneseq
        %v5833 = vshrl.u32 %v5832, 7
        %v5834 = vsub.s32 %v5831, %v5833
        %v5835 = vrot.slane %v5793, %v5834
        %v5836 = vcombine.low %v5800, %v5814
        %v5837 = vcombine.high %v5800, %v5814
        %v5838 = vcombine.low %v5807, %v5821
        %v5839 = vcombine.high %v5828, %v5828
        %v5841 = vunpack.c.l.s4 1966171168
        %v5842 = vunpack.c.0.s8 %v5841
        %v5843 = vlaneseq
        %v5844 = vshrl.u32 %v5843, 7
        %v5845 = vsub.s32 %v5842, %v5844
        %v5846 = vrot.slane %v5836, %v5845
        %v5848 = vunpack.c.l.s4 1966171168
        %v5849 = vunpack.c.0.s8 %v5848
        %v5850 = vlaneseq
        %v5851 = vshrl.u32 %v5850, 7
        %v5852 = vsub.s32 %v5849, %v5851
        %v5853 = vrot.slane %v5838, %v5852
        %v5855 = vunpack.c.l.s4 1966171168
        %v5856 = vunpack.c.0.s8 %v5855
        %v5857 = vlaneseq
        %v5858 = vshrl.u32 %v5857, 7
        %v5859 = vsub.s32 %v5856, %v5858
        %v5860 = vrot.slane %v5837, %v5859
        %v5862 = vunpack.c.l.s4 1966171168
        %v5863 = vunpack.c.0.s8 %v5862
        %v5864 = vlaneseq
        %v5865 = vshrl.u32 %v5864, 7
        %v5866 = vsub.s32 %v5863, %v5865
        %v5867 = vrot.slane %v5828, %v5866
        %v5869 = vunpack.c.l.s4 1966171168
        %v5870 = vunpack.c.0.s8 %v5869
        %v5871 = vlaneseq
        %v5872 = vshrl.u32 %v5871, 7
        %v5873 = vsub.s32 %v5870, %v5872
        %v5874 = vrot.slane %v5835, %v5873
        %v5876 = vunpack.c.l.s4 1966171168
        %v5877 = vunpack.c.0.s8 %v5876
        %v5878 = vlaneseq
        %v5879 = vshrl.u32 %v5878, 7
        %v5880 = vsub.s32 %v5877, %v5879
        %v5881 = vrot.slane %v5839, %v5880
        %v5882 = vcombine.low %v5846, %v5867
        %v5883 = vcombine.high %v5846, %v5867
        %v5884 = vcombine.low %v5853, %v5874
        %v5885 = vcombine.low %v5860, %v5881
        %v5886 = vcombine.high %v5860, %v5881
        %v5887 = vcombine.low %v4631, %v4975
        %v5888 = vcombine.high %v4631, %v4975
        %v5889 = vcombine.low %v5127, %v5471
        %v5890 = vcombine.high %v5127, %v5471
        %v5891 = vcombine.high %v5575, %v5575
        %v5893 = vunpack.c.l.s4 1966171168
        %v5894 = vunpack.c.0.s8 %v5893
        %v5895 = vlaneseq
        %v5896 = vshrl.u32 %v5895, 7
        %v5897 = vsub.s32 %v5894, %v5896
        %v5898 = vrot.slane %v5887, %v5897
        %v5900 = vunpack.c.l.s4 1966171168
        %v5901 = vunpack.c.0.s8 %v5900
        %v5902 = vlaneseq
        %v5903 = vshrl.u32 %v5902, 7
        %v5904 = vsub.s32 %v5901, %v5903
        %v5905 = vrot.slane %v5888, %v5904
        %v5907 = vunpack.c.l.s4 1966171168
        %v5908 = vunpack.c.0.s8 %v5907
        %v5909 = vlaneseq
        %v5910 = vshrl.u32 %v5909, 7
        %v5911 = vsub.s32 %v5908, %v5910
        %v5912 = vrot.slane %v5889, %v5911
        %v5914 = vunpack.c.l.s4 1966171168
        %v5915 = vunpack.c.0.s8 %v5914
        %v5916 = vlaneseq
        %v5917 = vshrl.u32 %v5916, 7
        %v5918 = vsub.s32 %v5915, %v5917
        %v5919 = vrot.slane %v5890, %v5918
        %v5921 = vunpack.c.l.s4 1966171168
        %v5922 = vunpack.c.0.s8 %v5921
        %v5923 = vlaneseq
        %v5924 = vshrl.u32 %v5923, 7
        %v5925 = vsub.s32 %v5922, %v5924
        %v5926 = vrot.slane %v5575, %v5925
        %v5928 = vunpack.c.l.s4 1966171168
        %v5929 = vunpack.c.0.s8 %v5928
        %v5930 = vlaneseq
        %v5931 = vshrl.u32 %v5930, 7
        %v5932 = vsub.s32 %v5929, %v5931
        %v5933 = vrot.slane %v5891, %v5932
        %v5934 = vcombine.low %v5898, %v5912
        %v5935 = vcombine.high %v5898, %v5912
        %v5936 = vcombine.low %v5905, %v5919
        %v5937 = vcombine.high %v5926, %v5926
        %v5939 = vunpack.c.l.s4 1966171168
        %v5940 = vunpack.c.0.s8 %v5939
        %v5941 = vlaneseq
        %v5942 = vshrl.u32 %v5941, 7
        %v5943 = vsub.s32 %v5940, %v5942
        %v5944 = vrot.slane %v5934, %v5943
        %v5946 = vunpack.c.l.s4 1966171168
        %v5947 = vunpack.c.0.s8 %v5946
        %v5948 = vlaneseq
        %v5949 = vshrl.u32 %v5948, 7
        %v5950 = vsub.s32 %v5947, %v5949
        %v5951 = vrot.slane %v5936, %v5950
        %v5953 = vunpack.c.l.s4 1966171168
        %v5954 = vunpack.c.0.s8 %v5953
        %v5955 = vlaneseq
        %v5956 = vshrl.u32 %v5955, 7
        %v5957 = vsub.s32 %v5954, %v5956
        %v5958 = vrot.slane %v5935, %v5957
        %v5960 = vunpack.c.l.s4 1966171168
        %v5961 = vunpack.c.0.s8 %v5960
        %v5962 = vlaneseq
        %v5963 = vshrl.u32 %v5962, 7
        %v5964 = vsub.s32 %v5961, %v5963
        %v5965 = vrot.slane %v5926, %v5964
        %v5967 = vunpack.c.l.s4 1966171168
        %v5968 = vunpack.c.0.s8 %v5967
        %v5969 = vlaneseq
        %v5970 = vshrl.u32 %v5969, 7
        %v5971 = vsub.s32 %v5968, %v5970
        %v5972 = vrot.slane %v5933, %v5971
        %v5974 = vunpack.c.l.s4 1966171168
        %v5975 = vunpack.c.0.s8 %v5974
        %v5976 = vlaneseq
        %v5977 = vshrl.u32 %v5976, 7
        %v5978 = vsub.s32 %v5975, %v5977
        %v5979 = vrot.slane %v5937, %v5978
        %v5980 = vcombine.low %v5944, %v5965
        %v5981 = vcombine.high %v5944, %v5965
        %v5982 = vcombine.low %v5951, %v5972
        %v5983 = vcombine.low %v5958, %v5979
        %v5984 = vcombine.high %v5958, %v5979
        %v5985 = vcombine.low %v4670, %v4982
        %v5986 = vcombine.high %v4670, %v4982
        %v5987 = vcombine.low %v5166, %v5478
        %v5988 = vcombine.high %v5166, %v5478
        %v5989 = vcombine.high %v5598, %v5598
        %v5991 = vunpack.c.l.s4 1966171168
        %v5992 = vunpack.c.0.s8 %v5991
        %v5993 = vlaneseq
        %v5994 = vshrl.u32 %v5993, 7
        %v5995 = vsub.s32 %v5992, %v5994
        %v5996 = vrot.slane %v5985, %v5995
        %v5998 = vunpack.c.l.s4 1966171168
        %v5999 = vunpack.c.0.s8 %v5998
        %v6000 = vlaneseq
        %v6001 = vshrl.u32 %v6000, 7
        %v6002 = vsub.s32 %v5999, %v6001
        %v6003 = vrot.slane %v5986, %v6002
        %v6005 = vunpack.c.l.s4 1966171168
        %v6006 = vunpack.c.0.s8 %v6005
        %v6007 = vlaneseq
        %v6008 = vshrl.u32 %v6007, 7
        %v6009 = vsub.s32 %v6006, %v6008
        %v6010 = vrot.slane %v5987, %v6009
        %v6012 = vunpack.c.l.s4 1966171168
        %v6013 = vunpack.c.0.s8 %v6012
        %v6014 = vlaneseq
        %v6015 = vshrl.u32 %v6014, 7
        %v6016 = vsub.s32 %v6013, %v6015
        %v6017 = vrot.slane %v5988, %v6016
        %v6019 = vunpack.c.l.s4 1966171168
        %v6020 = vunpack.c.0.s8 %v6019
        %v6021 = vlaneseq
        %v6022 = vshrl.u32 %v6021, 7
        %v6023 = vsub.s32 %v6020, %v6022
        %v6024 = vrot.slane %v5598, %v6023
        %v6026 = vunpack.c.l.s4 1966171168
        %v6027 = vunpack.c.0.s8 %v6026
        %v6028 = vlaneseq
        %v6029 = vshrl.u32 %v6028, 7
        %v6030 = vsub.s32 %v6027, %v6029
        %v6031 = vrot.slane %v5989, %v6030
        %v6032 = vcombine.low %v5996, %v6010
        %v6033 = vcombine.high %v5996, %v6010
        %v6034 = vcombine.low %v6003, %v6017
        %v6035 = vcombine.high %v6024, %v6024
        %v6037 = vunpack.c.l.s4 1966171168
        %v6038 = vunpack.c.0.s8 %v6037
        %v6039 = vlaneseq
        %v6040 = vshrl.u32 %v6039, 7
        %v6041 = vsub.s32 %v6038, %v6040
        %v6042 = vrot.slane %v6032, %v6041
        %v6044 = vunpack.c.l.s4 1966171168
        %v6045 = vunpack.c.0.s8 %v6044
        %v6046 = vlaneseq
        %v6047 = vshrl.u32 %v6046, 7
        %v6048 = vsub.s32 %v6045, %v6047
        %v6049 = vrot.slane %v6034, %v6048
        %v6051 = vunpack.c.l.s4 1966171168
        %v6052 = vunpack.c.0.s8 %v6051
        %v6053 = vlaneseq
        %v6054 = vshrl.u32 %v6053, 7
        %v6055 = vsub.s32 %v6052, %v6054
        %v6056 = vrot.slane %v6033, %v6055
        %v6058 = vunpack.c.l.s4 1966171168
        %v6059 = vunpack.c.0.s8 %v6058
        %v6060 = vlaneseq
        %v6061 = vshrl.u32 %v6060, 7
        %v6062 = vsub.s32 %v6059, %v6061
        %v6063 = vrot.slane %v6024, %v6062
        %v6065 = vunpack.c.l.s4 1966171168
        %v6066 = vunpack.c.0.s8 %v6065
        %v6067 = vlaneseq
        %v6068 = vshrl.u32 %v6067, 7
        %v6069 = vsub.s32 %v6066, %v6068
        %v6070 = vrot.slane %v6031, %v6069
        %v6072 = vunpack.c.l.s4 1966171168
        %v6073 = vunpack.c.0.s8 %v6072
        %v6074 = vlaneseq
        %v6075 = vshrl.u32 %v6074, 7
        %v6076 = vsub.s32 %v6073, %v6075
        %v6077 = vrot.slane %v6035, %v6076
        %v6078 = vcombine.low %v6042, %v6063
        %v6079 = vcombine.high %v6042, %v6063
        %v6080 = vcombine.low %v6049, %v6070
        %v6081 = vcombine.low %v6056, %v6077
        %v6082 = vcombine.high %v6056, %v6077
        %v6083 = vcombine.low %v4709, %v4989
        %v6084 = vcombine.high %v4709, %v4989
        %v6085 = vcombine.low %v5205, %v5485
        %v6086 = vcombine.high %v5205, %v5485
        %v6087 = vcombine.high %v5621, %v5621
        %v6089 = vunpack.c.l.s4 1966171168
        %v6090 = vunpack.c.0.s8 %v6089
        %v6091 = vlaneseq
        %v6092 = vshrl.u32 %v6091, 7
        %v6093 = vsub.s32 %v6090, %v6092
        %v6094 = vrot.slane %v6083, %v6093
        %v6096 = vunpack.c.l.s4 1966171168
        %v6097 = vunpack.c.0.s8 %v6096
        %v6098 = vlaneseq
        %v6099 = vshrl.u32 %v6098, 7
        %v6100 = vsub.s32 %v6097, %v6099
        %v6101 = vrot.slane %v6084, %v6100
        %v6103 = vunpack.c.l.s4 1966171168
        %v6104 = vunpack.c.0.s8 %v6103
        %v6105 = vlaneseq
        %v6106 = vshrl.u32 %v6105, 7
        %v6107 = vsub.s32 %v6104, %v6106
        %v6108 = vrot.slane %v6085, %v6107
        %v6110 = vunpack.c.l.s4 1966171168
        %v6111 = vunpack.c.0.s8 %v6110
        %v6112 = vlaneseq
        %v6113 = vshrl.u32 %v6112, 7
        %v6114 = vsub.s32 %v6111, %v6113
        %v6115 = vrot.slane %v6086, %v6114
        %v6117 = vunpack.c.l.s4 1966171168
        %v6118 = vunpack.c.0.s8 %v6117
        %v6119 = vlaneseq
        %v6120 = vshrl.u32 %v6119, 7
        %v6121 = vsub.s32 %v6118, %v6120
        %v6122 = vrot.slane %v5621, %v6121
        %v6124 = vunpack.c.l.s4 1966171168
        %v6125 = vunpack.c.0.s8 %v6124
        %v6126 = vlaneseq
        %v6127 = vshrl.u32 %v6126, 7
        %v6128 = vsub.s32 %v6125, %v6127
        %v6129 = vrot.slane %v6087, %v6128
        %v6130 = vcombine.low %v6094, %v6108
        %v6131 = vcombine.high %v6094, %v6108
        %v6132 = vcombine.low %v6101, %v6115
        %v6133 = vcombine.high %v6122, %v6122
        %v6135 = vunpack.c.l.s4 1966171168
        %v6136 = vunpack.c.0.s8 %v6135
        %v6137 = vlaneseq
        %v6138 = vshrl.u32 %v6137, 7
        %v6139 = vsub.s32 %v6136, %v6138
        %v6140 = vrot.slane %v6130, %v6139
        %v6142 = vunpack.c.l.s4 1966171168
        %v6143 = vunpack.c.0.s8 %v6142
        %v6144 = vlaneseq
        %v6145 = vshrl.u32 %v6144, 7
        %v6146 = vsub.s32 %v6143, %v6145
        %v6147 = vrot.slane %v6132, %v6146
        %v6149 = vunpack.c.l.s4 1966171168
        %v6150 = vunpack.c.0.s8 %v6149
        %v6151 = vlaneseq
        %v6152 = vshrl.u32 %v6151, 7
        %v6153 = vsub.s32 %v6150, %v6152
        %v6154 = vrot.slane %v6131, %v6153
        %v6156 = vunpack.c.l.s4 1966171168
        %v6157 = vunpack.c.0.s8 %v6156
        %v6158 = vlaneseq
        %v6159 = vshrl.u32 %v6158, 7
        %v6160 = vsub.s32 %v6157, %v6159
        %v6161 = vrot.slane %v6122, %v6160
        %v6163 = vunpack.c.l.s4 1966171168
        %v6164 = vunpack.c.0.s8 %v6163
        %v6165 = vlaneseq
        %v6166 = vshrl.u32 %v6165, 7
        %v6167 = vsub.s32 %v6164, %v6166
        %v6168 = vrot.slane %v6129, %v6167
        %v6170 = vunpack.c.l.s4 1966171168
        %v6171 = vunpack.c.0.s8 %v6170
        %v6172 = vlaneseq
        %v6173 = vshrl.u32 %v6172, 7
        %v6174 = vsub.s32 %v6171, %v6173
        %v6175 = vrot.slane %v6133, %v6174
        %v6176 = vcombine.low %v6140, %v6161
        %v6177 = vcombine.high %v6140, %v6161
        %v6178 = vcombine.low %v6147, %v6168
        %v6179 = vcombine.low %v6154, %v6175
        %v6180 = vcombine.high %v6154, %v6175
        %v6181 = vcombine.low %v4748, %v4996
        %v6182 = vcombine.high %v4748, %v4996
        %v6183 = vcombine.low %v5244, %v5492
        %v6184 = vcombine.high %v5244, %v5492
        %v6185 = vcombine.high %v5644, %v5644
        %v6187 = vunpack.c.l.s4 1966171168
        %v6188 = vunpack.c.0.s8 %v6187
        %v6189 = vlaneseq
        %v6190 = vshrl.u32 %v6189, 7
        %v6191 = vsub.s32 %v6188, %v6190
        %v6192 = vrot.slane %v6181, %v6191
        %v6194 = vunpack.c.l.s4 1966171168
        %v6195 = vunpack.c.0.s8 %v6194
        %v6196 = vlaneseq
        %v6197 = vshrl.u32 %v6196, 7
        %v6198 = vsub.s32 %v6195, %v6197
        %v6199 = vrot.slane %v6182, %v6198
        %v6201 = vunpack.c.l.s4 1966171168
        %v6202 = vunpack.c.0.s8 %v6201
        %v6203 = vlaneseq
        %v6204 = vshrl.u32 %v6203, 7
        %v6205 = vsub.s32 %v6202, %v6204
        %v6206 = vrot.slane %v6183, %v6205
        %v6208 = vunpack.c.l.s4 1966171168
        %v6209 = vunpack.c.0.s8 %v6208
        %v6210 = vlaneseq
        %v6211 = vshrl.u32 %v6210, 7
        %v6212 = vsub.s32 %v6209, %v6211
        %v6213 = vrot.slane %v6184, %v6212
        %v6215 = vunpack.c.l.s4 1966171168
        %v6216 = vunpack.c.0.s8 %v6215
        %v6217 = vlaneseq
        %v6218 = vshrl.u32 %v6217, 7
        %v6219 = vsub.s32 %v6216, %v6218
        %v6220 = vrot.slane %v5644, %v6219
        %v6222 = vunpack.c.l.s4 1966171168
        %v6223 = vunpack.c.0.s8 %v6222
        %v6224 = vlaneseq
        %v6225 = vshrl.u32 %v6224, 7
        %v6226 = vsub.s32 %v6223, %v6225
        %v6227 = vrot.slane %v6185, %v6226
        %v6228 = vcombine.low %v6192, %v6206
        %v6229 = vcombine.high %v6192, %v6206
        %v6230 = vcombine.low %v6199, %v6213
        %v6231 = vcombine.high %v6220, %v6220
        %v6233 = vunpack.c.l.s4 1966171168
        %v6234 = vunpack.c.0.s8 %v6233
        %v6235 = vlaneseq
        %v6236 = vshrl.u32 %v6235, 7
        %v6237 = vsub.s32 %v6234, %v6236
        %v6238 = vrot.slane %v6228, %v6237
        %v6240 = vunpack.c.l.s4 1966171168
        %v6241 = vunpack.c.0.s8 %v6240
        %v6242 = vlaneseq
        %v6243 = vshrl.u32 %v6242, 7
        %v6244 = vsub.s32 %v6241, %v6243
        %v6245 = vrot.slane %v6230, %v6244
        %v6247 = vunpack.c.l.s4 1966171168
        %v6248 = vunpack.c.0.s8 %v6247
        %v6249 = vlaneseq
        %v6250 = vshrl.u32 %v6249, 7
        %v6251 = vsub.s32 %v6248, %v6250
        %v6252 = vrot.slane %v6229, %v6251
        %v6254 = vunpack.c.l.s4 1966171168
        %v6255 = vunpack.c.0.s8 %v6254
        %v6256 = vlaneseq
        %v6257 = vshrl.u32 %v6256, 7
        %v6258 = vsub.s32 %v6255, %v6257
        %v6259 = vrot.slane %v6220, %v6258
        %v6261 = vunpack.c.l.s4 1966171168
        %v6262 = vunpack.c.0.s8 %v6261
        %v6263 = vlaneseq
        %v6264 = vshrl.u32 %v6263, 7
        %v6265 = vsub.s32 %v6262, %v6264
        %v6266 = vrot.slane %v6227, %v6265
        %v6268 = vunpack.c.l.s4 1966171168
        %v6269 = vunpack.c.0.s8 %v6268
        %v6270 = vlaneseq
        %v6271 = vshrl.u32 %v6270, 7
        %v6272 = vsub.s32 %v6269, %v6271
        %v6273 = vrot.slane %v6231, %v6272
        %v6274 = vcombine.low %v6238, %v6259
        %v6275 = vcombine.high %v6238, %v6259
        %v6276 = vcombine.low %v6245, %v6266
        %v6277 = vcombine.low %v6252, %v6273
        %v6278 = vcombine.high %v6252, %v6273
        %v6279 = vcombine.low %v4787, %v5003
        %v6280 = vcombine.high %v4787, %v5003
        %v6281 = vcombine.low %v5283, %v5499
        %v6282 = vcombine.high %v5283, %v5499
        %v6283 = vcombine.high %v5667, %v5667
        %v6285 = vunpack.c.l.s4 1966171168
        %v6286 = vunpack.c.0.s8 %v6285
        %v6287 = vlaneseq
        %v6288 = vshrl.u32 %v6287, 7
        %v6289 = vsub.s32 %v6286, %v6288
        %v6290 = vrot.slane %v6279, %v6289
        %v6292 = vunpack.c.l.s4 1966171168
        %v6293 = vunpack.c.0.s8 %v6292
        %v6294 = vlaneseq
        %v6295 = vshrl.u32 %v6294, 7
        %v6296 = vsub.s32 %v6293, %v6295
        %v6297 = vrot.slane %v6280, %v6296
        %v6299 = vunpack.c.l.s4 1966171168
        %v6300 = vunpack.c.0.s8 %v6299
        %v6301 = vlaneseq
        %v6302 = vshrl.u32 %v6301, 7
        %v6303 = vsub.s32 %v6300, %v6302
        %v6304 = vrot.slane %v6281, %v6303
        %v6306 = vunpack.c.l.s4 1966171168
        %v6307 = vunpack.c.0.s8 %v6306
        %v6308 = vlaneseq
        %v6309 = vshrl.u32 %v6308, 7
        %v6310 = vsub.s32 %v6307, %v6309
        %v6311 = vrot.slane %v6282, %v6310
        %v6313 = vunpack.c.l.s4 1966171168
        %v6314 = vunpack.c.0.s8 %v6313
        %v6315 = vlaneseq
        %v6316 = vshrl.u32 %v6315, 7
        %v6317 = vsub.s32 %v6314, %v6316
        %v6318 = vrot.slane %v5667, %v6317
        %v6320 = vunpack.c.l.s4 1966171168
        %v6321 = vunpack.c.0.s8 %v6320
        %v6322 = vlaneseq
        %v6323 = vshrl.u32 %v6322, 7
        %v6324 = vsub.s32 %v6321, %v6323
        %v6325 = vrot.slane %v6283, %v6324
        %v6326 = vcombine.low %v6290, %v6304
        %v6327 = vcombine.high %v6290, %v6304
        %v6328 = vcombine.low %v6297, %v6311
        %v6329 = vcombine.high %v6318, %v6318
        %v6331 = vunpack.c.l.s4 1966171168
        %v6332 = vunpack.c.0.s8 %v6331
        %v6333 = vlaneseq
        %v6334 = vshrl.u32 %v6333, 7
        %v6335 = vsub.s32 %v6332, %v6334
        %v6336 = vrot.slane %v6326, %v6335
        %v6338 = vunpack.c.l.s4 1966171168
        %v6339 = vunpack.c.0.s8 %v6338
        %v6340 = vlaneseq
        %v6341 = vshrl.u32 %v6340, 7
        %v6342 = vsub.s32 %v6339, %v6341
        %v6343 = vrot.slane %v6328, %v6342
        %v6345 = vunpack.c.l.s4 1966171168
        %v6346 = vunpack.c.0.s8 %v6345
        %v6347 = vlaneseq
        %v6348 = vshrl.u32 %v6347, 7
        %v6349 = vsub.s32 %v6346, %v6348
        %v6350 = vrot.slane %v6327, %v6349
        %v6352 = vunpack.c.l.s4 1966171168
        %v6353 = vunpack.c.0.s8 %v6352
        %v6354 = vlaneseq
        %v6355 = vshrl.u32 %v6354, 7
        %v6356 = vsub.s32 %v6353, %v6355
        %v6357 = vrot.slane %v6318, %v6356
        %v6359 = vunpack.c.l.s4 1966171168
        %v6360 = vunpack.c.0.s8 %v6359
        %v6361 = vlaneseq
        %v6362 = vshrl.u32 %v6361, 7
        %v6363 = vsub.s32 %v6360, %v6362
        %v6364 = vrot.slane %v6325, %v6363
        %v6366 = vunpack.c.l.s4 1966171168
        %v6367 = vunpack.c.0.s8 %v6366
        %v6368 = vlaneseq
        %v6369 = vshrl.u32 %v6368, 7
        %v6370 = vsub.s32 %v6367, %v6369
        %v6371 = vrot.slane %v6329, %v6370
        %v6372 = vcombine.low %v6336, %v6357
        %v6373 = vcombine.high %v6336, %v6357
        %v6374 = vcombine.low %v6343, %v6364
        %v6375 = vcombine.low %v6350, %v6371
        %v6376 = vcombine.high %v6350, %v6371
        %v6377 = vcombine.low %v4826, %v5010
        %v6378 = vcombine.high %v4826, %v5010
        %v6379 = vcombine.low %v5322, %v5506
        %v6380 = vcombine.high %v5322, %v5506
        %v6381 = vcombine.high %v5690, %v5690
        %v6383 = vunpack.c.l.s4 1966171168
        %v6384 = vunpack.c.0.s8 %v6383
        %v6385 = vlaneseq
        %v6386 = vshrl.u32 %v6385, 7
        %v6387 = vsub.s32 %v6384, %v6386
        %v6388 = vrot.slane %v6377, %v6387
        %v6390 = vunpack.c.l.s4 1966171168
        %v6391 = vunpack.c.0.s8 %v6390
        %v6392 = vlaneseq
        %v6393 = vshrl.u32 %v6392, 7
        %v6394 = vsub.s32 %v6391, %v6393
        %v6395 = vrot.slane %v6378, %v6394
        %v6397 = vunpack.c.l.s4 1966171168
        %v6398 = vunpack.c.0.s8 %v6397
        %v6399 = vlaneseq
        %v6400 = vshrl.u32 %v6399, 7
        %v6401 = vsub.s32 %v6398, %v6400
        %v6402 = vrot.slane %v6379, %v6401
        %v6404 = vunpack.c.l.s4 1966171168
        %v6405 = vunpack.c.0.s8 %v6404
        %v6406 = vlaneseq
        %v6407 = vshrl.u32 %v6406, 7
        %v6408 = vsub.s32 %v6405, %v6407
        %v6409 = vrot.slane %v6380, %v6408
        %v6411 = vunpack.c.l.s4 1966171168
        %v6412 = vunpack.c.0.s8 %v6411
        %v6413 = vlaneseq
        %v6414 = vshrl.u32 %v6413, 7
        %v6415 = vsub.s32 %v6412, %v6414
        %v6416 = vrot.slane %v5690, %v6415
        %v6418 = vunpack.c.l.s4 1966171168
        %v6419 = vunpack.c.0.s8 %v6418
        %v6420 = vlaneseq
        %v6421 = vshrl.u32 %v6420, 7
        %v6422 = vsub.s32 %v6419, %v6421
        %v6423 = vrot.slane %v6381, %v6422
        %v6424 = vcombine.low %v6388, %v6402
        %v6425 = vcombine.high %v6388, %v6402
        %v6426 = vcombine.low %v6395, %v6409
        %v6427 = vcombine.high %v6416, %v6416
        %v6429 = vunpack.c.l.s4 1966171168
        %v6430 = vunpack.c.0.s8 %v6429
        %v6431 = vlaneseq
        %v6432 = vshrl.u32 %v6431, 7
        %v6433 = vsub.s32 %v6430, %v6432
        %v6434 = vrot.slane %v6424, %v6433
        %v6436 = vunpack.c.l.s4 1966171168
        %v6437 = vunpack.c.0.s8 %v6436
        %v6438 = vlaneseq
        %v6439 = vshrl.u32 %v6438, 7
        %v6440 = vsub.s32 %v6437, %v6439
        %v6441 = vrot.slane %v6426, %v6440
        %v6443 = vunpack.c.l.s4 1966171168
        %v6444 = vunpack.c.0.s8 %v6443
        %v6445 = vlaneseq
        %v6446 = vshrl.u32 %v6445, 7
        %v6447 = vsub.s32 %v6444, %v6446
        %v6448 = vrot.slane %v6425, %v6447
        %v6450 = vunpack.c.l.s4 1966171168
        %v6451 = vunpack.c.0.s8 %v6450
        %v6452 = vlaneseq
        %v6453 = vshrl.u32 %v6452, 7
        %v6454 = vsub.s32 %v6451, %v6453
        %v6455 = vrot.slane %v6416, %v6454
        %v6457 = vunpack.c.l.s4 1966171168
        %v6458 = vunpack.c.0.s8 %v6457
        %v6459 = vlaneseq
        %v6460 = vshrl.u32 %v6459, 7
        %v6461 = vsub.s32 %v6458, %v6460
        %v6462 = vrot.slane %v6423, %v6461
        %v6464 = vunpack.c.l.s4 1966171168
        %v6465 = vunpack.c.0.s8 %v6464
        %v6466 = vlaneseq
        %v6467 = vshrl.u32 %v6466, 7
        %v6468 = vsub.s32 %v6465, %v6467
        %v6469 = vrot.slane %v6427, %v6468
        %v6470 = vcombine.low %v6434, %v6455
        %v6471 = vcombine.high %v6434, %v6455
        %v6472 = vcombine.low %v6441, %v6462
        %v6473 = vcombine.low %v6448, %v6469
        %v6474 = vcombine.high %v6448, %v6469
        %v6475 = vld [vmem:[%s4] sm:$0xff]
        %v6476 = vld [vmem:[%s4 + $0x8] sm:$0xff]
        %v6477 = vld [vmem:[%s4 + $0x10] sm:$0xff]
        %v6478 = vld [vmem:[%s4 + $0x18] sm:$0xff]
        %v6479 = vld [vmem:[%s4 + $0x20] sm:$0xff]
        %v6480 = vld [vmem:[%s4 + $0x28] sm:$0xff]
        %v6481 = vld [vmem:[%s4 + $0x30] sm:$0xff]
        %v6482 = vld [vmem:[%s4 + $0x38] sm:$0xff]
        %v6483 = vld [vmem:[%s4 + $0x40] sm:$0xff]
        %v6484 = vld [vmem:[%s4 + $0x48] sm:$0xff]
        %v6485 = vld [vmem:[%s4 + $0x50] sm:$0xff]
        %v6486 = vld [vmem:[%s4 + $0x58] sm:$0xff]
        %v6487 = vld [vmem:[%s4 + $0x60] sm:$0xff]
        %v6488 = vld [vmem:[%s4 + $0x68] sm:$0xff]
        %v6489 = vld [vmem:[%s4 + $0x70] sm:$0xff]
        %v6490 = vld [vmem:[%s4 + $0x78] sm:$0xff]
        %v6491 = vld [vmem:[%s4 + $0x80] sm:$0xff]
        %v6492 = vld [vmem:[%s4 + $0x88] sm:$0xff]
        %v6493 = vld [vmem:[%s4 + $0x90] sm:$0xff]
        %v6494 = vld [vmem:[%s4 + $0x98] sm:$0xff]
        %v6495 = vld [vmem:[%s4 + $0xa0] sm:$0xff]
        %v6496 = vld [vmem:[%s4 + $0xa8] sm:$0xff]
        %v6497 = vld [vmem:[%s4 + $0xb0] sm:$0xff]
        %v6498 = vld [vmem:[%s4 + $0xb8] sm:$0xff]
        %v6499 = vld [vmem:[%s4 + $0xc0] sm:$0xff]
        %v6500 = vld [vmem:[%s4 + $0xc8] sm:$0xff]
        %v6501 = vld [vmem:[%s4 + $0xd0] sm:$0xff]
        %v6502 = vld [vmem:[%s4 + $0xd8] sm:$0xff]
        %v6503 = vld [vmem:[%s4 + $0xe0] sm:$0xff]
        %v6504 = vld [vmem:[%s4 + $0xe8] sm:$0xff]
        %v6505 = vld [vmem:[%s4 + $0xf0] sm:$0xff]
        %v6506 = vld [vmem:[%s4 + $0xf8] sm:$0xff]
        %v6507 = vld [vmem:[%s4 + $0x100] sm:$0xff]
        %v6508 = vld [vmem:[%s4 + $0x108] sm:$0xff]
        %v6509 = vld [vmem:[%s4 + $0x110] sm:$0xff]
        %v6510 = vld [vmem:[%s4 + $0x118] sm:$0xff]
        %v6511 = vld [vmem:[%s4 + $0x120] sm:$0xff]
        %v6512 = vld [vmem:[%s4 + $0x128] sm:$0xff]
        %v6513 = vld [vmem:[%s4 + $0x130] sm:$0xff]
        %v6514 = vld [vmem:[%s4 + $0x138] sm:$0xff]
        %v6515 = vld [vmem:[%s4 + $0x140] sm:$0xff]
        %v6516 = vld [vmem:[%s4 + $0x148] sm:$0xff]
        %v6517 = vld [vmem:[%s4 + $0x150] sm:$0xff]
        %v6518 = vld [vmem:[%s4 + $0x158] sm:$0xff]
        %v6519 = vld [vmem:[%s4 + $0x160] sm:$0xff]
        %v6520 = vld [vmem:[%s4 + $0x168] sm:$0xff]
        %v6521 = vld [vmem:[%s4 + $0x170] sm:$0xff]
        %v6522 = vld [vmem:[%s4 + $0x178] sm:$0xff]
        %v6523 = vld [vmem:[%s4 + $0x180] sm:$0xff]
        %v6524 = vld [vmem:[%s4 + $0x188] sm:$0xff]
        %v6525 = vld [vmem:[%s4 + $0x190] sm:$0xff]
        %v6526 = vld [vmem:[%s4 + $0x198] sm:$0xff]
        %v6527 = vld [vmem:[%s4 + $0x1a0] sm:$0xff]
        %v6528 = vld [vmem:[%s4 + $0x1a8] sm:$0xff]
        %v6529 = vld [vmem:[%s4 + $0x1b0] sm:$0xff]
        %v6530 = vld [vmem:[%s4 + $0x1b8] sm:$0xff]
        %v6531 = vld [vmem:[%s4 + $0x1c0] sm:$0xff]
        %v6532 = vld [vmem:[%s4 + $0x1c8] sm:$0xff]
        %v6533 = vld [vmem:[%s4 + $0x1d0] sm:$0xff]
        %v6534 = vld [vmem:[%s4 + $0x1d8] sm:$0xff]
        %v6535 = vld [vmem:[%s4 + $0x1e0] sm:$0xff]
        %v6536 = vld [vmem:[%s4 + $0x1e8] sm:$0xff]
        %v6537 = vld [vmem:[%s4 + $0x1f0] sm:$0xff]
        %v6538 = vld [vmem:[%s4 + $0x1f8] sm:$0xff]
        %v6539 = vld [vmem:[%s4 + $0x200] sm:$0xff]
        %v6540 = vld [vmem:[%s4 + $0x208] sm:$0xff]
        %v6541 = vld [vmem:[%s4 + $0x210] sm:$0xff]
        %v6542 = vld [vmem:[%s4 + $0x218] sm:$0xff]
        %v6543 = vld [vmem:[%s4 + $0x220] sm:$0xff]
        %v6544 = vld [vmem:[%s4 + $0x228] sm:$0xff]
        %v6545 = vld [vmem:[%s4 + $0x230] sm:$0xff]
        %v6546 = vld [vmem:[%s4 + $0x238] sm:$0xff]
        %v6547 = vld [vmem:[%s4 + $0x240] sm:$0xff]
        %v6548 = vld [vmem:[%s4 + $0x248] sm:$0xff]
        %v6549 = vld [vmem:[%s4 + $0x250] sm:$0xff]
        %v6550 = vld [vmem:[%s4 + $0x258] sm:$0xff]
        %v6551 = vld [vmem:[%s4 + $0x260] sm:$0xff]
        %v6552 = vld [vmem:[%s4 + $0x268] sm:$0xff]
        %v6553 = vld [vmem:[%s4 + $0x270] sm:$0xff]
        %v6554 = vld [vmem:[%s4 + $0x278] sm:$0xff]
        %v6555 = vld [vmem:[%s5] sm:$0x3]
        %v6557 = vlaneseq
        %v6558 = vshrl.u32 %v6557, 7
        %v6559 = vsub.s32 0, %v6558
        %v6560 = vrot.slane %v6555, %v6559
        %v6561 = vlaneseq
        %v6562 = vshrl.u32 %v6561, 7
        %v6563 = vsub.s32 1, %v6562
        %v6564 = vrot.slane %v6555, %v6563
        %v6567 = vcombine.low %v5784, %v5787
        %v6568 = vcombine.high %v5784, %v5787
        %v6569 = vcombine.low %v5785, %v5788
        %v6570 = vcombine.high %v5785, %v5788
        %v6571 = vcombine.low %v5786, %v5882
        %v6572 = vcombine.high %v5786, %v5882
        %v6573 = vcombine.low %v5885, %v5883
        %v6574 = vcombine.high %v5885, %v5883
        %v6576 = vunpack.c.l.s4 1966171168
        %v6577 = vunpack.c.0.s8 %v6576
        %v6578 = vlaneseq
        %v6579 = vshrl.u32 %v6578, 7
        %v6580 = vsub.s32 %v6577, %v6579
        %v6581 = vrot.slane %v6567, %v6580
        %v6583 = vunpack.c.l.s4 1966171168
        %v6584 = vunpack.c.0.s8 %v6583
        %v6585 = vlaneseq
        %v6586 = vshrl.u32 %v6585, 7
        %v6587 = vsub.s32 %v6584, %v6586
        %v6588 = vrot.slane %v6568, %v6587
        %v6590 = vunpack.c.l.s4 1966171168
        %v6591 = vunpack.c.0.s8 %v6590
        %v6592 = vlaneseq
        %v6593 = vshrl.u32 %v6592, 7
        %v6594 = vsub.s32 %v6591, %v6593
        %v6595 = vrot.slane %v6569, %v6594
        %v6597 = vunpack.c.l.s4 1966171168
        %v6598 = vunpack.c.0.s8 %v6597
        %v6599 = vlaneseq
        %v6600 = vshrl.u32 %v6599, 7
        %v6601 = vsub.s32 %v6598, %v6600
        %v6602 = vrot.slane %v6570, %v6601
        %v6604 = vunpack.c.l.s4 1966171168
        %v6605 = vunpack.c.0.s8 %v6604
        %v6606 = vlaneseq
        %v6607 = vshrl.u32 %v6606, 7
        %v6608 = vsub.s32 %v6605, %v6607
        %v6609 = vrot.slane %v6571, %v6608
        %v6611 = vunpack.c.l.s4 1966171168
        %v6612 = vunpack.c.0.s8 %v6611
        %v6613 = vlaneseq
        %v6614 = vshrl.u32 %v6613, 7
        %v6615 = vsub.s32 %v6612, %v6614
        %v6616 = vrot.slane %v6572, %v6615
        %v6618 = vunpack.c.l.s4 1966171168
        %v6619 = vunpack.c.0.s8 %v6618
        %v6620 = vlaneseq
        %v6621 = vshrl.u32 %v6620, 7
        %v6622 = vsub.s32 %v6619, %v6621
        %v6623 = vrot.slane %v6573, %v6622
        %v6625 = vunpack.c.l.s4 1966171168
        %v6626 = vunpack.c.0.s8 %v6625
        %v6627 = vlaneseq
        %v6628 = vshrl.u32 %v6627, 7
        %v6629 = vsub.s32 %v6626, %v6628
        %v6630 = vrot.slane %v6574, %v6629
        %v6631 = vcombine.low %v6581, %v6595
        %v6632 = vcombine.high %v6581, %v6595
        %v6633 = vcombine.low %v6588, %v6602
        %v6634 = vcombine.low %v6609, %v6623
        %v6635 = vcombine.high %v6609, %v6623
        %v6636 = vcombine.low %v6616, %v6630
        %v6638 = vunpack.c.l.s4 1966171168
        %v6639 = vunpack.c.0.s8 %v6638
        %v6640 = vlaneseq
        %v6641 = vshrl.u32 %v6640, 7
        %v6642 = vsub.s32 %v6639, %v6641
        %v6643 = vrot.slane %v6631, %v6642
        %v6645 = vunpack.c.l.s4 1966171168
        %v6646 = vunpack.c.0.s8 %v6645
        %v6647 = vlaneseq
        %v6648 = vshrl.u32 %v6647, 7
        %v6649 = vsub.s32 %v6646, %v6648
        %v6650 = vrot.slane %v6633, %v6649
        %v6652 = vunpack.c.l.s4 1966171168
        %v6653 = vunpack.c.0.s8 %v6652
        %v6654 = vlaneseq
        %v6655 = vshrl.u32 %v6654, 7
        %v6656 = vsub.s32 %v6653, %v6655
        %v6657 = vrot.slane %v6632, %v6656
        %v6659 = vunpack.c.l.s4 1966171168
        %v6660 = vunpack.c.0.s8 %v6659
        %v6661 = vlaneseq
        %v6662 = vshrl.u32 %v6661, 7
        %v6663 = vsub.s32 %v6660, %v6662
        %v6664 = vrot.slane %v6634, %v6663
        %v6666 = vunpack.c.l.s4 1966171168
        %v6667 = vunpack.c.0.s8 %v6666
        %v6668 = vlaneseq
        %v6669 = vshrl.u32 %v6668, 7
        %v6670 = vsub.s32 %v6667, %v6669
        %v6671 = vrot.slane %v6636, %v6670
        %v6673 = vunpack.c.l.s4 1966171168
        %v6674 = vunpack.c.0.s8 %v6673
        %v6675 = vlaneseq
        %v6676 = vshrl.u32 %v6675, 7
        %v6677 = vsub.s32 %v6674, %v6676
        %v6678 = vrot.slane %v6635, %v6677
        %v6679 = vcombine.low %v6643, %v6664
        %v6680 = vcombine.high %v6643, %v6664
        %v6681 = vcombine.low %v6650, %v6671
        %v6682 = vcombine.low %v6657, %v6678
        %v6683 = vcombine.high %v6657, %v6678
        %v6684 = vcombine.low %v5886, %v5884
        %v6685 = vcombine.high %v5886, %v5884
        %v6686 = vcombine.low %v5980, %v5983
        %v6687 = vcombine.high %v5980, %v5983
        %v6688 = vcombine.low %v5981, %v5984
        %v6689 = vcombine.high %v5981, %v5984
        %v6690 = vcombine.low %v5982, %v6078
        %v6691 = vcombine.high %v5982, %v6078
        %v6693 = vunpack.c.l.s4 1966171168
        %v6694 = vunpack.c.0.s8 %v6693
        %v6695 = vlaneseq
        %v6696 = vshrl.u32 %v6695, 7
        %v6697 = vsub.s32 %v6694, %v6696
        %v6698 = vrot.slane %v6684, %v6697
        %v6700 = vunpack.c.l.s4 1966171168
        %v6701 = vunpack.c.0.s8 %v6700
        %v6702 = vlaneseq
        %v6703 = vshrl.u32 %v6702, 7
        %v6704 = vsub.s32 %v6701, %v6703
        %v6705 = vrot.slane %v6685, %v6704
        %v6707 = vunpack.c.l.s4 1966171168
        %v6708 = vunpack.c.0.s8 %v6707
        %v6709 = vlaneseq
        %v6710 = vshrl.u32 %v6709, 7
        %v6711 = vsub.s32 %v6708, %v6710
        %v6712 = vrot.slane %v6686, %v6711
        %v6714 = vunpack.c.l.s4 1966171168
        %v6715 = vunpack.c.0.s8 %v6714
        %v6716 = vlaneseq
        %v6717 = vshrl.u32 %v6716, 7
        %v6718 = vsub.s32 %v6715, %v6717
        %v6719 = vrot.slane %v6687, %v6718
        %v6721 = vunpack.c.l.s4 1966171168
        %v6722 = vunpack.c.0.s8 %v6721
        %v6723 = vlaneseq
        %v6724 = vshrl.u32 %v6723, 7
        %v6725 = vsub.s32 %v6722, %v6724
        %v6726 = vrot.slane %v6688, %v6725
        %v6728 = vunpack.c.l.s4 1966171168
        %v6729 = vunpack.c.0.s8 %v6728
        %v6730 = vlaneseq
        %v6731 = vshrl.u32 %v6730, 7
        %v6732 = vsub.s32 %v6729, %v6731
        %v6733 = vrot.slane %v6689, %v6732
        %v6735 = vunpack.c.l.s4 1966171168
        %v6736 = vunpack.c.0.s8 %v6735
        %v6737 = vlaneseq
        %v6738 = vshrl.u32 %v6737, 7
        %v6739 = vsub.s32 %v6736, %v6738
        %v6740 = vrot.slane %v6690, %v6739
        %v6742 = vunpack.c.l.s4 1966171168
        %v6743 = vunpack.c.0.s8 %v6742
        %v6744 = vlaneseq
        %v6745 = vshrl.u32 %v6744, 7
        %v6746 = vsub.s32 %v6743, %v6745
        %v6747 = vrot.slane %v6691, %v6746
        %v6748 = vcombine.low %v6698, %v6712
        %v6749 = vcombine.high %v6698, %v6712
        %v6750 = vcombine.low %v6705, %v6719
        %v6751 = vcombine.low %v6726, %v6740
        %v6752 = vcombine.high %v6726, %v6740
        %v6753 = vcombine.low %v6733, %v6747
        %v6755 = vunpack.c.l.s4 1966171168
        %v6756 = vunpack.c.0.s8 %v6755
        %v6757 = vlaneseq
        %v6758 = vshrl.u32 %v6757, 7
        %v6759 = vsub.s32 %v6756, %v6758
        %v6760 = vrot.slane %v6748, %v6759
        %v6762 = vunpack.c.l.s4 1966171168
        %v6763 = vunpack.c.0.s8 %v6762
        %v6764 = vlaneseq
        %v6765 = vshrl.u32 %v6764, 7
        %v6766 = vsub.s32 %v6763, %v6765
        %v6767 = vrot.slane %v6750, %v6766
        %v6769 = vunpack.c.l.s4 1966171168
        %v6770 = vunpack.c.0.s8 %v6769
        %v6771 = vlaneseq
        %v6772 = vshrl.u32 %v6771, 7
        %v6773 = vsub.s32 %v6770, %v6772
        %v6774 = vrot.slane %v6749, %v6773
        %v6776 = vunpack.c.l.s4 1966171168
        %v6777 = vunpack.c.0.s8 %v6776
        %v6778 = vlaneseq
        %v6779 = vshrl.u32 %v6778, 7
        %v6780 = vsub.s32 %v6777, %v6779
        %v6781 = vrot.slane %v6751, %v6780
        %v6783 = vunpack.c.l.s4 1966171168
        %v6784 = vunpack.c.0.s8 %v6783
        %v6785 = vlaneseq
        %v6786 = vshrl.u32 %v6785, 7
        %v6787 = vsub.s32 %v6784, %v6786
        %v6788 = vrot.slane %v6753, %v6787
        %v6790 = vunpack.c.l.s4 1966171168
        %v6791 = vunpack.c.0.s8 %v6790
        %v6792 = vlaneseq
        %v6793 = vshrl.u32 %v6792, 7
        %v6794 = vsub.s32 %v6791, %v6793
        %v6795 = vrot.slane %v6752, %v6794
        %v6796 = vcombine.low %v6760, %v6781
        %v6797 = vcombine.high %v6760, %v6781
        %v6798 = vcombine.low %v6767, %v6788
        %v6799 = vcombine.low %v6774, %v6795
        %v6800 = vcombine.high %v6774, %v6795
        %v6801 = vcombine.low %v6081, %v6079
        %v6802 = vcombine.high %v6081, %v6079
        %v6803 = vcombine.low %v6082, %v6080
        %v6804 = vcombine.high %v6082, %v6080
        %v6805 = vcombine.low %v6176, %v6179
        %v6806 = vcombine.high %v6176, %v6179
        %v6807 = vcombine.low %v6177, %v6180
        %v6808 = vcombine.high %v6177, %v6180
        %v6810 = vunpack.c.l.s4 1966171168
        %v6811 = vunpack.c.0.s8 %v6810
        %v6812 = vlaneseq
        %v6813 = vshrl.u32 %v6812, 7
        %v6814 = vsub.s32 %v6811, %v6813
        %v6815 = vrot.slane %v6801, %v6814
        %v6817 = vunpack.c.l.s4 1966171168
        %v6818 = vunpack.c.0.s8 %v6817
        %v6819 = vlaneseq
        %v6820 = vshrl.u32 %v6819, 7
        %v6821 = vsub.s32 %v6818, %v6820
        %v6822 = vrot.slane %v6802, %v6821
        %v6824 = vunpack.c.l.s4 1966171168
        %v6825 = vunpack.c.0.s8 %v6824
        %v6826 = vlaneseq
        %v6827 = vshrl.u32 %v6826, 7
        %v6828 = vsub.s32 %v6825, %v6827
        %v6829 = vrot.slane %v6803, %v6828
        %v6831 = vunpack.c.l.s4 1966171168
        %v6832 = vunpack.c.0.s8 %v6831
        %v6833 = vlaneseq
        %v6834 = vshrl.u32 %v6833, 7
        %v6835 = vsub.s32 %v6832, %v6834
        %v6836 = vrot.slane %v6804, %v6835
        %v6838 = vunpack.c.l.s4 1966171168
        %v6839 = vunpack.c.0.s8 %v6838
        %v6840 = vlaneseq
        %v6841 = vshrl.u32 %v6840, 7
        %v6842 = vsub.s32 %v6839, %v6841
        %v6843 = vrot.slane %v6805, %v6842
        %v6845 = vunpack.c.l.s4 1966171168
        %v6846 = vunpack.c.0.s8 %v6845
        %v6847 = vlaneseq
        %v6848 = vshrl.u32 %v6847, 7
        %v6849 = vsub.s32 %v6846, %v6848
        %v6850 = vrot.slane %v6806, %v6849
        %v6852 = vunpack.c.l.s4 1966171168
        %v6853 = vunpack.c.0.s8 %v6852
        %v6854 = vlaneseq
        %v6855 = vshrl.u32 %v6854, 7
        %v6856 = vsub.s32 %v6853, %v6855
        %v6857 = vrot.slane %v6807, %v6856
        %v6859 = vunpack.c.l.s4 1966171168
        %v6860 = vunpack.c.0.s8 %v6859
        %v6861 = vlaneseq
        %v6862 = vshrl.u32 %v6861, 7
        %v6863 = vsub.s32 %v6860, %v6862
        %v6864 = vrot.slane %v6808, %v6863
        %v6865 = vcombine.low %v6815, %v6829
        %v6866 = vcombine.high %v6815, %v6829
        %v6867 = vcombine.low %v6822, %v6836
        %v6868 = vcombine.low %v6843, %v6857
        %v6869 = vcombine.high %v6843, %v6857
        %v6870 = vcombine.low %v6850, %v6864
        %v6872 = vunpack.c.l.s4 1966171168
        %v6873 = vunpack.c.0.s8 %v6872
        %v6874 = vlaneseq
        %v6875 = vshrl.u32 %v6874, 7
        %v6876 = vsub.s32 %v6873, %v6875
        %v6877 = vrot.slane %v6865, %v6876
        %v6879 = vunpack.c.l.s4 1966171168
        %v6880 = vunpack.c.0.s8 %v6879
        %v6881 = vlaneseq
        %v6882 = vshrl.u32 %v6881, 7
        %v6883 = vsub.s32 %v6880, %v6882
        %v6884 = vrot.slane %v6867, %v6883
        %v6886 = vunpack.c.l.s4 1966171168
        %v6887 = vunpack.c.0.s8 %v6886
        %v6888 = vlaneseq
        %v6889 = vshrl.u32 %v6888, 7
        %v6890 = vsub.s32 %v6887, %v6889
        %v6891 = vrot.slane %v6866, %v6890
        %v6893 = vunpack.c.l.s4 1966171168
        %v6894 = vunpack.c.0.s8 %v6893
        %v6895 = vlaneseq
        %v6896 = vshrl.u32 %v6895, 7
        %v6897 = vsub.s32 %v6894, %v6896
        %v6898 = vrot.slane %v6868, %v6897
        %v6900 = vunpack.c.l.s4 1966171168
        %v6901 = vunpack.c.0.s8 %v6900
        %v6902 = vlaneseq
        %v6903 = vshrl.u32 %v6902, 7
        %v6904 = vsub.s32 %v6901, %v6903
        %v6905 = vrot.slane %v6870, %v6904
        %v6907 = vunpack.c.l.s4 1966171168
        %v6908 = vunpack.c.0.s8 %v6907
        %v6909 = vlaneseq
        %v6910 = vshrl.u32 %v6909, 7
        %v6911 = vsub.s32 %v6908, %v6910
        %v6912 = vrot.slane %v6869, %v6911
        %v6913 = vcombine.low %v6877, %v6898
        %v6914 = vcombine.high %v6877, %v6898
        %v6915 = vcombine.low %v6884, %v6905
        %v6916 = vcombine.low %v6891, %v6912
        %v6917 = vcombine.high %v6891, %v6912
        %v6918 = vcombine.low %v6178, %v6274
        %v6919 = vcombine.high %v6178, %v6274
        %v6920 = vcombine.low %v6277, %v6275
        %v6921 = vcombine.high %v6277, %v6275
        %v6922 = vcombine.low %v6278, %v6276
        %v6923 = vcombine.high %v6278, %v6276
        %v6924 = vcombine.low %v6372, %v6375
        %v6925 = vcombine.high %v6372, %v6375
        %v6927 = vunpack.c.l.s4 1966171168
        %v6928 = vunpack.c.0.s8 %v6927
        %v6929 = vlaneseq
        %v6930 = vshrl.u32 %v6929, 7
        %v6931 = vsub.s32 %v6928, %v6930
        %v6932 = vrot.slane %v6918, %v6931
        %v6934 = vunpack.c.l.s4 1966171168
        %v6935 = vunpack.c.0.s8 %v6934
        %v6936 = vlaneseq
        %v6937 = vshrl.u32 %v6936, 7
        %v6938 = vsub.s32 %v6935, %v6937
        %v6939 = vrot.slane %v6919, %v6938
        %v6941 = vunpack.c.l.s4 1966171168
        %v6942 = vunpack.c.0.s8 %v6941
        %v6943 = vlaneseq
        %v6944 = vshrl.u32 %v6943, 7
        %v6945 = vsub.s32 %v6942, %v6944
        %v6946 = vrot.slane %v6920, %v6945
        %v6948 = vunpack.c.l.s4 1966171168
        %v6949 = vunpack.c.0.s8 %v6948
        %v6950 = vlaneseq
        %v6951 = vshrl.u32 %v6950, 7
        %v6952 = vsub.s32 %v6949, %v6951
        %v6953 = vrot.slane %v6921, %v6952
        %v6955 = vunpack.c.l.s4 1966171168
        %v6956 = vunpack.c.0.s8 %v6955
        %v6957 = vlaneseq
        %v6958 = vshrl.u32 %v6957, 7
        %v6959 = vsub.s32 %v6956, %v6958
        %v6960 = vrot.slane %v6922, %v6959
        %v6962 = vunpack.c.l.s4 1966171168
        %v6963 = vunpack.c.0.s8 %v6962
        %v6964 = vlaneseq
        %v6965 = vshrl.u32 %v6964, 7
        %v6966 = vsub.s32 %v6963, %v6965
        %v6967 = vrot.slane %v6923, %v6966
        %v6969 = vunpack.c.l.s4 1966171168
        %v6970 = vunpack.c.0.s8 %v6969
        %v6971 = vlaneseq
        %v6972 = vshrl.u32 %v6971, 7
        %v6973 = vsub.s32 %v6970, %v6972
        %v6974 = vrot.slane %v6924, %v6973
        %v6976 = vunpack.c.l.s4 1966171168
        %v6977 = vunpack.c.0.s8 %v6976
        %v6978 = vlaneseq
        %v6979 = vshrl.u32 %v6978, 7
        %v6980 = vsub.s32 %v6977, %v6979
        %v6981 = vrot.slane %v6925, %v6980
        %v6982 = vcombine.low %v6932, %v6946
        %v6983 = vcombine.high %v6932, %v6946
        %v6984 = vcombine.low %v6939, %v6953
        %v6985 = vcombine.low %v6960, %v6974
        %v6986 = vcombine.high %v6960, %v6974
        %v6987 = vcombine.low %v6967, %v6981
        %v6989 = vunpack.c.l.s4 1966171168
        %v6990 = vunpack.c.0.s8 %v6989
        %v6991 = vlaneseq
        %v6992 = vshrl.u32 %v6991, 7
        %v6993 = vsub.s32 %v6990, %v6992
        %v6994 = vrot.slane %v6982, %v6993
        %v6996 = vunpack.c.l.s4 1966171168
        %v6997 = vunpack.c.0.s8 %v6996
        %v6998 = vlaneseq
        %v6999 = vshrl.u32 %v6998, 7
        %v7000 = vsub.s32 %v6997, %v6999
        %v7001 = vrot.slane %v6984, %v7000
        %v7003 = vunpack.c.l.s4 1966171168
        %v7004 = vunpack.c.0.s8 %v7003
        %v7005 = vlaneseq
        %v7006 = vshrl.u32 %v7005, 7
        %v7007 = vsub.s32 %v7004, %v7006
        %v7008 = vrot.slane %v6983, %v7007
        %v7010 = vunpack.c.l.s4 1966171168
        %v7011 = vunpack.c.0.s8 %v7010
        %v7012 = vlaneseq
        %v7013 = vshrl.u32 %v7012, 7
        %v7014 = vsub.s32 %v7011, %v7013
        %v7015 = vrot.slane %v6985, %v7014
        %v7017 = vunpack.c.l.s4 1966171168
        %v7018 = vunpack.c.0.s8 %v7017
        %v7019 = vlaneseq
        %v7020 = vshrl.u32 %v7019, 7
        %v7021 = vsub.s32 %v7018, %v7020
        %v7022 = vrot.slane %v6987, %v7021
        %v7024 = vunpack.c.l.s4 1966171168
        %v7025 = vunpack.c.0.s8 %v7024
        %v7026 = vlaneseq
        %v7027 = vshrl.u32 %v7026, 7
        %v7028 = vsub.s32 %v7025, %v7027
        %v7029 = vrot.slane %v6986, %v7028
        %v7030 = vcombine.low %v6994, %v7015
        %v7031 = vcombine.high %v6994, %v7015
        %v7032 = vcombine.low %v7001, %v7022
        %v7033 = vcombine.low %v7008, %v7029
        %v7034 = vcombine.high %v7008, %v7029
        %v7035 = vcombine.low %v6373, %v6376
        %v7036 = vcombine.high %v6373, %v6376
        %v7037 = vcombine.low %v6374, %v6470
        %v7038 = vcombine.high %v6374, %v6470
        %v7039 = vcombine.low %v6473, %v6471
        %v7040 = vcombine.high %v6473, %v6471
        %v7041 = vcombine.low %v6474, %v6472
        %v7042 = vcombine.high %v6474, %v6472
        %v7044 = vunpack.c.l.s4 1966171168
        %v7045 = vunpack.c.0.s8 %v7044
        %v7046 = vlaneseq
        %v7047 = vshrl.u32 %v7046, 7
        %v7048 = vsub.s32 %v7045, %v7047
        %v7049 = vrot.slane %v7035, %v7048
        %v7051 = vunpack.c.l.s4 1966171168
        %v7052 = vunpack.c.0.s8 %v7051
        %v7053 = vlaneseq
        %v7054 = vshrl.u32 %v7053, 7
        %v7055 = vsub.s32 %v7052, %v7054
        %v7056 = vrot.slane %v7036, %v7055
        %v7058 = vunpack.c.l.s4 1966171168
        %v7059 = vunpack.c.0.s8 %v7058
        %v7060 = vlaneseq
        %v7061 = vshrl.u32 %v7060, 7
        %v7062 = vsub.s32 %v7059, %v7061
        %v7063 = vrot.slane %v7037, %v7062
        %v7065 = vunpack.c.l.s4 1966171168
        %v7066 = vunpack.c.0.s8 %v7065
        %v7067 = vlaneseq
        %v7068 = vshrl.u32 %v7067, 7
        %v7069 = vsub.s32 %v7066, %v7068
        %v7070 = vrot.slane %v7038, %v7069
        %v7072 = vunpack.c.l.s4 1966171168
        %v7073 = vunpack.c.0.s8 %v7072
        %v7074 = vlaneseq
        %v7075 = vshrl.u32 %v7074, 7
        %v7076 = vsub.s32 %v7073, %v7075
        %v7077 = vrot.slane %v7039, %v7076
        %v7079 = vunpack.c.l.s4 1966171168
        %v7080 = vunpack.c.0.s8 %v7079
        %v7081 = vlaneseq
        %v7082 = vshrl.u32 %v7081, 7
        %v7083 = vsub.s32 %v7080, %v7082
        %v7084 = vrot.slane %v7040, %v7083
        %v7086 = vunpack.c.l.s4 1966171168
        %v7087 = vunpack.c.0.s8 %v7086
        %v7088 = vlaneseq
        %v7089 = vshrl.u32 %v7088, 7
        %v7090 = vsub.s32 %v7087, %v7089
        %v7091 = vrot.slane %v7041, %v7090
        %v7093 = vunpack.c.l.s4 1966171168
        %v7094 = vunpack.c.0.s8 %v7093
        %v7095 = vlaneseq
        %v7096 = vshrl.u32 %v7095, 7
        %v7097 = vsub.s32 %v7094, %v7096
        %v7098 = vrot.slane %v7042, %v7097
        %v7099 = vcombine.low %v7049, %v7063
        %v7100 = vcombine.high %v7049, %v7063
        %v7101 = vcombine.low %v7056, %v7070
        %v7102 = vcombine.low %v7077, %v7091
        %v7103 = vcombine.high %v7077, %v7091
        %v7104 = vcombine.low %v7084, %v7098
        %v7106 = vunpack.c.l.s4 1966171168
        %v7107 = vunpack.c.0.s8 %v7106
        %v7108 = vlaneseq
        %v7109 = vshrl.u32 %v7108, 7
        %v7110 = vsub.s32 %v7107, %v7109
        %v7111 = vrot.slane %v7099, %v7110
        %v7113 = vunpack.c.l.s4 1966171168
        %v7114 = vunpack.c.0.s8 %v7113
        %v7115 = vlaneseq
        %v7116 = vshrl.u32 %v7115, 7
        %v7117 = vsub.s32 %v7114, %v7116
        %v7118 = vrot.slane %v7101, %v7117
        %v7120 = vunpack.c.l.s4 1966171168
        %v7121 = vunpack.c.0.s8 %v7120
        %v7122 = vlaneseq
        %v7123 = vshrl.u32 %v7122, 7
        %v7124 = vsub.s32 %v7121, %v7123
        %v7125 = vrot.slane %v7100, %v7124
        %v7127 = vunpack.c.l.s4 1966171168
        %v7128 = vunpack.c.0.s8 %v7127
        %v7129 = vlaneseq
        %v7130 = vshrl.u32 %v7129, 7
        %v7131 = vsub.s32 %v7128, %v7130
        %v7132 = vrot.slane %v7102, %v7131
        %v7134 = vunpack.c.l.s4 1966171168
        %v7135 = vunpack.c.0.s8 %v7134
        %v7136 = vlaneseq
        %v7137 = vshrl.u32 %v7136, 7
        %v7138 = vsub.s32 %v7135, %v7137
        %v7139 = vrot.slane %v7104, %v7138
        %v7141 = vunpack.c.l.s4 1966171168
        %v7142 = vunpack.c.0.s8 %v7141
        %v7143 = vlaneseq
        %v7144 = vshrl.u32 %v7143, 7
        %v7145 = vsub.s32 %v7142, %v7144
        %v7146 = vrot.slane %v7103, %v7145
        %v7147 = vcombine.low %v7111, %v7132
        %v7148 = vcombine.high %v7111, %v7132
        %v7149 = vcombine.low %v7118, %v7139
        %v7150 = vcombine.low %v7125, %v7146
        %v7151 = vcombine.high %v7125, %v7146
        %v7257 = vunpack.c.l.b16 %v6475
        %v7258 = vunpack.c.h.b16 %v6475
        %v7259 = vunpack.c.l.b16 %v6476
        %v7260 = vunpack.c.h.b16 %v6476
        %v7261 = vunpack.c.l.b16 %v6477
        %v7262 = vunpack.c.h.b16 %v6477
        %v7263 = vunpack.c.l.b16 %v6478
        %v7264 = vunpack.c.h.b16 %v6478
        %v7265 = vunpack.c.l.b16 %v6479
        %v7266 = vunpack.c.h.b16 %v6479
        %v7267 = vunpack.c.l.b16 %v6480
        %v7268 = vunpack.c.h.b16 %v6480
        %v7269 = vunpack.c.l.b16 %v6481
        %v7270 = vunpack.c.h.b16 %v6481
        %v7271 = vunpack.c.l.b16 %v6482
        %v7272 = vunpack.c.h.b16 %v6482
        %v7273 = vunpack.c.l.b16 %v6483
        %v7274 = vunpack.c.h.b16 %v6483
        %v7275 = vunpack.c.l.b16 %v6484
        %v7276 = vunpack.c.h.b16 %v6484
        %v7277 = vunpack.c.l.b16 %v6485
        %v7278 = vunpack.c.h.b16 %v6485
        %v7279 = vunpack.c.l.b16 %v6486
        %v7280 = vunpack.c.h.b16 %v6486
        %v7281 = vunpack.c.l.b16 %v6487
        %v7282 = vunpack.c.h.b16 %v6487
        %v7283 = vunpack.c.l.b16 %v6488
        %v7284 = vunpack.c.h.b16 %v6488
        %v7285 = vunpack.c.l.b16 %v6489
        %v7286 = vunpack.c.h.b16 %v6489
        %v7287 = vunpack.c.l.b16 %v6490
        %v7288 = vunpack.c.h.b16 %v6490
        %v7289 = vunpack.c.l.b16 %v6491
        %v7290 = vunpack.c.h.b16 %v6491
        %v7291 = vunpack.c.l.b16 %v6492
        %v7292 = vunpack.c.h.b16 %v6492
        %v7293 = vunpack.c.l.b16 %v6493
        %v7294 = vunpack.c.h.b16 %v6493
        %v7295 = vunpack.c.l.b16 %v6494
        %v7296 = vunpack.c.h.b16 %v6494
        %v7297 = vunpack.c.l.b16 %v6495
        %v7298 = vunpack.c.h.b16 %v6495
        %v7299 = vunpack.c.l.b16 %v6496
        %v7300 = vunpack.c.h.b16 %v6496
        %v7301 = vunpack.c.l.b16 %v6497
        %v7302 = vunpack.c.h.b16 %v6497
        %v7303 = vunpack.c.l.b16 %v6498
        %v7304 = vunpack.c.h.b16 %v6498
        %v7305 = vunpack.c.l.b16 %v6499
        %v7306 = vunpack.c.h.b16 %v6499
        %v7307 = vunpack.c.l.b16 %v6500
        %v7308 = vunpack.c.h.b16 %v6500
        %v7309 = vunpack.c.l.b16 %v6501
        %v7310 = vunpack.c.h.b16 %v6501
        %v7311 = vunpack.c.l.b16 %v6502
        %v7312 = vunpack.c.h.b16 %v6502
        %v7313 = vunpack.c.l.b16 %v6503
        %v7314 = vunpack.c.h.b16 %v6503
        %v7315 = vunpack.c.l.b16 %v6504
        %v7316 = vunpack.c.h.b16 %v6504
        %v7317 = vunpack.c.l.b16 %v6505
        %v7318 = vunpack.c.h.b16 %v6505
        %v7319 = vunpack.c.l.b16 %v6506
        %v7320 = vunpack.c.h.b16 %v6506
        %v7321 = vunpack.c.l.b16 %v6507
        %v7322 = vunpack.c.h.b16 %v6507
        %v7323 = vunpack.c.l.b16 %v6508
        %v7324 = vunpack.c.h.b16 %v6508
        %v7325 = vunpack.c.l.b16 %v6509
        %v7326 = vunpack.c.h.b16 %v6509
        %v7327 = vunpack.c.l.b16 %v6510
        %v7328 = vunpack.c.h.b16 %v6510
        %v7329 = vunpack.c.l.b16 %v6511
        %v7330 = vunpack.c.h.b16 %v6511
        %v7331 = vunpack.c.l.b16 %v6512
        %v7332 = vunpack.c.h.b16 %v6512
        %v7333 = vunpack.c.l.b16 %v6513
        %v7334 = vunpack.c.h.b16 %v6513
        %v7335 = vunpack.c.l.b16 %v6514
        %v7336 = vunpack.c.h.b16 %v6514
        %v7337 = vunpack.c.l.b16 %v6515
        %v7338 = vunpack.c.h.b16 %v6515
        %v7339 = vunpack.c.l.b16 %v6516
        %v7340 = vunpack.c.h.b16 %v6516
        %v7341 = vunpack.c.l.b16 %v6517
        %v7342 = vunpack.c.h.b16 %v6517
        %v7343 = vunpack.c.l.b16 %v6518
        %v7344 = vunpack.c.h.b16 %v6518
        %v7345 = vunpack.c.l.b16 %v6519
        %v7346 = vunpack.c.h.b16 %v6519
        %v7347 = vunpack.c.l.b16 %v6520
        %v7348 = vunpack.c.h.b16 %v6520
        %v7349 = vunpack.c.l.b16 %v6521
        %v7350 = vunpack.c.h.b16 %v6521
        %v7351 = vunpack.c.l.b16 %v6522
        %v7352 = vunpack.c.h.b16 %v6522
        %v7353 = vunpack.c.l.b16 %v6523
        %v7354 = vunpack.c.h.b16 %v6523
        %v7355 = vunpack.c.l.b16 %v6524
        %v7356 = vunpack.c.h.b16 %v6524
        %v7357 = vunpack.c.l.b16 %v6525
        %v7358 = vunpack.c.h.b16 %v6525
        %v7359 = vunpack.c.l.b16 %v6526
        %v7360 = vunpack.c.h.b16 %v6526
        %v7361 = vunpack.c.l.b16 %v6527
        %v7362 = vunpack.c.h.b16 %v6527
        %v7363 = vunpack.c.l.b16 %v6528
        %v7364 = vunpack.c.h.b16 %v6528
        %v7365 = vunpack.c.l.b16 %v6529
        %v7366 = vunpack.c.h.b16 %v6529
        %v7367 = vunpack.c.l.b16 %v6530
        %v7368 = vunpack.c.h.b16 %v6530
        %v7369 = vunpack.c.l.b16 %v6531
        %v7370 = vunpack.c.h.b16 %v6531
        %v7371 = vunpack.c.l.b16 %v6532
        %v7372 = vunpack.c.h.b16 %v6532
        %v7373 = vunpack.c.l.b16 %v6533
        %v7374 = vunpack.c.h.b16 %v6533
        %v7375 = vunpack.c.l.b16 %v6534
        %v7376 = vunpack.c.h.b16 %v6534
        %v7377 = vunpack.c.l.b16 %v6535
        %v7378 = vunpack.c.h.b16 %v6535
        %v7379 = vunpack.c.l.b16 %v6536
        %v7380 = vunpack.c.h.b16 %v6536
        %v7381 = vunpack.c.l.b16 %v6537
        %v7382 = vunpack.c.h.b16 %v6537
        %v7383 = vunpack.c.l.b16 %v6538
        %v7384 = vunpack.c.h.b16 %v6538
        %v7385 = vunpack.c.l.b16 %v6539
        %v7386 = vunpack.c.h.b16 %v6539
        %v7387 = vunpack.c.l.b16 %v6540
        %v7388 = vunpack.c.h.b16 %v6540
        %v7389 = vunpack.c.l.b16 %v6541
        %v7390 = vunpack.c.h.b16 %v6541
        %v7391 = vunpack.c.l.b16 %v6542
        %v7392 = vunpack.c.h.b16 %v6542
        %v7393 = vunpack.c.l.b16 %v6543
        %v7394 = vunpack.c.h.b16 %v6543
        %v7395 = vunpack.c.l.b16 %v6544
        %v7396 = vunpack.c.h.b16 %v6544
        %v7397 = vunpack.c.l.b16 %v6545
        %v7398 = vunpack.c.h.b16 %v6545
        %v7399 = vunpack.c.l.b16 %v6546
        %v7400 = vunpack.c.h.b16 %v6546
        %v7401 = vunpack.c.l.b16 %v6547
        %v7402 = vunpack.c.h.b16 %v6547
        %v7403 = vunpack.c.l.b16 %v6548
        %v7404 = vunpack.c.h.b16 %v6548
        %v7405 = vunpack.c.l.b16 %v6549
        %v7406 = vunpack.c.h.b16 %v6549
        %v7407 = vunpack.c.l.b16 %v6550
        %v7408 = vunpack.c.h.b16 %v6550
        %v7409 = vunpack.c.l.b16 %v6551
        %v7410 = vunpack.c.h.b16 %v6551
        %v7411 = vunpack.c.l.b16 %v6552
        %v7412 = vunpack.c.h.b16 %v6552
        %v7413 = vunpack.c.l.b16 %v6553
        %v7414 = vunpack.c.h.b16 %v6553
        %v7415 = vunpack.c.l.b16 %v6554
        %v7416 = vunpack.c.h.b16 %v6554
        %v7417 = vpack.c.b16 %v7259, %v7257
        %v7418 = vpack.c.b16 %v7260, %v7258
        %v7419 = vpack.c.b16 %v7263, %v7261
        %v7420 = vpack.c.b16 %v7264, %v7262
        %v7421 = vpack.c.b16 %v7267, %v7265
        %v7422 = vpack.c.b16 %v7268, %v7266
        %v7423 = vpack.c.b16 %v7271, %v7269
        %v7424 = vpack.c.b16 %v7272, %v7270
        %v7425 = vpack.c.b16 %v7275, %v7273
        %v7426 = vpack.c.b16 %v7276, %v7274
        %v7427 = vpack.c.b16 %v7279, %v7277
        %v7428 = vpack.c.b16 %v7280, %v7278
        %v7429 = vpack.c.b16 %v7283, %v7281
        %v7430 = vpack.c.b16 %v7284, %v7282
        %v7431 = vpack.c.b16 %v7287, %v7285
        %v7432 = vpack.c.b16 %v7288, %v7286
        %v7433 = vpack.c.b16 %v7291, %v7289
        %v7434 = vpack.c.b16 %v7292, %v7290
        %v7435 = vpack.c.b16 %v7295, %v7293
        %v7436 = vpack.c.b16 %v7296, %v7294
        %v7437 = vpack.c.b16 %v7299, %v7297
        %v7438 = vpack.c.b16 %v7300, %v7298
        %v7439 = vpack.c.b16 %v7303, %v7301
        %v7440 = vpack.c.b16 %v7304, %v7302
        %v7441 = vpack.c.b16 %v7307, %v7305
        %v7442 = vpack.c.b16 %v7308, %v7306
        %v7443 = vpack.c.b16 %v7311, %v7309
        %v7444 = vpack.c.b16 %v7312, %v7310
        %v7445 = vpack.c.b16 %v7315, %v7313
        %v7446 = vpack.c.b16 %v7316, %v7314
        %v7447 = vpack.c.b16 %v7319, %v7317
        %v7448 = vpack.c.b16 %v7320, %v7318
        %v7449 = vpack.c.b16 %v7323, %v7321
        %v7450 = vpack.c.b16 %v7324, %v7322
        %v7451 = vpack.c.b16 %v7327, %v7325
        %v7452 = vpack.c.b16 %v7328, %v7326
        %v7453 = vpack.c.b16 %v7331, %v7329
        %v7454 = vpack.c.b16 %v7332, %v7330
        %v7455 = vpack.c.b16 %v7335, %v7333
        %v7456 = vpack.c.b16 %v7336, %v7334
        %v7457 = vpack.c.b16 %v7339, %v7337
        %v7458 = vpack.c.b16 %v7340, %v7338
        %v7459 = vpack.c.b16 %v7343, %v7341
        %v7460 = vpack.c.b16 %v7344, %v7342
        %v7461 = vpack.c.b16 %v7347, %v7345
        %v7462 = vpack.c.b16 %v7348, %v7346
        %v7463 = vpack.c.b16 %v7351, %v7349
        %v7464 = vpack.c.b16 %v7352, %v7350
        %v7465 = vpack.c.b16 %v7355, %v7353
        %v7466 = vpack.c.b16 %v7356, %v7354
        %v7467 = vpack.c.b16 %v7359, %v7357
        %v7468 = vpack.c.b16 %v7360, %v7358
        %v7469 = vpack.c.b16 %v7363, %v7361
        %v7470 = vpack.c.b16 %v7364, %v7362
        %v7471 = vpack.c.b16 %v7367, %v7365
        %v7472 = vpack.c.b16 %v7368, %v7366
        %v7473 = vpack.c.b16 %v7371, %v7369
        %v7474 = vpack.c.b16 %v7372, %v7370
        %v7475 = vpack.c.b16 %v7375, %v7373
        %v7476 = vpack.c.b16 %v7376, %v7374
        %v7477 = vpack.c.b16 %v7379, %v7377
        %v7478 = vpack.c.b16 %v7380, %v7378
        %v7479 = vpack.c.b16 %v7383, %v7381
        %v7480 = vpack.c.b16 %v7384, %v7382
        %v7481 = vpack.c.b16 %v7387, %v7385
        %v7482 = vpack.c.b16 %v7388, %v7386
        %v7483 = vpack.c.b16 %v7391, %v7389
        %v7484 = vpack.c.b16 %v7392, %v7390
        %v7485 = vpack.c.b16 %v7395, %v7393
        %v7486 = vpack.c.b16 %v7396, %v7394
        %v7487 = vpack.c.b16 %v7399, %v7397
        %v7488 = vpack.c.b16 %v7400, %v7398
        %v7489 = vpack.c.b16 %v7403, %v7401
        %v7490 = vpack.c.b16 %v7404, %v7402
        %v7491 = vpack.c.b16 %v7407, %v7405
        %v7492 = vpack.c.b16 %v7408, %v7406
        %v7493 = vpack.c.b16 %v7411, %v7409
        %v7494 = vpack.c.b16 %v7412, %v7410
        %v7495 = vpack.c.b16 %v7415, %v7413
        %v7496 = vpack.c.b16 %v7416, %v7414
        %7577 = vmatprep.subr.bf16.mxu0 %v7418
        %7578 = vmatpush1.bf16.msra.mxu0 %v7417
        %7579 = vmatprep.subr.bf16.mxu0 %v7420
        %7580 = vmatpush1.bf16.msra.mxu0 %v7419
        %7581 = vmatprep.subr.bf16.mxu0 %v7422
        %7582 = vmatpush1.bf16.msra.mxu0 %v7421
        %7583 = vmatprep.subr.bf16.mxu0 %v7424
        %7584 = vmatpush1.bf16.msra.mxu0 %v7423
        %7585 = vmatprep.subr.bf16.mxu0 %v7426
        %7586 = vmatpush1.bf16.msra.mxu0 %v7425
        %7587 = vmatprep.subr.bf16.mxu0 %v7428
        %7588 = vmatpush1.bf16.msra.mxu0 %v7427
        %7589 = vmatprep.subr.bf16.mxu0 %v7430
        %7590 = vmatpush1.bf16.msra.mxu0 %v7429
        %7591 = vmatprep.subr.bf16.mxu0 %v7432
        %7592 = vmatpush1.bf16.msra.mxu0 %v7431
        %7593 = vmatprep.subr.bf16.mxu0 %v7434
        %7594 = vmatpush1.bf16.msra.mxu0 %v7433
        %7595 = vmatprep.subr.bf16.mxu0 %v7436
        %7596 = vmatpush1.bf16.msra.mxu0 %v7435
        %7597 = vmatprep.subr.bf16.mxu0 %v7438
        %7598 = vmatpush1.bf16.msra.mxu0 %v7437
        %7599 = vmatprep.subr.bf16.mxu0 %v7440
        %7600 = vmatpush1.bf16.msra.mxu0 %v7439
        %7601 = vmatprep.subr.bf16.mxu0 %v7442
        %7602 = vmatpush1.bf16.msra.mxu0 %v7441
        %7603 = vmatprep.subr.bf16.mxu0 %v7444
        %7604 = vmatpush1.bf16.msra.mxu0 %v7443
        %7605 = vmatprep.subr.bf16.mxu0 %v7446
        %7606 = vmatpush1.bf16.msra.mxu0 %v7445
        %7607 = vmatprep.subr.bf16.mxu0 %v7448
        %7608 = vmatpush1.bf16.msra.mxu0 %v7447
        %7609 = vmatprep.mubr.bf16.mxu0 %v6682
        %7610 = vmatmul.mubr.bf16.gmra.mrb[0].mxu0 %v6679
        %v7611 = vpop.f32.mrb[0].mxu0
        %v7612 = vadd.f32 %v6560, %v7611
        %v7613 = vpop.f32.mrb[0].mxu0
        %v7614 = vadd.f32 %v6564, %v7613
        %v7615 = vpop.f32.mrb[0].mxu0
        %v7616 = vadd.f32 %v6560, %v7615
        %v7617 = vpop.f32.mrb[0].mxu0
        %v7618 = vadd.f32 %v6564, %v7617
        %7619 = vmatprep.mubr.bf16.mxu0 %v6799
        %7620 = vmatmul.mubr.bf16.gmra.mrb[0].mxu0 %v6796
        %v7621 = vpop.f32.mrb[0].mxu0
        %v7622 = vadd.f32 %v6560, %v7621
        %v7623 = vpop.f32.mrb[0].mxu0
        %v7624 = vadd.f32 %v6564, %v7623
        %v7625 = vpop.f32.mrb[0].mxu0
        %v7626 = vadd.f32 %v6560, %v7625
        %v7627 = vpop.f32.mrb[0].mxu0
        %v7628 = vadd.f32 %v6564, %v7627
        %7629 = vmatprep.mubr.bf16.mxu0 %v6916
        %7630 = vmatmul.mubr.bf16.gmra.mrb[0].mxu0 %v6913
        %v7631 = vpop.f32.mrb[0].mxu0
        %v7632 = vadd.f32 %v6560, %v7631
        %v7633 = vpop.f32.mrb[0].mxu0
        %v7634 = vadd.f32 %v6564, %v7633
        %v7635 = vpop.f32.mrb[0].mxu0
        %v7636 = vadd.f32 %v6560, %v7635
        %v7637 = vpop.f32.mrb[0].mxu0
        %v7638 = vadd.f32 %v6564, %v7637
        %7639 = vmatprep.mubr.bf16.mxu0 %v7033
        %7640 = vmatmul.mubr.bf16.gmra.mrb[0].mxu0 %v7030
        %v7641 = vpop.f32.mrb[0].mxu0
        %v7642 = vadd.f32 %v6560, %v7641
        %v7643 = vpop.f32.mrb[0].mxu0
        %v7644 = vadd.f32 %v6564, %v7643
        %v7645 = vpop.f32.mrb[0].mxu0
        %v7646 = vadd.f32 %v6560, %v7645
        %v7647 = vpop.f32.mrb[0].mxu0
        %v7648 = vadd.f32 %v6564, %v7647
        %7649 = vmatprep.mubr.bf16.mxu0 %v7150
        %7650 = vmatmul.mubr.bf16.gmra.mrb[0].mxu0 %v7147
        %v7651 = vpop.f32.mrb[0].mxu0
        %v7652 = vadd.f32 %v6560, %v7651
        %v7653 = vpop.f32.mrb[0].mxu0
        %v7654 = vadd.f32 %v6564, %v7653
        %v7655 = vpop.f32.mrb[0].mxu0
        %v7656 = vadd.f32 %v6560, %v7655
        %v7657 = vpop.f32.mrb[0].mxu0
        %v7658 = vadd.f32 %v6564, %v7657
        %7659 = vdwg.mxu0
        %7660 = vmatprep.subr.bf16.mxu0 %v7450
        %7661 = vmatpush1.bf16.msra.mxu0 %v7449
        %7662 = vmatprep.subr.bf16.mxu0 %v7452
        %7663 = vmatpush1.bf16.msra.mxu0 %v7451
        %7664 = vmatprep.subr.bf16.mxu0 %v7454
        %7665 = vmatpush1.bf16.msra.mxu0 %v7453
        %7666 = vmatprep.subr.bf16.mxu0 %v7456
        %7667 = vmatpush1.bf16.msra.mxu0 %v7455
        %7668 = vmatprep.subr.bf16.mxu0 %v7458
        %7669 = vmatpush1.bf16.msra.mxu0 %v7457
        %7670 = vmatprep.subr.bf16.mxu0 %v7460
        %7671 = vmatpush1.bf16.msra.mxu0 %v7459
        %7672 = vmatprep.subr.bf16.mxu0 %v7462
        %7673 = vmatpush1.bf16.msra.mxu0 %v7461
        %7674 = vmatprep.subr.bf16.mxu0 %v7464
        %7675 = vmatpush1.bf16.msra.mxu0 %v7463
        %7676 = vmatprep.subr.bf16.mxu0 %v7466
        %7677 = vmatpush1.bf16.msra.mxu0 %v7465
        %7678 = vmatprep.subr.bf16.mxu0 %v7468
        %7679 = vmatpush1.bf16.msra.mxu0 %v7467
        %7680 = vmatprep.subr.bf16.mxu0 %v7470
        %7681 = vmatpush1.bf16.msra.mxu0 %v7469
        %7682 = vmatprep.subr.bf16.mxu0 %v7472
        %7683 = vmatpush1.bf16.msra.mxu0 %v7471
        %7684 = vmatprep.subr.bf16.mxu0 %v7474
        %7685 = vmatpush1.bf16.msra.mxu0 %v7473
        %7686 = vmatprep.subr.bf16.mxu0 %v7476
        %7687 = vmatpush1.bf16.msra.mxu0 %v7475
        %7688 = vmatprep.subr.bf16.mxu0 %v7478
        %7689 = vmatpush1.bf16.msra.mxu0 %v7477
        %7690 = vmatprep.subr.bf16.mxu0 %v7480
        %7691 = vmatpush1.bf16.msra.mxu0 %v7479
        %7692 = vmatprep.mubr.bf16.mxu0 %v6683
        %7693 = vmatmul.mubr.bf16.gmra.mrb[0].mxu0 %v6680
        %v7694 = vpop.f32.mrb[0].mxu0
        %v7695 = vadd.f32 %v7612, %v7694
        %v7696 = vpop.f32.mrb[0].mxu0
        %v7697 = vadd.f32 %v7614, %v7696
        %v7698 = vpop.f32.mrb[0].mxu0
        %v7699 = vadd.f32 %v7616, %v7698
        %v7700 = vpop.f32.mrb[0].mxu0
        %v7701 = vadd.f32 %v7618, %v7700
        %7702 = vmatprep.mubr.bf16.mxu0 %v6800
        %7703 = vmatmul.mubr.bf16.gmra.mrb[0].mxu0 %v6797
        %v7704 = vpop.f32.mrb[0].mxu0
        %v7705 = vadd.f32 %v7622, %v7704
        %v7706 = vpop.f32.mrb[0].mxu0
        %v7707 = vadd.f32 %v7624, %v7706
        %v7708 = vpop.f32.mrb[0].mxu0
        %v7709 = vadd.f32 %v7626, %v7708
        %v7710 = vpop.f32.mrb[0].mxu0
        %v7711 = vadd.f32 %v7628, %v7710
        %7712 = vmatprep.mubr.bf16.mxu0 %v6917
        %7713 = vmatmul.mubr.bf16.gmra.mrb[0].mxu0 %v6914
        %v7714 = vpop.f32.mrb[0].mxu0
        %v7715 = vadd.f32 %v7632, %v7714
        %v7716 = vpop.f32.mrb[0].mxu0
        %v7717 = vadd.f32 %v7634, %v7716
        %v7718 = vpop.f32.mrb[0].mxu0
        %v7719 = vadd.f32 %v7636, %v7718
        %v7720 = vpop.f32.mrb[0].mxu0
        %v7721 = vadd.f32 %v7638, %v7720
        %7722 = vmatprep.mubr.bf16.mxu0 %v7034
        %7723 = vmatmul.mubr.bf16.gmra.mrb[0].mxu0 %v7031
        %v7724 = vpop.f32.mrb[0].mxu0
        %v7725 = vadd.f32 %v7642, %v7724
        %v7726 = vpop.f32.mrb[0].mxu0
        %v7727 = vadd.f32 %v7644, %v7726
        %v7728 = vpop.f32.mrb[0].mxu0
        %v7729 = vadd.f32 %v7646, %v7728
        %v7730 = vpop.f32.mrb[0].mxu0
        %v7731 = vadd.f32 %v7648, %v7730
        %7732 = vmatprep.mubr.bf16.mxu0 %v7151
        %7733 = vmatmul.mubr.bf16.gmra.mrb[0].mxu0 %v7148
        %v7734 = vpop.f32.mrb[0].mxu0
        %v7735 = vadd.f32 %v7652, %v7734
        %v7736 = vpop.f32.mrb[0].mxu0
        %v7737 = vadd.f32 %v7654, %v7736
        %v7738 = vpop.f32.mrb[0].mxu0
        %v7739 = vadd.f32 %v7656, %v7738
        %v7740 = vpop.f32.mrb[0].mxu0
        %v7741 = vadd.f32 %v7658, %v7740
        %7742 = vdwg.mxu0
        %7743 = vmatprep.subr.bf16.mxu0 %v7482
        %7744 = vmatpush1.bf16.msra.mxu0 %v7481
        %7745 = vmatprep.subr.bf16.mxu0 %v7484
        %7746 = vmatpush1.bf16.msra.mxu0 %v7483
        %7747 = vmatprep.subr.bf16.mxu0 %v7486
        %7748 = vmatpush1.bf16.msra.mxu0 %v7485
        %7749 = vmatprep.subr.bf16.mxu0 %v7488
        %7750 = vmatpush1.bf16.msra.mxu0 %v7487
        %7751 = vmatprep.subr.bf16.mxu0 %v7490
        %7752 = vmatpush1.bf16.msra.mxu0 %v7489
        %7753 = vmatprep.subr.bf16.mxu0 %v7492
        %7754 = vmatpush1.bf16.msra.mxu0 %v7491
        %7755 = vmatprep.subr.bf16.mxu0 %v7494
        %7756 = vmatpush1.bf16.msra.mxu0 %v7493
        %7757 = vmatprep.subr.bf16.mxu0 %v7496
        %7758 = vmatpush1.bf16.msra.mxu0 %v7495
        %7759 = vmatprep.subr.bf16.mxu0 0
        %7760 = vmatpush1.bf16.msra.mxu0 0
        %7761 = vmatprep.subr.bf16.mxu0 0
        %7762 = vmatpush1.bf16.msra.mxu0 0
        %7763 = vmatprep.subr.bf16.mxu0 0
        %7764 = vmatpush1.bf16.msra.mxu0 0
        %7765 = vmatprep.subr.bf16.mxu0 0
        %7766 = vmatpush1.bf16.msra.mxu0 0
        %7767 = vmatprep.subr.bf16.mxu0 0
        %7768 = vmatpush1.bf16.msra.mxu0 0
        %7769 = vmatprep.subr.bf16.mxu0 0
        %7770 = vmatpush1.bf16.msra.mxu0 0
        %7771 = vmatprep.subr.bf16.mxu0 0
        %7772 = vmatpush1.bf16.msra.mxu0 0
        %7773 = vmatprep.subr.bf16.mxu0 0
        %7774 = vmatpush1.bf16.msra.mxu0 0
        %7775 = vmatprep.mubr.bf16.mxu0 0
        %7776 = vmatmul.mubr.bf16.gmra.mrb[0].mxu0 %v6681
        %v7777 = vpop.f32.mrb[0].mxu0
        %v7778 = vadd.f32 %v7695, %v7777
        %v7779 = vpop.f32.mrb[0].mxu0
        %v7780 = vadd.f32 %v7697, %v7779
        %v7781 = vpop.f32.mrb[0].mxu0
        %v7782 = vadd.f32 %v7699, %v7781
        %v7783 = vpop.f32.mrb[0].mxu0
        %v7784 = vadd.f32 %v7701, %v7783
        %7785 = vmatprep.mubr.bf16.mxu0 0
        %7786 = vmatmul.mubr.bf16.gmra.mrb[0].mxu0 %v6798
        %v7787 = vpop.f32.mrb[0].mxu0
        %v7788 = vadd.f32 %v7705, %v7787
        %v7789 = vpop.f32.mrb[0].mxu0
        %v7790 = vadd.f32 %v7707, %v7789
        %v7791 = vpop.f32.mrb[0].mxu0
        %v7792 = vadd.f32 %v7709, %v7791
        %v7793 = vpop.f32.mrb[0].mxu0
        %v7794 = vadd.f32 %v7711, %v7793
        %7795 = vmatprep.mubr.bf16.mxu0 0
        %7796 = vmatmul.mubr.bf16.gmra.mrb[0].mxu0 %v6915
        %v7797 = vpop.f32.mrb[0].mxu0
        %v7798 = vadd.f32 %v7715, %v7797
        %v7799 = vpop.f32.mrb[0].mxu0
        %v7800 = vadd.f32 %v7717, %v7799
        %v7801 = vpop.f32.mrb[0].mxu0
        %v7802 = vadd.f32 %v7719, %v7801
        %v7803 = vpop.f32.mrb[0].mxu0
        %v7804 = vadd.f32 %v7721, %v7803
        %7805 = vmatprep.mubr.bf16.mxu0 0
        %7806 = vmatmul.mubr.bf16.gmra.mrb[0].mxu0 %v7032
        %v7807 = vpop.f32.mrb[0].mxu0
        %v7808 = vadd.f32 %v7725, %v7807
        %v7809 = vpop.f32.mrb[0].mxu0
        %v7810 = vadd.f32 %v7727, %v7809
        %v7811 = vpop.f32.mrb[0].mxu0
        %v7812 = vadd.f32 %v7729, %v7811
        %v7813 = vpop.f32.mrb[0].mxu0
        %v7814 = vadd.f32 %v7731, %v7813
        %7815 = vmatprep.mubr.bf16.mxu0 0
        %7816 = vmatmul.mubr.bf16.gmra.mrb[0].mxu0 %v7149
        %v7817 = vpop.f32.mrb[0].mxu0
        %v7818 = vadd.f32 %v7735, %v7817
        %v7819 = vpop.f32.mrb[0].mxu0
        %v7820 = vadd.f32 %v7737, %v7819
        %v7821 = vpop.f32.mrb[0].mxu0
        %v7822 = vadd.f32 %v7739, %v7821
        %v7823 = vpop.f32.mrb[0].mxu0
        %v7824 = vadd.f32 %v7741, %v7823
        %7825 = vdwg.mxu0
        %v7826 = vmax.f32 %v7778, 0.0
        %v7827 = vmax.f32 %v7780, 0.0
        %v7828 = vmax.f32 %v7782, 0.0
        %v7829 = vmax.f32 %v7784, 0.0
        %v7830 = vmax.f32 %v7788, 0.0
        %v7831 = vmax.f32 %v7790, 0.0
        %v7832 = vmax.f32 %v7792, 0.0
        %v7833 = vmax.f32 %v7794, 0.0
        %v7834 = vmax.f32 %v7798, 0.0
        %v7835 = vmax.f32 %v7800, 0.0
        %v7836 = vmax.f32 %v7802, 0.0
        %v7837 = vmax.f32 %v7804, 0.0
        %v7838 = vmax.f32 %v7808, 0.0
        %v7839 = vmax.f32 %v7810, 0.0
        %v7840 = vmax.f32 %v7812, 0.0
        %v7841 = vmax.f32 %v7814, 0.0
        %v7842 = vmax.f32 %v7818, 0.0
        %v7843 = vmax.f32 %v7820, 0.0
        %v7844 = vmax.f32 %v7822, 0.0
        %v7845 = vmax.f32 %v7824, 0.0
        %v7846 = vpack.c.bf16 %v7828, %v7826
        %v7847 = vpack.c.bf16 %v7829, %v7827
        %v7848 = vpack.c.bf16 %v7832, %v7830
        %v7849 = vpack.c.bf16 %v7833, %v7831
        %v7850 = vpack.c.bf16 %v7836, %v7834
        %v7851 = vpack.c.bf16 %v7837, %v7835
        %v7852 = vpack.c.bf16 %v7840, %v7838
        %v7853 = vpack.c.bf16 %v7841, %v7839
        %v7854 = vpack.c.bf16 %v7844, %v7842
        %v7855 = vpack.c.bf16 %v7845, %v7843
        %v7856 = vld [vmem:[%s6] sm:$0xf]
        %v7857 = vld [vmem:[%s6 + $0x4] sm:$0xf]
        %v7858 = vld [vmem:[%s6 + $0x8] sm:$0xf]
        %v7859 = vld [vmem:[%s6 + $0xc] sm:$0xf]
        %v7860 = vld [vmem:[%s6 + $0x10] sm:$0xf]
        %v7861 = vld [vmem:[%s6 + $0x14] sm:$0xf]
        %v7862 = vld [vmem:[%s6 + $0x18] sm:$0xf]
        %v7863 = vld [vmem:[%s6 + $0x1c] sm:$0xf]
        %v7864 = vld [vmem:[%s6 + $0x20] sm:$0xf]
        %v7865 = vld [vmem:[%s6 + $0x24] sm:$0xf]
        %v7866 = vld [vmem:[%s6 + $0x28] sm:$0xf]
        %v7867 = vld [vmem:[%s6 + $0x2c] sm:$0xf]
        %v7868 = vld [vmem:[%s6 + $0x30] sm:$0xf]
        %v7869 = vld [vmem:[%s6 + $0x34] sm:$0xf]
        %v7870 = vld [vmem:[%s6 + $0x38] sm:$0xf]
        %v7871 = vld [vmem:[%s6 + $0x3c] sm:$0xf]
        %v7872 = vld [vmem:[%s6 + $0x40] sm:$0xf]
        %v7873 = vld [vmem:[%s6 + $0x44] sm:$0xf]
        %v7874 = vld [vmem:[%s6 + $0x48] sm:$0xf]
        %v7875 = vld [vmem:[%s6 + $0x4c] sm:$0xf]
        %v7896 = vunpack.c.l.b16 %v7856
        %v7897 = vunpack.c.l.b16 %v7857
        %v7898 = vunpack.c.l.b16 %v7858
        %v7899 = vunpack.c.l.b16 %v7859
        %v7900 = vunpack.c.l.b16 %v7860
        %v7901 = vunpack.c.l.b16 %v7861
        %v7902 = vunpack.c.l.b16 %v7862
        %v7903 = vunpack.c.l.b16 %v7863
        %v7904 = vunpack.c.l.b16 %v7864
        %v7905 = vunpack.c.l.b16 %v7865
        %v7906 = vunpack.c.l.b16 %v7866
        %v7907 = vunpack.c.l.b16 %v7867
        %v7908 = vunpack.c.l.b16 %v7868
        %v7909 = vunpack.c.l.b16 %v7869
        %v7910 = vunpack.c.l.b16 %v7870
        %v7911 = vunpack.c.l.b16 %v7871
        %v7912 = vunpack.c.l.b16 %v7872
        %v7913 = vunpack.c.l.b16 %v7873
        %v7914 = vunpack.c.l.b16 %v7874
        %v7915 = vunpack.c.l.b16 %v7875
        %v7916 = vpack.c.b16 %v7897, %v7896
        %v7917 = vpack.c.b16 %v7899, %v7898
        %v7918 = vpack.c.b16 %v7901, %v7900
        %v7919 = vpack.c.b16 %v7903, %v7902
        %v7920 = vpack.c.b16 %v7905, %v7904
        %v7921 = vpack.c.b16 %v7907, %v7906
        %v7922 = vpack.c.b16 %v7909, %v7908
        %v7923 = vpack.c.b16 %v7911, %v7910
        %v7924 = vpack.c.b16 %v7913, %v7912
        %v7925 = vpack.c.b16 %v7915, %v7914
        %vm7936 = vcmask 261120
        %v7938 = vsel %vm7936, %v7847, 0
        %v7941 = vsel %vm7936, %v7849, 0
        %v7944 = vsel %vm7936, %v7851, 0
        %v7947 = vsel %vm7936, %v7853, 0
        %v7950 = vsel %vm7936, %v7855, 0
        %7952 = vmatprep.subr.bf16.mxu0 0
        %7953 = vmatpush1.bf16.msra.mxu0 %v7916
        %7954 = vmatprep.subr.bf16.mxu0 0
        %7955 = vmatpush1.bf16.msra.mxu0 %v7917
        %7956 = vmatprep.subr.bf16.mxu0 0
        %7957 = vmatpush1.bf16.msra.mxu0 %v7918
        %7958 = vmatprep.subr.bf16.mxu0 0
        %7959 = vmatpush1.bf16.msra.mxu0 %v7919
        %7960 = vmatprep.subr.bf16.mxu0 0
        %7961 = vmatpush1.bf16.msra.mxu0 %v7920
        %7962 = vmatprep.subr.bf16.mxu0 0
        %7963 = vmatpush1.bf16.msra.mxu0 %v7921
        %7964 = vmatprep.subr.bf16.mxu0 0
        %7965 = vmatpush1.bf16.msra.mxu0 %v7922
        %7966 = vmatprep.subr.bf16.mxu0 0
        %7967 = vmatpush1.bf16.msra.mxu0 %v7923
        %7968 = vmatprep.subr.bf16.mxu0 0
        %7969 = vmatpush1.bf16.msra.mxu0 %v7924
        %7970 = vmatprep.subr.bf16.mxu0 0
        %7971 = vmatpush1.bf16.msra.mxu0 %v7925
        %7972 = vmatprep.subr.bf16.mxu0 0
        %7973 = vmatpush1.bf16.msra.mxu0 0
        %7974 = vmatprep.subr.bf16.mxu0 0
        %7975 = vmatpush1.bf16.msra.mxu0 0
        %7976 = vmatprep.subr.bf16.mxu0 0
        %7977 = vmatpush1.bf16.msra.mxu0 0
        %7978 = vmatprep.subr.bf16.mxu0 0
        %7979 = vmatpush1.bf16.msra.mxu0 0
        %7980 = vmatprep.subr.bf16.mxu0 0
        %7981 = vmatpush1.bf16.msra.mxu0 0
        %7982 = vmatprep.subr.bf16.mxu0 0
        %7983 = vmatpush1.bf16.msra.mxu0 0
        %7984 = vmatprep.mubr.bf16.mxu0 %v7938
        %7985 = vmatmul.mubr.bf16.gmra.mrb[0].mxu0 %v7846
        %v7986 = vpop.f32.mrb[0].mxu0
        %v7987 = vadd.f32 0.0, %v7986
        %v7988 = vpop.f32.mrb[0].mxu0
        %v7989 = vpop.f32.mrb[0].mxu0
        %v7990 = vadd.f32 0.0, %v7989
        %v7991 = vpop.f32.mrb[0].mxu0
        %7992 = vmatprep.mubr.bf16.mxu0 %v7941
        %7993 = vmatmul.mubr.bf16.gmra.mrb[0].mxu0 %v7848
        %v7994 = vpop.f32.mrb[0].mxu0
        %v7995 = vadd.f32 0.0, %v7994
        %v7996 = vpop.f32.mrb[0].mxu0
        %v7997 = vpop.f32.mrb[0].mxu0
        %v7998 = vadd.f32 0.0, %v7997
        %v7999 = vpop.f32.mrb[0].mxu0
        %8000 = vmatprep.mubr.bf16.mxu0 %v7944
        %8001 = vmatmul.mubr.bf16.gmra.mrb[0].mxu0 %v7850
        %v8002 = vpop.f32.mrb[0].mxu0
        %v8003 = vadd.f32 0.0, %v8002
        %v8004 = vpop.f32.mrb[0].mxu0
        %v8005 = vpop.f32.mrb[0].mxu0
        %v8006 = vadd.f32 0.0, %v8005
        %v8007 = vpop.f32.mrb[0].mxu0
        %8008 = vmatprep.mubr.bf16.mxu0 %v7947
        %8009 = vmatmul.mubr.bf16.gmra.mrb[0].mxu0 %v7852
        %v8010 = vpop.f32.mrb[0].mxu0
        %v8011 = vadd.f32 0.0, %v8010
        %v8012 = vpop.f32.mrb[0].mxu0
        %v8013 = vpop.f32.mrb[0].mxu0
        %v8014 = vadd.f32 0.0, %v8013
        %v8015 = vpop.f32.mrb[0].mxu0
        %8016 = vmatprep.mubr.bf16.mxu0 %v7950
        %8017 = vmatmul.mubr.bf16.gmra.mrb[0].mxu0 %v7854
        %v8018 = vpop.f32.mrb[0].mxu0
        %v8019 = vadd.f32 0.0, %v8018
        %v8020 = vpop.f32.mrb[0].mxu0
        %v8021 = vpop.f32.mrb[0].mxu0
        %v8022 = vadd.f32 0.0, %v8021
        %v8023 = vpop.f32.mrb[0].mxu0
        %8024 = vdwg.mxu0
        %s8025 = scalar_lea.vmem %s6, 80
        %v8026 = vld [vmem:[%s8025] sm:$0xf]
        %v8027 = vld [vmem:[%s8025 + $0x4] sm:$0xf]
        %v8028 = vld [vmem:[%s8025 + $0x8] sm:$0xf]
        %v8029 = vld [vmem:[%s8025 + $0xc] sm:$0xf]
        %v8030 = vld [vmem:[%s8025 + $0x10] sm:$0xf]
        %v8031 = vld [vmem:[%s8025 + $0x14] sm:$0xf]
        %v8032 = vld [vmem:[%s8025 + $0x18] sm:$0xf]
        %v8033 = vld [vmem:[%s8025 + $0x1c] sm:$0xf]
        %v8034 = vld [vmem:[%s8025 + $0x20] sm:$0xf]
        %v8035 = vld [vmem:[%s8025 + $0x24] sm:$0xf]
        %v8036 = vld [vmem:[%s8025 + $0x28] sm:$0xf]
        %v8037 = vld [vmem:[%s8025 + $0x2c] sm:$0xf]
        %v8038 = vld [vmem:[%s8025 + $0x30] sm:$0xf]
        %v8039 = vld [vmem:[%s8025 + $0x34] sm:$0xf]
        %v8040 = vld [vmem:[%s8025 + $0x38] sm:$0xf]
        %v8041 = vld [vmem:[%s8025 + $0x3c] sm:$0xf]
        %v8042 = vld [vmem:[%s8025 + $0x40] sm:$0xf]
        %v8043 = vld [vmem:[%s8025 + $0x44] sm:$0xf]
        %v8044 = vld [vmem:[%s8025 + $0x48] sm:$0xf]
        %v8045 = vld [vmem:[%s8025 + $0x4c] sm:$0xf]
        %v8066 = vunpack.c.l.b16 %v8026
        %v8067 = vunpack.c.l.b16 %v8027
        %v8068 = vunpack.c.l.b16 %v8028
        %v8069 = vunpack.c.l.b16 %v8029
        %v8070 = vunpack.c.l.b16 %v8030
        %v8071 = vunpack.c.l.b16 %v8031
        %v8072 = vunpack.c.l.b16 %v8032
        %v8073 = vunpack.c.l.b16 %v8033
        %v8074 = vunpack.c.l.b16 %v8034
        %v8075 = vunpack.c.l.b16 %v8035
        %v8076 = vunpack.c.l.b16 %v8036
        %v8077 = vunpack.c.l.b16 %v8037
        %v8078 = vunpack.c.l.b16 %v8038
        %v8079 = vunpack.c.l.b16 %v8039
        %v8080 = vunpack.c.l.b16 %v8040
        %v8081 = vunpack.c.l.b16 %v8041
        %v8082 = vunpack.c.l.b16 %v8042
        %v8083 = vunpack.c.l.b16 %v8043
        %v8084 = vunpack.c.l.b16 %v8044
        %v8085 = vunpack.c.l.b16 %v8045
        %v8086 = vpack.c.b16 %v8067, %v8066
        %v8087 = vpack.c.b16 %v8069, %v8068
        %v8088 = vpack.c.b16 %v8071, %v8070
        %v8089 = vpack.c.b16 %v8073, %v8072
        %v8090 = vpack.c.b16 %v8075, %v8074
        %v8091 = vpack.c.b16 %v8077, %v8076
        %v8092 = vpack.c.b16 %v8079, %v8078
        %v8093 = vpack.c.b16 %v8081, %v8080
        %v8094 = vpack.c.b16 %v8083, %v8082
        %v8095 = vpack.c.b16 %v8085, %v8084
        %8106 = vmatprep.subr.bf16.mxu0 0
        %8107 = vmatpush1.bf16.msra.mxu0 %v8086
        %8108 = vmatprep.subr.bf16.mxu0 0
        %8109 = vmatpush1.bf16.msra.mxu0 %v8087
        %8110 = vmatprep.subr.bf16.mxu0 0
        %8111 = vmatpush1.bf16.msra.mxu0 %v8088
        %8112 = vmatprep.subr.bf16.mxu0 0
        %8113 = vmatpush1.bf16.msra.mxu0 %v8089
        %8114 = vmatprep.subr.bf16.mxu0 0
        %8115 = vmatpush1.bf16.msra.mxu0 %v8090
        %8116 = vmatprep.subr.bf16.mxu0 0
        %8117 = vmatpush1.bf16.msra.mxu0 %v8091
        %8118 = vmatprep.subr.bf16.mxu0 0
        %8119 = vmatpush1.bf16.msra.mxu0 %v8092
        %8120 = vmatprep.subr.bf16.mxu0 0
        %8121 = vmatpush1.bf16.msra.mxu0 %v8093
        %8122 = vmatprep.subr.bf16.mxu0 0
        %8123 = vmatpush1.bf16.msra.mxu0 %v8094
        %8124 = vmatprep.subr.bf16.mxu0 0
        %8125 = vmatpush1.bf16.msra.mxu0 %v8095
        %8126 = vmatprep.subr.bf16.mxu0 0
        %8127 = vmatpush1.bf16.msra.mxu0 0
        %8128 = vmatprep.subr.bf16.mxu0 0
        %8129 = vmatpush1.bf16.msra.mxu0 0
        %8130 = vmatprep.subr.bf16.mxu0 0
        %8131 = vmatpush1.bf16.msra.mxu0 0
        %8132 = vmatprep.subr.bf16.mxu0 0
        %8133 = vmatpush1.bf16.msra.mxu0 0
        %8134 = vmatprep.subr.bf16.mxu0 0
        %8135 = vmatpush1.bf16.msra.mxu0 0
        %8136 = vmatprep.subr.bf16.mxu0 0
        %8137 = vmatpush1.bf16.msra.mxu0 0
        %8138 = vmatprep.mubr.bf16.mxu0 %v7938
        %8139 = vmatmul.mubr.bf16.gmra.mrb[0].mxu0 %v7846
        %v8140 = vpop.f32.mrb[0].mxu0
        %v8141 = vadd.f32 0.0, %v8140
        %v8142 = vpop.f32.mrb[0].mxu0
        %v8143 = vpop.f32.mrb[0].mxu0
        %v8144 = vadd.f32 0.0, %v8143
        %v8145 = vpop.f32.mrb[0].mxu0
        %8146 = vmatprep.mubr.bf16.mxu0 %v7941
        %8147 = vmatmul.mubr.bf16.gmra.mrb[0].mxu0 %v7848
        %v8148 = vpop.f32.mrb[0].mxu0
        %v8149 = vadd.f32 0.0, %v8148
        %v8150 = vpop.f32.mrb[0].mxu0
        %v8151 = vpop.f32.mrb[0].mxu0
        %v8152 = vadd.f32 0.0, %v8151
        %v8153 = vpop.f32.mrb[0].mxu0
        %8154 = vmatprep.mubr.bf16.mxu0 %v7944
        %8155 = vmatmul.mubr.bf16.gmra.mrb[0].mxu0 %v7850
        %v8156 = vpop.f32.mrb[0].mxu0
        %v8157 = vadd.f32 0.0, %v8156
        %v8158 = vpop.f32.mrb[0].mxu0
        %v8159 = vpop.f32.mrb[0].mxu0
        %v8160 = vadd.f32 0.0, %v8159
        %v8161 = vpop.f32.mrb[0].mxu0
        %8162 = vmatprep.mubr.bf16.mxu0 %v7947
        %8163 = vmatmul.mubr.bf16.gmra.mrb[0].mxu0 %v7852
        %v8164 = vpop.f32.mrb[0].mxu0
        %v8165 = vadd.f32 0.0, %v8164
        %v8166 = vpop.f32.mrb[0].mxu0
        %v8167 = vpop.f32.mrb[0].mxu0
        %v8168 = vadd.f32 0.0, %v8167
        %v8169 = vpop.f32.mrb[0].mxu0
        %8170 = vmatprep.mubr.bf16.mxu0 %v7950
        %8171 = vmatmul.mubr.bf16.gmra.mrb[0].mxu0 %v7854
        %v8172 = vpop.f32.mrb[0].mxu0
        %v8173 = vadd.f32 0.0, %v8172
        %v8174 = vpop.f32.mrb[0].mxu0
        %v8175 = vpop.f32.mrb[0].mxu0
        %v8176 = vadd.f32 0.0, %v8175
        %v8177 = vpop.f32.mrb[0].mxu0
        %8178 = vdwg.mxu0
        %v8179 = vmax.f32 %v7987, %v8141
        %v8180 = vmax.f32 %v7990, %v8144
        %v8181 = vmax.f32 %v7995, %v8149
        %v8182 = vmax.f32 %v7998, %v8152
        %v8183 = vmax.f32 %v8003, %v8157
        %v8184 = vmax.f32 %v8006, %v8160
        %v8185 = vmax.f32 %v8011, %v8165
        %v8186 = vmax.f32 %v8014, %v8168
        %v8187 = vmax.f32 %v8019, %v8173
        %v8188 = vmax.f32 %v8022, %v8176
        %8189 = vst [vmem:[#allocation2] sm:$0xff] %v8179
        %8190 = vst [vmem:[#allocation2 + $0x8] sm:$0xff] %v8180
        %8191 = vst [vmem:[#allocation2 + $0x10] sm:$0xff] %v8181
        %8192 = vst [vmem:[#allocation2 + $0x18] sm:$0xff] %v8182
        %8193 = vst [vmem:[#allocation2 + $0x20] sm:$0xff] %v8183
        %8194 = vst [vmem:[#allocation2 + $0x28] sm:$0xff] %v8184
        %8195 = vst [vmem:[#allocation2 + $0x30] sm:$0xff] %v8185
        %8196 = vst [vmem:[#allocation2 + $0x38] sm:$0xff] %v8186
        %8197 = vst [vmem:[#allocation2 + $0x40] sm:$0xff] %v8187
        %8198 = vst [vmem:[#allocation2 + $0x48] sm:$0xff] %v8188
        %v8199 = vld [vmem:[#allocation2] ss:$2 sm:$0xff]
        %s8200 = scalar_lea.vmem [#allocation2], 16
        %v8201 = vld [vmem:[%s8200] ss:$2 sm:$0xff]
        %s8202 = scalar_lea.vmem [#allocation2], 32
        %v8203 = vld [vmem:[%s8202] ss:$2 sm:$0xff]
        %s8204 = scalar_lea.vmem [#allocation2], 48
        %v8205 = vld [vmem:[%s8204] ss:$2 sm:$0xff]
        %s8206 = scalar_lea.vmem [#allocation2], 64
        %v8207 = vld [vmem:[%s8206] ss:$2 sm:$0xff]
        %v8208 = vld [vmem:[%s4116] ss:$2 sm:$0xff]
        %v8209 = vld [vmem:[%s4118] ss:$2 sm:$0xff]
        %v8210 = vld [vmem:[%s4120] ss:$2 sm:$0xff]
        %v8211 = vld [vmem:[%s4122] ss:$2 sm:$0xff]
        %v8212 = vld [vmem:[%s4124] ss:$2 sm:$0xff]
        %v8213 = vmax.f32 %v8199, %v8208
        %v8214 = vmax.f32 %v8201, %v8209
        %v8215 = vmax.f32 %v8203, %v8210
        %v8216 = vmax.f32 %v8205, %v8211
        %v8217 = vmax.f32 %v8207, %v8212
        %v8218 = vpack.c.bf16 %v8214, %v8213
        %v8219 = vpack.c.bf16 %v8216, %v8215
        %v8220 = vpack.c.bf16 %v8217, %v8217
        %v8224 = vcombine.high %v8218, %v8218
        %v8226 = vunpack.c.l.s4 1966171168
        %v8227 = vunpack.c.0.s8 %v8226
        %v8228 = vlaneseq
        %v8229 = vshrl.u32 %v8228, 7
        %v8230 = vsub.s32 %v8227, %v8229
        %v8231 = vrot.slane %v8218, %v8230
        %v8233 = vunpack.c.l.s4 1966171168
        %v8234 = vunpack.c.0.s8 %v8233
        %v8235 = vlaneseq
        %v8236 = vshrl.u32 %v8235, 7
        %v8237 = vsub.s32 %v8234, %v8236
        %v8238 = vrot.slane %v8224, %v8237
        %v8239 = vcombine.high %v8231, %v8231
        %v8240 = vcombine.high %v8238, %v8238
        %v8242 = vunpack.c.l.s4 1966171168
        %v8243 = vunpack.c.0.s8 %v8242
        %v8244 = vlaneseq
        %v8245 = vshrl.u32 %v8244, 7
        %v8246 = vsub.s32 %v8243, %v8245
        %v8247 = vrot.slane %v8231, %v8246
        %v8249 = vunpack.c.l.s4 1966171168
        %v8250 = vunpack.c.0.s8 %v8249
        %v8251 = vlaneseq
        %v8252 = vshrl.u32 %v8251, 7
        %v8253 = vsub.s32 %v8250, %v8252
        %v8254 = vrot.slane %v8238, %v8253
        %v8256 = vunpack.c.l.s4 1966171168
        %v8257 = vunpack.c.0.s8 %v8256
        %v8258 = vlaneseq
        %v8259 = vshrl.u32 %v8258, 7
        %v8260 = vsub.s32 %v8257, %v8259
        %v8261 = vrot.slane %v8239, %v8260
        %v8263 = vunpack.c.l.s4 1966171168
        %v8264 = vunpack.c.0.s8 %v8263
        %v8265 = vlaneseq
        %v8266 = vshrl.u32 %v8265, 7
        %v8267 = vsub.s32 %v8264, %v8266
        %v8268 = vrot.slane %v8240, %v8267
        %v8269 = vcombine.high %v8247, %v8247
        %v8270 = vcombine.high %v8254, %v8254
        %v8271 = vcombine.high %v8261, %v8261
        %v8272 = vcombine.high %v8268, %v8268
        %v8273 = vcombine.high %v8219, %v8219
        %v8275 = vunpack.c.l.s4 1966171168
        %v8276 = vunpack.c.0.s8 %v8275
        %v8277 = vlaneseq
        %v8278 = vshrl.u32 %v8277, 7
        %v8279 = vsub.s32 %v8276, %v8278
        %v8280 = vrot.slane %v8219, %v8279
        %v8282 = vunpack.c.l.s4 1966171168
        %v8283 = vunpack.c.0.s8 %v8282
        %v8284 = vlaneseq
        %v8285 = vshrl.u32 %v8284, 7
        %v8286 = vsub.s32 %v8283, %v8285
        %v8287 = vrot.slane %v8273, %v8286
        %v8288 = vcombine.high %v8280, %v8280
        %v8289 = vcombine.high %v8287, %v8287
        %v8291 = vunpack.c.l.s4 1966171168
        %v8292 = vunpack.c.0.s8 %v8291
        %v8293 = vlaneseq
        %v8294 = vshrl.u32 %v8293, 7
        %v8295 = vsub.s32 %v8292, %v8294
        %v8296 = vrot.slane %v8280, %v8295
        %v8298 = vunpack.c.l.s4 1966171168
        %v8299 = vunpack.c.0.s8 %v8298
        %v8300 = vlaneseq
        %v8301 = vshrl.u32 %v8300, 7
        %v8302 = vsub.s32 %v8299, %v8301
        %v8303 = vrot.slane %v8287, %v8302
        %v8305 = vunpack.c.l.s4 1966171168
        %v8306 = vunpack.c.0.s8 %v8305
        %v8307 = vlaneseq
        %v8308 = vshrl.u32 %v8307, 7
        %v8309 = vsub.s32 %v8306, %v8308
        %v8310 = vrot.slane %v8288, %v8309
        %v8312 = vunpack.c.l.s4 1966171168
        %v8313 = vunpack.c.0.s8 %v8312
        %v8314 = vlaneseq
        %v8315 = vshrl.u32 %v8314, 7
        %v8316 = vsub.s32 %v8313, %v8315
        %v8317 = vrot.slane %v8289, %v8316
        %v8318 = vcombine.high %v8296, %v8296
        %v8319 = vcombine.high %v8303, %v8303
        %v8320 = vcombine.high %v8310, %v8310
        %v8321 = vcombine.high %v8317, %v8317
        %v8323 = vunpack.c.l.s4 1966171168
        %v8324 = vunpack.c.0.s8 %v8323
        %v8325 = vlaneseq
        %v8326 = vshrl.u32 %v8325, 7
        %v8327 = vsub.s32 %v8324, %v8326
        %v8328 = vrot.slane %v8220, %v8327
        %v8329 = vcombine.high %v8328, %v8328
        %v8331 = vunpack.c.l.s4 1966171168
        %v8332 = vunpack.c.0.s8 %v8331
        %v8333 = vlaneseq
        %v8334 = vshrl.u32 %v8333, 7
        %v8335 = vsub.s32 %v8332, %v8334
        %v8336 = vrot.slane %v8328, %v8335
        %v8338 = vunpack.c.l.s4 1966171168
        %v8339 = vunpack.c.0.s8 %v8338
        %v8340 = vlaneseq
        %v8341 = vshrl.u32 %v8340, 7
        %v8342 = vsub.s32 %v8339, %v8341
        %v8343 = vrot.slane %v8329, %v8342
        %v8344 = vcombine.high %v8336, %v8336
        %v8345 = vcombine.high %v8343, %v8343
        %v8346 = vunpack.i.l.s16 %v8247
        %v8347 = vunpack.i.h.s16 %v8247
        %v8348 = vunpack.i.l.s16 %v8261
        %v8349 = vunpack.i.h.s16 %v8261
        %v8350 = vunpack.i.l.s16 %v8269
        %v8351 = vunpack.i.h.s16 %v8269
        %v8352 = vunpack.i.l.s16 %v8271
        %v8353 = vunpack.i.h.s16 %v8271
        %v8354 = vunpack.i.l.s16 %v8254
        %v8355 = vunpack.i.h.s16 %v8254
        %v8356 = vunpack.i.l.s16 %v8268
        %v8357 = vunpack.i.h.s16 %v8268
        %v8358 = vunpack.i.l.s16 %v8270
        %v8359 = vunpack.i.h.s16 %v8270
        %v8360 = vunpack.i.l.s16 %v8272
        %v8361 = vunpack.i.h.s16 %v8272
        %v8362 = vunpack.i.l.s16 %v8296
        %v8363 = vunpack.i.h.s16 %v8296
        %v8364 = vunpack.i.l.s16 %v8310
        %v8365 = vunpack.i.h.s16 %v8310
        %v8366 = vunpack.i.l.s16 %v8318
        %v8367 = vunpack.i.h.s16 %v8318
        %v8368 = vunpack.i.l.s16 %v8320
        %v8369 = vunpack.i.h.s16 %v8320
        %v8370 = vunpack.i.l.s16 %v8303
        %v8371 = vunpack.i.h.s16 %v8303
        %v8372 = vunpack.i.l.s16 %v8317
        %v8373 = vunpack.i.h.s16 %v8317
        %v8374 = vunpack.i.l.s16 %v8319
        %v8375 = vunpack.i.h.s16 %v8319
        %v8376 = vunpack.i.l.s16 %v8321
        %v8377 = vunpack.i.h.s16 %v8321
        %v8378 = vunpack.i.l.s16 %v8336
        %v8379 = vunpack.i.h.s16 %v8336
        %v8380 = vunpack.i.l.s16 %v8343
        %v8381 = vunpack.i.h.s16 %v8343
        %v8382 = vunpack.i.l.s16 %v8344
        %v8383 = vunpack.i.h.s16 %v8344
        %v8384 = vunpack.i.l.s16 %v8345
        %v8385 = vunpack.i.h.s16 %v8345
        %v8386 = vld [vmem:[%s7] sm:$0xf]
        %v8387 = vld [vmem:[%s7 + $0x4] sm:$0xf]
        %v8388 = vld [vmem:[%s7 + $0x8] sm:$0xf]
        %v8389 = vld [vmem:[%s7 + $0xc] sm:$0xf]
        %v8390 = vld [vmem:[%s7 + $0x10] sm:$0xf]
        %v8391 = vld [vmem:[%s7 + $0x14] sm:$0xf]
        %v8392 = vld [vmem:[%s7 + $0x18] sm:$0xf]
        %v8393 = vld [vmem:[%s7 + $0x1c] sm:$0xf]
        %v8394 = vld [vmem:[%s7 + $0x20] sm:$0xf]
        %v8395 = vld [vmem:[%s7 + $0x24] sm:$0xf]
        %v8396 = vld [vmem:[%s7 + $0x28] sm:$0xf]
        %v8397 = vld [vmem:[%s7 + $0x2c] sm:$0xf]
        %v8398 = vld [vmem:[%s7 + $0x30] sm:$0xf]
        %v8399 = vld [vmem:[%s7 + $0x34] sm:$0xf]
        %v8400 = vld [vmem:[%s7 + $0x38] sm:$0xf]
        %v8401 = vld [vmem:[%s7 + $0x3c] sm:$0xf]
        %s8402 = scalar_lea.vmem %s7, 64
        %v8403 = vld [vmem:[%s8402] sm:$0xf]
        %v8404 = vld [vmem:[%s8402 + $0x4] sm:$0xf]
        %v8405 = vld [vmem:[%s8402 + $0x8] sm:$0xf]
        %v8406 = vld [vmem:[%s8402 + $0xc] sm:$0xf]
        %v8407 = vld [vmem:[%s8402 + $0x10] sm:$0xf]
        %v8408 = vld [vmem:[%s8402 + $0x14] sm:$0xf]
        %v8409 = vld [vmem:[%s8402 + $0x18] sm:$0xf]
        %v8410 = vld [vmem:[%s8402 + $0x1c] sm:$0xf]
        %v8411 = vld [vmem:[%s8402 + $0x20] sm:$0xf]
        %v8412 = vld [vmem:[%s8402 + $0x24] sm:$0xf]
        %v8413 = vld [vmem:[%s8402 + $0x28] sm:$0xf]
        %v8414 = vld [vmem:[%s8402 + $0x2c] sm:$0xf]
        %v8415 = vld [vmem:[%s8402 + $0x30] sm:$0xf]
        %v8416 = vld [vmem:[%s8402 + $0x34] sm:$0xf]
        %v8417 = vld [vmem:[%s8402 + $0x38] sm:$0xf]
        %v8418 = vld [vmem:[%s8402 + $0x3c] sm:$0xf]
        %v8419 = vpack.i.b16 %v8352, %v8347
        %v8420 = vpack.i.b16 %v8362, %v8357
        %v8421 = vpack.i.b16 %v8372, %v8367
        %v8422 = vpack.i.b16 %v8382, %v8377
        %v8423 = vcombine.low %v8419, %v8420
        %v8424 = vcombine.low %v8421, %v8422
        %v8426 = vunpack.c.l.s4 1966171168
        %v8427 = vunpack.c.0.s8 %v8426
        %v8428 = vlaneseq
        %v8429 = vshrl.u32 %v8428, 7
        %v8430 = vsub.s32 %v8427, %v8429
        %v8431 = vrot.slane %v8423, %v8430
        %v8433 = vunpack.c.l.s4 1966171168
        %v8434 = vunpack.c.0.s8 %v8433
        %v8435 = vlaneseq
        %v8436 = vshrl.u32 %v8435, 7
        %v8437 = vsub.s32 %v8434, %v8436
        %v8438 = vrot.slane %v8424, %v8437
        %v8439 = vcombine.low %v8431, %v8438
        %v8441 = vunpack.c.l.s4 1966171168
        %v8442 = vunpack.c.0.s8 %v8441
        %v8443 = vlaneseq
        %v8444 = vshrl.u32 %v8443, 7
        %v8445 = vsub.s32 %v8442, %v8444
        %v8446 = vrot.slane %v8439, %v8445
        %v8464 = vunpack.c.l.b16 %v8403
        %v8465 = vunpack.c.l.b16 %v8404
        %v8466 = vunpack.c.l.b16 %v8405
        %v8467 = vunpack.c.l.b16 %v8406
        %v8468 = vunpack.c.l.b16 %v8407
        %v8469 = vunpack.c.l.b16 %v8408
        %v8470 = vunpack.c.l.b16 %v8409
        %v8471 = vunpack.c.l.b16 %v8410
        %v8472 = vunpack.c.l.b16 %v8411
        %v8473 = vunpack.c.l.b16 %v8412
        %v8474 = vunpack.c.l.b16 %v8413
        %v8475 = vunpack.c.l.b16 %v8414
        %v8476 = vunpack.c.l.b16 %v8415
        %v8477 = vunpack.c.l.b16 %v8416
        %v8478 = vunpack.c.l.b16 %v8417
        %v8479 = vunpack.c.l.b16 %v8418
        %v8480 = vpack.c.b16 %v8465, %v8464
        %v8481 = vpack.c.b16 %v8467, %v8466
        %v8482 = vpack.c.b16 %v8469, %v8468
        %v8483 = vpack.c.b16 %v8471, %v8470
        %v8484 = vpack.c.b16 %v8473, %v8472
        %v8485 = vpack.c.b16 %v8475, %v8474
        %v8486 = vpack.c.b16 %v8477, %v8476
        %v8487 = vpack.c.b16 %v8479, %v8478
        %8496 = vmatprep.subr.bf16.mxu0 0
        %8497 = vmatpush1.bf16.msra.mxu0 %v8480
        %8498 = vmatprep.subr.bf16.mxu0 0
        %8499 = vmatpush1.bf16.msra.mxu0 %v8481
        %8500 = vmatprep.subr.bf16.mxu0 0
        %8501 = vmatpush1.bf16.msra.mxu0 %v8482
        %8502 = vmatprep.subr.bf16.mxu0 0
        %8503 = vmatpush1.bf16.msra.mxu0 %v8483
        %8504 = vmatprep.subr.bf16.mxu0 0
        %8505 = vmatpush1.bf16.msra.mxu0 %v8484
        %8506 = vmatprep.subr.bf16.mxu0 0
        %8507 = vmatpush1.bf16.msra.mxu0 %v8485
        %8508 = vmatprep.subr.bf16.mxu0 0
        %8509 = vmatpush1.bf16.msra.mxu0 %v8486
        %8510 = vmatprep.subr.bf16.mxu0 0
        %8511 = vmatpush1.bf16.msra.mxu0 %v8487
        %8512 = vmatprep.subr.bf16.mxu0 0
        %8513 = vmatpush1.bf16.msra.mxu0 0
        %8514 = vmatprep.subr.bf16.mxu0 0
        %8515 = vmatpush1.bf16.msra.mxu0 0
        %8516 = vmatprep.subr.bf16.mxu0 0
        %8517 = vmatpush1.bf16.msra.mxu0 0
        %8518 = vmatprep.subr.bf16.mxu0 0
        %8519 = vmatpush1.bf16.msra.mxu0 0
        %8520 = vmatprep.subr.bf16.mxu0 0
        %8521 = vmatpush1.bf16.msra.mxu0 0
        %8522 = vmatprep.subr.bf16.mxu0 0
        %8523 = vmatpush1.bf16.msra.mxu0 0
        %8524 = vmatprep.subr.bf16.mxu0 0
        %8525 = vmatpush1.bf16.msra.mxu0 0
        %8526 = vmatprep.subr.bf16.mxu0 0
        %8527 = vmatpush1.bf16.msra.mxu0 0
        %8528 = vmatprep.mubr.bf16.mxu0 0
        %8529 = vmatmul.mubr.bf16.gmra.mrb[0].mxu0 %v8446
        %v8530 = vpop.f32.mrb[0].mxu0
        %v8531 = vadd.f32 0.0, %v8530
        %v8532 = vpop.f32.mrb[0].mxu0
        %v8533 = vpop.f32.mrb[0].mxu0
        %v8534 = vpop.f32.mrb[0].mxu0
        %8535 = vdwg.mxu0
        %v8536 = vpack.i.b16 %v8351, %v8346
        %v8537 = vpack.i.b16 %v8361, %v8356
        %v8538 = vpack.i.b16 %v8371, %v8366
        %v8539 = vpack.i.b16 %v8381, %v8376
        %v8540 = vcombine.low %v8536, %v8537
        %v8541 = vcombine.low %v8538, %v8539
        %v8543 = vunpack.c.l.s4 1966171168
        %v8544 = vunpack.c.0.s8 %v8543
        %v8545 = vlaneseq
        %v8546 = vshrl.u32 %v8545, 7
        %v8547 = vsub.s32 %v8544, %v8546
        %v8548 = vrot.slane %v8540, %v8547
        %v8550 = vunpack.c.l.s4 1966171168
        %v8551 = vunpack.c.0.s8 %v8550
        %v8552 = vlaneseq
        %v8553 = vshrl.u32 %v8552, 7
        %v8554 = vsub.s32 %v8551, %v8553
        %v8555 = vrot.slane %v8541, %v8554
        %v8556 = vcombine.low %v8548, %v8555
        %v8558 = vunpack.c.l.s4 1966171168
        %v8559 = vunpack.c.0.s8 %v8558
        %v8560 = vlaneseq
        %v8561 = vshrl.u32 %v8560, 7
        %v8562 = vsub.s32 %v8559, %v8561
        %v8563 = vrot.slane %v8556, %v8562
        %v8581 = vunpack.c.l.b16 %v8386
        %v8582 = vunpack.c.l.b16 %v8387
        %v8583 = vunpack.c.l.b16 %v8388
        %v8584 = vunpack.c.l.b16 %v8389
        %v8585 = vunpack.c.l.b16 %v8390
        %v8586 = vunpack.c.l.b16 %v8391
        %v8587 = vunpack.c.l.b16 %v8392
        %v8588 = vunpack.c.l.b16 %v8393
        %v8589 = vunpack.c.l.b16 %v8394
        %v8590 = vunpack.c.l.b16 %v8395
        %v8591 = vunpack.c.l.b16 %v8396
        %v8592 = vunpack.c.l.b16 %v8397
        %v8593 = vunpack.c.l.b16 %v8398
        %v8594 = vunpack.c.l.b16 %v8399
        %v8595 = vunpack.c.l.b16 %v8400
        %v8596 = vunpack.c.l.b16 %v8401
        %v8597 = vpack.c.b16 %v8582, %v8581
        %v8598 = vpack.c.b16 %v8584, %v8583
        %v8599 = vpack.c.b16 %v8586, %v8585
        %v8600 = vpack.c.b16 %v8588, %v8587
        %v8601 = vpack.c.b16 %v8590, %v8589
        %v8602 = vpack.c.b16 %v8592, %v8591
        %v8603 = vpack.c.b16 %v8594, %v8593
        %v8604 = vpack.c.b16 %v8596, %v8595
        %8613 = vmatprep.subr.bf16.mxu0 0
        %8614 = vmatpush1.bf16.msra.mxu0 %v8597
        %8615 = vmatprep.subr.bf16.mxu0 0
        %8616 = vmatpush1.bf16.msra.mxu0 %v8598
        %8617 = vmatprep.subr.bf16.mxu0 0
        %8618 = vmatpush1.bf16.msra.mxu0 %v8599
        %8619 = vmatprep.subr.bf16.mxu0 0
        %8620 = vmatpush1.bf16.msra.mxu0 %v8600
        %8621 = vmatprep.subr.bf16.mxu0 0
        %8622 = vmatpush1.bf16.msra.mxu0 %v8601
        %8623 = vmatprep.subr.bf16.mxu0 0
        %8624 = vmatpush1.bf16.msra.mxu0 %v8602
        %8625 = vmatprep.subr.bf16.mxu0 0
        %8626 = vmatpush1.bf16.msra.mxu0 %v8603
        %8627 = vmatprep.subr.bf16.mxu0 0
        %8628 = vmatpush1.bf16.msra.mxu0 %v8604
        %8629 = vmatprep.subr.bf16.mxu0 0
        %8630 = vmatpush1.bf16.msra.mxu0 0
        %8631 = vmatprep.subr.bf16.mxu0 0
        %8632 = vmatpush1.bf16.msra.mxu0 0
        %8633 = vmatprep.subr.bf16.mxu0 0
        %8634 = vmatpush1.bf16.msra.mxu0 0
        %8635 = vmatprep.subr.bf16.mxu0 0
        %8636 = vmatpush1.bf16.msra.mxu0 0
        %8637 = vmatprep.subr.bf16.mxu0 0
        %8638 = vmatpush1.bf16.msra.mxu0 0
        %8639 = vmatprep.subr.bf16.mxu0 0
        %8640 = vmatpush1.bf16.msra.mxu0 0
        %8641 = vmatprep.subr.bf16.mxu0 0
        %8642 = vmatpush1.bf16.msra.mxu0 0
        %8643 = vmatprep.subr.bf16.mxu0 0
        %8644 = vmatpush1.bf16.msra.mxu0 0
        %8645 = vmatprep.mubr.bf16.mxu0 0
        %8646 = vmatmul.mubr.bf16.gmra.mrb[0].mxu0 %v8563
        %v8647 = vpop.f32.mrb[0].mxu0
        %v8648 = vadd.f32 %v8531, %v8647
        %v8649 = vpop.f32.mrb[0].mxu0
        %v8650 = vpop.f32.mrb[0].mxu0
        %v8651 = vpop.f32.mrb[0].mxu0
        %8652 = vdwg.mxu0
        %s8653 = scalar_lea.vmem %s7, 128
        %v8654 = vld [vmem:[%s8653] sm:$0xf]
        %v8655 = vld [vmem:[%s8653 + $0x4] sm:$0xf]
        %v8656 = vld [vmem:[%s8653 + $0x8] sm:$0xf]
        %v8657 = vld [vmem:[%s8653 + $0xc] sm:$0xf]
        %v8658 = vld [vmem:[%s8653 + $0x10] sm:$0xf]
        %v8659 = vld [vmem:[%s8653 + $0x14] sm:$0xf]
        %v8660 = vld [vmem:[%s8653 + $0x18] sm:$0xf]
        %v8661 = vld [vmem:[%s8653 + $0x1c] sm:$0xf]
        %v8662 = vld [vmem:[%s8653 + $0x20] sm:$0xf]
        %v8663 = vld [vmem:[%s8653 + $0x24] sm:$0xf]
        %v8664 = vld [vmem:[%s8653 + $0x28] sm:$0xf]
        %v8665 = vld [vmem:[%s8653 + $0x2c] sm:$0xf]
        %v8666 = vld [vmem:[%s8653 + $0x30] sm:$0xf]
        %v8667 = vld [vmem:[%s8653 + $0x34] sm:$0xf]
        %v8668 = vld [vmem:[%s8653 + $0x38] sm:$0xf]
        %v8669 = vld [vmem:[%s8653 + $0x3c] sm:$0xf]
        %v8670 = vpack.i.b16 %v8353, %v8348
        %v8671 = vpack.i.b16 %v8363, %v8358
        %v8672 = vpack.i.b16 %v8373, %v8368
        %v8673 = vpack.i.b16 %v8383, %v8378
        %v8674 = vcombine.low %v8670, %v8671
        %v8675 = vcombine.low %v8672, %v8673
        %v8677 = vunpack.c.l.s4 1966171168
        %v8678 = vunpack.c.0.s8 %v8677
        %v8679 = vlaneseq
        %v8680 = vshrl.u32 %v8679, 7
        %v8681 = vsub.s32 %v8678, %v8680
        %v8682 = vrot.slane %v8674, %v8681
        %v8684 = vunpack.c.l.s4 1966171168
        %v8685 = vunpack.c.0.s8 %v8684
        %v8686 = vlaneseq
        %v8687 = vshrl.u32 %v8686, 7
        %v8688 = vsub.s32 %v8685, %v8687
        %v8689 = vrot.slane %v8675, %v8688
        %v8690 = vcombine.low %v8682, %v8689
        %v8692 = vunpack.c.l.s4 1966171168
        %v8693 = vunpack.c.0.s8 %v8692
        %v8694 = vlaneseq
        %v8695 = vshrl.u32 %v8694, 7
        %v8696 = vsub.s32 %v8693, %v8695
        %v8697 = vrot.slane %v8690, %v8696
        %v8715 = vunpack.c.l.b16 %v8654
        %v8716 = vunpack.c.l.b16 %v8655
        %v8717 = vunpack.c.l.b16 %v8656
        %v8718 = vunpack.c.l.b16 %v8657
        %v8719 = vunpack.c.l.b16 %v8658
        %v8720 = vunpack.c.l.b16 %v8659
        %v8721 = vunpack.c.l.b16 %v8660
        %v8722 = vunpack.c.l.b16 %v8661
        %v8723 = vunpack.c.l.b16 %v8662
        %v8724 = vunpack.c.l.b16 %v8663
        %v8725 = vunpack.c.l.b16 %v8664
        %v8726 = vunpack.c.l.b16 %v8665
        %v8727 = vunpack.c.l.b16 %v8666
        %v8728 = vunpack.c.l.b16 %v8667
        %v8729 = vunpack.c.l.b16 %v8668
        %v8730 = vunpack.c.l.b16 %v8669
        %v8731 = vpack.c.b16 %v8716, %v8715
        %v8732 = vpack.c.b16 %v8718, %v8717
        %v8733 = vpack.c.b16 %v8720, %v8719
        %v8734 = vpack.c.b16 %v8722, %v8721
        %v8735 = vpack.c.b16 %v8724, %v8723
        %v8736 = vpack.c.b16 %v8726, %v8725
        %v8737 = vpack.c.b16 %v8728, %v8727
        %v8738 = vpack.c.b16 %v8730, %v8729
        %8747 = vmatprep.subr.bf16.mxu0 0
        %8748 = vmatpush1.bf16.msra.mxu0 %v8731
        %8749 = vmatprep.subr.bf16.mxu0 0
        %8750 = vmatpush1.bf16.msra.mxu0 %v8732
        %8751 = vmatprep.subr.bf16.mxu0 0
        %8752 = vmatpush1.bf16.msra.mxu0 %v8733
        %8753 = vmatprep.subr.bf16.mxu0 0
        %8754 = vmatpush1.bf16.msra.mxu0 %v8734
        %8755 = vmatprep.subr.bf16.mxu0 0
        %8756 = vmatpush1.bf16.msra.mxu0 %v8735
        %8757 = vmatprep.subr.bf16.mxu0 0
        %8758 = vmatpush1.bf16.msra.mxu0 %v8736
        %8759 = vmatprep.subr.bf16.mxu0 0
        %8760 = vmatpush1.bf16.msra.mxu0 %v8737
        %8761 = vmatprep.subr.bf16.mxu0 0
        %8762 = vmatpush1.bf16.msra.mxu0 %v8738
        %8763 = vmatprep.subr.bf16.mxu0 0
        %8764 = vmatpush1.bf16.msra.mxu0 0
        %8765 = vmatprep.subr.bf16.mxu0 0
        %8766 = vmatpush1.bf16.msra.mxu0 0
        %8767 = vmatprep.subr.bf16.mxu0 0
        %8768 = vmatpush1.bf16.msra.mxu0 0
        %8769 = vmatprep.subr.bf16.mxu0 0
        %8770 = vmatpush1.bf16.msra.mxu0 0
        %8771 = vmatprep.subr.bf16.mxu0 0
        %8772 = vmatpush1.bf16.msra.mxu0 0
        %8773 = vmatprep.subr.bf16.mxu0 0
        %8774 = vmatpush1.bf16.msra.mxu0 0
        %8775 = vmatprep.subr.bf16.mxu0 0
        %8776 = vmatpush1.bf16.msra.mxu0 0
        %8777 = vmatprep.subr.bf16.mxu0 0
        %8778 = vmatpush1.bf16.msra.mxu0 0
        %8779 = vmatprep.mubr.bf16.mxu0 0
        %8780 = vmatmul.mubr.bf16.gmra.mrb[0].mxu0 %v8697
        %v8781 = vpop.f32.mrb[0].mxu0
        %v8782 = vadd.f32 0.0, %v8781
        %v8783 = vpop.f32.mrb[0].mxu0
        %v8784 = vpop.f32.mrb[0].mxu0
        %v8785 = vpop.f32.mrb[0].mxu0
        %8786 = vdwg.mxu0
        %v8787 = vadd.f32 %v8648, %v8782
        %s8788 = scalar_lea.vmem %s7, 192
        %v8789 = vld [vmem:[%s8788] sm:$0xf]
        %v8790 = vld [vmem:[%s8788 + $0x4] sm:$0xf]
        %v8791 = vld [vmem:[%s8788 + $0x8] sm:$0xf]
        %v8792 = vld [vmem:[%s8788 + $0xc] sm:$0xf]
        %v8793 = vld [vmem:[%s8788 + $0x10] sm:$0xf]
        %v8794 = vld [vmem:[%s8788 + $0x14] sm:$0xf]
        %v8795 = vld [vmem:[%s8788 + $0x18] sm:$0xf]
        %v8796 = vld [vmem:[%s8788 + $0x1c] sm:$0xf]
        %v8797 = vld [vmem:[%s8788 + $0x20] sm:$0xf]
        %v8798 = vld [vmem:[%s8788 + $0x24] sm:$0xf]
        %v8799 = vld [vmem:[%s8788 + $0x28] sm:$0xf]
        %v8800 = vld [vmem:[%s8788 + $0x2c] sm:$0xf]
        %v8801 = vld [vmem:[%s8788 + $0x30] sm:$0xf]
        %v8802 = vld [vmem:[%s8788 + $0x34] sm:$0xf]
        %v8803 = vld [vmem:[%s8788 + $0x38] sm:$0xf]
        %v8804 = vld [vmem:[%s8788 + $0x3c] sm:$0xf]
        %v8805 = vpack.i.b16 %v8354, %v8349
        %v8806 = vpack.i.b16 %v8364, %v8359
        %v8807 = vpack.i.b16 %v8374, %v8369
        %v8808 = vpack.i.b16 %v8384, %v8379
        %v8809 = vcombine.low %v8805, %v8806
        %v8810 = vcombine.low %v8807, %v8808
        %v8812 = vunpack.c.l.s4 1966171168
        %v8813 = vunpack.c.0.s8 %v8812
        %v8814 = vlaneseq
        %v8815 = vshrl.u32 %v8814, 7
        %v8816 = vsub.s32 %v8813, %v8815
        %v8817 = vrot.slane %v8809, %v8816
        %v8819 = vunpack.c.l.s4 1966171168
        %v8820 = vunpack.c.0.s8 %v8819
        %v8821 = vlaneseq
        %v8822 = vshrl.u32 %v8821, 7
        %v8823 = vsub.s32 %v8820, %v8822
        %v8824 = vrot.slane %v8810, %v8823
        %v8825 = vcombine.low %v8817, %v8824
        %v8827 = vunpack.c.l.s4 1966171168
        %v8828 = vunpack.c.0.s8 %v8827
        %v8829 = vlaneseq
        %v8830 = vshrl.u32 %v8829, 7
        %v8831 = vsub.s32 %v8828, %v8830
        %v8832 = vrot.slane %v8825, %v8831
        %v8850 = vunpack.c.l.b16 %v8789
        %v8851 = vunpack.c.l.b16 %v8790
        %v8852 = vunpack.c.l.b16 %v8791
        %v8853 = vunpack.c.l.b16 %v8792
        %v8854 = vunpack.c.l.b16 %v8793
        %v8855 = vunpack.c.l.b16 %v8794
        %v8856 = vunpack.c.l.b16 %v8795
        %v8857 = vunpack.c.l.b16 %v8796
        %v8858 = vunpack.c.l.b16 %v8797
        %v8859 = vunpack.c.l.b16 %v8798
        %v8860 = vunpack.c.l.b16 %v8799
        %v8861 = vunpack.c.l.b16 %v8800
        %v8862 = vunpack.c.l.b16 %v8801
        %v8863 = vunpack.c.l.b16 %v8802
        %v8864 = vunpack.c.l.b16 %v8803
        %v8865 = vunpack.c.l.b16 %v8804
        %v8866 = vpack.c.b16 %v8851, %v8850
        %v8867 = vpack.c.b16 %v8853, %v8852
        %v8868 = vpack.c.b16 %v8855, %v8854
        %v8869 = vpack.c.b16 %v8857, %v8856
        %v8870 = vpack.c.b16 %v8859, %v8858
        %v8871 = vpack.c.b16 %v8861, %v8860
        %v8872 = vpack.c.b16 %v8863, %v8862
        %v8873 = vpack.c.b16 %v8865, %v8864
        %8882 = vmatprep.subr.bf16.mxu0 0
        %8883 = vmatpush1.bf16.msra.mxu0 %v8866
        %8884 = vmatprep.subr.bf16.mxu0 0
        %8885 = vmatpush1.bf16.msra.mxu0 %v8867
        %8886 = vmatprep.subr.bf16.mxu0 0
        %8887 = vmatpush1.bf16.msra.mxu0 %v8868
        %8888 = vmatprep.subr.bf16.mxu0 0
        %8889 = vmatpush1.bf16.msra.mxu0 %v8869
        %8890 = vmatprep.subr.bf16.mxu0 0
        %8891 = vmatpush1.bf16.msra.mxu0 %v8870
        %8892 = vmatprep.subr.bf16.mxu0 0
        %8893 = vmatpush1.bf16.msra.mxu0 %v8871
        %8894 = vmatprep.subr.bf16.mxu0 0
        %8895 = vmatpush1.bf16.msra.mxu0 %v8872
        %8896 = vmatprep.subr.bf16.mxu0 0
        %8897 = vmatpush1.bf16.msra.mxu0 %v8873
        %8898 = vmatprep.subr.bf16.mxu0 0
        %8899 = vmatpush1.bf16.msra.mxu0 0
        %8900 = vmatprep.subr.bf16.mxu0 0
        %8901 = vmatpush1.bf16.msra.mxu0 0
        %8902 = vmatprep.subr.bf16.mxu0 0
        %8903 = vmatpush1.bf16.msra.mxu0 0
        %8904 = vmatprep.subr.bf16.mxu0 0
        %8905 = vmatpush1.bf16.msra.mxu0 0
        %8906 = vmatprep.subr.bf16.mxu0 0
        %8907 = vmatpush1.bf16.msra.mxu0 0
        %8908 = vmatprep.subr.bf16.mxu0 0
        %8909 = vmatpush1.bf16.msra.mxu0 0
        %8910 = vmatprep.subr.bf16.mxu0 0
        %8911 = vmatpush1.bf16.msra.mxu0 0
        %8912 = vmatprep.subr.bf16.mxu0 0
        %8913 = vmatpush1.bf16.msra.mxu0 0
        %8914 = vmatprep.mubr.bf16.mxu0 0
        %8915 = vmatmul.mubr.bf16.gmra.mrb[0].mxu0 %v8832
        %v8916 = vpop.f32.mrb[0].mxu0
        %v8917 = vadd.f32 0.0, %v8916
        %v8918 = vpop.f32.mrb[0].mxu0
        %v8919 = vpop.f32.mrb[0].mxu0
        %v8920 = vpop.f32.mrb[0].mxu0
        %8921 = vdwg.mxu0
        %v8922 = vadd.f32 %v8787, %v8917
        %s8923 = scalar_lea.vmem %s7, 256
        %v8924 = vld [vmem:[%s8923] sm:$0xf]
        %v8925 = vld [vmem:[%s8923 + $0x4] sm:$0xf]
        %v8926 = vld [vmem:[%s8923 + $0x8] sm:$0xf]
        %v8927 = vld [vmem:[%s8923 + $0xc] sm:$0xf]
        %v8928 = vld [vmem:[%s8923 + $0x10] sm:$0xf]
        %v8929 = vld [vmem:[%s8923 + $0x14] sm:$0xf]
        %v8930 = vld [vmem:[%s8923 + $0x18] sm:$0xf]
        %v8931 = vld [vmem:[%s8923 + $0x1c] sm:$0xf]
        %v8932 = vld [vmem:[%s8923 + $0x20] sm:$0xf]
        %v8933 = vld [vmem:[%s8923 + $0x24] sm:$0xf]
        %v8934 = vld [vmem:[%s8923 + $0x28] sm:$0xf]
        %v8935 = vld [vmem:[%s8923 + $0x2c] sm:$0xf]
        %v8936 = vld [vmem:[%s8923 + $0x30] sm:$0xf]
        %v8937 = vld [vmem:[%s8923 + $0x34] sm:$0xf]
        %v8938 = vld [vmem:[%s8923 + $0x38] sm:$0xf]
        %v8939 = vld [vmem:[%s8923 + $0x3c] sm:$0xf]
        %v8940 = vpack.i.b16 %v8355, %v8350
        %v8941 = vpack.i.b16 %v8365, %v8360
        %v8942 = vpack.i.b16 %v8375, %v8370
        %v8943 = vpack.i.b16 %v8385, %v8380
        %v8944 = vcombine.low %v8940, %v8941
        %v8945 = vcombine.low %v8942, %v8943
        %v8947 = vunpack.c.l.s4 1966171168
        %v8948 = vunpack.c.0.s8 %v8947
        %v8949 = vlaneseq
        %v8950 = vshrl.u32 %v8949, 7
        %v8951 = vsub.s32 %v8948, %v8950
        %v8952 = vrot.slane %v8944, %v8951
        %v8954 = vunpack.c.l.s4 1966171168
        %v8955 = vunpack.c.0.s8 %v8954
        %v8956 = vlaneseq
        %v8957 = vshrl.u32 %v8956, 7
        %v8958 = vsub.s32 %v8955, %v8957
        %v8959 = vrot.slane %v8945, %v8958
        %v8960 = vcombine.low %v8952, %v8959
        %v8962 = vunpack.c.l.s4 1966171168
        %v8963 = vunpack.c.0.s8 %v8962
        %v8964 = vlaneseq
        %v8965 = vshrl.u32 %v8964, 7
        %v8966 = vsub.s32 %v8963, %v8965
        %v8967 = vrot.slane %v8960, %v8966
        %v8985 = vunpack.c.l.b16 %v8924
        %v8986 = vunpack.c.l.b16 %v8925
        %v8987 = vunpack.c.l.b16 %v8926
        %v8988 = vunpack.c.l.b16 %v8927
        %v8989 = vunpack.c.l.b16 %v8928
        %v8990 = vunpack.c.l.b16 %v8929
        %v8991 = vunpack.c.l.b16 %v8930
        %v8992 = vunpack.c.l.b16 %v8931
        %v8993 = vunpack.c.l.b16 %v8932
        %v8994 = vunpack.c.l.b16 %v8933
        %v8995 = vunpack.c.l.b16 %v8934
        %v8996 = vunpack.c.l.b16 %v8935
        %v8997 = vunpack.c.l.b16 %v8936
        %v8998 = vunpack.c.l.b16 %v8937
        %v8999 = vunpack.c.l.b16 %v8938
        %v9000 = vunpack.c.l.b16 %v8939
        %v9001 = vpack.c.b16 %v8986, %v8985
        %v9002 = vpack.c.b16 %v8988, %v8987
        %v9003 = vpack.c.b16 %v8990, %v8989
        %v9004 = vpack.c.b16 %v8992, %v8991
        %v9005 = vpack.c.b16 %v8994, %v8993
        %v9006 = vpack.c.b16 %v8996, %v8995
        %v9007 = vpack.c.b16 %v8998, %v8997
        %v9008 = vpack.c.b16 %v9000, %v8999
        %9017 = vmatprep.subr.bf16.mxu0 0
        %9018 = vmatpush1.bf16.msra.mxu0 %v9001
        %9019 = vmatprep.subr.bf16.mxu0 0
        %9020 = vmatpush1.bf16.msra.mxu0 %v9002
        %9021 = vmatprep.subr.bf16.mxu0 0
        %9022 = vmatpush1.bf16.msra.mxu0 %v9003
        %9023 = vmatprep.subr.bf16.mxu0 0
        %9024 = vmatpush1.bf16.msra.mxu0 %v9004
        %9025 = vmatprep.subr.bf16.mxu0 0
        %9026 = vmatpush1.bf16.msra.mxu0 %v9005
        %9027 = vmatprep.subr.bf16.mxu0 0
        %9028 = vmatpush1.bf16.msra.mxu0 %v9006
        %9029 = vmatprep.subr.bf16.mxu0 0
        %9030 = vmatpush1.bf16.msra.mxu0 %v9007
        %9031 = vmatprep.subr.bf16.mxu0 0
        %9032 = vmatpush1.bf16.msra.mxu0 %v9008
        %9033 = vmatprep.subr.bf16.mxu0 0
        %9034 = vmatpush1.bf16.msra.mxu0 0
        %9035 = vmatprep.subr.bf16.mxu0 0
        %9036 = vmatpush1.bf16.msra.mxu0 0
        %9037 = vmatprep.subr.bf16.mxu0 0
        %9038 = vmatpush1.bf16.msra.mxu0 0
        %9039 = vmatprep.subr.bf16.mxu0 0
        %9040 = vmatpush1.bf16.msra.mxu0 0
        %9041 = vmatprep.subr.bf16.mxu0 0
        %9042 = vmatpush1.bf16.msra.mxu0 0
        %9043 = vmatprep.subr.bf16.mxu0 0
        %9044 = vmatpush1.bf16.msra.mxu0 0
        %9045 = vmatprep.subr.bf16.mxu0 0
        %9046 = vmatpush1.bf16.msra.mxu0 0
        %9047 = vmatprep.subr.bf16.mxu0 0
        %9048 = vmatpush1.bf16.msra.mxu0 0
        %9049 = vmatprep.mubr.bf16.mxu0 0
        %9050 = vmatmul.mubr.bf16.gmra.mrb[0].mxu0 %v8967
        %v9051 = vpop.f32.mrb[0].mxu0
        %v9052 = vadd.f32 0.0, %v9051
        %v9053 = vpop.f32.mrb[0].mxu0
        %v9054 = vpop.f32.mrb[0].mxu0
        %v9055 = vpop.f32.mrb[0].mxu0
        %9056 = vdwg.mxu0
        %v9057 = vadd.f32 %v8922, %v9052
        %v9058 = vld [vmem:[%s8] sm:$0x1]
        %v9060 = vlaneseq
        %v9061 = vshrl.u32 %v9060, 7
        %v9062 = vsub.s32 0, %v9061
        %v9063 = vrot.slane %v9058, %v9062
        %v9065 = vadd.f32 %v9057, %v9063
        %v9066 = vmax.f32 %v9065, 0.0
        %v9067 = vpack.c.bf16 %v9066, %v9066
        %v9068 = vld [vmem:[%s9] sm:$0xf]
        %v9069 = vld [vmem:[%s9 + $0x4] sm:$0xf]
        %v9070 = vld [vmem:[%s9 + $0x8] sm:$0xf]
        %v9071 = vld [vmem:[%s9 + $0xc] sm:$0xf]
        %v9072 = vld [vmem:[%s9 + $0x10] sm:$0xf]
        %v9073 = vld [vmem:[%s9 + $0x14] sm:$0xf]
        %v9074 = vld [vmem:[%s9 + $0x18] sm:$0xf]
        %v9075 = vld [vmem:[%s9 + $0x1c] sm:$0xf]
        %v9076 = vld [vmem:[%s9 + $0x20] sm:$0xf]
        %v9077 = vld [vmem:[%s9 + $0x24] sm:$0xf]
        %v9078 = vld [vmem:[%s9 + $0x28] sm:$0xf]
        %v9079 = vld [vmem:[%s9 + $0x2c] sm:$0xf]
        %v9080 = vld [vmem:[%s9 + $0x30] sm:$0xf]
        %v9081 = vld [vmem:[%s9 + $0x34] sm:$0xf]
        %v9082 = vld [vmem:[%s9 + $0x38] sm:$0xf]
        %v9083 = vld [vmem:[%s10] sm:$0x1]
        %v9085 = vlaneseq
        %v9086 = vshrl.u32 %v9085, 7
        %v9087 = vsub.s32 0, %v9086
        %v9088 = vrot.slane %v9083, %v9087
        %v9105 = vunpack.c.l.b16 %v9068
        %v9106 = vunpack.c.l.b16 %v9069
        %v9107 = vunpack.c.l.b16 %v9070
        %v9108 = vunpack.c.l.b16 %v9071
        %v9109 = vunpack.c.l.b16 %v9072
        %v9110 = vunpack.c.l.b16 %v9073
        %v9111 = vunpack.c.l.b16 %v9074
        %v9112 = vunpack.c.l.b16 %v9075
        %v9113 = vunpack.c.l.b16 %v9076
        %v9114 = vunpack.c.l.b16 %v9077
        %v9115 = vunpack.c.l.b16 %v9078
        %v9116 = vunpack.c.l.b16 %v9079
        %v9117 = vunpack.c.l.b16 %v9080
        %v9118 = vunpack.c.l.b16 %v9081
        %v9119 = vunpack.c.l.b16 %v9082
        %v9120 = vpack.c.b16 %v9106, %v9105
        %v9121 = vpack.c.b16 %v9108, %v9107
        %v9122 = vpack.c.b16 %v9110, %v9109
        %v9123 = vpack.c.b16 %v9112, %v9111
        %v9124 = vpack.c.b16 %v9114, %v9113
        %v9125 = vpack.c.b16 %v9116, %v9115
        %v9126 = vpack.c.b16 %v9118, %v9117
        %v9127 = vpack.c.b16 %v9119, %v9119
        %vm9135 = vcmask 982016
        %v9137 = vsel %vm9135, %v9067, 0
        %v9140 = vsel %vm3651, %v9127, 0
        %9142 = vmatprep.subr.bf16.mxu0 0
        %9143 = vmatpush1.bf16.msra.mxu0 %v9120
        %9144 = vmatprep.subr.bf16.mxu0 0
        %9145 = vmatpush1.bf16.msra.mxu0 %v9121
        %9146 = vmatprep.subr.bf16.mxu0 0
        %9147 = vmatpush1.bf16.msra.mxu0 %v9122
        %9148 = vmatprep.subr.bf16.mxu0 0
        %9149 = vmatpush1.bf16.msra.mxu0 %v9123
        %9150 = vmatprep.subr.bf16.mxu0 0
        %9151 = vmatpush1.bf16.msra.mxu0 %v9124
        %9152 = vmatprep.subr.bf16.mxu0 0
        %9153 = vmatpush1.bf16.msra.mxu0 %v9125
        %9154 = vmatprep.subr.bf16.mxu0 0
        %9155 = vmatpush1.bf16.msra.mxu0 %v9126
        %9156 = vmatprep.subr.bf16.mxu0 0
        %9157 = vmatpush1.bf16.msra.mxu0 %v9140
        %9158 = vmatprep.subr.bf16.mxu0 0
        %9159 = vmatpush1.bf16.msra.mxu0 0
        %9160 = vmatprep.subr.bf16.mxu0 0
        %9161 = vmatpush1.bf16.msra.mxu0 0
        %9162 = vmatprep.subr.bf16.mxu0 0
        %9163 = vmatpush1.bf16.msra.mxu0 0
        %9164 = vmatprep.subr.bf16.mxu0 0
        %9165 = vmatpush1.bf16.msra.mxu0 0
        %9166 = vmatprep.subr.bf16.mxu0 0
        %9167 = vmatpush1.bf16.msra.mxu0 0
        %9168 = vmatprep.subr.bf16.mxu0 0
        %9169 = vmatpush1.bf16.msra.mxu0 0
        %9170 = vmatprep.subr.bf16.mxu0 0
        %9171 = vmatpush1.bf16.msra.mxu0 0
        %9172 = vmatprep.subr.bf16.mxu0 0
        %9173 = vmatpush1.bf16.msra.mxu0 0
        %9174 = vmatprep.mubr.bf16.mxu0 0
        %9175 = vmatmul.mubr.bf16.gmra.mrb[0].mxu0 %v9137
        %v9176 = vpop.f32.mrb[0].mxu0
        %v9177 = vadd.f32 %v9088, %v9176
        %v9178 = vpop.f32.mrb[0].mxu0
        %v9179 = vpop.f32.mrb[0].mxu0
        %v9180 = vpop.f32.mrb[0].mxu0
        %9181 = vdwg.mxu0
        %v9182 = vmax.f32 %v9177, 0.0
        %v9183 = vpack.c.bf16 %v9182, %v9182
        %v9184 = vld [vmem:[%s11] sm:$0xf]
        %v9185 = vld [vmem:[%s11 + $0x4] sm:$0xf]
        %v9186 = vld [vmem:[%s11 + $0x8] sm:$0xf]
        %v9187 = vld [vmem:[%s11 + $0xc] sm:$0xf]
        %v9188 = vld [vmem:[%s11 + $0x10] sm:$0xf]
        %v9189 = vld [vmem:[%s11 + $0x14] sm:$0xf]
        %v9190 = vld [vmem:[%s11 + $0x18] sm:$0xf]
        %v9191 = vld [vmem:[%s11 + $0x1c] sm:$0xf]
        %v9192 = vld [vmem:[%s11 + $0x20] sm:$0xf]
        %v9193 = vld [vmem:[%s11 + $0x24] sm:$0xf]
        %v9194 = vld [vmem:[%s11 + $0x28] sm:$0x3]
        %v9195 = vld [vmem:[%s12] sm:$0x1]
        %v9197 = vlaneseq
        %v9198 = vshrl.u32 %v9197, 7
        %v9199 = vsub.s32 0, %v9198
        %v9200 = vrot.slane %v9195, %v9199
        %v9213 = vunpack.c.l.b16 %v9184
        %v9214 = vunpack.c.l.b16 %v9185
        %v9215 = vunpack.c.l.b16 %v9186
        %v9216 = vunpack.c.l.b16 %v9187
        %v9217 = vunpack.c.l.b16 %v9188
        %v9218 = vunpack.c.l.b16 %v9189
        %v9219 = vunpack.c.l.b16 %v9190
        %v9220 = vunpack.c.l.b16 %v9191
        %v9221 = vunpack.c.l.b16 %v9192
        %v9222 = vunpack.c.l.b16 %v9193
        %v9223 = vunpack.c.l.b16 %v9194
        %v9224 = vpack.c.b16 %v9214, %v9213
        %v9225 = vpack.c.b16 %v9216, %v9215
        %v9226 = vpack.c.b16 %v9218, %v9217
        %v9227 = vpack.c.b16 %v9220, %v9219
        %v9228 = vpack.c.b16 %v9222, %v9221
        %v9229 = vpack.c.b16 %v9223, %v9223
        %vm9235 = vcmask 687104
        %v9237 = vsel %vm9235, %v9183, 0
        %vm9239 = vcmask 1041408
        %v9241 = vsel %vm9239, %v9229, 0
        %9243 = vmatprep.subr.bf16.mxu0 0
        %9244 = vmatpush1.bf16.msra.mxu0 %v9224
        %9245 = vmatprep.subr.bf16.mxu0 0
        %9246 = vmatpush1.bf16.msra.mxu0 %v9225
        %9247 = vmatprep.subr.bf16.mxu0 0
        %9248 = vmatpush1.bf16.msra.mxu0 %v9226
        %9249 = vmatprep.subr.bf16.mxu0 0
        %9250 = vmatpush1.bf16.msra.mxu0 %v9227
        %9251 = vmatprep.subr.bf16.mxu0 0
        %9252 = vmatpush1.bf16.msra.mxu0 %v9228
        %9253 = vmatprep.subr.bf16.mxu0 0
        %9254 = vmatpush1.bf16.msra.mxu0 %v9241
        %9255 = vmatprep.subr.bf16.mxu0 0
        %9256 = vmatpush1.bf16.msra.mxu0 0
        %9257 = vmatprep.subr.bf16.mxu0 0
        %9258 = vmatpush1.bf16.msra.mxu0 0
        %9259 = vmatprep.subr.bf16.mxu0 0
        %9260 = vmatpush1.bf16.msra.mxu0 0
        %9261 = vmatprep.subr.bf16.mxu0 0
        %9262 = vmatpush1.bf16.msra.mxu0 0
        %9263 = vmatprep.subr.bf16.mxu0 0
        %9264 = vmatpush1.bf16.msra.mxu0 0
        %9265 = vmatprep.subr.bf16.mxu0 0
        %9266 = vmatpush1.bf16.msra.mxu0 0
        %9267 = vmatprep.subr.bf16.mxu0 0
        %9268 = vmatpush1.bf16.msra.mxu0 0
        %9269 = vmatprep.subr.bf16.mxu0 0
        %9270 = vmatpush1.bf16.msra.mxu0 0
        %9271 = vmatprep.subr.bf16.mxu0 0
        %9272 = vmatpush1.bf16.msra.mxu0 0
        %9273 = vmatprep.subr.bf16.mxu0 0
        %9274 = vmatpush1.bf16.msra.mxu0 0
        %9275 = vmatprep.mubr.bf16.mxu0 0
        %9276 = vmatmul.mubr.bf16.gmra.mrb[0].mxu0 %v9237
        %v9277 = vpop.f32.mrb[0].mxu0
        %v9278 = vadd.f32 %v9200, %v9277
        %v9279 = vpop.f32.mrb[0].mxu0
        %v9280 = vpop.f32.mrb[0].mxu0
        %v9281 = vpop.f32.mrb[0].mxu0
        %9282 = vdwg.mxu0
        %9283 = vst [vmem:[%s436] sm:$0xff] %v9278
        %s9284 = sand.u32 %s313, 1
        %s9285 = scalar_lea.sflag [#allocation4], %s9284
        %s9286 = sand.u32 %s313, 1
        %s9287 = smul.addr %s9286, 8
        %s9288 = scalar_lea.vmem [#allocation3], %s9287
        // Predicated region
        $region73: #{forward.1} parent=71 // pred_check
          %p9289 = pneg %p323
        $region74: #{forward.1} parent=71 // pred_check_branch
          %9291 = sbr.rel (%p9289) target = $region76
        $region75: #{forward.1} parent=71 // pred_region
          %s9293 = ssub.s32 128, 128
          %9294 = vsyncadd %s9285, %s9293
          %s9295 = smul.addr %s27, 128
          %s9296 = scalar_lea.hbm %s13, %s9295
          %s9298 = sshll.u32 %s9288, 4
          %s9299 = int_to_ptr.vmem [resolvable:$true] %s9298
          %9301 = dma.vmem_to_hbm [thread:$0]  %s9299, 128, %s9296, %s9285
        $region76: #{forward.1} parent=71 // pred_fallthru
          _
      $region72: #{forward.1} parent=5 // pred_fallthru
        _
      %p9302 = scmp.le.s32.totalorder 2, %s22
      // Predicated region
      $region77: #{forward.1} parent=5 // pred_check
        %p9303 = pneg %p9302
      $region78: #{forward.1} parent=5 // pred_check_branch
        %9305 = sbr.rel (%p9303) target = $region80
      $region79: #{forward.1} parent=5 // pred_region
        %s9306 = ssub.s32 %s22, 2
        // Predicated region
        $region81: #{forward.1} parent=79 // pred_check
          %p9307 = pneg %p329
        $region82: #{forward.1} parent=79 // pred_check_branch
          %9309 = sbr.rel (%p9307) target = $region84
        $region83: #{forward.1} parent=79 // pred_region
          %s9310 = sand.u32 %s314, 1
          %s9311 = scalar_lea.sflag [#allocation4], %s9310
          %s9312 = sand.u32 %s314, 1
          %s9313 = smul.addr %s9312, 8
          %s9314 = scalar_lea.vmem [#allocation3], %s9313
          %9315 = dma.done %s9311, 128
        $region84: #{forward.1} parent=79 // pred_fallthru
          _
      $region80: #{forward.1} parent=5 // pred_fallthru
        _
    $region6: #{forward.1} parent=1 // loop_footer
      %s26 = sadd.s32 1, %s22
    $region7: #{forward.1} parent=1 // loop_footer_branch
      %21 = sbr.rel target = $region3
    $region8: #{forward.1} parent=1 // loop_exit
      _
    %9316 = vsyncpa [#allocation4], 1
    %s9317 = scalar_lea.sflag [#allocation4], 1
    %9318 = vsyncpa %s9317, 1

</llo_original>
